<compile_context>
chip_gen: v7x
topology: tpu7x:2x2x1
jax: 0.10.0
libtpu: 0.0.40
codegen_flags: <defaults>
</compile_context>

<pallas_src>
import functools

import jax
import jax.numpy as jnp
from jax.experimental import pallas as pl
from jax.experimental.pallas import tpu as pltpu

BN_EPS = 1e-5
TILE_M = 256


def _round_up(n, m):
    return -(-n // m) * m


# ----------------------------------------------------------------------------
# Pallas kernels
# ----------------------------------------------------------------------------
def _gemm_bias_kernel(x_ref, w_ref, b_ref, o_ref, *, relu):
    y = jnp.dot(x_ref[...], w_ref[...], preferred_element_type=jnp.float32)
    y = y + b_ref[...]
    if relu:
        y = jnp.maximum(y, 0.0)
    o_ref[...] = y.astype(o_ref.dtype)


def _gemm_scale_bias_kernel(x_ref, w_ref, s_ref, b_ref, o_ref, *, relu):
    y = jnp.dot(x_ref[...], w_ref[...], preferred_element_type=jnp.float32)
    y = y * s_ref[...] + b_ref[...]
    if relu:
        y = jnp.maximum(y, 0.0)
    o_ref[...] = y.astype(o_ref.dtype)


def _encoder_head_kernel(h_ref, w1_ref, s1_ref, b1_ref, w2_ref, b2_ref, o_ref):
    # h1 = relu((h @ w1) * s1 + b1)   (fc 256->512 with folded BatchNorm1d)
    # o  = h1 @ [w_mu | w_logvar] + [b_mu | b_logvar]
    h1 = jnp.dot(h_ref[...], w1_ref[...], preferred_element_type=jnp.float32)
    h1 = jnp.maximum(h1 * s1_ref[...] + b1_ref[...], 0.0)
    o = jnp.dot(h1.astype(jnp.bfloat16), w2_ref[...],
                preferred_element_type=jnp.float32)
    o_ref[...] = o + b2_ref[...]


def _reparam_fc_kernel(mu_ref, lv_ref, eps_ref, w_ref, b_ref, o_ref):
    # z = mu + eps * exp(0.5*log_var);  o = z @ w + b   (decoder fc, fused)
    z = mu_ref[...] + eps_ref[...] * jnp.exp(0.5 * lv_ref[...])
    o = jnp.dot(z.astype(jnp.bfloat16), w_ref[...],
                preferred_element_type=jnp.float32) + b_ref[...]
    o_ref[...] = o.astype(o_ref.dtype)


# ----------------------------------------------------------------------------
# Pallas wrappers
# ----------------------------------------------------------------------------
def _compiler_params(block_bytes, parallel=True):
    sem = ("parallel",) if parallel else ("arbitrary",)
    limit = int(min(max(2 * block_bytes, 8 << 20), 32 << 20))
    return pltpu.CompilerParams(dimension_semantics=sem, vmem_limit_bytes=limit)


def gemm(x, layer, n_out, relu, out_dtype=jnp.bfloat16):
    """x:(M,Kp) @ layer['w']:(Kp,Np), fused (scale,)bias(,ReLU); M tiled on grid."""
    M, K = x.shape
    Kp, Np = layer["w"].shape
    assert K == Kp, (K, Kp)
    tm = min(TILE_M, _round_up(M, 8))
    Mp = _round_up(M, tm)
    xp = x.astype(jnp.bfloat16)
    if Mp > M:
        xp = jnp.pad(xp, ((0, Mp - M), (0, 0)))

    has_scale = "s" in layer
    kern = _gemm_scale_bias_kernel if has_scale else _gemm_bias_kernel
    in_specs = [pl.BlockSpec((tm, Kp), lambda i: (i, 0)),
                pl.BlockSpec((Kp, Np), lambda i: (0, 0))]
    args = [xp, layer["w"]]
    if has_scale:
        in_specs.append(pl.BlockSpec((1, Np), lambda i: (0, 0)))
        args.append(layer["s"])
    in_specs.append(pl.BlockSpec((1, Np), lambda i: (0, 0)))
    args.append(layer["b"])

    blk_bytes = 2 * tm * Kp + 2 * Kp * Np + 4 * tm * Np + 16 * Np
    out = pl.pallas_call(
        functools.partial(kern, relu=relu),
        out_shape=jax.ShapeDtypeStruct((Mp, Np), out_dtype),
        grid=(Mp // tm,),
        in_specs=in_specs,
        out_specs=pl.BlockSpec((tm, Np), lambda i: (i, 0)),
        compiler_params=_compiler_params(blk_bytes),
    )(*args)
    return out[:M, :n_out]


def encoder_head(h, layer, z_dim):
    """Fused fc(256->512)+BN+ReLU and the concatenated mu/log_var projections."""
    B, K = h.shape
    K1, N1 = layer["w1"].shape
    _, N2 = layer["w2"].shape
    Bp = _round_up(B, 8)
    hp = jnp.pad(h.astype(jnp.bfloat16), ((0, Bp - B), (0, K1 - K)))
    blk_bytes = 2 * (Bp * K1 + K1 * N1 + N1 * N2) + 4 * Bp * N2 + 16 * (N1 + N2)
    out = pl.pallas_call(
        _encoder_head_kernel,
        out_shape=jax.ShapeDtypeStruct((Bp, N2), jnp.float32),
        grid=(1,),
        in_specs=[
            pl.BlockSpec((Bp, K1), lambda i: (0, 0)),
            pl.BlockSpec((K1, N1), lambda i: (0, 0)),
            pl.BlockSpec((1, N1), lambda i: (0, 0)),
            pl.BlockSpec((1, N1), lambda i: (0, 0)),
            pl.BlockSpec((N1, N2), lambda i: (0, 0)),
            pl.BlockSpec((1, N2), lambda i: (0, 0)),
        ],
        out_specs=pl.BlockSpec((Bp, N2), lambda i: (0, 0)),
        compiler_params=_compiler_params(blk_bytes, parallel=False),
    )(hp, layer["w1"], layer["s1"], layer["b1"], layer["w2"], layer["b2"])
    return out[:B, :z_dim], out[:B, z_dim:2 * z_dim]


def reparam_fc(mu, log_var, eps, layer):
    """Fused reparameterize + decoder fc (z -> 7*7*128, NHWC-ordered output)."""
    B, Z = mu.shape
    Kp, Np = layer["w"].shape
    Bp = _round_up(B, 8)

    def padz(a):
        return jnp.pad(a.astype(jnp.float32), ((0, Bp - B), (0, Kp - Z)))

    blk_bytes = 12 * Bp * Kp + 2 * Kp * Np + 2 * Bp * Np + 16 * Np
    out = pl.pallas_call(
        _reparam_fc_kernel,
        out_shape=jax.ShapeDtypeStruct((Bp, Np), jnp.bfloat16),
        grid=(1,),
        in_specs=[
            pl.BlockSpec((Bp, Kp), lambda i: (0, 0)),
            pl.BlockSpec((Bp, Kp), lambda i: (0, 0)),
            pl.BlockSpec((Bp, Kp), lambda i: (0, 0)),
            pl.BlockSpec((Kp, Np), lambda i: (0, 0)),
            pl.BlockSpec((1, Np), lambda i: (0, 0)),
        ],
        out_specs=pl.BlockSpec((Bp, Np), lambda i: (0, 0)),
        compiler_params=_compiler_params(blk_bytes, parallel=False),
    )(padz(mu), padz(log_var), padz(eps), layer["w"], layer["b"])
    return out[:B]


# ----------------------------------------------------------------------------
# Conv helpers (NHWC im2col glue in JAX, GEMM + epilogue in Pallas)
# ----------------------------------------------------------------------------
def _im2col_nhwc(x, kh, kw, stride, padding, k_pad):
    """NHWC im2col: (B,H,W,C) -> (B*Ho*Wo, k_pad); columns ordered (kh,kw,C)."""
    B, H, W, C = x.shape
    if padding:
        x = jnp.pad(x, ((0, 0), (padding, padding), (padding, padding), (0, 0)))
    Hp, Wp = x.shape[1], x.shape[2]
    Ho = (Hp - kh) // stride + 1
    Wo = (Wp - kw) // stride + 1
    cols = []
    for i in range(kh):
        for j in range(kw):
            cols.append(x[:, i:i + stride * Ho:stride,
                          j:j + stride * Wo:stride, :])
    k_true = kh * kw * C
    if k_pad > k_true:
        cols.append(jnp.zeros((B, Ho, Wo, k_pad - k_true), x.dtype))
    cols = jnp.concatenate(cols, axis=-1)
    return cols.reshape(B * Ho * Wo, k_pad), Ho, Wo


def conv2d(x, layer, kh, kw, stride, padding, cout, relu, out_dtype=jnp.bfloat16):
    """NHWC conv as an im2col GEMM with fused (BN-)bias(/ReLU) epilogue."""
    B = x.shape[0]
    cols, Ho, Wo = _im2col_nhwc(x, kh, kw, stride, padding, layer["w"].shape[0])
    y = gemm(cols, layer, n_out=cout, relu=relu, out_dtype=out_dtype)
    return y.reshape(B, Ho, Wo, cout)


def conv_transpose2d_s2(x, layer, cout, relu):
    """ConvTranspose2d(k=4, stride=2, padding=1) via sub-pixel phase decomposition.

    One GEMM over 2x2 patches of the (1,1)-zero-padded input against the four
    2x2 phase sub-kernels concatenated along N; output phases are interleaved.
    """
    B, H, W, _ = x.shape
    xpad = jnp.pad(x, ((0, 0), (1, 1), (1, 1), (0, 0)))
    cols, Ho, Wo = _im2col_nhwc(xpad, 2, 2, 1, 0, layer["w"].shape[0])  # Ho=H+1
    g = gemm(cols, layer, n_out=4 * cout, relu=relu)
    g = g.reshape(B, Ho, Wo, 4, cout)
    phases = [g[:, p:p + H, q:q + W, 2 * p + q, :]
              for p in range(2) for q in range(2)]
    y = jnp.stack(phases, axis=3).reshape(B, H, W, 2, 2, cout)
    y = y.transpose(0, 1, 3, 2, 4, 5).reshape(B, 2 * H, 2 * W, cout)
    return y


# ----------------------------------------------------------------------------
# VAE forward (activations NHWC; NCHW only at the external interface)
# ----------------------------------------------------------------------------
def encoder_forward(p, x, z_dim):
    h = conv2d(x, p["e_conv1"], 5, 5, 1, 0, 32, relu=True)   # (B,24,24,32)
    h = conv2d(h, p["e_conv2"], 3, 3, 2, 0, 64, relu=True)   # (B,11,11,64)
    h = conv2d(h, p["e_conv3"], 3, 3, 2, 0, 64, relu=True)   # (B,5,5,64)
    h = conv2d(h, p["e_conv4"], 3, 3, 2, 0, 64, relu=True)   # (B,2,2,64)
    h = h.reshape(h.shape[0], -1)                            # (B,256) in (h,w,c)
    return encoder_head(h, p["e_head"], z_dim)               # mu, log_var


def decoder_forward(p, mu, log_var, eps):
    B = mu.shape[0]
    h = reparam_fc(mu, log_var, eps, p["d_fc"])              # (B,6272) in (h,w,c)
    h = h.reshape(B, 7, 7, 128)
    h = conv_transpose2d_s2(h, p["d_conv1"], 64, relu=True)  # (B,14,14,64)
    h = conv_transpose2d_s2(h, p["d_conv2"], 32, relu=True)  # (B,28,28,32)
    x_hat = conv2d(h, p["d_conv3"], 3, 3, 1, 1, 1, relu=False,
                   out_dtype=jnp.float32)                    # (B,28,28,1)
    return x_hat.transpose(0, 3, 1, 2)                       # NCHW


def vae_forward(p, x, eps):
    z_dim = eps.shape[1]
    x = x.transpose(0, 2, 3, 1)                              # NCHW -> NHWC
    mu, log_var = encoder_forward(p, x, z_dim)
    x_hat = decoder_forward(p, mu, log_var, eps)
    return x_hat, mu, log_var


# ----------------------------------------------------------------------------
# One-time parameter preparation (runs outside the hot path / outside jit)
# ----------------------------------------------------------------------------
def _pad2d(a, rows, cols):
    return jnp.pad(a, ((0, rows - a.shape[0]), (0, cols - a.shape[1])))


def _prep_gemm(wmat, bias, scale=None):
    K, N = wmat.shape
    Kp, Np = _round_up(K, 128), _round_up(N, 128)
    layer = {
        "w": _pad2d(wmat.astype(jnp.float32), Kp, Np).astype(jnp.bfloat16),
        "b": _pad2d(bias.reshape(1, N).astype(jnp.float32), 1, Np),
    }
    if scale is not None:
        layer["s"] = _pad2d(scale.reshape(1, N).astype(jnp.float32), 1, Np)
    return layer


def _conv_wmat(w):
    # (C_out, C_in, KH, KW) -> (KH*KW*C_in, C_out), columns ordered (kh,kw,ci).
    C_out, C_in, KH, KW = w.shape
    return w.transpose(2, 3, 1, 0).reshape(KH * KW * C_in, C_out)


def _convt_phase_wmat(w):
    # ConvTranspose2d weight (C_in, C_out, 4, 4) -> (4*C_in, 4*C_out):
    # four 2x2 phase sub-kernels (rows ordered (a,b,ci)) concatenated along N.
    C_in, C_out = w.shape[0], w.shape[1]
    kidx = ([3, 1], [2, 0])   # kernel taps used by output phase 0 / phase 1
    mats = []
    for p in range(2):
        for q in range(2):
            sub = w[:, :, kidx[p], :][:, :, :, kidx[q]]      # (C_in,C_out,2,2)
            mats.append(sub.transpose(2, 3, 0, 1).reshape(4 * C_in, C_out))
    return jnp.concatenate(mats, axis=1)


def _bn_fold(bn, conv_bias):
    scale = bn["gamma"] / jnp.sqrt(bn["var"] + BN_EPS)
    shift = bn["beta"] + scale * (conv_bias - bn["mean"])
    return scale, shift


def prepare_params(p):
    """Converts PyTorch-layout params to GEMM-ready bf16/f32 tensors (once)."""
    q = {}
    for name in ("e_conv1", "e_conv2", "e_conv3", "e_conv4"):
        s, t = _bn_fold(p[name + "_bn"], p[name + "_b"])
        q[name] = _prep_gemm(_conv_wmat(p[name + "_w"]), t, s)

    # Encoder fc (input features permuted (c,h,w)->(h,w,c) for NHWC flatten)
    # fused with the concatenated mu/log_var projections.
    s, t = _bn_fold(p["e_fc_bn"], p["e_fc_b"])
    w_fc = (p["e_fc_w"].reshape(512, 64, 2, 2).transpose(0, 2, 3, 1)
            .reshape(512, 256).T)                                   # (256,512)
    w_head = jnp.concatenate([p["e_mu_w"].T, p["e_lv_w"].T], axis=1)  # (512,2z)
    b_head = jnp.concatenate([p["e_mu_b"], p["e_lv_b"]])
    z2 = w_head.shape[1]
    N2 = _round_up(z2, 128)
    q["e_head"] = {
        "w1": w_fc.astype(jnp.bfloat16),
        "s1": s.reshape(1, 512).astype(jnp.float32),
        "b1": t.reshape(1, 512).astype(jnp.float32),
        "w2": _pad2d(w_head.astype(jnp.float32), 512, N2).astype(jnp.bfloat16),
        "b2": _pad2d(b_head.reshape(1, z2).astype(jnp.float32), 1, N2),
    }

    # Decoder fc: permute output features (c,h,w)->(h,w,c) so result is NHWC.
    z_dim = p["d_fc_w"].shape[1]
    w_dfc = (p["d_fc_w"].reshape(128, 7, 7, z_dim).transpose(1, 2, 0, 3)
             .reshape(7 * 7 * 128, z_dim).T)                        # (z,6272)
    b_dfc = p["d_fc_b"].reshape(128, 7, 7).transpose(1, 2, 0).reshape(-1)
    q["d_fc"] = _prep_gemm(w_dfc, b_dfc)

    q["d_conv1"] = _prep_gemm(_convt_phase_wmat(p["d_conv1_w"]),
                              jnp.tile(p["d_conv1_b"], 4))
    q["d_conv2"] = _prep_gemm(_convt_phase_wmat(p["d_conv2_w"]),
                              jnp.tile(p["d_conv2_b"], 4))
    q["d_conv3"] = _prep_gemm(_conv_wmat(p["d_conv3_w"]), p["d_conv3_b"])
    return q


# ----------------------------------------------------------------------------
# Deterministic parameter init (shapes per module __init__, not a checkpoint)
# ----------------------------------------------------------------------------
def init_params(key, z_dim):
    keys = iter(jax.random.split(key, 64))

    def w(shape):
        fan_in = 1
        for d in shape[1:]:
            fan_in *= d
        return jax.random.normal(next(keys), shape, jnp.float32) / jnp.sqrt(
            float(fan_in))

    def b(shape):
        return 0.01 * jax.random.normal(next(keys), shape, jnp.float32)

    def bn(c):
        return {
            "gamma": 1.0 + 0.1 * jax.random.normal(next(keys), (c,), jnp.float32),
            "beta": 0.05 * jax.random.normal(next(keys), (c,), jnp.float32),
            "mean": 0.1 * jax.random.normal(next(keys), (c,), jnp.float32),
            "var": 1.0 + 0.1 * jnp.abs(
                jax.random.normal(next(keys), (c,), jnp.float32)),
        }

    p = {}
    # Encoder
    p["e_conv1_w"], p["e_conv1_b"], p["e_conv1_bn"] = w((32, 1, 5, 5)), b((32,)), bn(32)
    p["e_conv2_w"], p["e_conv2_b"], p["e_conv2_bn"] = w((64, 32, 3, 3)), b((64,)), bn(64)
    p["e_conv3_w"], p["e_conv3_b"], p["e_conv3_bn"] = w((64, 64, 3, 3)), b((64,)), bn(64)
    p["e_conv4_w"], p["e_conv4_b"], p["e_conv4_bn"] = w((64, 64, 3, 3)), b((64,)), bn(64)
    p["e_fc_w"], p["e_fc_b"], p["e_fc_bn"] = w((512, 256)), b((512,)), bn(512)
    p["e_mu_w"], p["e_mu_b"] = w((z_dim, 512)), b((z_dim,))
    p["e_lv_w"], p["e_lv_b"] = w((z_dim, 512)), b((z_dim,))
    # Decoder
    p["d_fc_w"], p["d_fc_b"] = w((7 * 7 * 128, z_dim)), b((7 * 7 * 128,))
    p["d_conv1_w"], p["d_conv1_b"] = w((128, 64, 4, 4)), b((64,))   # ConvTranspose2d
    p["d_conv2_w"], p["d_conv2_b"] = w((64, 32, 4, 4)), b((32,))    # ConvTranspose2d
    p["d_conv3_w"], p["d_conv3_b"] = w((1, 32, 3, 3)), b((1,))
    return p


if __name__ == "__main__":
    z_dim = 16
    B = 2
    key = jax.random.PRNGKey(0)
    k_param, k_x = jax.random.split(key)

    raw_params = init_params(k_param, z_dim)
    params = prepare_params(raw_params)   # one-time: GEMM-ready, BN-folded, padded

    # Encoder requires 28x28 inputs (so the flatten yields 64*2*2 features).
    x = jax.random.normal(k_x, (B, 1, 28, 28), jnp.float32)
    eps = jnp.zeros((B, z_dim), jnp.float32)  # eval-mode reparameterization

    fwd = jax.jit(vae_forward)
    x_hat, mu, log_var = fwd(params, x, eps)
    jax.block_until_ready((x_hat, mu, log_var))

    assert x_hat.shape == (B, 1, 28, 28)
    assert mu.shape == (B, z_dim) and log_var.shape == (B, z_dim)
    assert jnp.all(jnp.isfinite(x_hat))
    assert jnp.all(jnp.isfinite(mu)) and jnp.all(jnp.isfinite(log_var))
    print("KERNEL_OK")
</pallas_src>

<mosaic_0001>
module attributes {stable_mosaic.version = 11 : i64} {
  func.func @_gemm_scale_bias_kernel(%arg0: i32, %arg1: memref<256x128xbf16, #tpu.memory_space<vmem>>, %arg2: memref<128x128xbf16, #tpu.memory_space<vmem>>, %arg3: memref<1x128xf32, #tpu.memory_space<vmem>>, %arg4: memref<1x128xf32, #tpu.memory_space<vmem>>, %arg5: memref<256x128xbf16, #tpu.memory_space<vmem>>) attributes {dimension_semantics = [#tpu.dimension_semantics<parallel>], iteration_bounds = array<i64: 5>, scalar_prefetch = 0 : i64, scratch_operands = 0 : i64, tpu.core_type = #tpu.core_type<tc>, window_params = [{transform_indices = @transform_0, window_bounds = array<i64: 256, 128>}, {pipeline_mode = #tpu.pipeline_mode<synchronous>, transform_indices = @transform_1, window_bounds = array<i64: 128, 128>}, {pipeline_mode = #tpu.pipeline_mode<synchronous>, transform_indices = @transform_2, window_bounds = array<i64: 1, 128>}, {pipeline_mode = #tpu.pipeline_mode<synchronous>, transform_indices = @transform_3, window_bounds = array<i64: 1, 128>}, {transform_indices = @transform_4, window_bounds = array<i64: 256, 128>}]} {
    %c0 = arith.constant 0 : index
    %c0_0 = arith.constant 0 : index
    %0 = vector.load %arg1[%c0, %c0_0] : memref<256x128xbf16, #tpu.memory_space<vmem>>, vector<256x128xbf16>
    %c0_1 = arith.constant 0 : index
    %c0_2 = arith.constant 0 : index
    %1 = vector.load %arg2[%c0_1, %c0_2] : memref<128x128xbf16, #tpu.memory_space<vmem>>, vector<128x128xbf16>
    %cst = arith.constant dense<0.000000e+00> : vector<256x128xf32>
    %2 = tpu.matmul %0, %1, %cst {dimension_numbers = #tpu.dot_dimension_numbers<[1], [0], [0], [1], [0, 0, 1, 1], [], []>} : vector<256x128xbf16>, vector<128x128xbf16>, vector<256x128xf32> -> vector<256x128xf32>
    %c0_3 = arith.constant 0 : index
    %c0_4 = arith.constant 0 : index
    %3 = vector.load %arg3[%c0_3, %c0_4] : memref<1x128xf32, #tpu.memory_space<vmem>>, vector<1x128xf32>
    %4 = vector.broadcast %3 : vector<1x128xf32> to vector<256x128xf32>
    %5 = arith.mulf %2, %4 : vector<256x128xf32>
    %c0_5 = arith.constant 0 : index
    %c0_6 = arith.constant 0 : index
    %6 = vector.load %arg4[%c0_5, %c0_6] : memref<1x128xf32, #tpu.memory_space<vmem>>, vector<1x128xf32>
    %7 = vector.broadcast %6 : vector<1x128xf32> to vector<256x128xf32>
    %8 = arith.addf %5, %7 : vector<256x128xf32>
    %cst_7 = arith.constant 0.000000e+00 : f32
    %9 = vector.broadcast %cst_7 : f32 to vector<256x128xf32>
    %10 = arith.maximumf %8, %9 : vector<256x128xf32>
    %11 = arith.truncf %10 : vector<256x128xf32> to vector<256x128xbf16>
    %c0_8 = arith.constant 0 : index
    %c0_9 = arith.constant 0 : index
    %12 = vector.load %arg5[%c0_8, %c0_9] : memref<256x128xbf16, #tpu.memory_space<vmem>>, vector<256x128xbf16>
    tpu.vector_store %arg5[%c0_8, %c0_9], %11 {strides = array<i32>} : memref<256x128xbf16, #tpu.memory_space<vmem>>, vector<256x128xbf16>,
    return
  }
  func.func @transform_0(%arg0: i32) -> (i32, i32) {
    %c0_i32 = arith.constant 0 : i32
    %c0_i32_0 = arith.constant 0 : i32
    return %arg0, %c0_i32 : i32, i32
  }
  func.func @transform_1(%arg0: i32) -> (i32, i32) {
    %c0_i32 = arith.constant 0 : i32
    %c0_i32_0 = arith.constant 0 : i32
    %c0_i32_1 = arith.constant 0 : i32
    return %c0_i32, %c0_i32_0 : i32, i32
  }
  func.func @transform_2(%arg0: i32) -> (i32, i32) {
    %c0_i32 = arith.constant 0 : i32
    %c0_i32_0 = arith.constant 0 : i32
    %c0_i32_1 = arith.constant 0 : i32
    return %c0_i32, %c0_i32_0 : i32, i32
  }
  func.func @transform_3(%arg0: i32) -> (i32, i32) {
    %c0_i32 = arith.constant 0 : i32
    %c0_i32_0 = arith.constant 0 : i32
    %c0_i32_1 = arith.constant 0 : i32
    return %c0_i32, %c0_i32_0 : i32, i32
  }
  func.func @transform_4(%arg0: i32) -> (i32, i32) {
    %c0_i32 = arith.constant 0 : i32
    %c0_i32_0 = arith.constant 0 : i32
    return %arg0, %c0_i32 : i32, i32
  }
}

module attributes {stable_mosaic.version = 11 : i64} {
  func.func @_gemm_scale_bias_kernel(%arg0: i32, %arg1: memref<248x384xbf16, #tpu.memory_space<vmem>>, %arg2: memref<384x128xbf16, #tpu.memory_space<vmem>>, %arg3: memref<1x128xf32, #tpu.memory_space<vmem>>, %arg4: memref<1x128xf32, #tpu.memory_space<vmem>>, %arg5: memref<248x128xbf16, #tpu.memory_space<vmem>>) attributes {dimension_semantics = [#tpu.dimension_semantics<parallel>], iteration_bounds = array<i64: 1>, scalar_prefetch = 0 : i64, scratch_operands = 0 : i64, tpu.core_type = #tpu.core_type<tc>, window_params = [{transform_indices = @transform_0, window_bounds = array<i64: 248, 384>}, {pipeline_mode = #tpu.pipeline_mode<synchronous>, transform_indices = @transform_1, window_bounds = array<i64: 384, 128>}, {pipeline_mode = #tpu.pipeline_mode<synchronous>, transform_indices = @transform_2, window_bounds = array<i64: 1, 128>}, {pipeline_mode = #tpu.pipeline_mode<synchronous>, transform_indices = @transform_3, window_bounds = array<i64: 1, 128>}, {transform_indices = @transform_4, window_bounds = array<i64: 248, 128>}]} {
    %c0 = arith.constant 0 : index
    %c0_0 = arith.constant 0 : index
    %0 = vector.load %arg1[%c0, %c0_0] : memref<248x384xbf16, #tpu.memory_space<vmem>>, vector<248x384xbf16>
    %c0_1 = arith.constant 0 : index
    %c0_2 = arith.constant 0 : index
    %1 = vector.load %arg2[%c0_1, %c0_2] : memref<384x128xbf16, #tpu.memory_space<vmem>>, vector<384x128xbf16>
    %cst = arith.constant dense<0.000000e+00> : vector<248x128xf32>
    %2 = tpu.matmul %0, %1, %cst {dimension_numbers = #tpu.dot_dimension_numbers<[1], [0], [0], [1], [0, 0, 1, 1], [], []>} : vector<248x384xbf16>, vector<384x128xbf16>, vector<248x128xf32> -> vector<248x128xf32>
    %c0_3 = arith.constant 0 : index
    %c0_4 = arith.constant 0 : index
    %3 = vector.load %arg3[%c0_3, %c0_4] : memref<1x128xf32, #tpu.memory_space<vmem>>, vector<1x128xf32>
    %4 = vector.broadcast %3 : vector<1x128xf32> to vector<248x128xf32>
    %5 = arith.mulf %2, %4 : vector<248x128xf32>
    %c0_5 = arith.constant 0 : index
    %c0_6 = arith.constant 0 : index
    %6 = vector.load %arg4[%c0_5, %c0_6] : memref<1x128xf32, #tpu.memory_space<vmem>>, vector<1x128xf32>
    %7 = vector.broadcast %6 : vector<1x128xf32> to vector<248x128xf32>
    %8 = arith.addf %5, %7 : vector<248x128xf32>
    %cst_7 = arith.constant 0.000000e+00 : f32
    %9 = vector.broadcast %cst_7 : f32 to vector<248x128xf32>
    %10 = arith.maximumf %8, %9 : vector<248x128xf32>
    %11 = arith.truncf %10 : vector<248x128xf32> to vector<248x128xbf16>
    %c0_8 = arith.constant 0 : index
    %c0_9 = arith.constant 0 : index
    %12 = vector.load %arg5[%c0_8, %c0_9] : memref<248x128xbf16, #tpu.memory_space<vmem>>, vector<248x128xbf16>
    tpu.vector_store %arg5[%c0_8, %c0_9], %11 {strides = array<i32>} : memref<248x128xbf16, #tpu.memory_space<vmem>>, vector<248x128xbf16>,
    return
  }
  func.func @transform_0(%arg0: i32) -> (i32, i32) {
    %c0_i32 = arith.constant 0 : i32
    %c0_i32_0 = arith.constant 0 : i32
    return %arg0, %c0_i32 : i32, i32
  }
  func.func @transform_1(%arg0: i32) -> (i32, i32) {
    %c0_i32 = arith.constant 0 : i32
    %c0_i32_0 = arith.constant 0 : i32
    %c0_i32_1 = arith.constant 0 : i32
    return %c0_i32, %c0_i32_0 : i32, i32
  }
  func.func @transform_2(%arg0: i32) -> (i32, i32) {
    %c0_i32 = arith.constant 0 : i32
    %c0_i32_0 = arith.constant 0 : i32
    %c0_i32_1 = arith.constant 0 : i32
    return %c0_i32, %c0_i32_0 : i32, i32
  }
  func.func @transform_3(%arg0: i32) -> (i32, i32) {
    %c0_i32 = arith.constant 0 : i32
    %c0_i32_0 = arith.constant 0 : i32
    %c0_i32_1 = arith.constant 0 : i32
    return %c0_i32, %c0_i32_0 : i32, i32
  }
  func.func @transform_4(%arg0: i32) -> (i32, i32) {
    %c0_i32 = arith.constant 0 : i32
    %c0_i32_0 = arith.constant 0 : i32
    return %arg0, %c0_i32 : i32, i32
  }
}

module attributes {stable_mosaic.version = 11 : i64} {
  func.func @_gemm_scale_bias_kernel(%arg0: i32, %arg1: memref<56x640xbf16, #tpu.memory_space<vmem>>, %arg2: memref<640x128xbf16, #tpu.memory_space<vmem>>, %arg3: memref<1x128xf32, #tpu.memory_space<vmem>>, %arg4: memref<1x128xf32, #tpu.memory_space<vmem>>, %arg5: memref<56x128xbf16, #tpu.memory_space<vmem>>) attributes {dimension_semantics = [#tpu.dimension_semantics<parallel>], iteration_bounds = array<i64: 1>, scalar_prefetch = 0 : i64, scratch_operands = 0 : i64, tpu.core_type = #tpu.core_type<tc>, window_params = [{transform_indices = @transform_0, window_bounds = array<i64: 56, 640>}, {pipeline_mode = #tpu.pipeline_mode<synchronous>, transform_indices = @transform_1, window_bounds = array<i64: 640, 128>}, {pipeline_mode = #tpu.pipeline_mode<synchronous>, transform_indices = @transform_2, window_bounds = array<i64: 1, 128>}, {pipeline_mode = #tpu.pipeline_mode<synchronous>, transform_indices = @transform_3, window_bounds = array<i64: 1, 128>}, {transform_indices = @transform_4, window_bounds = array<i64: 56, 128>}]} {
    %c0 = arith.constant 0 : index
    %c0_0 = arith.constant 0 : index
    %0 = vector.load %arg1[%c0, %c0_0] : memref<56x640xbf16, #tpu.memory_space<vmem>>, vector<56x640xbf16>
    %c0_1 = arith.constant 0 : index
    %c0_2 = arith.constant 0 : index
    %1 = vector.load %arg2[%c0_1, %c0_2] : memref<640x128xbf16, #tpu.memory_space<vmem>>, vector<640x128xbf16>
    %cst = arith.constant dense<0.000000e+00> : vector<56x128xf32>
    %2 = tpu.matmul %0, %1, %cst {dimension_numbers = #tpu.dot_dimension_numbers<[1], [0], [0], [1], [0, 0, 1, 1], [], []>} : vector<56x640xbf16>, vector<640x128xbf16>, vector<56x128xf32> -> vector<56x128xf32>
    %c0_3 = arith.constant 0 : index
    %c0_4 = arith.constant 0 : index
    %3 = vector.load %arg3[%c0_3, %c0_4] : memref<1x128xf32, #tpu.memory_space<vmem>>, vector<1x128xf32>
    %4 = vector.broadcast %3 : vector<1x128xf32> to vector<56x128xf32>
    %5 = arith.mulf %2, %4 : vector<56x128xf32>
    %c0_5 = arith.constant 0 : index
    %c0_6 = arith.constant 0 : index
    %6 = vector.load %arg4[%c0_5, %c0_6] : memref<1x128xf32, #tpu.memory_space<vmem>>, vector<1x128xf32>
    %7 = vector.broadcast %6 : vector<1x128xf32> to vector<56x128xf32>
    %8 = arith.addf %5, %7 : vector<56x128xf32>
    %cst_7 = arith.constant 0.000000e+00 : f32
    %9 = vector.broadcast %cst_7 : f32 to vector<56x128xf32>
    %10 = arith.maximumf %8, %9 : vector<56x128xf32>
    %11 = arith.truncf %10 : vector<56x128xf32> to vector<56x128xbf16>
    %c0_8 = arith.constant 0 : index
    %c0_9 = arith.constant 0 : index
    %12 = vector.load %arg5[%c0_8, %c0_9] : memref<56x128xbf16, #tpu.memory_space<vmem>>, vector<56x128xbf16>
    tpu.vector_store %arg5[%c0_8, %c0_9], %11 {strides = array<i32>} : memref<56x128xbf16, #tpu.memory_space<vmem>>, vector<56x128xbf16>,
    return
  }
  func.func @transform_0(%arg0: i32) -> (i32, i32) {
    %c0_i32 = arith.constant 0 : i32
    %c0_i32_0 = arith.constant 0 : i32
    return %arg0, %c0_i32 : i32, i32
  }
  func.func @transform_1(%arg0: i32) -> (i32, i32) {
    %c0_i32 = arith.constant 0 : i32
    %c0_i32_0 = arith.constant 0 : i32
    %c0_i32_1 = arith.constant 0 : i32
    return %c0_i32, %c0_i32_0 : i32, i32
  }
  func.func @transform_2(%arg0: i32) -> (i32, i32) {
    %c0_i32 = arith.constant 0 : i32
    %c0_i32_0 = arith.constant 0 : i32
    %c0_i32_1 = arith.constant 0 : i32
    return %c0_i32, %c0_i32_0 : i32, i32
  }
  func.func @transform_3(%arg0: i32) -> (i32, i32) {
    %c0_i32 = arith.constant 0 : i32
    %c0_i32_0 = arith.constant 0 : i32
    %c0_i32_1 = arith.constant 0 : i32
    return %c0_i32, %c0_i32_0 : i32, i32
  }
  func.func @transform_4(%arg0: i32) -> (i32, i32) {
    %c0_i32 = arith.constant 0 : i32
    %c0_i32_0 = arith.constant 0 : i32
    return %arg0, %c0_i32 : i32, i32
  }
}

module attributes {stable_mosaic.version = 11 : i64} {
  func.func @_gemm_scale_bias_kernel(%arg0: i32, %arg1: memref<8x640xbf16, #tpu.memory_space<vmem>>, %arg2: memref<640x128xbf16, #tpu.memory_space<vmem>>, %arg3: memref<1x128xf32, #tpu.memory_space<vmem>>, %arg4: memref<1x128xf32, #tpu.memory_space<vmem>>, %arg5: memref<8x128xbf16, #tpu.memory_space<vmem>>) attributes {dimension_semantics = [#tpu.dimension_semantics<parallel>], iteration_bounds = array<i64: 1>, scalar_prefetch = 0 : i64, scratch_operands = 0 : i64, tpu.core_type = #tpu.core_type<tc>, window_params = [{transform_indices = @transform_0, window_bounds = array<i64: 8, 640>}, {pipeline_mode = #tpu.pipeline_mode<synchronous>, transform_indices = @transform_1, window_bounds = array<i64: 640, 128>}, {pipeline_mode = #tpu.pipeline_mode<synchronous>, transform_indices = @transform_2, window_bounds = array<i64: 1, 128>}, {pipeline_mode = #tpu.pipeline_mode<synchronous>, transform_indices = @transform_3, window_bounds = array<i64: 1, 128>}, {transform_indices = @transform_4, window_bounds = array<i64: 8, 128>}]} {
    %c0 = arith.constant 0 : index
    %c0_0 = arith.constant 0 : index
    %0 = vector.load %arg1[%c0, %c0_0] : memref<8x640xbf16, #tpu.memory_space<vmem>>, vector<8x640xbf16>
    %c0_1 = arith.constant 0 : index
    %c0_2 = arith.constant 0 : index
    %1 = vector.load %arg2[%c0_1, %c0_2] : memref<640x128xbf16, #tpu.memory_space<vmem>>, vector<640x128xbf16>
    %cst = arith.constant dense<0.000000e+00> : vector<8x128xf32>
    %2 = tpu.matmul %0, %1, %cst {dimension_numbers = #tpu.dot_dimension_numbers<[1], [0], [0], [1], [0, 0, 1, 1], [], []>} : vector<8x640xbf16>, vector<640x128xbf16>, vector<8x128xf32> -> vector<8x128xf32>
    %c0_3 = arith.constant 0 : index
    %c0_4 = arith.constant 0 : index
    %3 = vector.load %arg3[%c0_3, %c0_4] : memref<1x128xf32, #tpu.memory_space<vmem>>, vector<1x128xf32>
    %4 = vector.broadcast %3 : vector<1x128xf32> to vector<8x128xf32>
    %5 = arith.mulf %2, %4 : vector<8x128xf32>
    %c0_5 = arith.constant 0 : index
    %c0_6 = arith.constant 0 : index
    %6 = vector.load %arg4[%c0_5, %c0_6] : memref<1x128xf32, #tpu.memory_space<vmem>>, vector<1x128xf32>
    %7 = vector.broadcast %6 : vector<1x128xf32> to vector<8x128xf32>
    %8 = arith.addf %5, %7 : vector<8x128xf32>
    %cst_7 = arith.constant 0.000000e+00 : f32
    %9 = vector.broadcast %cst_7 : f32 to vector<8x128xf32>
    %10 = arith.maximumf %8, %9 : vector<8x128xf32>
    %11 = arith.truncf %10 : vector<8x128xf32> to vector<8x128xbf16>
    %c0_8 = arith.constant 0 : index
    %c0_9 = arith.constant 0 : index
    %12 = vector.load %arg5[%c0_8, %c0_9] : memref<8x128xbf16, #tpu.memory_space<vmem>>, vector<8x128xbf16>
    tpu.vector_store %arg5[%c0_8, %c0_9], %11 {strides = array<i32>} : memref<8x128xbf16, #tpu.memory_space<vmem>>, vector<8x128xbf16>,
    return
  }
  func.func @transform_0(%arg0: i32) -> (i32, i32) {
    %c0_i32 = arith.constant 0 : i32
    %c0_i32_0 = arith.constant 0 : i32
    return %arg0, %c0_i32 : i32, i32
  }
  func.func @transform_1(%arg0: i32) -> (i32, i32) {
    %c0_i32 = arith.constant 0 : i32
    %c0_i32_0 = arith.constant 0 : i32
    %c0_i32_1 = arith.constant 0 : i32
    return %c0_i32, %c0_i32_0 : i32, i32
  }
  func.func @transform_2(%arg0: i32) -> (i32, i32) {
    %c0_i32 = arith.constant 0 : i32
    %c0_i32_0 = arith.constant 0 : i32
    %c0_i32_1 = arith.constant 0 : i32
    return %c0_i32, %c0_i32_0 : i32, i32
  }
  func.func @transform_3(%arg0: i32) -> (i32, i32) {
    %c0_i32 = arith.constant 0 : i32
    %c0_i32_0 = arith.constant 0 : i32
    %c0_i32_1 = arith.constant 0 : i32
    return %c0_i32, %c0_i32_0 : i32, i32
  }
  func.func @transform_4(%arg0: i32) -> (i32, i32) {
    %c0_i32 = arith.constant 0 : i32
    %c0_i32_0 = arith.constant 0 : i32
    return %arg0, %c0_i32 : i32, i32
  }
}

module attributes {stable_mosaic.version = 11 : i64} {
  func.func @_reparam_fc_kernel(%arg0: i32, %arg1: memref<8x128xf32, #tpu.memory_space<vmem>>, %arg2: memref<8x128xf32, #tpu.memory_space<vmem>>, %arg3: memref<8x128xf32, #tpu.memory_space<vmem>>, %arg4: memref<128x6272xbf16, #tpu.memory_space<vmem>>, %arg5: memref<1x6272xf32, #tpu.memory_space<vmem>>, %arg6: memref<8x6272xbf16, #tpu.memory_space<vmem>>) attributes {dimension_semantics = [#tpu.dimension_semantics<arbitrary>], iteration_bounds = array<i64: 1>, scalar_prefetch = 0 : i64, scratch_operands = 0 : i64, tpu.core_type = #tpu.core_type<tc>, window_params = [{pipeline_mode = #tpu.pipeline_mode<synchronous>, transform_indices = @transform_0, window_bounds = array<i64: 8, 128>}, {pipeline_mode = #tpu.pipeline_mode<synchronous>, transform_indices = @transform_1, window_bounds = array<i64: 8, 128>}, {pipeline_mode = #tpu.pipeline_mode<synchronous>, transform_indices = @transform_2, window_bounds = array<i64: 8, 128>}, {pipeline_mode = #tpu.pipeline_mode<synchronous>, transform_indices = @transform_3, window_bounds = array<i64: 128, 6272>}, {pipeline_mode = #tpu.pipeline_mode<synchronous>, transform_indices = @transform_4, window_bounds = array<i64: 1, 6272>}, {pipeline_mode = #tpu.pipeline_mode<synchronous>, transform_indices = @transform_5, window_bounds = array<i64: 8, 6272>}]} {
    %c0 = arith.constant 0 : index
    %c0_0 = arith.constant 0 : index
    %0 = vector.load %arg1[%c0, %c0_0] : memref<8x128xf32, #tpu.memory_space<vmem>>, vector<8x128xf32>
    %c0_1 = arith.constant 0 : index
    %c0_2 = arith.constant 0 : index
    %1 = vector.load %arg3[%c0_1, %c0_2] : memref<8x128xf32, #tpu.memory_space<vmem>>, vector<8x128xf32>
    %c0_3 = arith.constant 0 : index
    %c0_4 = arith.constant 0 : index
    %2 = vector.load %arg2[%c0_3, %c0_4] : memref<8x128xf32, #tpu.memory_space<vmem>>, vector<8x128xf32>
    %cst = arith.constant 5.000000e-01 : f32
    %3 = vector.broadcast %cst : f32 to vector<8x128xf32>
    %4 = arith.mulf %3, %2 : vector<8x128xf32>
    %5 = math.exp %4 : vector<8x128xf32>
    %6 = arith.mulf %1, %5 : vector<8x128xf32>
    %7 = arith.addf %0, %6 : vector<8x128xf32>
    %8 = arith.truncf %7 : vector<8x128xf32> to vector<8x128xbf16>
    %c0_5 = arith.constant 0 : index
    %c0_6 = arith.constant 0 : index
    %9 = vector.load %arg4[%c0_5, %c0_6] : memref<128x6272xbf16, #tpu.memory_space<vmem>>, vector<128x6272xbf16>
    %cst_7 = arith.constant dense<0.000000e+00> : vector<8x6272xf32>
    %10 = tpu.matmul %8, %9, %cst_7 {dimension_numbers = #tpu.dot_dimension_numbers<[1], [0], [0], [1], [0, 0, 1, 1], [], []>} : vector<8x128xbf16>, vector<128x6272xbf16>, vector<8x6272xf32> -> vector<8x6272xf32>
    %c0_8 = arith.constant 0 : index
    %c0_9 = arith.constant 0 : index
    %11 = vector.load %arg5[%c0_8, %c0_9] : memref<1x6272xf32, #tpu.memory_space<vmem>>, vector<1x6272xf32>
    %12 = vector.broadcast %11 : vector<1x6272xf32> to vector<8x6272xf32>
    %13 = arith.addf %10, %12 : vector<8x6272xf32>
    %14 = arith.truncf %13 : vector<8x6272xf32> to vector<8x6272xbf16>
    %c0_10 = arith.constant 0 : index
    %c0_11 = arith.constant 0 : index
    %15 = vector.load %arg6[%c0_10, %c0_11] : memref<8x6272xbf16, #tpu.memory_space<vmem>>, vector<8x6272xbf16>
    tpu.vector_store %arg6[%c0_10, %c0_11], %14 {strides = array<i32>} : memref<8x6272xbf16, #tpu.memory_space<vmem>>, vector<8x6272xbf16>,
    return
  }
  func.func @transform_0(%arg0: i32) -> (i32, i32) {
    %c0_i32 = arith.constant 0 : i32
    %c0_i32_0 = arith.constant 0 : i32
    %c0_i32_1 = arith.constant 0 : i32
    return %c0_i32, %c0_i32_0 : i32, i32
  }
  func.func @transform_1(%arg0: i32) -> (i32, i32) {
    %c0_i32 = arith.constant 0 : i32
    %c0_i32_0 = arith.constant 0 : i32
    %c0_i32_1 = arith.constant 0 : i32
    return %c0_i32, %c0_i32_0 : i32, i32
  }
  func.func @transform_2(%arg0: i32) -> (i32, i32) {
    %c0_i32 = arith.constant 0 : i32
    %c0_i32_0 = arith.constant 0 : i32
    %c0_i32_1 = arith.constant 0 : i32
    return %c0_i32, %c0_i32_0 : i32, i32
  }
  func.func @transform_3(%arg0: i32) -> (i32, i32) {
    %c0_i32 = arith.constant 0 : i32
    %c0_i32_0 = arith.constant 0 : i32
    %c0_i32_1 = arith.constant 0 : i32
    return %c0_i32, %c0_i32_0 : i32, i32
  }
  func.func @transform_4(%arg0: i32) -> (i32, i32) {
    %c0_i32 = arith.constant 0 : i32
    %c0_i32_0 = arith.constant 0 : i32
    %c0_i32_1 = arith.constant 0 : i32
    return %c0_i32, %c0_i32_0 : i32, i32
  }
  func.func @transform_5(%arg0: i32) -> (i32, i32) {
    %c0_i32 = arith.constant 0 : i32
    %c0_i32_0 = arith.constant 0 : i32
    %c0_i32_1 = arith.constant 0 : i32
    return %c0_i32, %c0_i32_0 : i32, i32
  }
}

module attributes {stable_mosaic.version = 11 : i64} {
  func.func @_encoder_head_kernel(%arg0: i32, %arg1: memref<8x256xbf16, #tpu.memory_space<vmem>>, %arg2: memref<256x512xbf16, #tpu.memory_space<vmem>>, %arg3: memref<1x512xf32, #tpu.memory_space<vmem>>, %arg4: memref<1x512xf32, #tpu.memory_space<vmem>>, %arg5: memref<512x128xbf16, #tpu.memory_space<vmem>>, %arg6: memref<1x128xf32, #tpu.memory_space<vmem>>, %arg7: memref<8x128xf32, #tpu.memory_space<vmem>>) attributes {dimension_semantics = [#tpu.dimension_semantics<arbitrary>], iteration_bounds = array<i64: 1>, scalar_prefetch = 0 : i64, scratch_operands = 0 : i64, tpu.core_type = #tpu.core_type<tc>, window_params = [{pipeline_mode = #tpu.pipeline_mode<synchronous>, transform_indices = @transform_0, window_bounds = array<i64: 8, 256>}, {pipeline_mode = #tpu.pipeline_mode<synchronous>, transform_indices = @transform_1, window_bounds = array<i64: 256, 512>}, {pipeline_mode = #tpu.pipeline_mode<synchronous>, transform_indices = @transform_2, window_bounds = array<i64: 1, 512>}, {pipeline_mode = #tpu.pipeline_mode<synchronous>, transform_indices = @transform_3, window_bounds = array<i64: 1, 512>}, {pipeline_mode = #tpu.pipeline_mode<synchronous>, transform_indices = @transform_4, window_bounds = array<i64: 512, 128>}, {pipeline_mode = #tpu.pipeline_mode<synchronous>, transform_indices = @transform_5, window_bounds = array<i64: 1, 128>}, {pipeline_mode = #tpu.pipeline_mode<synchronous>, transform_indices = @transform_6, window_bounds = array<i64: 8, 128>}]} {
    %c0 = arith.constant 0 : index
    %c0_0 = arith.constant 0 : index
    %0 = vector.load %arg1[%c0, %c0_0] : memref<8x256xbf16, #tpu.memory_space<vmem>>, vector<8x256xbf16>
    %c0_1 = arith.constant 0 : index
    %c0_2 = arith.constant 0 : index
    %1 = vector.load %arg2[%c0_1, %c0_2] : memref<256x512xbf16, #tpu.memory_space<vmem>>, vector<256x512xbf16>
    %cst = arith.constant dense<0.000000e+00> : vector<8x512xf32>
    %2 = tpu.matmul %0, %1, %cst {dimension_numbers = #tpu.dot_dimension_numbers<[1], [0], [0], [1], [0, 0, 1, 1], [], []>} : vector<8x256xbf16>, vector<256x512xbf16>, vector<8x512xf32> -> vector<8x512xf32>
    %c0_3 = arith.constant 0 : index
    %c0_4 = arith.constant 0 : index
    %3 = vector.load %arg3[%c0_3, %c0_4] : memref<1x512xf32, #tpu.memory_space<vmem>>, vector<1x512xf32>
    %4 = vector.broadcast %3 : vector<1x512xf32> to vector<8x512xf32>
    %5 = arith.mulf %2, %4 : vector<8x512xf32>
    %c0_5 = arith.constant 0 : index
    %c0_6 = arith.constant 0 : index
    %6 = vector.load %arg4[%c0_5, %c0_6] : memref<1x512xf32, #tpu.memory_space<vmem>>, vector<1x512xf32>
    %7 = vector.broadcast %6 : vector<1x512xf32> to vector<8x512xf32>
    %8 = arith.addf %5, %7 : vector<8x512xf32>
    %cst_7 = arith.constant 0.000000e+00 : f32
    %9 = vector.broadcast %cst_7 : f32 to vector<8x512xf32>
    %10 = arith.maximumf %8, %9 : vector<8x512xf32>
    %11 = arith.truncf %10 : vector<8x512xf32> to vector<8x512xbf16>
    %c0_8 = arith.constant 0 : index
    %c0_9 = arith.constant 0 : index
    %12 = vector.load %arg5[%c0_8, %c0_9] : memref<512x128xbf16, #tpu.memory_space<vmem>>, vector<512x128xbf16>
    %cst_10 = arith.constant dense<0.000000e+00> : vector<8x128xf32>
    %13 = tpu.matmul %11, %12, %cst_10 {dimension_numbers = #tpu.dot_dimension_numbers<[1], [0], [0], [1], [0, 0, 1, 1], [], []>} : vector<8x512xbf16>, vector<512x128xbf16>, vector<8x128xf32> -> vector<8x128xf32>
    %c0_11 = arith.constant 0 : index
    %c0_12 = arith.constant 0 : index
    %14 = vector.load %arg6[%c0_11, %c0_12] : memref<1x128xf32, #tpu.memory_space<vmem>>, vector<1x128xf32>
    %15 = vector.broadcast %14 : vector<1x128xf32> to vector<8x128xf32>
    %16 = arith.addf %13, %15 : vector<8x128xf32>
    %c0_13 = arith.constant 0 : index
    %c0_14 = arith.constant 0 : index
    %17 = vector.load %arg7[%c0_13, %c0_14] : memref<8x128xf32, #tpu.memory_space<vmem>>, vector<8x128xf32>
    tpu.vector_store %arg7[%c0_13, %c0_14], %16 {strides = array<i32>} : memref<8x128xf32, #tpu.memory_space<vmem>>, vector<8x128xf32>,
    return
  }
  func.func @transform_0(%arg0: i32) -> (i32, i32) {
    %c0_i32 = arith.constant 0 : i32
    %c0_i32_0 = arith.constant 0 : i32
    %c0_i32_1 = arith.constant 0 : i32
    return %c0_i32, %c0_i32_0 : i32, i32
  }
  func.func @transform_1(%arg0: i32) -> (i32, i32) {
    %c0_i32 = arith.constant 0 : i32
    %c0_i32_0 = arith.constant 0 : i32
    %c0_i32_1 = arith.constant 0 : i32
    return %c0_i32, %c0_i32_0 : i32, i32
  }
  func.func @transform_2(%arg0: i32) -> (i32, i32) {
    %c0_i32 = arith.constant 0 : i32
    %c0_i32_0 = arith.constant 0 : i32
    %c0_i32_1 = arith.constant 0 : i32
    return %c0_i32, %c0_i32_0 : i32, i32
  }
  func.func @transform_3(%arg0: i32) -> (i32, i32) {
    %c0_i32 = arith.constant 0 : i32
    %c0_i32_0 = arith.constant 0 : i32
    %c0_i32_1 = arith.constant 0 : i32
    return %c0_i32, %c0_i32_0 : i32, i32
  }
  func.func @transform_4(%arg0: i32) -> (i32, i32) {
    %c0_i32 = arith.constant 0 : i32
    %c0_i32_0 = arith.constant 0 : i32
    %c0_i32_1 = arith.constant 0 : i32
    return %c0_i32, %c0_i32_0 : i32, i32
  }
  func.func @transform_5(%arg0: i32) -> (i32, i32) {
    %c0_i32 = arith.constant 0 : i32
    %c0_i32_0 = arith.constant 0 : i32
    %c0_i32_1 = arith.constant 0 : i32
    return %c0_i32, %c0_i32_0 : i32, i32
  }
  func.func @transform_6(%arg0: i32) -> (i32, i32) {
    %c0_i32 = arith.constant 0 : i32
    %c0_i32_0 = arith.constant 0 : i32
    %c0_i32_1 = arith.constant 0 : i32
    return %c0_i32, %c0_i32_0 : i32, i32
  }
}

module attributes {stable_mosaic.version = 11 : i64} {
  func.func @_gemm_bias_kernel(%arg0: i32, %arg1: memref<128x512xbf16, #tpu.memory_space<vmem>>, %arg2: memref<512x256xbf16, #tpu.memory_space<vmem>>, %arg3: memref<1x256xf32, #tpu.memory_space<vmem>>, %arg4: memref<128x256xbf16, #tpu.memory_space<vmem>>) attributes {dimension_semantics = [#tpu.dimension_semantics<parallel>], iteration_bounds = array<i64: 1>, scalar_prefetch = 0 : i64, scratch_operands = 0 : i64, tpu.core_type = #tpu.core_type<tc>, window_params = [{transform_indices = @transform_0, window_bounds = array<i64: 128, 512>}, {pipeline_mode = #tpu.pipeline_mode<synchronous>, transform_indices = @transform_1, window_bounds = array<i64: 512, 256>}, {pipeline_mode = #tpu.pipeline_mode<synchronous>, transform_indices = @transform_2, window_bounds = array<i64: 1, 256>}, {transform_indices = @transform_3, window_bounds = array<i64: 128, 256>}]} {
    %c0 = arith.constant 0 : index
    %c0_0 = arith.constant 0 : index
    %0 = vector.load %arg1[%c0, %c0_0] : memref<128x512xbf16, #tpu.memory_space<vmem>>, vector<128x512xbf16>
    %c0_1 = arith.constant 0 : index
    %c0_2 = arith.constant 0 : index
    %1 = vector.load %arg2[%c0_1, %c0_2] : memref<512x256xbf16, #tpu.memory_space<vmem>>, vector<512x256xbf16>
    %cst = arith.constant dense<0.000000e+00> : vector<128x256xf32>
    %2 = tpu.matmul %0, %1, %cst {dimension_numbers = #tpu.dot_dimension_numbers<[1], [0], [0], [1], [0, 0, 1, 1], [], []>} : vector<128x512xbf16>, vector<512x256xbf16>, vector<128x256xf32> -> vector<128x256xf32>
    %c0_3 = arith.constant 0 : index
    %c0_4 = arith.constant 0 : index
    %3 = vector.load %arg3[%c0_3, %c0_4] : memref<1x256xf32, #tpu.memory_space<vmem>>, vector<1x256xf32>
    %4 = vector.broadcast %3 : vector<1x256xf32> to vector<128x256xf32>
    %5 = arith.addf %2, %4 : vector<128x256xf32>
    %cst_5 = arith.constant 0.000000e+00 : f32
    %6 = vector.broadcast %cst_5 : f32 to vector<128x256xf32>
    %7 = arith.maximumf %5, %6 : vector<128x256xf32>
    %8 = arith.truncf %7 : vector<128x256xf32> to vector<128x256xbf16>
    %c0_6 = arith.constant 0 : index
    %c0_7 = arith.constant 0 : index
    %9 = vector.load %arg4[%c0_6, %c0_7] : memref<128x256xbf16, #tpu.memory_space<vmem>>, vector<128x256xbf16>
    tpu.vector_store %arg4[%c0_6, %c0_7], %8 {strides = array<i32>} : memref<128x256xbf16, #tpu.memory_space<vmem>>, vector<128x256xbf16>,
    return
  }
  func.func @transform_0(%arg0: i32) -> (i32, i32) {
    %c0_i32 = arith.constant 0 : i32
    %c0_i32_0 = arith.constant 0 : i32
    return %arg0, %c0_i32 : i32, i32
  }
  func.func @transform_1(%arg0: i32) -> (i32, i32) {
    %c0_i32 = arith.constant 0 : i32
    %c0_i32_0 = arith.constant 0 : i32
    %c0_i32_1 = arith.constant 0 : i32
    return %c0_i32, %c0_i32_0 : i32, i32
  }
  func.func @transform_2(%arg0: i32) -> (i32, i32) {
    %c0_i32 = arith.constant 0 : i32
    %c0_i32_0 = arith.constant 0 : i32
    %c0_i32_1 = arith.constant 0 : i32
    return %c0_i32, %c0_i32_0 : i32, i32
  }
  func.func @transform_3(%arg0: i32) -> (i32, i32) {
    %c0_i32 = arith.constant 0 : i32
    %c0_i32_0 = arith.constant 0 : i32
    return %arg0, %c0_i32 : i32, i32
  }
}

module attributes {stable_mosaic.version = 11 : i64} {
  func.func @_gemm_bias_kernel(%arg0: i32, %arg1: memref<256x256xbf16, #tpu.memory_space<vmem>>, %arg2: memref<256x128xbf16, #tpu.memory_space<vmem>>, %arg3: memref<1x128xf32, #tpu.memory_space<vmem>>, %arg4: memref<256x128xbf16, #tpu.memory_space<vmem>>) attributes {dimension_semantics = [#tpu.dimension_semantics<parallel>], iteration_bounds = array<i64: 2>, scalar_prefetch = 0 : i64, scratch_operands = 0 : i64, tpu.core_type = #tpu.core_type<tc>, window_params = [{transform_indices = @transform_0, window_bounds = array<i64: 256, 256>}, {pipeline_mode = #tpu.pipeline_mode<synchronous>, transform_indices = @transform_1, window_bounds = array<i64: 256, 128>}, {pipeline_mode = #tpu.pipeline_mode<synchronous>, transform_indices = @transform_2, window_bounds = array<i64: 1, 128>}, {transform_indices = @transform_3, window_bounds = array<i64: 256, 128>}]} {
    %c0 = arith.constant 0 : index
    %c0_0 = arith.constant 0 : index
    %0 = vector.load %arg1[%c0, %c0_0] : memref<256x256xbf16, #tpu.memory_space<vmem>>, vector<256x256xbf16>
    %c0_1 = arith.constant 0 : index
    %c0_2 = arith.constant 0 : index
    %1 = vector.load %arg2[%c0_1, %c0_2] : memref<256x128xbf16, #tpu.memory_space<vmem>>, vector<256x128xbf16>
    %cst = arith.constant dense<0.000000e+00> : vector<256x128xf32>
    %2 = tpu.matmul %0, %1, %cst {dimension_numbers = #tpu.dot_dimension_numbers<[1], [0], [0], [1], [0, 0, 1, 1], [], []>} : vector<256x256xbf16>, vector<256x128xbf16>, vector<256x128xf32> -> vector<256x128xf32>
    %c0_3 = arith.constant 0 : index
    %c0_4 = arith.constant 0 : index
    %3 = vector.load %arg3[%c0_3, %c0_4] : memref<1x128xf32, #tpu.memory_space<vmem>>, vector<1x128xf32>
    %4 = vector.broadcast %3 : vector<1x128xf32> to vector<256x128xf32>
    %5 = arith.addf %2, %4 : vector<256x128xf32>
    %cst_5 = arith.constant 0.000000e+00 : f32
    %6 = vector.broadcast %cst_5 : f32 to vector<256x128xf32>
    %7 = arith.maximumf %5, %6 : vector<256x128xf32>
    %8 = arith.truncf %7 : vector<256x128xf32> to vector<256x128xbf16>
    %c0_6 = arith.constant 0 : index
    %c0_7 = arith.constant 0 : index
    %9 = vector.load %arg4[%c0_6, %c0_7] : memref<256x128xbf16, #tpu.memory_space<vmem>>, vector<256x128xbf16>
    tpu.vector_store %arg4[%c0_6, %c0_7], %8 {strides = array<i32>} : memref<256x128xbf16, #tpu.memory_space<vmem>>, vector<256x128xbf16>,
    return
  }
  func.func @transform_0(%arg0: i32) -> (i32, i32) {
    %c0_i32 = arith.constant 0 : i32
    %c0_i32_0 = arith.constant 0 : i32
    return %arg0, %c0_i32 : i32, i32
  }
  func.func @transform_1(%arg0: i32) -> (i32, i32) {
    %c0_i32 = arith.constant 0 : i32
    %c0_i32_0 = arith.constant 0 : i32
    %c0_i32_1 = arith.constant 0 : i32
    return %c0_i32, %c0_i32_0 : i32, i32
  }
  func.func @transform_2(%arg0: i32) -> (i32, i32) {
    %c0_i32 = arith.constant 0 : i32
    %c0_i32_0 = arith.constant 0 : i32
    %c0_i32_1 = arith.constant 0 : i32
    return %c0_i32, %c0_i32_0 : i32, i32
  }
  func.func @transform_3(%arg0: i32) -> (i32, i32) {
    %c0_i32 = arith.constant 0 : i32
    %c0_i32_0 = arith.constant 0 : i32
    return %arg0, %c0_i32 : i32, i32
  }
}

module attributes {stable_mosaic.version = 11 : i64} {
  func.func @_gemm_bias_kernel(%arg0: i32, %arg1: memref<256x384xbf16, #tpu.memory_space<vmem>>, %arg2: memref<384x128xbf16, #tpu.memory_space<vmem>>, %arg3: memref<1x128xf32, #tpu.memory_space<vmem>>, %arg4: memref<256x128xf32, #tpu.memory_space<vmem>>) attributes {dimension_semantics = [#tpu.dimension_semantics<parallel>], iteration_bounds = array<i64: 7>, scalar_prefetch = 0 : i64, scratch_operands = 0 : i64, tpu.core_type = #tpu.core_type<tc>, window_params = [{transform_indices = @transform_0, window_bounds = array<i64: 256, 384>}, {pipeline_mode = #tpu.pipeline_mode<synchronous>, transform_indices = @transform_1, window_bounds = array<i64: 384, 128>}, {pipeline_mode = #tpu.pipeline_mode<synchronous>, transform_indices = @transform_2, window_bounds = array<i64: 1, 128>}, {transform_indices = @transform_3, window_bounds = array<i64: 256, 128>}]} {
    %c0 = arith.constant 0 : index
    %c0_0 = arith.constant 0 : index
    %0 = vector.load %arg1[%c0, %c0_0] : memref<256x384xbf16, #tpu.memory_space<vmem>>, vector<256x384xbf16>
    %c0_1 = arith.constant 0 : index
    %c0_2 = arith.constant 0 : index
    %1 = vector.load %arg2[%c0_1, %c0_2] : memref<384x128xbf16, #tpu.memory_space<vmem>>, vector<384x128xbf16>
    %cst = arith.constant dense<0.000000e+00> : vector<256x128xf32>
    %2 = tpu.matmul %0, %1, %cst {dimension_numbers = #tpu.dot_dimension_numbers<[1], [0], [0], [1], [0, 0, 1, 1], [], []>} : vector<256x384xbf16>, vector<384x128xbf16>, vector<256x128xf32> -> vector<256x128xf32>
    %c0_3 = arith.constant 0 : index
    %c0_4 = arith.constant 0 : index
    %3 = vector.load %arg3[%c0_3, %c0_4] : memref<1x128xf32, #tpu.memory_space<vmem>>, vector<1x128xf32>
    %4 = vector.broadcast %3 : vector<1x128xf32> to vector<256x128xf32>
    %5 = arith.addf %2, %4 : vector<256x128xf32>
    %c0_5 = arith.constant 0 : index
    %c0_6 = arith.constant 0 : index
    %6 = vector.load %arg4[%c0_5, %c0_6] : memref<256x128xf32, #tpu.memory_space<vmem>>, vector<256x128xf32>
    tpu.vector_store %arg4[%c0_5, %c0_6], %5 {strides = array<i32>} : memref<256x128xf32, #tpu.memory_space<vmem>>, vector<256x128xf32>,
    return
  }
  func.func @transform_0(%arg0: i32) -> (i32, i32) {
    %c0_i32 = arith.constant 0 : i32
    %c0_i32_0 = arith.constant 0 : i32
    return %arg0, %c0_i32 : i32, i32
  }
  func.func @transform_1(%arg0: i32) -> (i32, i32) {
    %c0_i32 = arith.constant 0 : i32
    %c0_i32_0 = arith.constant 0 : i32
    %c0_i32_1 = arith.constant 0 : i32
    return %c0_i32, %c0_i32_0 : i32, i32
  }
  func.func @transform_2(%arg0: i32) -> (i32, i32) {
    %c0_i32 = arith.constant 0 : i32
    %c0_i32_0 = arith.constant 0 : i32
    %c0_i32_1 = arith.constant 0 : i32
    return %c0_i32, %c0_i32_0 : i32, i32
  }
  func.func @transform_3(%arg0: i32) -> (i32, i32) {
    %c0_i32 = arith.constant 0 : i32
    %c0_i32_0 = arith.constant 0 : i32
    return %arg0, %c0_i32 : i32, i32
  }
}

</mosaic_0001>

<llo_original>
// kernel: vae_forward.9
$region0: #{vae_forward.9}
  #allocation0 [shape = 'u32[]', space=smem, size = 0x4, offset = 0x4, fixed_abs, tag = 'smem constant byte address 0x4 - core index']
  #allocation1 [shape = 'u32[144,128]{1,0:T(1,128)}', space=vmem, size = 0x12000, scoped, tag = 'internal scratch']
  %s0 = inlined_call_operand.vmem [shape: bf16[1280,128], index: 0, kind: input, shape index: {}]
  %s1 = inlined_call_operand.vmem [shape: bf16[128,128], index: 1, kind: input, shape index: {}]
  %s2 = inlined_call_operand.vmem [shape: f32[1,128], index: 2, kind: input, shape index: {}]
  %s3 = inlined_call_operand.vmem [shape: f32[1,128], index: 3, kind: input, shape index: {}]
  %s4 = inlined_call_operand.vmem [shape: bf16[1280,128], index: 4, kind: output, shape index: {}]
  %s5 = sld [smem:[#allocation0]]
  $region49: #{vae_forward.9} parent=0
    _
  %s7 = ssub.s32 1, %s5
  %s8 = scalar_select 0, %s7, %s5
  loop: start=0, step=1, limit=7
  $region2: #{vae_forward.9} parent=0 // loop_pre_header
    _
  $region3: #{vae_forward.9} parent=0 // loop_header
    %s10 = sphi 0, %s14
    %p11 = scmp.ge.s32.totalorder %s10, 7
    %s20 = sphi 0, %s22
    %s23 = sphi 0, %s20
    %s24 = sphi 0, %s23
    %s40 = sphi 0, %s24
    %s44 = sphi 0, %s44
    %s46 = sphi 0, %s44
    %s47 = sphi 0, %s46
    %s61 = sphi 0, %s47
    %s65 = sphi 0, %s65
    %s67 = sphi 0, %s65
    %s68 = sphi 0, %s67
    %s82 = sphi 0, %s68
    %s86 = sphi 0, %s86
    %s88 = sphi 0, %s86
    %s89 = sphi 0, %s88
    %s103 = sphi 0, %s89
    %s109 = sphi 0, %s111
    %s112 = sphi 0, %s109
    %s113 = sphi 0, %s112
    %s129 = sphi 0, %s113
  $region4: #{vae_forward.9} parent=0 // loop_header_branch
    %13 = sbr.rel (%p11) target = $region8
  $region5: #{vae_forward.9} parent=0 // loop_body
    %s15 = ssub.s32 %s10, 1
    %s16 = ssub.s32 %s10, 2
    %s17 = sadd.s32 %s10, 1
    %s18 = ssub.s32 %s10, %s17
    %p19 = scmp.eq.s32.totalorder %s18, 0
    %s21 = sadd.s32 %s20, 1
    %s22 = scalar_select %p19, %s20, %s21
    %p25 = pneg %p19
    %p26 = scmp.eq.s32.totalorder %s10, 4
    %p27 = por %p25, %p26
    %p28 = scmp.ne.s32.totalorder %s20, %s23
    %p29 = scmp.eq.s32.totalorder %s10, 0
    %p30 = por %p28, %p29
    %p31 = scmp.ne.s32.totalorder %s20, %s23
    %p32 = scmp.eq.s32.totalorder %s15, 4
    %p33 = por %p31, %p32
    %p34 = scmp.ne.s32.totalorder %s23, %s24
    %p35 = scmp.eq.s32.totalorder %s15, 0
    %p36 = por %p34, %p35
    %p37 = scmp.ne.s32.totalorder %s23, %s24
    %p38 = scmp.eq.s32.totalorder %s16, 4
    %p39 = por %p37, %p38
    %p41 = scmp.ne.s32.totalorder %s24, %s40
    %p42 = scmp.eq.s32.totalorder %s16, 0
    %p43 = por %p41, %p42
    %s45 = sadd.s32 %s44, 1
    %p48 = scmp.eq.s32.totalorder %s10, 4
    %p49 = scmp.ne.s32.totalorder %s44, %s46
    %p50 = scmp.eq.s32.totalorder %s10, 0
    %p51 = por %p49, %p50
    %p52 = scmp.ne.s32.totalorder %s44, %s46
    %p53 = scmp.eq.s32.totalorder %s15, 4
    %p54 = por %p52, %p53
    %p55 = scmp.ne.s32.totalorder %s46, %s47
    %p56 = scmp.eq.s32.totalorder %s15, 0
    %p57 = por %p55, %p56
    %p58 = scmp.ne.s32.totalorder %s46, %s47
    %p59 = scmp.eq.s32.totalorder %s16, 4
    %p60 = por %p58, %p59
    %p62 = scmp.ne.s32.totalorder %s47, %s61
    %p63 = scmp.eq.s32.totalorder %s16, 0
    %p64 = por %p62, %p63
    %s66 = sadd.s32 %s65, 1
    %p69 = scmp.eq.s32.totalorder %s10, 4
    %p70 = scmp.ne.s32.totalorder %s65, %s67
    %p71 = scmp.eq.s32.totalorder %s10, 0
    %p72 = por %p70, %p71
    %p73 = scmp.ne.s32.totalorder %s65, %s67
    %p74 = scmp.eq.s32.totalorder %s15, 4
    %p75 = por %p73, %p74
    %p76 = scmp.ne.s32.totalorder %s67, %s68
    %p77 = scmp.eq.s32.totalorder %s15, 0
    %p78 = por %p76, %p77
    %p79 = scmp.ne.s32.totalorder %s67, %s68
    %p80 = scmp.eq.s32.totalorder %s16, 4
    %p81 = por %p79, %p80
    %p83 = scmp.ne.s32.totalorder %s68, %s82
    %p84 = scmp.eq.s32.totalorder %s16, 0
    %p85 = por %p83, %p84
    %s87 = sadd.s32 %s86, 1
    %p90 = scmp.eq.s32.totalorder %s10, 4
    %p91 = scmp.ne.s32.totalorder %s86, %s88
    %p92 = scmp.eq.s32.totalorder %s10, 0
    %p93 = por %p91, %p92
    %p94 = scmp.ne.s32.totalorder %s86, %s88
    %p95 = scmp.eq.s32.totalorder %s15, 4
    %p96 = por %p94, %p95
    %p97 = scmp.ne.s32.totalorder %s88, %s89
    %p98 = scmp.eq.s32.totalorder %s15, 0
    %p99 = por %p97, %p98
    %p100 = scmp.ne.s32.totalorder %s88, %s89
    %p101 = scmp.eq.s32.totalorder %s16, 4
    %p102 = por %p100, %p101
    %p104 = scmp.ne.s32.totalorder %s89, %s103
    %p105 = scmp.eq.s32.totalorder %s16, 0
    %p106 = por %p104, %p105
    %s107 = ssub.s32 %s10, %s17
    %p108 = scmp.eq.s32.totalorder %s107, 0
    %s110 = sadd.s32 %s109, 1
    %s111 = scalar_select %p108, %s109, %s110
    %p114 = pneg %p108
    %p115 = scmp.eq.s32.totalorder %s10, 4
    %p116 = por %p114, %p115
    %p117 = scmp.ne.s32.totalorder %s109, %s112
    %p118 = scmp.eq.s32.totalorder %s10, 0
    %p119 = por %p117, %p118
    %p120 = scmp.ne.s32.totalorder %s109, %s112
    %p121 = scmp.eq.s32.totalorder %s15, 4
    %p122 = por %p120, %p121
    %p123 = scmp.ne.s32.totalorder %s112, %s113
    %p124 = scmp.eq.s32.totalorder %s15, 0
    %p125 = por %p123, %p124
    %p126 = scmp.ne.s32.totalorder %s112, %s113
    %p127 = scmp.eq.s32.totalorder %s16, 4
    %p128 = por %p126, %p127
    %p130 = scmp.ne.s32.totalorder %s113, %s129
    %p131 = scmp.eq.s32.totalorder %s16, 0
    %p132 = por %p130, %p131
    %p133 = scmp.le.s32.totalorder 1, %s10
    %p134 = scmp.lt.s32.totalorder %s10, 6
    %p135 = pnand %p133, %p134
    %p136 = pneg %p135
    // Predicated region
    $region9: #{vae_forward.9} parent=5 // pred_check
      _
    $region10: #{vae_forward.9} parent=5 // pred_check_branch
      %138 = sbr.rel (%p135) target = $region12
    $region11: #{vae_forward.9} parent=5 // pred_region
      %s139 = ssub.s32 %s10, 1
      // Predicated region
      $region13: #{vae_forward.9} parent=11 // pred_check
        %p140 = pneg %p57
      $region14: #{vae_forward.9} parent=11 // pred_check_branch
        %142 = sbr.rel (%p140) target = $region16
      $region15: #{vae_forward.9} parent=11 // pred_region
        _
      $region16: #{vae_forward.9} parent=11 // pred_fallthru
        _
      // Predicated region
      $region17: #{vae_forward.9} parent=11 // pred_check
        %p143 = pneg %p78
      $region18: #{vae_forward.9} parent=11 // pred_check_branch
        %145 = sbr.rel (%p143) target = $region20
      $region19: #{vae_forward.9} parent=11 // pred_region
        _
      $region20: #{vae_forward.9} parent=11 // pred_fallthru
        _
      // Predicated region
      $region21: #{vae_forward.9} parent=11 // pred_check
        %p146 = pneg %p99
      $region22: #{vae_forward.9} parent=11 // pred_check_branch
        %148 = sbr.rel (%p146) target = $region24
      $region23: #{vae_forward.9} parent=11 // pred_region
        _
      $region24: #{vae_forward.9} parent=11 // pred_fallthru
        _
    $region12: #{vae_forward.9} parent=5 // pred_fallthru
      _
    %p149 = scmp.lt.s32.totalorder %s10, 5
    // Predicated region
    $region25: #{vae_forward.9} parent=5 // pred_check
      %p150 = pneg %p149
    $region26: #{vae_forward.9} parent=5 // pred_check_branch
      %152 = sbr.rel (%p150) target = $region28
    $region27: #{vae_forward.9} parent=5 // pred_region
      // Predicated region
      $region29: #{vae_forward.9} parent=27 // pred_check
        %p153 = pneg %p30
      $region30: #{vae_forward.9} parent=27 // pred_check_branch
        %155 = sbr.rel (%p153) target = $region32
      $region31: #{vae_forward.9} parent=27 // pred_region
        %s156 = smul.u32 32, %s10
        %p157 = scmp.lt.s32.totalorder %s156, 159
        %s158 = scalar_select %p157, %s156, 159
        %s159 = smul.addr %s158, 4
        %s160 = scalar_lea.vmem %s0, %s159
        %s161 = smul.u32 32, %s10
      $region32: #{vae_forward.9} parent=27 // pred_fallthru
        _
    $region28: #{vae_forward.9} parent=5 // pred_fallthru
      _
    %p162 = scmp.le.s32.totalorder 1, %s10
    %p163 = scmp.lt.s32.totalorder %s10, 6
    %p164 = pnand %p162, %p163
    %p165 = pneg %p164
    // Predicated region
    $region33: #{vae_forward.9} parent=5 // pred_check
      _
    $region34: #{vae_forward.9} parent=5 // pred_check_branch
      %167 = sbr.rel (%p164) target = $region36
    $region35: #{vae_forward.9} parent=5 // pred_region
      %s168 = ssub.s32 %s10, 1
      %s169 = smul.u32 32, %s15
      %p170 = scmp.lt.s32.totalorder %s169, 159
      %s171 = scalar_select %p170, %s169, 159
      %s172 = smul.addr %s171, 4
      %s173 = scalar_lea.vmem %s0, %s172
      %p174 = pneg %p36
      %p175 = pneg %p33
      %p176 = pneg %p57
      %p177 = pneg %p54
      %p178 = pneg %p78
      %p179 = pneg %p75
      %p180 = pneg %p99
      %p181 = pneg %p96
      %p182 = pneg %p125
      %p183 = pneg %p122
      %s184 = smul.u32 32, %s15
      %p185 = scmp.lt.s32.totalorder %s184, 159
      %s186 = scalar_select %p185, %s184, 159
      %s187 = smul.addr %s186, 4
      %s188 = scalar_lea.vmem %s4, %s187
      %s189 = smul.u32 32, %s15
      %p190 = scmp.lt.s32.totalorder %s189, 159
      %s191 = scalar_select %p190, %s189, 159
      %s192 = smul.addr %s191, 4
      %s193 = scalar_lea.vmem %s0, %s192
      %s194 = smul.u32 32, %s15
      %s195 = smul.u32 32, %s15
      %p196 = scmp.lt.s32.totalorder %s195, 159
      %s197 = scalar_select %p196, %s195, 159
      %s198 = smul.addr %s197, 4
      %s199 = scalar_lea.vmem %s4, %s198
      %s200 = smul.u32 32, %s15
      %v202 = vld [vmem:[%s193] sm:$0xf]
      %v203 = vld [vmem:[%s193 + $0x4] sm:$0xf]
      %v204 = vld [vmem:[%s193 + $0x8] sm:$0xf]
      %v205 = vld [vmem:[%s193 + $0xc] sm:$0xf]
      %v206 = vld [vmem:[%s193 + $0x10] sm:$0xf]
      %v207 = vld [vmem:[%s193 + $0x14] sm:$0xf]
      %v208 = vld [vmem:[%s193 + $0x18] sm:$0xf]
      %v209 = vld [vmem:[%s193 + $0x1c] sm:$0xf]
      %v210 = vld [vmem:[%s193 + $0x20] sm:$0xf]
      %v211 = vld [vmem:[%s193 + $0x24] sm:$0xf]
      %v212 = vld [vmem:[%s193 + $0x28] sm:$0xf]
      %v213 = vld [vmem:[%s193 + $0x2c] sm:$0xf]
      %v214 = vld [vmem:[%s193 + $0x30] sm:$0xf]
      %v215 = vld [vmem:[%s193 + $0x34] sm:$0xf]
      %v216 = vld [vmem:[%s193 + $0x38] sm:$0xf]
      %v217 = vld [vmem:[%s193 + $0x3c] sm:$0xf]
      %v218 = vld [vmem:[%s193 + $0x40] sm:$0xf]
      %v219 = vld [vmem:[%s193 + $0x44] sm:$0xf]
      %v220 = vld [vmem:[%s193 + $0x48] sm:$0xf]
      %v221 = vld [vmem:[%s193 + $0x4c] sm:$0xf]
      %v222 = vld [vmem:[%s193 + $0x50] sm:$0xf]
      %v223 = vld [vmem:[%s193 + $0x54] sm:$0xf]
      %v224 = vld [vmem:[%s193 + $0x58] sm:$0xf]
      %v225 = vld [vmem:[%s193 + $0x5c] sm:$0xf]
      %v226 = vld [vmem:[%s193 + $0x60] sm:$0xf]
      %v227 = vld [vmem:[%s193 + $0x64] sm:$0xf]
      %v228 = vld [vmem:[%s193 + $0x68] sm:$0xf]
      %v229 = vld [vmem:[%s193 + $0x6c] sm:$0xf]
      %v230 = vld [vmem:[%s193 + $0x70] sm:$0xf]
      %v231 = vld [vmem:[%s193 + $0x74] sm:$0xf]
      %v232 = vld [vmem:[%s193 + $0x78] sm:$0xf]
      %v233 = vld [vmem:[%s193 + $0x7c] sm:$0xf]
      %v234 = vld [vmem:[%s1] sm:$0xf]
      %v235 = vld [vmem:[%s1 + $0x4] sm:$0xf]
      %v236 = vld [vmem:[%s1 + $0x8] sm:$0xf]
      %v237 = vld [vmem:[%s1 + $0xc] sm:$0xf]
      %v238 = vld [vmem:[%s1 + $0x10] sm:$0xf]
      %v239 = vld [vmem:[%s1 + $0x14] sm:$0xf]
      %v240 = vld [vmem:[%s1 + $0x18] sm:$0xf]
      %v241 = vld [vmem:[%s1 + $0x1c] sm:$0xf]
      %v242 = vld [vmem:[%s1 + $0x20] sm:$0xf]
      %v243 = vld [vmem:[%s1 + $0x24] sm:$0xf]
      %v244 = vld [vmem:[%s1 + $0x28] sm:$0xf]
      %v245 = vld [vmem:[%s1 + $0x2c] sm:$0xf]
      %v246 = vld [vmem:[%s1 + $0x30] sm:$0xf]
      %v247 = vld [vmem:[%s1 + $0x34] sm:$0xf]
      %v248 = vld [vmem:[%s1 + $0x38] sm:$0xf]
      %v249 = vld [vmem:[%s1 + $0x3c] sm:$0xf]
      %v282 = vunpack.c.l.b16 %v202
      %v283 = vunpack.c.l.b16 %v203
      %v284 = vunpack.c.l.b16 %v204
      %v285 = vunpack.c.l.b16 %v205
      %v286 = vunpack.c.l.b16 %v206
      %v287 = vunpack.c.l.b16 %v207
      %v288 = vunpack.c.l.b16 %v208
      %v289 = vunpack.c.l.b16 %v209
      %v290 = vunpack.c.l.b16 %v210
      %v291 = vunpack.c.l.b16 %v211
      %v292 = vunpack.c.l.b16 %v212
      %v293 = vunpack.c.l.b16 %v213
      %v294 = vunpack.c.l.b16 %v214
      %v295 = vunpack.c.l.b16 %v215
      %v296 = vunpack.c.l.b16 %v216
      %v297 = vunpack.c.l.b16 %v217
      %v298 = vunpack.c.l.b16 %v218
      %v299 = vunpack.c.l.b16 %v219
      %v300 = vunpack.c.l.b16 %v220
      %v301 = vunpack.c.l.b16 %v221
      %v302 = vunpack.c.l.b16 %v222
      %v303 = vunpack.c.l.b16 %v223
      %v304 = vunpack.c.l.b16 %v224
      %v305 = vunpack.c.l.b16 %v225
      %v306 = vunpack.c.l.b16 %v226
      %v307 = vunpack.c.l.b16 %v227
      %v308 = vunpack.c.l.b16 %v228
      %v309 = vunpack.c.l.b16 %v229
      %v310 = vunpack.c.l.b16 %v230
      %v311 = vunpack.c.l.b16 %v231
      %v312 = vunpack.c.l.b16 %v232
      %v313 = vunpack.c.l.b16 %v233
      %v314 = vpack.c.b16 %v283, %v282
      %v315 = vpack.c.b16 %v285, %v284
      %v316 = vpack.c.b16 %v287, %v286
      %v317 = vpack.c.b16 %v289, %v288
      %v318 = vpack.c.b16 %v291, %v290
      %v319 = vpack.c.b16 %v293, %v292
      %v320 = vpack.c.b16 %v295, %v294
      %v321 = vpack.c.b16 %v297, %v296
      %v322 = vpack.c.b16 %v299, %v298
      %v323 = vpack.c.b16 %v301, %v300
      %v324 = vpack.c.b16 %v303, %v302
      %v325 = vpack.c.b16 %v305, %v304
      %v326 = vpack.c.b16 %v307, %v306
      %v327 = vpack.c.b16 %v309, %v308
      %v328 = vpack.c.b16 %v311, %v310
      %v329 = vpack.c.b16 %v313, %v312
      %v362 = vunpack.c.l.b16 %v234
      %v363 = vunpack.c.l.b16 %v235
      %v364 = vunpack.c.l.b16 %v236
      %v365 = vunpack.c.l.b16 %v237
      %v366 = vunpack.c.l.b16 %v238
      %v367 = vunpack.c.l.b16 %v239
      %v368 = vunpack.c.l.b16 %v240
      %v369 = vunpack.c.l.b16 %v241
      %v370 = vunpack.c.l.b16 %v242
      %v371 = vunpack.c.l.b16 %v243
      %v372 = vunpack.c.l.b16 %v244
      %v373 = vunpack.c.l.b16 %v245
      %v374 = vunpack.c.l.b16 %v246
      %v375 = vunpack.c.l.b16 %v247
      %v376 = vunpack.c.l.b16 %v248
      %v377 = vunpack.c.l.b16 %v249
      %v378 = vpack.c.b16 %v363, %v362
      %v379 = vpack.c.b16 %v365, %v364
      %v380 = vpack.c.b16 %v367, %v366
      %v381 = vpack.c.b16 %v369, %v368
      %v382 = vpack.c.b16 %v371, %v370
      %v383 = vpack.c.b16 %v373, %v372
      %v384 = vpack.c.b16 %v375, %v374
      %v385 = vpack.c.b16 %v377, %v376
      %394 = vmatprep.subr.bf16.mxu0 0
      %395 = vmatpush1.bf16.msra.mxu0 %v378
      %396 = vmatprep.subr.bf16.mxu0 0
      %397 = vmatpush1.bf16.msra.mxu0 %v379
      %398 = vmatprep.subr.bf16.mxu0 0
      %399 = vmatpush1.bf16.msra.mxu0 %v380
      %400 = vmatprep.subr.bf16.mxu0 0
      %401 = vmatpush1.bf16.msra.mxu0 %v381
      %402 = vmatprep.subr.bf16.mxu0 0
      %403 = vmatpush1.bf16.msra.mxu0 %v382
      %404 = vmatprep.subr.bf16.mxu0 0
      %405 = vmatpush1.bf16.msra.mxu0 %v383
      %406 = vmatprep.subr.bf16.mxu0 0
      %407 = vmatpush1.bf16.msra.mxu0 %v384
      %408 = vmatprep.subr.bf16.mxu0 0
      %409 = vmatpush1.bf16.msra.mxu0 %v385
      %410 = vmatprep.subr.bf16.mxu0 0
      %411 = vmatpush1.bf16.msra.mxu0 0
      %412 = vmatprep.subr.bf16.mxu0 0
      %413 = vmatpush1.bf16.msra.mxu0 0
      %414 = vmatprep.subr.bf16.mxu0 0
      %415 = vmatpush1.bf16.msra.mxu0 0
      %416 = vmatprep.subr.bf16.mxu0 0
      %417 = vmatpush1.bf16.msra.mxu0 0
      %418 = vmatprep.subr.bf16.mxu0 0
      %419 = vmatpush1.bf16.msra.mxu0 0
      %420 = vmatprep.subr.bf16.mxu0 0
      %421 = vmatpush1.bf16.msra.mxu0 0
      %422 = vmatprep.subr.bf16.mxu0 0
      %423 = vmatpush1.bf16.msra.mxu0 0
      %424 = vmatprep.subr.bf16.mxu0 0
      %425 = vmatpush1.bf16.msra.mxu0 0
      %426 = vmatprep.mubr.bf16.mxu0 0
      %427 = vmatmul.mubr.bf16.gmra.mrb[0].mxu0 %v314
      %v428 = vpop.f32.mrb[0].mxu0
      %v429 = vadd.f32 0.0, %v428
      %v430 = vpop.f32.mrb[0].mxu0
      %v431 = vpop.f32.mrb[0].mxu0
      %v432 = vadd.f32 0.0, %v431
      %v433 = vpop.f32.mrb[0].mxu0
      %434 = vmatprep.mubr.bf16.mxu0 0
      %435 = vmatmul.mubr.bf16.gmra.mrb[0].mxu0 %v315
      %v436 = vpop.f32.mrb[0].mxu0
      %v437 = vadd.f32 0.0, %v436
      %v438 = vpop.f32.mrb[0].mxu0
      %v439 = vpop.f32.mrb[0].mxu0
      %v440 = vadd.f32 0.0, %v439
      %v441 = vpop.f32.mrb[0].mxu0
      %442 = vmatprep.mubr.bf16.mxu0 0
      %443 = vmatmul.mubr.bf16.gmra.mrb[0].mxu0 %v316
      %v444 = vpop.f32.mrb[0].mxu0
      %v445 = vadd.f32 0.0, %v444
      %v446 = vpop.f32.mrb[0].mxu0
      %v447 = vpop.f32.mrb[0].mxu0
      %v448 = vadd.f32 0.0, %v447
      %v449 = vpop.f32.mrb[0].mxu0
      %450 = vmatprep.mubr.bf16.mxu0 0
      %451 = vmatmul.mubr.bf16.gmra.mrb[0].mxu0 %v317
      %v452 = vpop.f32.mrb[0].mxu0
      %v453 = vadd.f32 0.0, %v452
      %v454 = vpop.f32.mrb[0].mxu0
      %v455 = vpop.f32.mrb[0].mxu0
      %v456 = vadd.f32 0.0, %v455
      %v457 = vpop.f32.mrb[0].mxu0
      %458 = vmatprep.mubr.bf16.mxu0 0
      %459 = vmatmul.mubr.bf16.gmra.mrb[0].mxu0 %v318
      %v460 = vpop.f32.mrb[0].mxu0
      %v461 = vadd.f32 0.0, %v460
      %v462 = vpop.f32.mrb[0].mxu0
      %v463 = vpop.f32.mrb[0].mxu0
      %v464 = vadd.f32 0.0, %v463
      %v465 = vpop.f32.mrb[0].mxu0
      %466 = vmatprep.mubr.bf16.mxu0 0
      %467 = vmatmul.mubr.bf16.gmra.mrb[0].mxu0 %v319
      %v468 = vpop.f32.mrb[0].mxu0
      %v469 = vadd.f32 0.0, %v468
      %v470 = vpop.f32.mrb[0].mxu0
      %v471 = vpop.f32.mrb[0].mxu0
      %v472 = vadd.f32 0.0, %v471
      %v473 = vpop.f32.mrb[0].mxu0
      %474 = vmatprep.mubr.bf16.mxu0 0
      %475 = vmatmul.mubr.bf16.gmra.mrb[0].mxu0 %v320
      %v476 = vpop.f32.mrb[0].mxu0
      %v477 = vadd.f32 0.0, %v476
      %v478 = vpop.f32.mrb[0].mxu0
      %v479 = vpop.f32.mrb[0].mxu0
      %v480 = vadd.f32 0.0, %v479
      %v481 = vpop.f32.mrb[0].mxu0
      %482 = vmatprep.mubr.bf16.mxu0 0
      %483 = vmatmul.mubr.bf16.gmra.mrb[0].mxu0 %v321
      %v484 = vpop.f32.mrb[0].mxu0
      %v485 = vadd.f32 0.0, %v484
      %v486 = vpop.f32.mrb[0].mxu0
      %v487 = vpop.f32.mrb[0].mxu0
      %v488 = vadd.f32 0.0, %v487
      %v489 = vpop.f32.mrb[0].mxu0
      %490 = vmatprep.mubr.bf16.mxu0 0
      %491 = vmatmul.mubr.bf16.gmra.mrb[0].mxu0 %v322
      %v492 = vpop.f32.mrb[0].mxu0
      %v493 = vadd.f32 0.0, %v492
      %v494 = vpop.f32.mrb[0].mxu0
      %v495 = vpop.f32.mrb[0].mxu0
      %v496 = vadd.f32 0.0, %v495
      %v497 = vpop.f32.mrb[0].mxu0
      %498 = vmatprep.mubr.bf16.mxu0 0
      %499 = vmatmul.mubr.bf16.gmra.mrb[0].mxu0 %v323
      %v500 = vpop.f32.mrb[0].mxu0
      %v501 = vadd.f32 0.0, %v500
      %v502 = vpop.f32.mrb[0].mxu0
      %v503 = vpop.f32.mrb[0].mxu0
      %v504 = vadd.f32 0.0, %v503
      %v505 = vpop.f32.mrb[0].mxu0
      %506 = vmatprep.mubr.bf16.mxu0 0
      %507 = vmatmul.mubr.bf16.gmra.mrb[0].mxu0 %v324
      %v508 = vpop.f32.mrb[0].mxu0
      %v509 = vadd.f32 0.0, %v508
      %v510 = vpop.f32.mrb[0].mxu0
      %v511 = vpop.f32.mrb[0].mxu0
      %v512 = vadd.f32 0.0, %v511
      %v513 = vpop.f32.mrb[0].mxu0
      %514 = vmatprep.mubr.bf16.mxu0 0
      %515 = vmatmul.mubr.bf16.gmra.mrb[0].mxu0 %v325
      %v516 = vpop.f32.mrb[0].mxu0
      %v517 = vadd.f32 0.0, %v516
      %v518 = vpop.f32.mrb[0].mxu0
      %v519 = vpop.f32.mrb[0].mxu0
      %v520 = vadd.f32 0.0, %v519
      %v521 = vpop.f32.mrb[0].mxu0
      %522 = vmatprep.mubr.bf16.mxu0 0
      %523 = vmatmul.mubr.bf16.gmra.mrb[0].mxu0 %v326
      %v524 = vpop.f32.mrb[0].mxu0
      %v525 = vadd.f32 0.0, %v524
      %v526 = vpop.f32.mrb[0].mxu0
      %v527 = vpop.f32.mrb[0].mxu0
      %v528 = vadd.f32 0.0, %v527
      %v529 = vpop.f32.mrb[0].mxu0
      %530 = vmatprep.mubr.bf16.mxu0 0
      %531 = vmatmul.mubr.bf16.gmra.mrb[0].mxu0 %v327
      %v532 = vpop.f32.mrb[0].mxu0
      %v533 = vadd.f32 0.0, %v532
      %v534 = vpop.f32.mrb[0].mxu0
      %v535 = vpop.f32.mrb[0].mxu0
      %v536 = vadd.f32 0.0, %v535
      %v537 = vpop.f32.mrb[0].mxu0
      %538 = vmatprep.mubr.bf16.mxu0 0
      %539 = vmatmul.mubr.bf16.gmra.mrb[0].mxu0 %v328
      %v540 = vpop.f32.mrb[0].mxu0
      %v541 = vadd.f32 0.0, %v540
      %v542 = vpop.f32.mrb[0].mxu0
      %v543 = vpop.f32.mrb[0].mxu0
      %v544 = vadd.f32 0.0, %v543
      %v545 = vpop.f32.mrb[0].mxu0
      %546 = vmatprep.mubr.bf16.mxu0 0
      %547 = vmatmul.mubr.bf16.gmra.mrb[0].mxu0 %v329
      %v548 = vpop.f32.mrb[0].mxu0
      %v549 = vadd.f32 0.0, %v548
      %v550 = vpop.f32.mrb[0].mxu0
      %v551 = vpop.f32.mrb[0].mxu0
      %v552 = vadd.f32 0.0, %v551
      %v553 = vpop.f32.mrb[0].mxu0
      %554 = vdwg.mxu0
      %v555 = vld [vmem:[%s2] sm:$0x1]
      %v557 = vlaneseq
      %v558 = vshrl.u32 %v557, 7
      %v559 = vsub.s32 0, %v558
      %v560 = vrot.slane %v555, %v559
      %v562 = vmul.f32 %v429, %v560
      %v563 = vmul.f32 %v432, %v560
      %v564 = vmul.f32 %v437, %v560
      %v565 = vmul.f32 %v440, %v560
      %v566 = vmul.f32 %v445, %v560
      %v567 = vmul.f32 %v448, %v560
      %v568 = vmul.f32 %v453, %v560
      %v569 = vmul.f32 %v456, %v560
      %v570 = vmul.f32 %v461, %v560
      %v571 = vmul.f32 %v464, %v560
      %v572 = vmul.f32 %v469, %v560
      %v573 = vmul.f32 %v472, %v560
      %v574 = vmul.f32 %v477, %v560
      %v575 = vmul.f32 %v480, %v560
      %v576 = vmul.f32 %v485, %v560
      %v577 = vmul.f32 %v488, %v560
      %v578 = vmul.f32 %v493, %v560
      %v579 = vmul.f32 %v496, %v560
      %v580 = vmul.f32 %v501, %v560
      %v581 = vmul.f32 %v504, %v560
      %v582 = vmul.f32 %v509, %v560
      %v583 = vmul.f32 %v512, %v560
      %v584 = vmul.f32 %v517, %v560
      %v585 = vmul.f32 %v520, %v560
      %v586 = vmul.f32 %v525, %v560
      %v587 = vmul.f32 %v528, %v560
      %v588 = vmul.f32 %v533, %v560
      %v589 = vmul.f32 %v536, %v560
      %v590 = vmul.f32 %v541, %v560
      %v591 = vmul.f32 %v544, %v560
      %v592 = vmul.f32 %v549, %v560
      %v593 = vmul.f32 %v552, %v560
      %v594 = vld [vmem:[%s3] sm:$0x1]
      %v596 = vlaneseq
      %v597 = vshrl.u32 %v596, 7
      %v598 = vsub.s32 0, %v597
      %v599 = vrot.slane %v594, %v598
      %v601 = vadd.f32 %v562, %v599
      %v602 = vadd.f32 %v563, %v599
      %v603 = vadd.f32 %v564, %v599
      %v604 = vadd.f32 %v565, %v599
      %v605 = vadd.f32 %v566, %v599
      %v606 = vadd.f32 %v567, %v599
      %v607 = vadd.f32 %v568, %v599
      %v608 = vadd.f32 %v569, %v599
      %v609 = vadd.f32 %v570, %v599
      %v610 = vadd.f32 %v571, %v599
      %v611 = vadd.f32 %v572, %v599
      %v612 = vadd.f32 %v573, %v599
      %v613 = vadd.f32 %v574, %v599
      %v614 = vadd.f32 %v575, %v599
      %v615 = vadd.f32 %v576, %v599
      %v616 = vadd.f32 %v577, %v599
      %v617 = vadd.f32 %v578, %v599
      %v618 = vadd.f32 %v579, %v599
      %v619 = vadd.f32 %v580, %v599
      %v620 = vadd.f32 %v581, %v599
      %v621 = vadd.f32 %v582, %v599
      %v622 = vadd.f32 %v583, %v599
      %v623 = vadd.f32 %v584, %v599
      %v624 = vadd.f32 %v585, %v599
      %v625 = vadd.f32 %v586, %v599
      %v626 = vadd.f32 %v587, %v599
      %v627 = vadd.f32 %v588, %v599
      %v628 = vadd.f32 %v589, %v599
      %v629 = vadd.f32 %v590, %v599
      %v630 = vadd.f32 %v591, %v599
      %v631 = vadd.f32 %v592, %v599
      %v632 = vadd.f32 %v593, %v599
      %v633 = vmax.f32 %v601, 0.0
      %v634 = vmax.f32 %v602, 0.0
      %v635 = vmax.f32 %v603, 0.0
      %v636 = vmax.f32 %v604, 0.0
      %v637 = vmax.f32 %v605, 0.0
      %v638 = vmax.f32 %v606, 0.0
      %v639 = vmax.f32 %v607, 0.0
      %v640 = vmax.f32 %v608, 0.0
      %v641 = vmax.f32 %v609, 0.0
      %v642 = vmax.f32 %v610, 0.0
      %v643 = vmax.f32 %v611, 0.0
      %v644 = vmax.f32 %v612, 0.0
      %v645 = vmax.f32 %v613, 0.0
      %v646 = vmax.f32 %v614, 0.0
      %v647 = vmax.f32 %v615, 0.0
      %v648 = vmax.f32 %v616, 0.0
      %v649 = vmax.f32 %v617, 0.0
      %v650 = vmax.f32 %v618, 0.0
      %v651 = vmax.f32 %v619, 0.0
      %v652 = vmax.f32 %v620, 0.0
      %v653 = vmax.f32 %v621, 0.0
      %v654 = vmax.f32 %v622, 0.0
      %v655 = vmax.f32 %v623, 0.0
      %v656 = vmax.f32 %v624, 0.0
      %v657 = vmax.f32 %v625, 0.0
      %v658 = vmax.f32 %v626, 0.0
      %v659 = vmax.f32 %v627, 0.0
      %v660 = vmax.f32 %v628, 0.0
      %v661 = vmax.f32 %v629, 0.0
      %v662 = vmax.f32 %v630, 0.0
      %v663 = vmax.f32 %v631, 0.0
      %v664 = vmax.f32 %v632, 0.0
      %v665 = vpack.c.bf16 %v634, %v633
      %v666 = vpack.c.bf16 %v636, %v635
      %v667 = vpack.c.bf16 %v638, %v637
      %v668 = vpack.c.bf16 %v640, %v639
      %v669 = vpack.c.bf16 %v642, %v641
      %v670 = vpack.c.bf16 %v644, %v643
      %v671 = vpack.c.bf16 %v646, %v645
      %v672 = vpack.c.bf16 %v648, %v647
      %v673 = vpack.c.bf16 %v650, %v649
      %v674 = vpack.c.bf16 %v652, %v651
      %v675 = vpack.c.bf16 %v654, %v653
      %v676 = vpack.c.bf16 %v656, %v655
      %v677 = vpack.c.bf16 %v658, %v657
      %v678 = vpack.c.bf16 %v660, %v659
      %v679 = vpack.c.bf16 %v662, %v661
      %v680 = vpack.c.bf16 %v664, %v663
      %v697 = vunpack.c.l.b16 %v665
      %v698 = vunpack.c.h.b16 %v665
      %v699 = vunpack.c.l.b16 %v666
      %v700 = vunpack.c.h.b16 %v666
      %v701 = vunpack.c.l.b16 %v667
      %v702 = vunpack.c.h.b16 %v667
      %v703 = vunpack.c.l.b16 %v668
      %v704 = vunpack.c.h.b16 %v668
      %v705 = vunpack.c.l.b16 %v669
      %v706 = vunpack.c.h.b16 %v669
      %v707 = vunpack.c.l.b16 %v670
      %v708 = vunpack.c.h.b16 %v670
      %v709 = vunpack.c.l.b16 %v671
      %v710 = vunpack.c.h.b16 %v671
      %v711 = vunpack.c.l.b16 %v672
      %v712 = vunpack.c.h.b16 %v672
      %v713 = vunpack.c.l.b16 %v673
      %v714 = vunpack.c.h.b16 %v673
      %v715 = vunpack.c.l.b16 %v674
      %v716 = vunpack.c.h.b16 %v674
      %v717 = vunpack.c.l.b16 %v675
      %v718 = vunpack.c.h.b16 %v675
      %v719 = vunpack.c.l.b16 %v676
      %v720 = vunpack.c.h.b16 %v676
      %v721 = vunpack.c.l.b16 %v677
      %v722 = vunpack.c.h.b16 %v677
      %v723 = vunpack.c.l.b16 %v678
      %v724 = vunpack.c.h.b16 %v678
      %v725 = vunpack.c.l.b16 %v679
      %v726 = vunpack.c.h.b16 %v679
      %v727 = vunpack.c.l.b16 %v680
      %v728 = vunpack.c.h.b16 %v680
      %v729 = vpack.c.b16 %v697, %v697
      %v730 = vpack.c.b16 %v698, %v698
      %v731 = vpack.c.b16 %v699, %v699
      %v732 = vpack.c.b16 %v700, %v700
      %v733 = vpack.c.b16 %v701, %v701
      %v734 = vpack.c.b16 %v702, %v702
      %v735 = vpack.c.b16 %v703, %v703
      %v736 = vpack.c.b16 %v704, %v704
      %v737 = vpack.c.b16 %v705, %v705
      %v738 = vpack.c.b16 %v706, %v706
      %v739 = vpack.c.b16 %v707, %v707
      %v740 = vpack.c.b16 %v708, %v708
      %v741 = vpack.c.b16 %v709, %v709
      %v742 = vpack.c.b16 %v710, %v710
      %v743 = vpack.c.b16 %v711, %v711
      %v744 = vpack.c.b16 %v712, %v712
      %v745 = vpack.c.b16 %v713, %v713
      %v746 = vpack.c.b16 %v714, %v714
      %v747 = vpack.c.b16 %v715, %v715
      %v748 = vpack.c.b16 %v716, %v716
      %v749 = vpack.c.b16 %v717, %v717
      %v750 = vpack.c.b16 %v718, %v718
      %v751 = vpack.c.b16 %v719, %v719
      %v752 = vpack.c.b16 %v720, %v720
      %v753 = vpack.c.b16 %v721, %v721
      %v754 = vpack.c.b16 %v722, %v722
      %v755 = vpack.c.b16 %v723, %v723
      %v756 = vpack.c.b16 %v724, %v724
      %v757 = vpack.c.b16 %v725, %v725
      %v758 = vpack.c.b16 %v726, %v726
      %v759 = vpack.c.b16 %v727, %v727
      %v760 = vpack.c.b16 %v728, %v728
      %793 = vst [vmem:[%s199] sm:$0xf] %v729
      %794 = vst [vmem:[%s199 + $0x4] sm:$0xf] %v730
      %795 = vst [vmem:[%s199 + $0x8] sm:$0xf] %v731
      %796 = vst [vmem:[%s199 + $0xc] sm:$0xf] %v732
      %797 = vst [vmem:[%s199 + $0x10] sm:$0xf] %v733
      %798 = vst [vmem:[%s199 + $0x14] sm:$0xf] %v734
      %799 = vst [vmem:[%s199 + $0x18] sm:$0xf] %v735
      %800 = vst [vmem:[%s199 + $0x1c] sm:$0xf] %v736
      %801 = vst [vmem:[%s199 + $0x20] sm:$0xf] %v737
      %802 = vst [vmem:[%s199 + $0x24] sm:$0xf] %v738
      %803 = vst [vmem:[%s199 + $0x28] sm:$0xf] %v739
      %804 = vst [vmem:[%s199 + $0x2c] sm:$0xf] %v740
      %805 = vst [vmem:[%s199 + $0x30] sm:$0xf] %v741
      %806 = vst [vmem:[%s199 + $0x34] sm:$0xf] %v742
      %807 = vst [vmem:[%s199 + $0x38] sm:$0xf] %v743
      %808 = vst [vmem:[%s199 + $0x3c] sm:$0xf] %v744
      %809 = vst [vmem:[%s199 + $0x40] sm:$0xf] %v745
      %810 = vst [vmem:[%s199 + $0x44] sm:$0xf] %v746
      %811 = vst [vmem:[%s199 + $0x48] sm:$0xf] %v747
      %812 = vst [vmem:[%s199 + $0x4c] sm:$0xf] %v748
      %813 = vst [vmem:[%s199 + $0x50] sm:$0xf] %v749
      %814 = vst [vmem:[%s199 + $0x54] sm:$0xf] %v750
      %815 = vst [vmem:[%s199 + $0x58] sm:$0xf] %v751
      %816 = vst [vmem:[%s199 + $0x5c] sm:$0xf] %v752
      %817 = vst [vmem:[%s199 + $0x60] sm:$0xf] %v753
      %818 = vst [vmem:[%s199 + $0x64] sm:$0xf] %v754
      %819 = vst [vmem:[%s199 + $0x68] sm:$0xf] %v755
      %820 = vst [vmem:[%s199 + $0x6c] sm:$0xf] %v756
      %821 = vst [vmem:[%s199 + $0x70] sm:$0xf] %v757
      %822 = vst [vmem:[%s199 + $0x74] sm:$0xf] %v758
      %823 = vst [vmem:[%s199 + $0x78] sm:$0xf] %v759
      %824 = vst [vmem:[%s199 + $0x7c] sm:$0xf] %v760
      %s825 = smul.u32 32, %s15
      %p826 = scmp.lt.s32.totalorder %s825, 159
      %s827 = scalar_select %p826, %s825, 159
      %s828 = smul.addr %s827, 4
      %s829 = scalar_lea.vmem %s4, %s828
      // Predicated region
      $region37: #{vae_forward.9} parent=35 // pred_check
        %p830 = pneg %p122
      $region38: #{vae_forward.9} parent=35 // pred_check_branch
        %832 = sbr.rel (%p830) target = $region40
      $region39: #{vae_forward.9} parent=35 // pred_region
        %s833 = smul.u32 32, %s15
      $region40: #{vae_forward.9} parent=35 // pred_fallthru
        _
    $region36: #{vae_forward.9} parent=5 // pred_fallthru
      _
    %p834 = scmp.le.s32.totalorder 2, %s10
    // Predicated region
    $region41: #{vae_forward.9} parent=5 // pred_check
      %p835 = pneg %p834
    $region42: #{vae_forward.9} parent=5 // pred_check_branch
      %837 = sbr.rel (%p835) target = $region44
    $region43: #{vae_forward.9} parent=5 // pred_region
      %s838 = ssub.s32 %s10, 2
      // Predicated region
      $region45: #{vae_forward.9} parent=43 // pred_check
        %p839 = pneg %p128
      $region46: #{vae_forward.9} parent=43 // pred_check_branch
        %841 = sbr.rel (%p839) target = $region48
      $region47: #{vae_forward.9} parent=43 // pred_region
        %s842 = smul.u32 32, %s16
        %p843 = scmp.lt.s32.totalorder %s842, 159
        %s844 = scalar_select %p843, %s842, 159
        %s845 = smul.addr %s844, 4
        %s846 = scalar_lea.vmem %s4, %s845
      $region48: #{vae_forward.9} parent=43 // pred_fallthru
        _
    $region44: #{vae_forward.9} parent=5 // pred_fallthru
      _
  $region6: #{vae_forward.9} parent=0 // loop_footer
    %s14 = sadd.s32 1, %s10
  $region7: #{vae_forward.9} parent=0 // loop_footer_branch
    %9 = sbr.rel target = $region3
  $region8: #{vae_forward.9} parent=0 // loop_exit
    _

// kernel: vae_forward.10
$region0: #{vae_forward.10}
  #allocation0 [shape = 'u32[]', space=smem, size = 0x4, offset = 0x4, fixed_abs, tag = 'smem constant byte address 0x4 - core index']
  #allocation1 [shape = 'u32[144,128]{1,0:T(1,128)}', space=vmem, size = 0x12000, scoped, tag = 'internal scratch']
  %s0 = inlined_call_operand.vmem [shape: bf16[248,384], index: 0, kind: input, shape index: {}]
  %s1 = inlined_call_operand.vmem [shape: bf16[384,128], index: 1, kind: input, shape index: {}]
  %s2 = inlined_call_operand.vmem [shape: f32[1,128], index: 2, kind: input, shape index: {}]
  %s3 = inlined_call_operand.vmem [shape: f32[1,128], index: 3, kind: input, shape index: {}]
  %s4 = inlined_call_operand.vmem [shape: bf16[248,128], index: 4, kind: output, shape index: {}]
  %s5 = sld [smem:[#allocation0]]
  $region26: #{vae_forward.10} parent=0
    _
  %s7 = ssub.s32 1, %s5
  %s8 = scalar_select 0, %s7, %s5
  // Predicated region
  $region2: #{vae_forward.10} parent=0 // pred_check
    _
  $region3: #{vae_forward.10} parent=0 // pred_check_branch
    %10 = sbr.rel (0) target = $region5
  $region4: #{vae_forward.10} parent=0 // pred_region
    _
  $region5: #{vae_forward.10} parent=0 // pred_fallthru
    _
  // Predicated region
  $region6: #{vae_forward.10} parent=0 // pred_check
    _
  $region7: #{vae_forward.10} parent=0 // pred_check_branch
    %12 = sbr.rel (0) target = $region9
  $region8: #{vae_forward.10} parent=0 // pred_region
    _
  $region9: #{vae_forward.10} parent=0 // pred_fallthru
    _
  // Predicated region
  $region10: #{vae_forward.10} parent=0 // pred_check
    _
  $region11: #{vae_forward.10} parent=0 // pred_check_branch
    %14 = sbr.rel (0) target = $region13
  $region12: #{vae_forward.10} parent=0 // pred_region
    _
  $region13: #{vae_forward.10} parent=0 // pred_fallthru
    _
  // Predicated region
  $region14: #{vae_forward.10} parent=0 // pred_check
    _
  $region15: #{vae_forward.10} parent=0 // pred_check_branch
    %16 = sbr.rel (0) target = $region17
  $region16: #{vae_forward.10} parent=0 // pred_region
    _
  $region17: #{vae_forward.10} parent=0 // pred_fallthru
    _
  %v18 = vld [vmem:[%s0] sm:$0xff]
  %v19 = vld [vmem:[%s0 + $0x8] sm:$0xf]
  %v20 = vld [vmem:[%s0 + $0xc] sm:$0xff]
  %v21 = vld [vmem:[%s0 + $0x14] sm:$0xf]
  %v22 = vld [vmem:[%s0 + $0x18] sm:$0xff]
  %v23 = vld [vmem:[%s0 + $0x20] sm:$0xf]
  %v24 = vld [vmem:[%s0 + $0x24] sm:$0xff]
  %v25 = vld [vmem:[%s0 + $0x2c] sm:$0xf]
  %v26 = vld [vmem:[%s0 + $0x30] sm:$0xff]
  %v27 = vld [vmem:[%s0 + $0x38] sm:$0xf]
  %v28 = vld [vmem:[%s0 + $0x3c] sm:$0xff]
  %v29 = vld [vmem:[%s0 + $0x44] sm:$0xf]
  %v30 = vld [vmem:[%s0 + $0x48] sm:$0xff]
  %v31 = vld [vmem:[%s0 + $0x50] sm:$0xf]
  %v32 = vld [vmem:[%s0 + $0x54] sm:$0xff]
  %v33 = vld [vmem:[%s0 + $0x5c] sm:$0xf]
  %v34 = vld [vmem:[%s0 + $0x60] sm:$0xff]
  %v35 = vld [vmem:[%s0 + $0x68] sm:$0xf]
  %v36 = vld [vmem:[%s0 + $0x6c] sm:$0xff]
  %v37 = vld [vmem:[%s0 + $0x74] sm:$0xf]
  %v38 = vld [vmem:[%s0 + $0x78] sm:$0xff]
  %v39 = vld [vmem:[%s0 + $0x80] sm:$0xf]
  %v40 = vld [vmem:[%s0 + $0x84] sm:$0xff]
  %v41 = vld [vmem:[%s0 + $0x8c] sm:$0xf]
  %v42 = vld [vmem:[%s0 + $0x90] sm:$0xff]
  %v43 = vld [vmem:[%s0 + $0x98] sm:$0xf]
  %v44 = vld [vmem:[%s0 + $0x9c] sm:$0xff]
  %v45 = vld [vmem:[%s0 + $0xa4] sm:$0xf]
  %v46 = vld [vmem:[%s0 + $0xa8] sm:$0xff]
  %v47 = vld [vmem:[%s0 + $0xb0] sm:$0xf]
  %v48 = vld [vmem:[%s0 + $0xb4] sm:$0xff]
  %v49 = vld [vmem:[%s0 + $0xbc] sm:$0xf]
  %v50 = vld [vmem:[%s0 + $0xc0] sm:$0xff]
  %v51 = vld [vmem:[%s0 + $0xc8] sm:$0xf]
  %v52 = vld [vmem:[%s0 + $0xcc] sm:$0xff]
  %v53 = vld [vmem:[%s0 + $0xd4] sm:$0xf]
  %v54 = vld [vmem:[%s0 + $0xd8] sm:$0xff]
  %v55 = vld [vmem:[%s0 + $0xe0] sm:$0xf]
  %v56 = vld [vmem:[%s0 + $0xe4] sm:$0xff]
  %v57 = vld [vmem:[%s0 + $0xec] sm:$0xf]
  %v58 = vld [vmem:[%s0 + $0xf0] sm:$0xff]
  %v59 = vld [vmem:[%s0 + $0xf8] sm:$0xf]
  %v60 = vld [vmem:[%s0 + $0xfc] sm:$0xff]
  %v61 = vld [vmem:[%s0 + $0x104] sm:$0xf]
  %v62 = vld [vmem:[%s0 + $0x108] sm:$0xff]
  %v63 = vld [vmem:[%s0 + $0x110] sm:$0xf]
  %v64 = vld [vmem:[%s0 + $0x114] sm:$0xff]
  %v65 = vld [vmem:[%s0 + $0x11c] sm:$0xf]
  %v66 = vld [vmem:[%s0 + $0x120] sm:$0xff]
  %v67 = vld [vmem:[%s0 + $0x128] sm:$0xf]
  %v68 = vld [vmem:[%s0 + $0x12c] sm:$0xff]
  %v69 = vld [vmem:[%s0 + $0x134] sm:$0xf]
  %v70 = vld [vmem:[%s0 + $0x138] sm:$0xff]
  %v71 = vld [vmem:[%s0 + $0x140] sm:$0xf]
  %v72 = vld [vmem:[%s0 + $0x144] sm:$0xff]
  %v73 = vld [vmem:[%s0 + $0x14c] sm:$0xf]
  %v74 = vld [vmem:[%s0 + $0x150] sm:$0xff]
  %v75 = vld [vmem:[%s0 + $0x158] sm:$0xf]
  %v76 = vld [vmem:[%s0 + $0x15c] sm:$0xff]
  %v77 = vld [vmem:[%s0 + $0x164] sm:$0xf]
  %v78 = vld [vmem:[%s0 + $0x168] sm:$0xff]
  %v79 = vld [vmem:[%s0 + $0x170] sm:$0xf]
  %v80 = vld [vmem:[%s1] sm:$0xf]
  %v81 = vld [vmem:[%s1 + $0x4] sm:$0xf]
  %v82 = vld [vmem:[%s1 + $0x8] sm:$0xf]
  %v83 = vld [vmem:[%s1 + $0xc] sm:$0xf]
  %v84 = vld [vmem:[%s1 + $0x10] sm:$0xf]
  %v85 = vld [vmem:[%s1 + $0x14] sm:$0xf]
  %v86 = vld [vmem:[%s1 + $0x18] sm:$0xf]
  %v87 = vld [vmem:[%s1 + $0x1c] sm:$0xf]
  %v88 = vld [vmem:[%s1 + $0x20] sm:$0xf]
  %v89 = vld [vmem:[%s1 + $0x24] sm:$0xf]
  %v90 = vld [vmem:[%s1 + $0x28] sm:$0xf]
  %v91 = vld [vmem:[%s1 + $0x2c] sm:$0xf]
  %v92 = vld [vmem:[%s1 + $0x30] sm:$0xf]
  %v93 = vld [vmem:[%s1 + $0x34] sm:$0xf]
  %v94 = vld [vmem:[%s1 + $0x38] sm:$0xf]
  %v95 = vld [vmem:[%s1 + $0x3c] sm:$0xf]
  %v96 = vld [vmem:[%s1 + $0x40] sm:$0xf]
  %v97 = vld [vmem:[%s1 + $0x44] sm:$0xf]
  %v98 = vld [vmem:[%s1 + $0x48] sm:$0xf]
  %v99 = vld [vmem:[%s1 + $0x4c] sm:$0xf]
  %v100 = vld [vmem:[%s1 + $0x50] sm:$0xf]
  %v101 = vld [vmem:[%s1 + $0x54] sm:$0xf]
  %v102 = vld [vmem:[%s1 + $0x58] sm:$0xf]
  %v103 = vld [vmem:[%s1 + $0x5c] sm:$0xf]
  %v104 = vld [vmem:[%s1 + $0x60] sm:$0xf]
  %v105 = vld [vmem:[%s1 + $0x64] sm:$0xf]
  %v106 = vld [vmem:[%s1 + $0x68] sm:$0xf]
  %v107 = vld [vmem:[%s1 + $0x6c] sm:$0xf]
  %v108 = vld [vmem:[%s1 + $0x70] sm:$0xf]
  %v109 = vld [vmem:[%s1 + $0x74] sm:$0xf]
  %v110 = vld [vmem:[%s1 + $0x78] sm:$0xf]
  %v111 = vld [vmem:[%s1 + $0x7c] sm:$0xf]
  %v112 = vld [vmem:[%s1 + $0x80] sm:$0xf]
  %v113 = vld [vmem:[%s1 + $0x84] sm:$0xf]
  %v114 = vld [vmem:[%s1 + $0x88] sm:$0xf]
  %v115 = vld [vmem:[%s1 + $0x8c] sm:$0xf]
  %v116 = vld [vmem:[%s1 + $0x90] sm:$0xf]
  %v117 = vld [vmem:[%s1 + $0x94] sm:$0xf]
  %v118 = vld [vmem:[%s1 + $0x98] sm:$0xf]
  %v119 = vld [vmem:[%s1 + $0x9c] sm:$0xf]
  %v120 = vld [vmem:[%s1 + $0xa0] sm:$0xf]
  %v121 = vld [vmem:[%s1 + $0xa4] sm:$0xf]
  %v122 = vld [vmem:[%s1 + $0xa8] sm:$0xf]
  %v123 = vld [vmem:[%s1 + $0xac] sm:$0xf]
  %v124 = vld [vmem:[%s1 + $0xb0] sm:$0xf]
  %v125 = vld [vmem:[%s1 + $0xb4] sm:$0xf]
  %v126 = vld [vmem:[%s1 + $0xb8] sm:$0xf]
  %v127 = vld [vmem:[%s1 + $0xbc] sm:$0xf]
  %v190 = vunpack.c.l.b16 %v18
  %v191 = vunpack.c.h.b16 %v18
  %v192 = vunpack.c.l.b16 %v19
  %v193 = vunpack.c.l.b16 %v20
  %v194 = vunpack.c.h.b16 %v20
  %v195 = vunpack.c.l.b16 %v21
  %v196 = vunpack.c.l.b16 %v22
  %v197 = vunpack.c.h.b16 %v22
  %v198 = vunpack.c.l.b16 %v23
  %v199 = vunpack.c.l.b16 %v24
  %v200 = vunpack.c.h.b16 %v24
  %v201 = vunpack.c.l.b16 %v25
  %v202 = vunpack.c.l.b16 %v26
  %v203 = vunpack.c.h.b16 %v26
  %v204 = vunpack.c.l.b16 %v27
  %v205 = vunpack.c.l.b16 %v28
  %v206 = vunpack.c.h.b16 %v28
  %v207 = vunpack.c.l.b16 %v29
  %v208 = vunpack.c.l.b16 %v30
  %v209 = vunpack.c.h.b16 %v30
  %v210 = vunpack.c.l.b16 %v31
  %v211 = vunpack.c.l.b16 %v32
  %v212 = vunpack.c.h.b16 %v32
  %v213 = vunpack.c.l.b16 %v33
  %v214 = vunpack.c.l.b16 %v34
  %v215 = vunpack.c.h.b16 %v34
  %v216 = vunpack.c.l.b16 %v35
  %v217 = vunpack.c.l.b16 %v36
  %v218 = vunpack.c.h.b16 %v36
  %v219 = vunpack.c.l.b16 %v37
  %v220 = vunpack.c.l.b16 %v38
  %v221 = vunpack.c.h.b16 %v38
  %v222 = vunpack.c.l.b16 %v39
  %v223 = vunpack.c.l.b16 %v40
  %v224 = vunpack.c.h.b16 %v40
  %v225 = vunpack.c.l.b16 %v41
  %v226 = vunpack.c.l.b16 %v42
  %v227 = vunpack.c.h.b16 %v42
  %v228 = vunpack.c.l.b16 %v43
  %v229 = vunpack.c.l.b16 %v44
  %v230 = vunpack.c.h.b16 %v44
  %v231 = vunpack.c.l.b16 %v45
  %v232 = vunpack.c.l.b16 %v46
  %v233 = vunpack.c.h.b16 %v46
  %v234 = vunpack.c.l.b16 %v47
  %v235 = vunpack.c.l.b16 %v48
  %v236 = vunpack.c.h.b16 %v48
  %v237 = vunpack.c.l.b16 %v49
  %v238 = vunpack.c.l.b16 %v50
  %v239 = vunpack.c.h.b16 %v50
  %v240 = vunpack.c.l.b16 %v51
  %v241 = vunpack.c.l.b16 %v52
  %v242 = vunpack.c.h.b16 %v52
  %v243 = vunpack.c.l.b16 %v53
  %v244 = vunpack.c.l.b16 %v54
  %v245 = vunpack.c.h.b16 %v54
  %v246 = vunpack.c.l.b16 %v55
  %v247 = vunpack.c.l.b16 %v56
  %v248 = vunpack.c.h.b16 %v56
  %v249 = vunpack.c.l.b16 %v57
  %v250 = vunpack.c.l.b16 %v58
  %v251 = vunpack.c.h.b16 %v58
  %v252 = vunpack.c.l.b16 %v59
  %v253 = vunpack.c.l.b16 %v60
  %v254 = vunpack.c.h.b16 %v60
  %v255 = vunpack.c.l.b16 %v61
  %v256 = vunpack.c.l.b16 %v62
  %v257 = vunpack.c.h.b16 %v62
  %v258 = vunpack.c.l.b16 %v63
  %v259 = vunpack.c.l.b16 %v64
  %v260 = vunpack.c.h.b16 %v64
  %v261 = vunpack.c.l.b16 %v65
  %v262 = vunpack.c.l.b16 %v66
  %v263 = vunpack.c.h.b16 %v66
  %v264 = vunpack.c.l.b16 %v67
  %v265 = vunpack.c.l.b16 %v68
  %v266 = vunpack.c.h.b16 %v68
  %v267 = vunpack.c.l.b16 %v69
  %v268 = vunpack.c.l.b16 %v70
  %v269 = vunpack.c.h.b16 %v70
  %v270 = vunpack.c.l.b16 %v71
  %v271 = vunpack.c.l.b16 %v72
  %v272 = vunpack.c.h.b16 %v72
  %v273 = vunpack.c.l.b16 %v73
  %v274 = vunpack.c.l.b16 %v74
  %v275 = vunpack.c.h.b16 %v74
  %v276 = vunpack.c.l.b16 %v75
  %v277 = vunpack.c.l.b16 %v76
  %v278 = vunpack.c.h.b16 %v76
  %v279 = vunpack.c.l.b16 %v77
  %v280 = vunpack.c.l.b16 %v78
  %v281 = vunpack.c.h.b16 %v78
  %v282 = vunpack.c.l.b16 %v79
  %v283 = vpack.c.b16 %v193, %v190
  %v284 = vpack.c.b16 %v194, %v191
  %v285 = vpack.c.b16 %v195, %v192
  %v286 = vpack.c.b16 %v199, %v196
  %v287 = vpack.c.b16 %v200, %v197
  %v288 = vpack.c.b16 %v201, %v198
  %v289 = vpack.c.b16 %v205, %v202
  %v290 = vpack.c.b16 %v206, %v203
  %v291 = vpack.c.b16 %v207, %v204
  %v292 = vpack.c.b16 %v211, %v208
  %v293 = vpack.c.b16 %v212, %v209
  %v294 = vpack.c.b16 %v213, %v210
  %v295 = vpack.c.b16 %v217, %v214
  %v296 = vpack.c.b16 %v218, %v215
  %v297 = vpack.c.b16 %v219, %v216
  %v298 = vpack.c.b16 %v223, %v220
  %v299 = vpack.c.b16 %v224, %v221
  %v300 = vpack.c.b16 %v225, %v222
  %v301 = vpack.c.b16 %v229, %v226
  %v302 = vpack.c.b16 %v230, %v227
  %v303 = vpack.c.b16 %v231, %v228
  %v304 = vpack.c.b16 %v235, %v232
  %v305 = vpack.c.b16 %v236, %v233
  %v306 = vpack.c.b16 %v237, %v234
  %v307 = vpack.c.b16 %v241, %v238
  %v308 = vpack.c.b16 %v242, %v239
  %v309 = vpack.c.b16 %v243, %v240
  %v310 = vpack.c.b16 %v247, %v244
  %v311 = vpack.c.b16 %v248, %v245
  %v312 = vpack.c.b16 %v249, %v246
  %v313 = vpack.c.b16 %v253, %v250
  %v314 = vpack.c.b16 %v254, %v251
  %v315 = vpack.c.b16 %v255, %v252
  %v316 = vpack.c.b16 %v259, %v256
  %v317 = vpack.c.b16 %v260, %v257
  %v318 = vpack.c.b16 %v261, %v258
  %v319 = vpack.c.b16 %v265, %v262
  %v320 = vpack.c.b16 %v266, %v263
  %v321 = vpack.c.b16 %v267, %v264
  %v322 = vpack.c.b16 %v271, %v268
  %v323 = vpack.c.b16 %v272, %v269
  %v324 = vpack.c.b16 %v273, %v270
  %v325 = vpack.c.b16 %v277, %v274
  %v326 = vpack.c.b16 %v278, %v275
  %v327 = vpack.c.b16 %v279, %v276
  %v328 = vpack.c.b16 %v280, %v280
  %v329 = vpack.c.b16 %v281, %v281
  %v330 = vpack.c.b16 %v282, %v282
  %v427 = vunpack.c.l.b16 %v80
  %v428 = vunpack.c.l.b16 %v81
  %v429 = vunpack.c.l.b16 %v82
  %v430 = vunpack.c.l.b16 %v83
  %v431 = vunpack.c.l.b16 %v84
  %v432 = vunpack.c.l.b16 %v85
  %v433 = vunpack.c.l.b16 %v86
  %v434 = vunpack.c.l.b16 %v87
  %v435 = vunpack.c.l.b16 %v88
  %v436 = vunpack.c.l.b16 %v89
  %v437 = vunpack.c.l.b16 %v90
  %v438 = vunpack.c.l.b16 %v91
  %v439 = vunpack.c.l.b16 %v92
  %v440 = vunpack.c.l.b16 %v93
  %v441 = vunpack.c.l.b16 %v94
  %v442 = vunpack.c.l.b16 %v95
  %v443 = vunpack.c.l.b16 %v96
  %v444 = vunpack.c.l.b16 %v97
  %v445 = vunpack.c.l.b16 %v98
  %v446 = vunpack.c.l.b16 %v99
  %v447 = vunpack.c.l.b16 %v100
  %v448 = vunpack.c.l.b16 %v101
  %v449 = vunpack.c.l.b16 %v102
  %v450 = vunpack.c.l.b16 %v103
  %v451 = vunpack.c.l.b16 %v104
  %v452 = vunpack.c.l.b16 %v105
  %v453 = vunpack.c.l.b16 %v106
  %v454 = vunpack.c.l.b16 %v107
  %v455 = vunpack.c.l.b16 %v108
  %v456 = vunpack.c.l.b16 %v109
  %v457 = vunpack.c.l.b16 %v110
  %v458 = vunpack.c.l.b16 %v111
  %v459 = vunpack.c.l.b16 %v112
  %v460 = vunpack.c.l.b16 %v113
  %v461 = vunpack.c.l.b16 %v114
  %v462 = vunpack.c.l.b16 %v115
  %v463 = vunpack.c.l.b16 %v116
  %v464 = vunpack.c.l.b16 %v117
  %v465 = vunpack.c.l.b16 %v118
  %v466 = vunpack.c.l.b16 %v119
  %v467 = vunpack.c.l.b16 %v120
  %v468 = vunpack.c.l.b16 %v121
  %v469 = vunpack.c.l.b16 %v122
  %v470 = vunpack.c.l.b16 %v123
  %v471 = vunpack.c.l.b16 %v124
  %v472 = vunpack.c.l.b16 %v125
  %v473 = vunpack.c.l.b16 %v126
  %v474 = vunpack.c.l.b16 %v127
  %v475 = vpack.c.b16 %v428, %v427
  %v476 = vpack.c.b16 %v430, %v429
  %v477 = vpack.c.b16 %v432, %v431
  %v478 = vpack.c.b16 %v434, %v433
  %v479 = vpack.c.b16 %v436, %v435
  %v480 = vpack.c.b16 %v438, %v437
  %v481 = vpack.c.b16 %v440, %v439
  %v482 = vpack.c.b16 %v442, %v441
  %v483 = vpack.c.b16 %v444, %v443
  %v484 = vpack.c.b16 %v446, %v445
  %v485 = vpack.c.b16 %v448, %v447
  %v486 = vpack.c.b16 %v450, %v449
  %v487 = vpack.c.b16 %v452, %v451
  %v488 = vpack.c.b16 %v454, %v453
  %v489 = vpack.c.b16 %v456, %v455
  %v490 = vpack.c.b16 %v458, %v457
  %v491 = vpack.c.b16 %v460, %v459
  %v492 = vpack.c.b16 %v462, %v461
  %v493 = vpack.c.b16 %v464, %v463
  %v494 = vpack.c.b16 %v466, %v465
  %v495 = vpack.c.b16 %v468, %v467
  %v496 = vpack.c.b16 %v470, %v469
  %v497 = vpack.c.b16 %v472, %v471
  %v498 = vpack.c.b16 %v474, %v473
  %523 = vmatprep.subr.bf16.mxu0 0
  %524 = vmatpush1.bf16.msra.mxu0 %v475
  %525 = vmatprep.subr.bf16.mxu0 0
  %526 = vmatpush1.bf16.msra.mxu0 %v476
  %527 = vmatprep.subr.bf16.mxu0 0
  %528 = vmatpush1.bf16.msra.mxu0 %v477
  %529 = vmatprep.subr.bf16.mxu0 0
  %530 = vmatpush1.bf16.msra.mxu0 %v478
  %531 = vmatprep.subr.bf16.mxu0 0
  %532 = vmatpush1.bf16.msra.mxu0 %v479
  %533 = vmatprep.subr.bf16.mxu0 0
  %534 = vmatpush1.bf16.msra.mxu0 %v480
  %535 = vmatprep.subr.bf16.mxu0 0
  %536 = vmatpush1.bf16.msra.mxu0 %v481
  %537 = vmatprep.subr.bf16.mxu0 0
  %538 = vmatpush1.bf16.msra.mxu0 %v482
  %539 = vmatprep.subr.bf16.mxu0 0
  %540 = vmatpush1.bf16.msra.mxu0 %v483
  %541 = vmatprep.subr.bf16.mxu0 0
  %542 = vmatpush1.bf16.msra.mxu0 %v484
  %543 = vmatprep.subr.bf16.mxu0 0
  %544 = vmatpush1.bf16.msra.mxu0 %v485
  %545 = vmatprep.subr.bf16.mxu0 0
  %546 = vmatpush1.bf16.msra.mxu0 %v486
  %547 = vmatprep.subr.bf16.mxu0 0
  %548 = vmatpush1.bf16.msra.mxu0 %v487
  %549 = vmatprep.subr.bf16.mxu0 0
  %550 = vmatpush1.bf16.msra.mxu0 %v488
  %551 = vmatprep.subr.bf16.mxu0 0
  %552 = vmatpush1.bf16.msra.mxu0 %v489
  %553 = vmatprep.subr.bf16.mxu0 0
  %554 = vmatpush1.bf16.msra.mxu0 %v490
  %555 = vmatprep.mubr.bf16.mxu0 %v284
  %556 = vmatmul.mubr.bf16.gmra.mrb[0].mxu0 %v283
  %v557 = vpop.f32.mrb[0].mxu0
  %v558 = vadd.f32 0.0, %v557
  %v559 = vpop.f32.mrb[0].mxu0
  %v560 = vpop.f32.mrb[0].mxu0
  %v561 = vadd.f32 0.0, %v560
  %v562 = vpop.f32.mrb[0].mxu0
  %563 = vmatprep.mubr.bf16.mxu0 %v287
  %564 = vmatmul.mubr.bf16.gmra.mrb[0].mxu0 %v286
  %v565 = vpop.f32.mrb[0].mxu0
  %v566 = vadd.f32 0.0, %v565
  %v567 = vpop.f32.mrb[0].mxu0
  %v568 = vpop.f32.mrb[0].mxu0
  %v569 = vadd.f32 0.0, %v568
  %v570 = vpop.f32.mrb[0].mxu0
  %571 = vmatprep.mubr.bf16.mxu0 %v290
  %572 = vmatmul.mubr.bf16.gmra.mrb[0].mxu0 %v289
  %v573 = vpop.f32.mrb[0].mxu0
  %v574 = vadd.f32 0.0, %v573
  %v575 = vpop.f32.mrb[0].mxu0
  %v576 = vpop.f32.mrb[0].mxu0
  %v577 = vadd.f32 0.0, %v576
  %v578 = vpop.f32.mrb[0].mxu0
  %579 = vmatprep.mubr.bf16.mxu0 %v293
  %580 = vmatmul.mubr.bf16.gmra.mrb[0].mxu0 %v292
  %v581 = vpop.f32.mrb[0].mxu0
  %v582 = vadd.f32 0.0, %v581
  %v583 = vpop.f32.mrb[0].mxu0
  %v584 = vpop.f32.mrb[0].mxu0
  %v585 = vadd.f32 0.0, %v584
  %v586 = vpop.f32.mrb[0].mxu0
  %587 = vmatprep.mubr.bf16.mxu0 %v296
  %588 = vmatmul.mubr.bf16.gmra.mrb[0].mxu0 %v295
  %v589 = vpop.f32.mrb[0].mxu0
  %v590 = vadd.f32 0.0, %v589
  %v591 = vpop.f32.mrb[0].mxu0
  %v592 = vpop.f32.mrb[0].mxu0
  %v593 = vadd.f32 0.0, %v592
  %v594 = vpop.f32.mrb[0].mxu0
  %595 = vmatprep.mubr.bf16.mxu0 %v299
  %596 = vmatmul.mubr.bf16.gmra.mrb[0].mxu0 %v298
  %v597 = vpop.f32.mrb[0].mxu0
  %v598 = vadd.f32 0.0, %v597
  %v599 = vpop.f32.mrb[0].mxu0
  %v600 = vpop.f32.mrb[0].mxu0
  %v601 = vadd.f32 0.0, %v600
  %v602 = vpop.f32.mrb[0].mxu0
  %603 = vmatprep.mubr.bf16.mxu0 %v302
  %604 = vmatmul.mubr.bf16.gmra.mrb[0].mxu0 %v301
  %v605 = vpop.f32.mrb[0].mxu0
  %v606 = vadd.f32 0.0, %v605
  %v607 = vpop.f32.mrb[0].mxu0
  %v608 = vpop.f32.mrb[0].mxu0
  %v609 = vadd.f32 0.0, %v608
  %v610 = vpop.f32.mrb[0].mxu0
  %611 = vmatprep.mubr.bf16.mxu0 %v305
  %612 = vmatmul.mubr.bf16.gmra.mrb[0].mxu0 %v304
  %v613 = vpop.f32.mrb[0].mxu0
  %v614 = vadd.f32 0.0, %v613
  %v615 = vpop.f32.mrb[0].mxu0
  %v616 = vpop.f32.mrb[0].mxu0
  %v617 = vadd.f32 0.0, %v616
  %v618 = vpop.f32.mrb[0].mxu0
  %619 = vmatprep.mubr.bf16.mxu0 %v308
  %620 = vmatmul.mubr.bf16.gmra.mrb[0].mxu0 %v307
  %v621 = vpop.f32.mrb[0].mxu0
  %v622 = vadd.f32 0.0, %v621
  %v623 = vpop.f32.mrb[0].mxu0
  %v624 = vpop.f32.mrb[0].mxu0
  %v625 = vadd.f32 0.0, %v624
  %v626 = vpop.f32.mrb[0].mxu0
  %627 = vmatprep.mubr.bf16.mxu0 %v311
  %628 = vmatmul.mubr.bf16.gmra.mrb[0].mxu0 %v310
  %v629 = vpop.f32.mrb[0].mxu0
  %v630 = vadd.f32 0.0, %v629
  %v631 = vpop.f32.mrb[0].mxu0
  %v632 = vpop.f32.mrb[0].mxu0
  %v633 = vadd.f32 0.0, %v632
  %v634 = vpop.f32.mrb[0].mxu0
  %635 = vmatprep.mubr.bf16.mxu0 %v314
  %636 = vmatmul.mubr.bf16.gmra.mrb[0].mxu0 %v313
  %v637 = vpop.f32.mrb[0].mxu0
  %v638 = vadd.f32 0.0, %v637
  %v639 = vpop.f32.mrb[0].mxu0
  %v640 = vpop.f32.mrb[0].mxu0
  %v641 = vadd.f32 0.0, %v640
  %v642 = vpop.f32.mrb[0].mxu0
  %643 = vmatprep.mubr.bf16.mxu0 %v317
  %644 = vmatmul.mubr.bf16.gmra.mrb[0].mxu0 %v316
  %v645 = vpop.f32.mrb[0].mxu0
  %v646 = vadd.f32 0.0, %v645
  %v647 = vpop.f32.mrb[0].mxu0
  %v648 = vpop.f32.mrb[0].mxu0
  %v649 = vadd.f32 0.0, %v648
  %v650 = vpop.f32.mrb[0].mxu0
  %651 = vmatprep.mubr.bf16.mxu0 %v320
  %652 = vmatmul.mubr.bf16.gmra.mrb[0].mxu0 %v319
  %v653 = vpop.f32.mrb[0].mxu0
  %v654 = vadd.f32 0.0, %v653
  %v655 = vpop.f32.mrb[0].mxu0
  %v656 = vpop.f32.mrb[0].mxu0
  %v657 = vadd.f32 0.0, %v656
  %v658 = vpop.f32.mrb[0].mxu0
  %659 = vmatprep.mubr.bf16.mxu0 %v323
  %660 = vmatmul.mubr.bf16.gmra.mrb[0].mxu0 %v322
  %v661 = vpop.f32.mrb[0].mxu0
  %v662 = vadd.f32 0.0, %v661
  %v663 = vpop.f32.mrb[0].mxu0
  %v664 = vpop.f32.mrb[0].mxu0
  %v665 = vadd.f32 0.0, %v664
  %v666 = vpop.f32.mrb[0].mxu0
  %667 = vmatprep.mubr.bf16.mxu0 %v326
  %668 = vmatmul.mubr.bf16.gmra.mrb[0].mxu0 %v325
  %v669 = vpop.f32.mrb[0].mxu0
  %v670 = vadd.f32 0.0, %v669
  %v671 = vpop.f32.mrb[0].mxu0
  %v672 = vpop.f32.mrb[0].mxu0
  %v673 = vadd.f32 0.0, %v672
  %v674 = vpop.f32.mrb[0].mxu0
  %675 = vmatprep.mubr.bf16.mxu0 %v329
  %676 = vmatmul.mubr.bf16.gmra.mrb[0].mxu0 %v328
  %v677 = vpop.f32.mrb[0].mxu0
  %v678 = vadd.f32 0.0, %v677
  %v679 = vpop.f32.mrb[0].mxu0
  %v680 = vpop.f32.mrb[0].mxu0
  %v681 = vpop.f32.mrb[0].mxu0
  %682 = vdwg.mxu0
  %683 = vmatprep.subr.bf16.mxu0 0
  %684 = vmatpush1.bf16.msra.mxu0 %v491
  %685 = vmatprep.subr.bf16.mxu0 0
  %686 = vmatpush1.bf16.msra.mxu0 %v492
  %687 = vmatprep.subr.bf16.mxu0 0
  %688 = vmatpush1.bf16.msra.mxu0 %v493
  %689 = vmatprep.subr.bf16.mxu0 0
  %690 = vmatpush1.bf16.msra.mxu0 %v494
  %691 = vmatprep.subr.bf16.mxu0 0
  %692 = vmatpush1.bf16.msra.mxu0 %v495
  %693 = vmatprep.subr.bf16.mxu0 0
  %694 = vmatpush1.bf16.msra.mxu0 %v496
  %695 = vmatprep.subr.bf16.mxu0 0
  %696 = vmatpush1.bf16.msra.mxu0 %v497
  %697 = vmatprep.subr.bf16.mxu0 0
  %698 = vmatpush1.bf16.msra.mxu0 %v498
  %699 = vmatprep.subr.bf16.mxu0 0
  %700 = vmatpush1.bf16.msra.mxu0 0
  %701 = vmatprep.subr.bf16.mxu0 0
  %702 = vmatpush1.bf16.msra.mxu0 0
  %703 = vmatprep.subr.bf16.mxu0 0
  %704 = vmatpush1.bf16.msra.mxu0 0
  %705 = vmatprep.subr.bf16.mxu0 0
  %706 = vmatpush1.bf16.msra.mxu0 0
  %707 = vmatprep.subr.bf16.mxu0 0
  %708 = vmatpush1.bf16.msra.mxu0 0
  %709 = vmatprep.subr.bf16.mxu0 0
  %710 = vmatpush1.bf16.msra.mxu0 0
  %711 = vmatprep.subr.bf16.mxu0 0
  %712 = vmatpush1.bf16.msra.mxu0 0
  %713 = vmatprep.subr.bf16.mxu0 0
  %714 = vmatpush1.bf16.msra.mxu0 0
  %715 = vmatprep.mubr.bf16.mxu0 0
  %716 = vmatmul.mubr.bf16.gmra.mrb[0].mxu0 %v285
  %v717 = vpop.f32.mrb[0].mxu0
  %v718 = vadd.f32 %v558, %v717
  %v719 = vpop.f32.mrb[0].mxu0
  %v720 = vpop.f32.mrb[0].mxu0
  %v721 = vadd.f32 %v561, %v720
  %v722 = vpop.f32.mrb[0].mxu0
  %723 = vmatprep.mubr.bf16.mxu0 0
  %724 = vmatmul.mubr.bf16.gmra.mrb[0].mxu0 %v288
  %v725 = vpop.f32.mrb[0].mxu0
  %v726 = vadd.f32 %v566, %v725
  %v727 = vpop.f32.mrb[0].mxu0
  %v728 = vpop.f32.mrb[0].mxu0
  %v729 = vadd.f32 %v569, %v728
  %v730 = vpop.f32.mrb[0].mxu0
  %731 = vmatprep.mubr.bf16.mxu0 0
  %732 = vmatmul.mubr.bf16.gmra.mrb[0].mxu0 %v291
  %v733 = vpop.f32.mrb[0].mxu0
  %v734 = vadd.f32 %v574, %v733
  %v735 = vpop.f32.mrb[0].mxu0
  %v736 = vpop.f32.mrb[0].mxu0
  %v737 = vadd.f32 %v577, %v736
  %v738 = vpop.f32.mrb[0].mxu0
  %739 = vmatprep.mubr.bf16.mxu0 0
  %740 = vmatmul.mubr.bf16.gmra.mrb[0].mxu0 %v294
  %v741 = vpop.f32.mrb[0].mxu0
  %v742 = vadd.f32 %v582, %v741
  %v743 = vpop.f32.mrb[0].mxu0
  %v744 = vpop.f32.mrb[0].mxu0
  %v745 = vadd.f32 %v585, %v744
  %v746 = vpop.f32.mrb[0].mxu0
  %747 = vmatprep.mubr.bf16.mxu0 0
  %748 = vmatmul.mubr.bf16.gmra.mrb[0].mxu0 %v297
  %v749 = vpop.f32.mrb[0].mxu0
  %v750 = vadd.f32 %v590, %v749
  %v751 = vpop.f32.mrb[0].mxu0
  %v752 = vpop.f32.mrb[0].mxu0
  %v753 = vadd.f32 %v593, %v752
  %v754 = vpop.f32.mrb[0].mxu0
  %755 = vmatprep.mubr.bf16.mxu0 0
  %756 = vmatmul.mubr.bf16.gmra.mrb[0].mxu0 %v300
  %v757 = vpop.f32.mrb[0].mxu0
  %v758 = vadd.f32 %v598, %v757
  %v759 = vpop.f32.mrb[0].mxu0
  %v760 = vpop.f32.mrb[0].mxu0
  %v761 = vadd.f32 %v601, %v760
  %v762 = vpop.f32.mrb[0].mxu0
  %763 = vmatprep.mubr.bf16.mxu0 0
  %764 = vmatmul.mubr.bf16.gmra.mrb[0].mxu0 %v303
  %v765 = vpop.f32.mrb[0].mxu0
  %v766 = vadd.f32 %v606, %v765
  %v767 = vpop.f32.mrb[0].mxu0
  %v768 = vpop.f32.mrb[0].mxu0
  %v769 = vadd.f32 %v609, %v768
  %v770 = vpop.f32.mrb[0].mxu0
  %771 = vmatprep.mubr.bf16.mxu0 0
  %772 = vmatmul.mubr.bf16.gmra.mrb[0].mxu0 %v306
  %v773 = vpop.f32.mrb[0].mxu0
  %v774 = vadd.f32 %v614, %v773
  %v775 = vpop.f32.mrb[0].mxu0
  %v776 = vpop.f32.mrb[0].mxu0
  %v777 = vadd.f32 %v617, %v776
  %v778 = vpop.f32.mrb[0].mxu0
  %779 = vmatprep.mubr.bf16.mxu0 0
  %780 = vmatmul.mubr.bf16.gmra.mrb[0].mxu0 %v309
  %v781 = vpop.f32.mrb[0].mxu0
  %v782 = vadd.f32 %v622, %v781
  %v783 = vpop.f32.mrb[0].mxu0
  %v784 = vpop.f32.mrb[0].mxu0
  %v785 = vadd.f32 %v625, %v784
  %v786 = vpop.f32.mrb[0].mxu0
  %787 = vmatprep.mubr.bf16.mxu0 0
  %788 = vmatmul.mubr.bf16.gmra.mrb[0].mxu0 %v312
  %v789 = vpop.f32.mrb[0].mxu0
  %v790 = vadd.f32 %v630, %v789
  %v791 = vpop.f32.mrb[0].mxu0
  %v792 = vpop.f32.mrb[0].mxu0
  %v793 = vadd.f32 %v633, %v792
  %v794 = vpop.f32.mrb[0].mxu0
  %795 = vmatprep.mubr.bf16.mxu0 0
  %796 = vmatmul.mubr.bf16.gmra.mrb[0].mxu0 %v315
  %v797 = vpop.f32.mrb[0].mxu0
  %v798 = vadd.f32 %v638, %v797
  %v799 = vpop.f32.mrb[0].mxu0
  %v800 = vpop.f32.mrb[0].mxu0
  %v801 = vadd.f32 %v641, %v800
  %v802 = vpop.f32.mrb[0].mxu0
  %803 = vmatprep.mubr.bf16.mxu0 0
  %804 = vmatmul.mubr.bf16.gmra.mrb[0].mxu0 %v318
  %v805 = vpop.f32.mrb[0].mxu0
  %v806 = vadd.f32 %v646, %v805
  %v807 = vpop.f32.mrb[0].mxu0
  %v808 = vpop.f32.mrb[0].mxu0
  %v809 = vadd.f32 %v649, %v808
  %v810 = vpop.f32.mrb[0].mxu0
  %811 = vmatprep.mubr.bf16.mxu0 0
  %812 = vmatmul.mubr.bf16.gmra.mrb[0].mxu0 %v321
  %v813 = vpop.f32.mrb[0].mxu0
  %v814 = vadd.f32 %v654, %v813
  %v815 = vpop.f32.mrb[0].mxu0
  %v816 = vpop.f32.mrb[0].mxu0
  %v817 = vadd.f32 %v657, %v816
  %v818 = vpop.f32.mrb[0].mxu0
  %819 = vmatprep.mubr.bf16.mxu0 0
  %820 = vmatmul.mubr.bf16.gmra.mrb[0].mxu0 %v324
  %v821 = vpop.f32.mrb[0].mxu0
  %v822 = vadd.f32 %v662, %v821
  %v823 = vpop.f32.mrb[0].mxu0
  %v824 = vpop.f32.mrb[0].mxu0
  %v825 = vadd.f32 %v665, %v824
  %v826 = vpop.f32.mrb[0].mxu0
  %827 = vmatprep.mubr.bf16.mxu0 0
  %828 = vmatmul.mubr.bf16.gmra.mrb[0].mxu0 %v327
  %v829 = vpop.f32.mrb[0].mxu0
  %v830 = vadd.f32 %v670, %v829
  %v831 = vpop.f32.mrb[0].mxu0
  %v832 = vpop.f32.mrb[0].mxu0
  %v833 = vadd.f32 %v673, %v832
  %v834 = vpop.f32.mrb[0].mxu0
  %835 = vmatprep.mubr.bf16.mxu0 0
  %836 = vmatmul.mubr.bf16.gmra.mrb[0].mxu0 %v330
  %v837 = vpop.f32.mrb[0].mxu0
  %v838 = vadd.f32 %v678, %v837
  %v839 = vpop.f32.mrb[0].mxu0
  %v840 = vpop.f32.mrb[0].mxu0
  %v841 = vpop.f32.mrb[0].mxu0
  %842 = vdwg.mxu0
  %v843 = vld [vmem:[%s2] sm:$0x1]
  %v845 = vlaneseq
  %v846 = vshrl.u32 %v845, 7
  %v847 = vsub.s32 0, %v846
  %v848 = vrot.slane %v843, %v847
  %v850 = vmul.f32 %v718, %v848
  %v851 = vmul.f32 %v721, %v848
  %v852 = vmul.f32 %v726, %v848
  %v853 = vmul.f32 %v729, %v848
  %v854 = vmul.f32 %v734, %v848
  %v855 = vmul.f32 %v737, %v848
  %v856 = vmul.f32 %v742, %v848
  %v857 = vmul.f32 %v745, %v848
  %v858 = vmul.f32 %v750, %v848
  %v859 = vmul.f32 %v753, %v848
  %v860 = vmul.f32 %v758, %v848
  %v861 = vmul.f32 %v761, %v848
  %v862 = vmul.f32 %v766, %v848
  %v863 = vmul.f32 %v769, %v848
  %v864 = vmul.f32 %v774, %v848
  %v865 = vmul.f32 %v777, %v848
  %v866 = vmul.f32 %v782, %v848
  %v867 = vmul.f32 %v785, %v848
  %v868 = vmul.f32 %v790, %v848
  %v869 = vmul.f32 %v793, %v848
  %v870 = vmul.f32 %v798, %v848
  %v871 = vmul.f32 %v801, %v848
  %v872 = vmul.f32 %v806, %v848
  %v873 = vmul.f32 %v809, %v848
  %v874 = vmul.f32 %v814, %v848
  %v875 = vmul.f32 %v817, %v848
  %v876 = vmul.f32 %v822, %v848
  %v877 = vmul.f32 %v825, %v848
  %v878 = vmul.f32 %v830, %v848
  %v879 = vmul.f32 %v833, %v848
  %v880 = vmul.f32 %v838, %v848
  %v881 = vld [vmem:[%s3] sm:$0x1]
  %v883 = vlaneseq
  %v884 = vshrl.u32 %v883, 7
  %v885 = vsub.s32 0, %v884
  %v886 = vrot.slane %v881, %v885
  %v888 = vadd.f32 %v850, %v886
  %v889 = vadd.f32 %v851, %v886
  %v890 = vadd.f32 %v852, %v886
  %v891 = vadd.f32 %v853, %v886
  %v892 = vadd.f32 %v854, %v886
  %v893 = vadd.f32 %v855, %v886
  %v894 = vadd.f32 %v856, %v886
  %v895 = vadd.f32 %v857, %v886
  %v896 = vadd.f32 %v858, %v886
  %v897 = vadd.f32 %v859, %v886
  %v898 = vadd.f32 %v860, %v886
  %v899 = vadd.f32 %v861, %v886
  %v900 = vadd.f32 %v862, %v886
  %v901 = vadd.f32 %v863, %v886
  %v902 = vadd.f32 %v864, %v886
  %v903 = vadd.f32 %v865, %v886
  %v904 = vadd.f32 %v866, %v886
  %v905 = vadd.f32 %v867, %v886
  %v906 = vadd.f32 %v868, %v886
  %v907 = vadd.f32 %v869, %v886
  %v908 = vadd.f32 %v870, %v886
  %v909 = vadd.f32 %v871, %v886
  %v910 = vadd.f32 %v872, %v886
  %v911 = vadd.f32 %v873, %v886
  %v912 = vadd.f32 %v874, %v886
  %v913 = vadd.f32 %v875, %v886
  %v914 = vadd.f32 %v876, %v886
  %v915 = vadd.f32 %v877, %v886
  %v916 = vadd.f32 %v878, %v886
  %v917 = vadd.f32 %v879, %v886
  %v918 = vadd.f32 %v880, %v886
  %v919 = vmax.f32 %v888, 0.0
  %v920 = vmax.f32 %v889, 0.0
  %v921 = vmax.f32 %v890, 0.0
  %v922 = vmax.f32 %v891, 0.0
  %v923 = vmax.f32 %v892, 0.0
  %v924 = vmax.f32 %v893, 0.0
  %v925 = vmax.f32 %v894, 0.0
  %v926 = vmax.f32 %v895, 0.0
  %v927 = vmax.f32 %v896, 0.0
  %v928 = vmax.f32 %v897, 0.0
  %v929 = vmax.f32 %v898, 0.0
  %v930 = vmax.f32 %v899, 0.0
  %v931 = vmax.f32 %v900, 0.0
  %v932 = vmax.f32 %v901, 0.0
  %v933 = vmax.f32 %v902, 0.0
  %v934 = vmax.f32 %v903, 0.0
  %v935 = vmax.f32 %v904, 0.0
  %v936 = vmax.f32 %v905, 0.0
  %v937 = vmax.f32 %v906, 0.0
  %v938 = vmax.f32 %v907, 0.0
  %v939 = vmax.f32 %v908, 0.0
  %v940 = vmax.f32 %v909, 0.0
  %v941 = vmax.f32 %v910, 0.0
  %v942 = vmax.f32 %v911, 0.0
  %v943 = vmax.f32 %v912, 0.0
  %v944 = vmax.f32 %v913, 0.0
  %v945 = vmax.f32 %v914, 0.0
  %v946 = vmax.f32 %v915, 0.0
  %v947 = vmax.f32 %v916, 0.0
  %v948 = vmax.f32 %v917, 0.0
  %v949 = vmax.f32 %v918, 0.0
  %v950 = vpack.c.bf16 %v920, %v919
  %v951 = vpack.c.bf16 %v922, %v921
  %v952 = vpack.c.bf16 %v924, %v923
  %v953 = vpack.c.bf16 %v926, %v925
  %v954 = vpack.c.bf16 %v928, %v927
  %v955 = vpack.c.bf16 %v930, %v929
  %v956 = vpack.c.bf16 %v932, %v931
  %v957 = vpack.c.bf16 %v934, %v933
  %v958 = vpack.c.bf16 %v936, %v935
  %v959 = vpack.c.bf16 %v938, %v937
  %v960 = vpack.c.bf16 %v940, %v939
  %v961 = vpack.c.bf16 %v942, %v941
  %v962 = vpack.c.bf16 %v944, %v943
  %v963 = vpack.c.bf16 %v946, %v945
  %v964 = vpack.c.bf16 %v948, %v947
  %v965 = vpack.c.bf16 %v949, %v949
  %v982 = vunpack.c.l.b16 %v950
  %v983 = vunpack.c.h.b16 %v950
  %v984 = vunpack.c.l.b16 %v951
  %v985 = vunpack.c.h.b16 %v951
  %v986 = vunpack.c.l.b16 %v952
  %v987 = vunpack.c.h.b16 %v952
  %v988 = vunpack.c.l.b16 %v953
  %v989 = vunpack.c.h.b16 %v953
  %v990 = vunpack.c.l.b16 %v954
  %v991 = vunpack.c.h.b16 %v954
  %v992 = vunpack.c.l.b16 %v955
  %v993 = vunpack.c.h.b16 %v955
  %v994 = vunpack.c.l.b16 %v956
  %v995 = vunpack.c.h.b16 %v956
  %v996 = vunpack.c.l.b16 %v957
  %v997 = vunpack.c.h.b16 %v957
  %v998 = vunpack.c.l.b16 %v958
  %v999 = vunpack.c.h.b16 %v958
  %v1000 = vunpack.c.l.b16 %v959
  %v1001 = vunpack.c.h.b16 %v959
  %v1002 = vunpack.c.l.b16 %v960
  %v1003 = vunpack.c.h.b16 %v960
  %v1004 = vunpack.c.l.b16 %v961
  %v1005 = vunpack.c.h.b16 %v961
  %v1006 = vunpack.c.l.b16 %v962
  %v1007 = vunpack.c.h.b16 %v962
  %v1008 = vunpack.c.l.b16 %v963
  %v1009 = vunpack.c.h.b16 %v963
  %v1010 = vunpack.c.l.b16 %v964
  %v1011 = vunpack.c.h.b16 %v964
  %v1012 = vunpack.c.l.b16 %v965
  %v1013 = vpack.c.b16 %v982, %v982
  %v1014 = vpack.c.b16 %v983, %v983
  %v1015 = vpack.c.b16 %v984, %v984
  %v1016 = vpack.c.b16 %v985, %v985
  %v1017 = vpack.c.b16 %v986, %v986
  %v1018 = vpack.c.b16 %v987, %v987
  %v1019 = vpack.c.b16 %v988, %v988
  %v1020 = vpack.c.b16 %v989, %v989
  %v1021 = vpack.c.b16 %v990, %v990
  %v1022 = vpack.c.b16 %v991, %v991
  %v1023 = vpack.c.b16 %v992, %v992
  %v1024 = vpack.c.b16 %v993, %v993
  %v1025 = vpack.c.b16 %v994, %v994
  %v1026 = vpack.c.b16 %v995, %v995
  %v1027 = vpack.c.b16 %v996, %v996
  %v1028 = vpack.c.b16 %v997, %v997
  %v1029 = vpack.c.b16 %v998, %v998
  %v1030 = vpack.c.b16 %v999, %v999
  %v1031 = vpack.c.b16 %v1000, %v1000
  %v1032 = vpack.c.b16 %v1001, %v1001
  %v1033 = vpack.c.b16 %v1002, %v1002
  %v1034 = vpack.c.b16 %v1003, %v1003
  %v1035 = vpack.c.b16 %v1004, %v1004
  %v1036 = vpack.c.b16 %v1005, %v1005
  %v1037 = vpack.c.b16 %v1006, %v1006
  %v1038 = vpack.c.b16 %v1007, %v1007
  %v1039 = vpack.c.b16 %v1008, %v1008
  %v1040 = vpack.c.b16 %v1009, %v1009
  %v1041 = vpack.c.b16 %v1010, %v1010
  %v1042 = vpack.c.b16 %v1011, %v1011
  %v1043 = vpack.c.b16 %v1012, %v1012
  %1075 = vst [vmem:[%s4] sm:$0xf] %v1013
  %1076 = vst [vmem:[%s4 + $0x4] sm:$0xf] %v1014
  %1077 = vst [vmem:[%s4 + $0x8] sm:$0xf] %v1015
  %1078 = vst [vmem:[%s4 + $0xc] sm:$0xf] %v1016
  %1079 = vst [vmem:[%s4 + $0x10] sm:$0xf] %v1017
  %1080 = vst [vmem:[%s4 + $0x14] sm:$0xf] %v1018
  %1081 = vst [vmem:[%s4 + $0x18] sm:$0xf] %v1019
  %1082 = vst [vmem:[%s4 + $0x1c] sm:$0xf] %v1020
  %1083 = vst [vmem:[%s4 + $0x20] sm:$0xf] %v1021
  %1084 = vst [vmem:[%s4 + $0x24] sm:$0xf] %v1022
  %1085 = vst [vmem:[%s4 + $0x28] sm:$0xf] %v1023
  %1086 = vst [vmem:[%s4 + $0x2c] sm:$0xf] %v1024
  %1087 = vst [vmem:[%s4 + $0x30] sm:$0xf] %v1025
  %1088 = vst [vmem:[%s4 + $0x34] sm:$0xf] %v1026
  %1089 = vst [vmem:[%s4 + $0x38] sm:$0xf] %v1027
  %1090 = vst [vmem:[%s4 + $0x3c] sm:$0xf] %v1028
  %1091 = vst [vmem:[%s4 + $0x40] sm:$0xf] %v1029
  %1092 = vst [vmem:[%s4 + $0x44] sm:$0xf] %v1030
  %1093 = vst [vmem:[%s4 + $0x48] sm:$0xf] %v1031
  %1094 = vst [vmem:[%s4 + $0x4c] sm:$0xf] %v1032
  %1095 = vst [vmem:[%s4 + $0x50] sm:$0xf] %v1033
  %1096 = vst [vmem:[%s4 + $0x54] sm:$0xf] %v1034
  %1097 = vst [vmem:[%s4 + $0x58] sm:$0xf] %v1035
  %1098 = vst [vmem:[%s4 + $0x5c] sm:$0xf] %v1036
  %1099 = vst [vmem:[%s4 + $0x60] sm:$0xf] %v1037
  %1100 = vst [vmem:[%s4 + $0x64] sm:$0xf] %v1038
  %1101 = vst [vmem:[%s4 + $0x68] sm:$0xf] %v1039
  %1102 = vst [vmem:[%s4 + $0x6c] sm:$0xf] %v1040
  %1103 = vst [vmem:[%s4 + $0x70] sm:$0xf] %v1041
  %1104 = vst [vmem:[%s4 + $0x74] sm:$0xf] %v1042
  %1105 = vst [vmem:[%s4 + $0x78] sm:$0xf] %v1043
  // Predicated region
  $region18: #{vae_forward.10} parent=0 // pred_check
    _
  $region19: #{vae_forward.10} parent=0 // pred_check_branch
    %1107 = sbr.rel (0) target = $region21
  $region20: #{vae_forward.10} parent=0 // pred_region
    _
  $region21: #{vae_forward.10} parent=0 // pred_fallthru
    _
  // Predicated region
  $region22: #{vae_forward.10} parent=0 // pred_check
    _
  $region23: #{vae_forward.10} parent=0 // pred_check_branch
    %1109 = sbr.rel (0) target = $region25
  $region24: #{vae_forward.10} parent=0 // pred_region
    _
  $region25: #{vae_forward.10} parent=0 // pred_fallthru
    _

// kernel: vae_forward.11
$region0: #{vae_forward.11}
  #allocation0 [shape = 'u32[]', space=smem, size = 0x4, offset = 0x4, fixed_abs, tag = 'smem constant byte address 0x4 - core index']
  #allocation1 [shape = 'u32[144,128]{1,0:T(1,128)}', space=vmem, size = 0x12000, scoped, tag = 'internal scratch']
  %s0 = inlined_call_operand.vmem [shape: bf16[56,640], index: 0, kind: input, shape index: {}]
  %s1 = inlined_call_operand.vmem [shape: bf16[640,128], index: 1, kind: input, shape index: {}]
  %s2 = inlined_call_operand.vmem [shape: f32[1,128], index: 2, kind: input, shape index: {}]
  %s3 = inlined_call_operand.vmem [shape: f32[1,128], index: 3, kind: input, shape index: {}]
  %s4 = inlined_call_operand.vmem [shape: bf16[56,128], index: 4, kind: output, shape index: {}]
  %s5 = sld [smem:[#allocation0]]
  $region26: #{vae_forward.11} parent=0
    _
  %s7 = ssub.s32 1, %s5
  %s8 = scalar_select 0, %s7, %s5
  // Predicated region
  $region2: #{vae_forward.11} parent=0 // pred_check
    _
  $region3: #{vae_forward.11} parent=0 // pred_check_branch
    %10 = sbr.rel (0) target = $region5
  $region4: #{vae_forward.11} parent=0 // pred_region
    _
  $region5: #{vae_forward.11} parent=0 // pred_fallthru
    _
  // Predicated region
  $region6: #{vae_forward.11} parent=0 // pred_check
    _
  $region7: #{vae_forward.11} parent=0 // pred_check_branch
    %12 = sbr.rel (0) target = $region9
  $region8: #{vae_forward.11} parent=0 // pred_region
    _
  $region9: #{vae_forward.11} parent=0 // pred_fallthru
    _
  // Predicated region
  $region10: #{vae_forward.11} parent=0 // pred_check
    _
  $region11: #{vae_forward.11} parent=0 // pred_check_branch
    %14 = sbr.rel (0) target = $region13
  $region12: #{vae_forward.11} parent=0 // pred_region
    _
  $region13: #{vae_forward.11} parent=0 // pred_fallthru
    _
  // Predicated region
  $region14: #{vae_forward.11} parent=0 // pred_check
    _
  $region15: #{vae_forward.11} parent=0 // pred_check_branch
    %16 = sbr.rel (0) target = $region17
  $region16: #{vae_forward.11} parent=0 // pred_region
    _
  $region17: #{vae_forward.11} parent=0 // pred_fallthru
    _
  %v18 = vld [vmem:[%s0] sm:$0xff]
  %v19 = vld [vmem:[%s0 + $0x8] sm:$0xff]
  %v20 = vld [vmem:[%s0 + $0x10] sm:$0xf]
  %v21 = vld [vmem:[%s0 + $0x14] sm:$0xff]
  %v22 = vld [vmem:[%s0 + $0x1c] sm:$0xff]
  %v23 = vld [vmem:[%s0 + $0x24] sm:$0xf]
  %v24 = vld [vmem:[%s0 + $0x28] sm:$0xff]
  %v25 = vld [vmem:[%s0 + $0x30] sm:$0xff]
  %v26 = vld [vmem:[%s0 + $0x38] sm:$0xf]
  %v27 = vld [vmem:[%s0 + $0x3c] sm:$0xff]
  %v28 = vld [vmem:[%s0 + $0x44] sm:$0xff]
  %v29 = vld [vmem:[%s0 + $0x4c] sm:$0xf]
  %v30 = vld [vmem:[%s0 + $0x50] sm:$0xff]
  %v31 = vld [vmem:[%s0 + $0x58] sm:$0xff]
  %v32 = vld [vmem:[%s0 + $0x60] sm:$0xf]
  %v33 = vld [vmem:[%s0 + $0x64] sm:$0xff]
  %v34 = vld [vmem:[%s0 + $0x6c] sm:$0xff]
  %v35 = vld [vmem:[%s0 + $0x74] sm:$0xf]
  %v36 = vld [vmem:[%s0 + $0x78] sm:$0xff]
  %v37 = vld [vmem:[%s0 + $0x80] sm:$0xff]
  %v38 = vld [vmem:[%s0 + $0x88] sm:$0xf]
  %v39 = vld [vmem:[%s1] sm:$0xf]
  %v40 = vld [vmem:[%s1 + $0x4] sm:$0xf]
  %v41 = vld [vmem:[%s1 + $0x8] sm:$0xf]
  %v42 = vld [vmem:[%s1 + $0xc] sm:$0xf]
  %v43 = vld [vmem:[%s1 + $0x10] sm:$0xf]
  %v44 = vld [vmem:[%s1 + $0x14] sm:$0xf]
  %v45 = vld [vmem:[%s1 + $0x18] sm:$0xf]
  %v46 = vld [vmem:[%s1 + $0x1c] sm:$0xf]
  %v47 = vld [vmem:[%s1 + $0x20] sm:$0xf]
  %v48 = vld [vmem:[%s1 + $0x24] sm:$0xf]
  %v49 = vld [vmem:[%s1 + $0x28] sm:$0xf]
  %v50 = vld [vmem:[%s1 + $0x2c] sm:$0xf]
  %v51 = vld [vmem:[%s1 + $0x30] sm:$0xf]
  %v52 = vld [vmem:[%s1 + $0x34] sm:$0xf]
  %v53 = vld [vmem:[%s1 + $0x38] sm:$0xf]
  %v54 = vld [vmem:[%s1 + $0x3c] sm:$0xf]
  %v55 = vld [vmem:[%s1 + $0x40] sm:$0xf]
  %v56 = vld [vmem:[%s1 + $0x44] sm:$0xf]
  %v57 = vld [vmem:[%s1 + $0x48] sm:$0xf]
  %v58 = vld [vmem:[%s1 + $0x4c] sm:$0xf]
  %v59 = vld [vmem:[%s1 + $0x50] sm:$0xf]
  %v60 = vld [vmem:[%s1 + $0x54] sm:$0xf]
  %v61 = vld [vmem:[%s1 + $0x58] sm:$0xf]
  %v62 = vld [vmem:[%s1 + $0x5c] sm:$0xf]
  %v63 = vld [vmem:[%s1 + $0x60] sm:$0xf]
  %v64 = vld [vmem:[%s1 + $0x64] sm:$0xf]
  %v65 = vld [vmem:[%s1 + $0x68] sm:$0xf]
  %v66 = vld [vmem:[%s1 + $0x6c] sm:$0xf]
  %v67 = vld [vmem:[%s1 + $0x70] sm:$0xf]
  %v68 = vld [vmem:[%s1 + $0x74] sm:$0xf]
  %v69 = vld [vmem:[%s1 + $0x78] sm:$0xf]
  %v70 = vld [vmem:[%s1 + $0x7c] sm:$0xf]
  %v71 = vld [vmem:[%s1 + $0x80] sm:$0xf]
  %v72 = vld [vmem:[%s1 + $0x84] sm:$0xf]
  %v73 = vld [vmem:[%s1 + $0x88] sm:$0xf]
  %v74 = vld [vmem:[%s1 + $0x8c] sm:$0xf]
  %v75 = vld [vmem:[%s1 + $0x90] sm:$0xf]
  %v76 = vld [vmem:[%s1 + $0x94] sm:$0xf]
  %v77 = vld [vmem:[%s1 + $0x98] sm:$0xf]
  %v78 = vld [vmem:[%s1 + $0x9c] sm:$0xf]
  %v79 = vld [vmem:[%s1 + $0xa0] sm:$0xf]
  %v80 = vld [vmem:[%s1 + $0xa4] sm:$0xf]
  %v81 = vld [vmem:[%s1 + $0xa8] sm:$0xf]
  %v82 = vld [vmem:[%s1 + $0xac] sm:$0xf]
  %v83 = vld [vmem:[%s1 + $0xb0] sm:$0xf]
  %v84 = vld [vmem:[%s1 + $0xb4] sm:$0xf]
  %v85 = vld [vmem:[%s1 + $0xb8] sm:$0xf]
  %v86 = vld [vmem:[%s1 + $0xbc] sm:$0xf]
  %v87 = vld [vmem:[%s1 + $0xc0] sm:$0xf]
  %v88 = vld [vmem:[%s1 + $0xc4] sm:$0xf]
  %v89 = vld [vmem:[%s1 + $0xc8] sm:$0xf]
  %v90 = vld [vmem:[%s1 + $0xcc] sm:$0xf]
  %v91 = vld [vmem:[%s1 + $0xd0] sm:$0xf]
  %v92 = vld [vmem:[%s1 + $0xd4] sm:$0xf]
  %v93 = vld [vmem:[%s1 + $0xd8] sm:$0xf]
  %v94 = vld [vmem:[%s1 + $0xdc] sm:$0xf]
  %v95 = vld [vmem:[%s1 + $0xe0] sm:$0xf]
  %v96 = vld [vmem:[%s1 + $0xe4] sm:$0xf]
  %v97 = vld [vmem:[%s1 + $0xe8] sm:$0xf]
  %v98 = vld [vmem:[%s1 + $0xec] sm:$0xf]
  %v99 = vld [vmem:[%s1 + $0xf0] sm:$0xf]
  %v100 = vld [vmem:[%s1 + $0xf4] sm:$0xf]
  %v101 = vld [vmem:[%s1 + $0xf8] sm:$0xf]
  %v102 = vld [vmem:[%s1 + $0xfc] sm:$0xf]
  %v103 = vld [vmem:[%s1 + $0x100] sm:$0xf]
  %v104 = vld [vmem:[%s1 + $0x104] sm:$0xf]
  %v105 = vld [vmem:[%s1 + $0x108] sm:$0xf]
  %v106 = vld [vmem:[%s1 + $0x10c] sm:$0xf]
  %v107 = vld [vmem:[%s1 + $0x110] sm:$0xf]
  %v108 = vld [vmem:[%s1 + $0x114] sm:$0xf]
  %v109 = vld [vmem:[%s1 + $0x118] sm:$0xf]
  %v110 = vld [vmem:[%s1 + $0x11c] sm:$0xf]
  %v111 = vld [vmem:[%s1 + $0x120] sm:$0xf]
  %v112 = vld [vmem:[%s1 + $0x124] sm:$0xf]
  %v113 = vld [vmem:[%s1 + $0x128] sm:$0xf]
  %v114 = vld [vmem:[%s1 + $0x12c] sm:$0xf]
  %v115 = vld [vmem:[%s1 + $0x130] sm:$0xf]
  %v116 = vld [vmem:[%s1 + $0x134] sm:$0xf]
  %v117 = vld [vmem:[%s1 + $0x138] sm:$0xf]
  %v118 = vld [vmem:[%s1 + $0x13c] sm:$0xf]
  %v140 = vunpack.c.l.b16 %v18
  %v141 = vunpack.c.h.b16 %v18
  %v142 = vunpack.c.l.b16 %v19
  %v143 = vunpack.c.h.b16 %v19
  %v144 = vunpack.c.l.b16 %v20
  %v145 = vunpack.c.l.b16 %v21
  %v146 = vunpack.c.h.b16 %v21
  %v147 = vunpack.c.l.b16 %v22
  %v148 = vunpack.c.h.b16 %v22
  %v149 = vunpack.c.l.b16 %v23
  %v150 = vunpack.c.l.b16 %v24
  %v151 = vunpack.c.h.b16 %v24
  %v152 = vunpack.c.l.b16 %v25
  %v153 = vunpack.c.h.b16 %v25
  %v154 = vunpack.c.l.b16 %v26
  %v155 = vunpack.c.l.b16 %v27
  %v156 = vunpack.c.h.b16 %v27
  %v157 = vunpack.c.l.b16 %v28
  %v158 = vunpack.c.h.b16 %v28
  %v159 = vunpack.c.l.b16 %v29
  %v160 = vunpack.c.l.b16 %v30
  %v161 = vunpack.c.h.b16 %v30
  %v162 = vunpack.c.l.b16 %v31
  %v163 = vunpack.c.h.b16 %v31
  %v164 = vunpack.c.l.b16 %v32
  %v165 = vunpack.c.l.b16 %v33
  %v166 = vunpack.c.h.b16 %v33
  %v167 = vunpack.c.l.b16 %v34
  %v168 = vunpack.c.h.b16 %v34
  %v169 = vunpack.c.l.b16 %v35
  %v170 = vunpack.c.l.b16 %v36
  %v171 = vunpack.c.h.b16 %v36
  %v172 = vunpack.c.l.b16 %v37
  %v173 = vunpack.c.h.b16 %v37
  %v174 = vunpack.c.l.b16 %v38
  %v175 = vpack.c.b16 %v145, %v140
  %v176 = vpack.c.b16 %v146, %v141
  %v177 = vpack.c.b16 %v147, %v142
  %v178 = vpack.c.b16 %v148, %v143
  %v179 = vpack.c.b16 %v149, %v144
  %v180 = vpack.c.b16 %v155, %v150
  %v181 = vpack.c.b16 %v156, %v151
  %v182 = vpack.c.b16 %v157, %v152
  %v183 = vpack.c.b16 %v158, %v153
  %v184 = vpack.c.b16 %v159, %v154
  %v185 = vpack.c.b16 %v165, %v160
  %v186 = vpack.c.b16 %v166, %v161
  %v187 = vpack.c.b16 %v167, %v162
  %v188 = vpack.c.b16 %v168, %v163
  %v189 = vpack.c.b16 %v169, %v164
  %v190 = vpack.c.b16 %v170, %v170
  %v191 = vpack.c.b16 %v171, %v171
  %v192 = vpack.c.b16 %v172, %v172
  %v193 = vpack.c.b16 %v173, %v173
  %v194 = vpack.c.b16 %v174, %v174
  %v295 = vunpack.c.l.b16 %v39
  %v296 = vunpack.c.l.b16 %v40
  %v297 = vunpack.c.l.b16 %v41
  %v298 = vunpack.c.l.b16 %v42
  %v299 = vunpack.c.l.b16 %v43
  %v300 = vunpack.c.l.b16 %v44
  %v301 = vunpack.c.l.b16 %v45
  %v302 = vunpack.c.l.b16 %v46
  %v303 = vunpack.c.l.b16 %v47
  %v304 = vunpack.c.l.b16 %v48
  %v305 = vunpack.c.l.b16 %v49
  %v306 = vunpack.c.l.b16 %v50
  %v307 = vunpack.c.l.b16 %v51
  %v308 = vunpack.c.l.b16 %v52
  %v309 = vunpack.c.l.b16 %v53
  %v310 = vunpack.c.l.b16 %v54
  %v311 = vunpack.c.l.b16 %v55
  %v312 = vunpack.c.l.b16 %v56
  %v313 = vunpack.c.l.b16 %v57
  %v314 = vunpack.c.l.b16 %v58
  %v315 = vunpack.c.l.b16 %v59
  %v316 = vunpack.c.l.b16 %v60
  %v317 = vunpack.c.l.b16 %v61
  %v318 = vunpack.c.l.b16 %v62
  %v319 = vunpack.c.l.b16 %v63
  %v320 = vunpack.c.l.b16 %v64
  %v321 = vunpack.c.l.b16 %v65
  %v322 = vunpack.c.l.b16 %v66
  %v323 = vunpack.c.l.b16 %v67
  %v324 = vunpack.c.l.b16 %v68
  %v325 = vunpack.c.l.b16 %v69
  %v326 = vunpack.c.l.b16 %v70
  %v327 = vunpack.c.l.b16 %v71
  %v328 = vunpack.c.l.b16 %v72
  %v329 = vunpack.c.l.b16 %v73
  %v330 = vunpack.c.l.b16 %v74
  %v331 = vunpack.c.l.b16 %v75
  %v332 = vunpack.c.l.b16 %v76
  %v333 = vunpack.c.l.b16 %v77
  %v334 = vunpack.c.l.b16 %v78
  %v335 = vunpack.c.l.b16 %v79
  %v336 = vunpack.c.l.b16 %v80
  %v337 = vunpack.c.l.b16 %v81
  %v338 = vunpack.c.l.b16 %v82
  %v339 = vunpack.c.l.b16 %v83
  %v340 = vunpack.c.l.b16 %v84
  %v341 = vunpack.c.l.b16 %v85
  %v342 = vunpack.c.l.b16 %v86
  %v343 = vunpack.c.l.b16 %v87
  %v344 = vunpack.c.l.b16 %v88
  %v345 = vunpack.c.l.b16 %v89
  %v346 = vunpack.c.l.b16 %v90
  %v347 = vunpack.c.l.b16 %v91
  %v348 = vunpack.c.l.b16 %v92
  %v349 = vunpack.c.l.b16 %v93
  %v350 = vunpack.c.l.b16 %v94
  %v351 = vunpack.c.l.b16 %v95
  %v352 = vunpack.c.l.b16 %v96
  %v353 = vunpack.c.l.b16 %v97
  %v354 = vunpack.c.l.b16 %v98
  %v355 = vunpack.c.l.b16 %v99
  %v356 = vunpack.c.l.b16 %v100
  %v357 = vunpack.c.l.b16 %v101
  %v358 = vunpack.c.l.b16 %v102
  %v359 = vunpack.c.l.b16 %v103
  %v360 = vunpack.c.l.b16 %v104
  %v361 = vunpack.c.l.b16 %v105
  %v362 = vunpack.c.l.b16 %v106
  %v363 = vunpack.c.l.b16 %v107
  %v364 = vunpack.c.l.b16 %v108
  %v365 = vunpack.c.l.b16 %v109
  %v366 = vunpack.c.l.b16 %v110
  %v367 = vunpack.c.l.b16 %v111
  %v368 = vunpack.c.l.b16 %v112
  %v369 = vunpack.c.l.b16 %v113
  %v370 = vunpack.c.l.b16 %v114
  %v371 = vunpack.c.l.b16 %v115
  %v372 = vunpack.c.l.b16 %v116
  %v373 = vunpack.c.l.b16 %v117
  %v374 = vunpack.c.l.b16 %v118
  %v375 = vpack.c.b16 %v296, %v295
  %v376 = vpack.c.b16 %v298, %v297
  %v377 = vpack.c.b16 %v300, %v299
  %v378 = vpack.c.b16 %v302, %v301
  %v379 = vpack.c.b16 %v304, %v303
  %v380 = vpack.c.b16 %v306, %v305
  %v381 = vpack.c.b16 %v308, %v307
  %v382 = vpack.c.b16 %v310, %v309
  %v383 = vpack.c.b16 %v312, %v311
  %v384 = vpack.c.b16 %v314, %v313
  %v385 = vpack.c.b16 %v316, %v315
  %v386 = vpack.c.b16 %v318, %v317
  %v387 = vpack.c.b16 %v320, %v319
  %v388 = vpack.c.b16 %v322, %v321
  %v389 = vpack.c.b16 %v324, %v323
  %v390 = vpack.c.b16 %v326, %v325
  %v391 = vpack.c.b16 %v328, %v327
  %v392 = vpack.c.b16 %v330, %v329
  %v393 = vpack.c.b16 %v332, %v331
  %v394 = vpack.c.b16 %v334, %v333
  %v395 = vpack.c.b16 %v336, %v335
  %v396 = vpack.c.b16 %v338, %v337
  %v397 = vpack.c.b16 %v340, %v339
  %v398 = vpack.c.b16 %v342, %v341
  %v399 = vpack.c.b16 %v344, %v343
  %v400 = vpack.c.b16 %v346, %v345
  %v401 = vpack.c.b16 %v348, %v347
  %v402 = vpack.c.b16 %v350, %v349
  %v403 = vpack.c.b16 %v352, %v351
  %v404 = vpack.c.b16 %v354, %v353
  %v405 = vpack.c.b16 %v356, %v355
  %v406 = vpack.c.b16 %v358, %v357
  %v407 = vpack.c.b16 %v360, %v359
  %v408 = vpack.c.b16 %v362, %v361
  %v409 = vpack.c.b16 %v364, %v363
  %v410 = vpack.c.b16 %v366, %v365
  %v411 = vpack.c.b16 %v368, %v367
  %v412 = vpack.c.b16 %v370, %v369
  %v413 = vpack.c.b16 %v372, %v371
  %v414 = vpack.c.b16 %v374, %v373
  %455 = vmatprep.subr.bf16.mxu0 0
  %456 = vmatpush1.bf16.msra.mxu0 %v375
  %457 = vmatprep.subr.bf16.mxu0 0
  %458 = vmatpush1.bf16.msra.mxu0 %v376
  %459 = vmatprep.subr.bf16.mxu0 0
  %460 = vmatpush1.bf16.msra.mxu0 %v377
  %461 = vmatprep.subr.bf16.mxu0 0
  %462 = vmatpush1.bf16.msra.mxu0 %v378
  %463 = vmatprep.subr.bf16.mxu0 0
  %464 = vmatpush1.bf16.msra.mxu0 %v379
  %465 = vmatprep.subr.bf16.mxu0 0
  %466 = vmatpush1.bf16.msra.mxu0 %v380
  %467 = vmatprep.subr.bf16.mxu0 0
  %468 = vmatpush1.bf16.msra.mxu0 %v381
  %469 = vmatprep.subr.bf16.mxu0 0
  %470 = vmatpush1.bf16.msra.mxu0 %v382
  %471 = vmatprep.subr.bf16.mxu0 0
  %472 = vmatpush1.bf16.msra.mxu0 %v383
  %473 = vmatprep.subr.bf16.mxu0 0
  %474 = vmatpush1.bf16.msra.mxu0 %v384
  %475 = vmatprep.subr.bf16.mxu0 0
  %476 = vmatpush1.bf16.msra.mxu0 %v385
  %477 = vmatprep.subr.bf16.mxu0 0
  %478 = vmatpush1.bf16.msra.mxu0 %v386
  %479 = vmatprep.subr.bf16.mxu0 0
  %480 = vmatpush1.bf16.msra.mxu0 %v387
  %481 = vmatprep.subr.bf16.mxu0 0
  %482 = vmatpush1.bf16.msra.mxu0 %v388
  %483 = vmatprep.subr.bf16.mxu0 0
  %484 = vmatpush1.bf16.msra.mxu0 %v389
  %485 = vmatprep.subr.bf16.mxu0 0
  %486 = vmatpush1.bf16.msra.mxu0 %v390
  %487 = vmatprep.mubr.bf16.mxu0 %v176
  %488 = vmatmul.mubr.bf16.gmra.mrb[0].mxu0 %v175
  %v489 = vpop.f32.mrb[0].mxu0
  %v490 = vadd.f32 0.0, %v489
  %v491 = vpop.f32.mrb[0].mxu0
  %v492 = vpop.f32.mrb[0].mxu0
  %v493 = vadd.f32 0.0, %v492
  %v494 = vpop.f32.mrb[0].mxu0
  %495 = vmatprep.mubr.bf16.mxu0 %v181
  %496 = vmatmul.mubr.bf16.gmra.mrb[0].mxu0 %v180
  %v497 = vpop.f32.mrb[0].mxu0
  %v498 = vadd.f32 0.0, %v497
  %v499 = vpop.f32.mrb[0].mxu0
  %v500 = vpop.f32.mrb[0].mxu0
  %v501 = vadd.f32 0.0, %v500
  %v502 = vpop.f32.mrb[0].mxu0
  %503 = vmatprep.mubr.bf16.mxu0 %v186
  %504 = vmatmul.mubr.bf16.gmra.mrb[0].mxu0 %v185
  %v505 = vpop.f32.mrb[0].mxu0
  %v506 = vadd.f32 0.0, %v505
  %v507 = vpop.f32.mrb[0].mxu0
  %v508 = vpop.f32.mrb[0].mxu0
  %v509 = vadd.f32 0.0, %v508
  %v510 = vpop.f32.mrb[0].mxu0
  %511 = vmatprep.mubr.bf16.mxu0 %v191
  %512 = vmatmul.mubr.bf16.gmra.mrb[0].mxu0 %v190
  %v513 = vpop.f32.mrb[0].mxu0
  %v514 = vadd.f32 0.0, %v513
  %v515 = vpop.f32.mrb[0].mxu0
  %v516 = vpop.f32.mrb[0].mxu0
  %v517 = vpop.f32.mrb[0].mxu0
  %518 = vdwg.mxu0
  %519 = vmatprep.subr.bf16.mxu0 0
  %520 = vmatpush1.bf16.msra.mxu0 %v391
  %521 = vmatprep.subr.bf16.mxu0 0
  %522 = vmatpush1.bf16.msra.mxu0 %v392
  %523 = vmatprep.subr.bf16.mxu0 0
  %524 = vmatpush1.bf16.msra.mxu0 %v393
  %525 = vmatprep.subr.bf16.mxu0 0
  %526 = vmatpush1.bf16.msra.mxu0 %v394
  %527 = vmatprep.subr.bf16.mxu0 0
  %528 = vmatpush1.bf16.msra.mxu0 %v395
  %529 = vmatprep.subr.bf16.mxu0 0
  %530 = vmatpush1.bf16.msra.mxu0 %v396
  %531 = vmatprep.subr.bf16.mxu0 0
  %532 = vmatpush1.bf16.msra.mxu0 %v397
  %533 = vmatprep.subr.bf16.mxu0 0
  %534 = vmatpush1.bf16.msra.mxu0 %v398
  %535 = vmatprep.subr.bf16.mxu0 0
  %536 = vmatpush1.bf16.msra.mxu0 %v399
  %537 = vmatprep.subr.bf16.mxu0 0
  %538 = vmatpush1.bf16.msra.mxu0 %v400
  %539 = vmatprep.subr.bf16.mxu0 0
  %540 = vmatpush1.bf16.msra.mxu0 %v401
  %541 = vmatprep.subr.bf16.mxu0 0
  %542 = vmatpush1.bf16.msra.mxu0 %v402
  %543 = vmatprep.subr.bf16.mxu0 0
  %544 = vmatpush1.bf16.msra.mxu0 %v403
  %545 = vmatprep.subr.bf16.mxu0 0
  %546 = vmatpush1.bf16.msra.mxu0 %v404
  %547 = vmatprep.subr.bf16.mxu0 0
  %548 = vmatpush1.bf16.msra.mxu0 %v405
  %549 = vmatprep.subr.bf16.mxu0 0
  %550 = vmatpush1.bf16.msra.mxu0 %v406
  %551 = vmatprep.mubr.bf16.mxu0 %v178
  %552 = vmatmul.mubr.bf16.gmra.mrb[0].mxu0 %v177
  %v553 = vpop.f32.mrb[0].mxu0
  %v554 = vadd.f32 %v490, %v553
  %v555 = vpop.f32.mrb[0].mxu0
  %v556 = vpop.f32.mrb[0].mxu0
  %v557 = vadd.f32 %v493, %v556
  %v558 = vpop.f32.mrb[0].mxu0
  %559 = vmatprep.mubr.bf16.mxu0 %v183
  %560 = vmatmul.mubr.bf16.gmra.mrb[0].mxu0 %v182
  %v561 = vpop.f32.mrb[0].mxu0
  %v562 = vadd.f32 %v498, %v561
  %v563 = vpop.f32.mrb[0].mxu0
  %v564 = vpop.f32.mrb[0].mxu0
  %v565 = vadd.f32 %v501, %v564
  %v566 = vpop.f32.mrb[0].mxu0
  %567 = vmatprep.mubr.bf16.mxu0 %v188
  %568 = vmatmul.mubr.bf16.gmra.mrb[0].mxu0 %v187
  %v569 = vpop.f32.mrb[0].mxu0
  %v570 = vadd.f32 %v506, %v569
  %v571 = vpop.f32.mrb[0].mxu0
  %v572 = vpop.f32.mrb[0].mxu0
  %v573 = vadd.f32 %v509, %v572
  %v574 = vpop.f32.mrb[0].mxu0
  %575 = vmatprep.mubr.bf16.mxu0 %v193
  %576 = vmatmul.mubr.bf16.gmra.mrb[0].mxu0 %v192
  %v577 = vpop.f32.mrb[0].mxu0
  %v578 = vadd.f32 %v514, %v577
  %v579 = vpop.f32.mrb[0].mxu0
  %v580 = vpop.f32.mrb[0].mxu0
  %v581 = vpop.f32.mrb[0].mxu0
  %582 = vdwg.mxu0
  %583 = vmatprep.subr.bf16.mxu0 0
  %584 = vmatpush1.bf16.msra.mxu0 %v407
  %585 = vmatprep.subr.bf16.mxu0 0
  %586 = vmatpush1.bf16.msra.mxu0 %v408
  %587 = vmatprep.subr.bf16.mxu0 0
  %588 = vmatpush1.bf16.msra.mxu0 %v409
  %589 = vmatprep.subr.bf16.mxu0 0
  %590 = vmatpush1.bf16.msra.mxu0 %v410
  %591 = vmatprep.subr.bf16.mxu0 0
  %592 = vmatpush1.bf16.msra.mxu0 %v411
  %593 = vmatprep.subr.bf16.mxu0 0
  %594 = vmatpush1.bf16.msra.mxu0 %v412
  %595 = vmatprep.subr.bf16.mxu0 0
  %596 = vmatpush1.bf16.msra.mxu0 %v413
  %597 = vmatprep.subr.bf16.mxu0 0
  %598 = vmatpush1.bf16.msra.mxu0 %v414
  %599 = vmatprep.subr.bf16.mxu0 0
  %600 = vmatpush1.bf16.msra.mxu0 0
  %601 = vmatprep.subr.bf16.mxu0 0
  %602 = vmatpush1.bf16.msra.mxu0 0
  %603 = vmatprep.subr.bf16.mxu0 0
  %604 = vmatpush1.bf16.msra.mxu0 0
  %605 = vmatprep.subr.bf16.mxu0 0
  %606 = vmatpush1.bf16.msra.mxu0 0
  %607 = vmatprep.subr.bf16.mxu0 0
  %608 = vmatpush1.bf16.msra.mxu0 0
  %609 = vmatprep.subr.bf16.mxu0 0
  %610 = vmatpush1.bf16.msra.mxu0 0
  %611 = vmatprep.subr.bf16.mxu0 0
  %612 = vmatpush1.bf16.msra.mxu0 0
  %613 = vmatprep.subr.bf16.mxu0 0
  %614 = vmatpush1.bf16.msra.mxu0 0
  %615 = vmatprep.mubr.bf16.mxu0 0
  %616 = vmatmul.mubr.bf16.gmra.mrb[0].mxu0 %v179
  %v617 = vpop.f32.mrb[0].mxu0
  %v618 = vadd.f32 %v554, %v617
  %v619 = vpop.f32.mrb[0].mxu0
  %v620 = vpop.f32.mrb[0].mxu0
  %v621 = vadd.f32 %v557, %v620
  %v622 = vpop.f32.mrb[0].mxu0
  %623 = vmatprep.mubr.bf16.mxu0 0
  %624 = vmatmul.mubr.bf16.gmra.mrb[0].mxu0 %v184
  %v625 = vpop.f32.mrb[0].mxu0
  %v626 = vadd.f32 %v562, %v625
  %v627 = vpop.f32.mrb[0].mxu0
  %v628 = vpop.f32.mrb[0].mxu0
  %v629 = vadd.f32 %v565, %v628
  %v630 = vpop.f32.mrb[0].mxu0
  %631 = vmatprep.mubr.bf16.mxu0 0
  %632 = vmatmul.mubr.bf16.gmra.mrb[0].mxu0 %v189
  %v633 = vpop.f32.mrb[0].mxu0
  %v634 = vadd.f32 %v570, %v633
  %v635 = vpop.f32.mrb[0].mxu0
  %v636 = vpop.f32.mrb[0].mxu0
  %v637 = vadd.f32 %v573, %v636
  %v638 = vpop.f32.mrb[0].mxu0
  %639 = vmatprep.mubr.bf16.mxu0 0
  %640 = vmatmul.mubr.bf16.gmra.mrb[0].mxu0 %v194
  %v641 = vpop.f32.mrb[0].mxu0
  %v642 = vadd.f32 %v578, %v641
  %v643 = vpop.f32.mrb[0].mxu0
  %v644 = vpop.f32.mrb[0].mxu0
  %v645 = vpop.f32.mrb[0].mxu0
  %646 = vdwg.mxu0
  %v647 = vld [vmem:[%s2] sm:$0x1]
  %v649 = vlaneseq
  %v650 = vshrl.u32 %v649, 7
  %v651 = vsub.s32 0, %v650
  %v652 = vrot.slane %v647, %v651
  %v654 = vmul.f32 %v618, %v652
  %v655 = vmul.f32 %v621, %v652
  %v656 = vmul.f32 %v626, %v652
  %v657 = vmul.f32 %v629, %v652
  %v658 = vmul.f32 %v634, %v652
  %v659 = vmul.f32 %v637, %v652
  %v660 = vmul.f32 %v642, %v652
  %v661 = vld [vmem:[%s3] sm:$0x1]
  %v663 = vlaneseq
  %v664 = vshrl.u32 %v663, 7
  %v665 = vsub.s32 0, %v664
  %v666 = vrot.slane %v661, %v665
  %v668 = vadd.f32 %v654, %v666
  %v669 = vadd.f32 %v655, %v666
  %v670 = vadd.f32 %v656, %v666
  %v671 = vadd.f32 %v657, %v666
  %v672 = vadd.f32 %v658, %v666
  %v673 = vadd.f32 %v659, %v666
  %v674 = vadd.f32 %v660, %v666
  %v675 = vmax.f32 %v668, 0.0
  %v676 = vmax.f32 %v669, 0.0
  %v677 = vmax.f32 %v670, 0.0
  %v678 = vmax.f32 %v671, 0.0
  %v679 = vmax.f32 %v672, 0.0
  %v680 = vmax.f32 %v673, 0.0
  %v681 = vmax.f32 %v674, 0.0
  %v682 = vpack.c.bf16 %v676, %v675
  %v683 = vpack.c.bf16 %v678, %v677
  %v684 = vpack.c.bf16 %v680, %v679
  %v685 = vpack.c.bf16 %v681, %v681
  %v690 = vunpack.c.l.b16 %v682
  %v691 = vunpack.c.h.b16 %v682
  %v692 = vunpack.c.l.b16 %v683
  %v693 = vunpack.c.h.b16 %v683
  %v694 = vunpack.c.l.b16 %v684
  %v695 = vunpack.c.h.b16 %v684
  %v696 = vunpack.c.l.b16 %v685
  %v697 = vpack.c.b16 %v690, %v690
  %v698 = vpack.c.b16 %v691, %v691
  %v699 = vpack.c.b16 %v692, %v692
  %v700 = vpack.c.b16 %v693, %v693
  %v701 = vpack.c.b16 %v694, %v694
  %v702 = vpack.c.b16 %v695, %v695
  %v703 = vpack.c.b16 %v696, %v696
  %711 = vst [vmem:[%s4] sm:$0xf] %v697
  %712 = vst [vmem:[%s4 + $0x4] sm:$0xf] %v698
  %713 = vst [vmem:[%s4 + $0x8] sm:$0xf] %v699
  %714 = vst [vmem:[%s4 + $0xc] sm:$0xf] %v700
  %715 = vst [vmem:[%s4 + $0x10] sm:$0xf] %v701
  %716 = vst [vmem:[%s4 + $0x14] sm:$0xf] %v702
  %717 = vst [vmem:[%s4 + $0x18] sm:$0xf] %v703
  // Predicated region
  $region18: #{vae_forward.11} parent=0 // pred_check
    _
  $region19: #{vae_forward.11} parent=0 // pred_check_branch
    %719 = sbr.rel (0) target = $region21
  $region20: #{vae_forward.11} parent=0 // pred_region
    _
  $region21: #{vae_forward.11} parent=0 // pred_fallthru
    _
  // Predicated region
  $region22: #{vae_forward.11} parent=0 // pred_check
    _
  $region23: #{vae_forward.11} parent=0 // pred_check_branch
    %721 = sbr.rel (0) target = $region25
  $region24: #{vae_forward.11} parent=0 // pred_region
    _
  $region25: #{vae_forward.11} parent=0 // pred_fallthru
    _

// kernel: vae_forward.12
$region0: #{vae_forward.12}
  #allocation0 [shape = 'u32[]', space=smem, size = 0x4, offset = 0x4, fixed_abs, tag = 'smem constant byte address 0x4 - core index']
  #allocation1 [shape = 'u32[144,128]{1,0:T(1,128)}', space=vmem, size = 0x12000, scoped, tag = 'internal scratch']
  %s0 = inlined_call_operand.vmem [shape: bf16[8,640], index: 0, kind: input, shape index: {}]
  %s1 = inlined_call_operand.vmem [shape: bf16[640,128], index: 1, kind: input, shape index: {}]
  %s2 = inlined_call_operand.vmem [shape: f32[1,128], index: 2, kind: input, shape index: {}]
  %s3 = inlined_call_operand.vmem [shape: f32[1,128], index: 3, kind: input, shape index: {}]
  %s4 = inlined_call_operand.vmem [shape: bf16[8,128], index: 4, kind: output, shape index: {}]
  %s5 = sld [smem:[#allocation0]]
  $region26: #{vae_forward.12} parent=0
    _
  %s7 = ssub.s32 1, %s5
  %s8 = scalar_select 0, %s7, %s5
  // Predicated region
  $region2: #{vae_forward.12} parent=0 // pred_check
    _
  $region3: #{vae_forward.12} parent=0 // pred_check_branch
    %10 = sbr.rel (0) target = $region5
  $region4: #{vae_forward.12} parent=0 // pred_region
    _
  $region5: #{vae_forward.12} parent=0 // pred_fallthru
    _
  // Predicated region
  $region6: #{vae_forward.12} parent=0 // pred_check
    _
  $region7: #{vae_forward.12} parent=0 // pred_check_branch
    %12 = sbr.rel (0) target = $region9
  $region8: #{vae_forward.12} parent=0 // pred_region
    _
  $region9: #{vae_forward.12} parent=0 // pred_fallthru
    _
  // Predicated region
  $region10: #{vae_forward.12} parent=0 // pred_check
    _
  $region11: #{vae_forward.12} parent=0 // pred_check_branch
    %14 = sbr.rel (0) target = $region13
  $region12: #{vae_forward.12} parent=0 // pred_region
    _
  $region13: #{vae_forward.12} parent=0 // pred_fallthru
    _
  // Predicated region
  $region14: #{vae_forward.12} parent=0 // pred_check
    _
  $region15: #{vae_forward.12} parent=0 // pred_check_branch
    %16 = sbr.rel (0) target = $region17
  $region16: #{vae_forward.12} parent=0 // pred_region
    _
  $region17: #{vae_forward.12} parent=0 // pred_fallthru
    _
  %v18 = vld [vmem:[%s0] sm:$0xff]
  %v19 = vld [vmem:[%s0 + $0x8] sm:$0xff]
  %v20 = vld [vmem:[%s0 + $0x10] sm:$0xf]
  %v21 = vld [vmem:[%s1] sm:$0xf]
  %v22 = vld [vmem:[%s1 + $0x4] sm:$0xf]
  %v23 = vld [vmem:[%s1 + $0x8] sm:$0xf]
  %v24 = vld [vmem:[%s1 + $0xc] sm:$0xf]
  %v25 = vld [vmem:[%s1 + $0x10] sm:$0xf]
  %v26 = vld [vmem:[%s1 + $0x14] sm:$0xf]
  %v27 = vld [vmem:[%s1 + $0x18] sm:$0xf]
  %v28 = vld [vmem:[%s1 + $0x1c] sm:$0xf]
  %v29 = vld [vmem:[%s1 + $0x20] sm:$0xf]
  %v30 = vld [vmem:[%s1 + $0x24] sm:$0xf]
  %v31 = vld [vmem:[%s1 + $0x28] sm:$0xf]
  %v32 = vld [vmem:[%s1 + $0x2c] sm:$0xf]
  %v33 = vld [vmem:[%s1 + $0x30] sm:$0xf]
  %v34 = vld [vmem:[%s1 + $0x34] sm:$0xf]
  %v35 = vld [vmem:[%s1 + $0x38] sm:$0xf]
  %v36 = vld [vmem:[%s1 + $0x3c] sm:$0xf]
  %v37 = vld [vmem:[%s1 + $0x40] sm:$0xf]
  %v38 = vld [vmem:[%s1 + $0x44] sm:$0xf]
  %v39 = vld [vmem:[%s1 + $0x48] sm:$0xf]
  %v40 = vld [vmem:[%s1 + $0x4c] sm:$0xf]
  %v41 = vld [vmem:[%s1 + $0x50] sm:$0xf]
  %v42 = vld [vmem:[%s1 + $0x54] sm:$0xf]
  %v43 = vld [vmem:[%s1 + $0x58] sm:$0xf]
  %v44 = vld [vmem:[%s1 + $0x5c] sm:$0xf]
  %v45 = vld [vmem:[%s1 + $0x60] sm:$0xf]
  %v46 = vld [vmem:[%s1 + $0x64] sm:$0xf]
  %v47 = vld [vmem:[%s1 + $0x68] sm:$0xf]
  %v48 = vld [vmem:[%s1 + $0x6c] sm:$0xf]
  %v49 = vld [vmem:[%s1 + $0x70] sm:$0xf]
  %v50 = vld [vmem:[%s1 + $0x74] sm:$0xf]
  %v51 = vld [vmem:[%s1 + $0x78] sm:$0xf]
  %v52 = vld [vmem:[%s1 + $0x7c] sm:$0xf]
  %v53 = vld [vmem:[%s1 + $0x80] sm:$0xf]
  %v54 = vld [vmem:[%s1 + $0x84] sm:$0xf]
  %v55 = vld [vmem:[%s1 + $0x88] sm:$0xf]
  %v56 = vld [vmem:[%s1 + $0x8c] sm:$0xf]
  %v57 = vld [vmem:[%s1 + $0x90] sm:$0xf]
  %v58 = vld [vmem:[%s1 + $0x94] sm:$0xf]
  %v59 = vld [vmem:[%s1 + $0x98] sm:$0xf]
  %v60 = vld [vmem:[%s1 + $0x9c] sm:$0xf]
  %v61 = vld [vmem:[%s1 + $0xa0] sm:$0xf]
  %v62 = vld [vmem:[%s1 + $0xa4] sm:$0xf]
  %v63 = vld [vmem:[%s1 + $0xa8] sm:$0xf]
  %v64 = vld [vmem:[%s1 + $0xac] sm:$0xf]
  %v65 = vld [vmem:[%s1 + $0xb0] sm:$0xf]
  %v66 = vld [vmem:[%s1 + $0xb4] sm:$0xf]
  %v67 = vld [vmem:[%s1 + $0xb8] sm:$0xf]
  %v68 = vld [vmem:[%s1 + $0xbc] sm:$0xf]
  %v69 = vld [vmem:[%s1 + $0xc0] sm:$0xf]
  %v70 = vld [vmem:[%s1 + $0xc4] sm:$0xf]
  %v71 = vld [vmem:[%s1 + $0xc8] sm:$0xf]
  %v72 = vld [vmem:[%s1 + $0xcc] sm:$0xf]
  %v73 = vld [vmem:[%s1 + $0xd0] sm:$0xf]
  %v74 = vld [vmem:[%s1 + $0xd4] sm:$0xf]
  %v75 = vld [vmem:[%s1 + $0xd8] sm:$0xf]
  %v76 = vld [vmem:[%s1 + $0xdc] sm:$0xf]
  %v77 = vld [vmem:[%s1 + $0xe0] sm:$0xf]
  %v78 = vld [vmem:[%s1 + $0xe4] sm:$0xf]
  %v79 = vld [vmem:[%s1 + $0xe8] sm:$0xf]
  %v80 = vld [vmem:[%s1 + $0xec] sm:$0xf]
  %v81 = vld [vmem:[%s1 + $0xf0] sm:$0xf]
  %v82 = vld [vmem:[%s1 + $0xf4] sm:$0xf]
  %v83 = vld [vmem:[%s1 + $0xf8] sm:$0xf]
  %v84 = vld [vmem:[%s1 + $0xfc] sm:$0xf]
  %v85 = vld [vmem:[%s1 + $0x100] sm:$0xf]
  %v86 = vld [vmem:[%s1 + $0x104] sm:$0xf]
  %v87 = vld [vmem:[%s1 + $0x108] sm:$0xf]
  %v88 = vld [vmem:[%s1 + $0x10c] sm:$0xf]
  %v89 = vld [vmem:[%s1 + $0x110] sm:$0xf]
  %v90 = vld [vmem:[%s1 + $0x114] sm:$0xf]
  %v91 = vld [vmem:[%s1 + $0x118] sm:$0xf]
  %v92 = vld [vmem:[%s1 + $0x11c] sm:$0xf]
  %v93 = vld [vmem:[%s1 + $0x120] sm:$0xf]
  %v94 = vld [vmem:[%s1 + $0x124] sm:$0xf]
  %v95 = vld [vmem:[%s1 + $0x128] sm:$0xf]
  %v96 = vld [vmem:[%s1 + $0x12c] sm:$0xf]
  %v97 = vld [vmem:[%s1 + $0x130] sm:$0xf]
  %v98 = vld [vmem:[%s1 + $0x134] sm:$0xf]
  %v99 = vld [vmem:[%s1 + $0x138] sm:$0xf]
  %v100 = vld [vmem:[%s1 + $0x13c] sm:$0xf]
  %v104 = vunpack.c.l.b16 %v18
  %v105 = vunpack.c.h.b16 %v18
  %v106 = vunpack.c.l.b16 %v19
  %v107 = vunpack.c.h.b16 %v19
  %v108 = vunpack.c.l.b16 %v20
  %v109 = vpack.c.b16 %v104, %v104
  %v110 = vpack.c.b16 %v105, %v105
  %v111 = vpack.c.b16 %v106, %v106
  %v112 = vpack.c.b16 %v107, %v107
  %v113 = vpack.c.b16 %v108, %v108
  %v199 = vunpack.c.l.b16 %v21
  %v200 = vunpack.c.l.b16 %v22
  %v201 = vunpack.c.l.b16 %v23
  %v202 = vunpack.c.l.b16 %v24
  %v203 = vunpack.c.l.b16 %v25
  %v204 = vunpack.c.l.b16 %v26
  %v205 = vunpack.c.l.b16 %v27
  %v206 = vunpack.c.l.b16 %v28
  %v207 = vunpack.c.l.b16 %v29
  %v208 = vunpack.c.l.b16 %v30
  %v209 = vunpack.c.l.b16 %v31
  %v210 = vunpack.c.l.b16 %v32
  %v211 = vunpack.c.l.b16 %v33
  %v212 = vunpack.c.l.b16 %v34
  %v213 = vunpack.c.l.b16 %v35
  %v214 = vunpack.c.l.b16 %v36
  %v215 = vunpack.c.l.b16 %v37
  %v216 = vunpack.c.l.b16 %v38
  %v217 = vunpack.c.l.b16 %v39
  %v218 = vunpack.c.l.b16 %v40
  %v219 = vunpack.c.l.b16 %v41
  %v220 = vunpack.c.l.b16 %v42
  %v221 = vunpack.c.l.b16 %v43
  %v222 = vunpack.c.l.b16 %v44
  %v223 = vunpack.c.l.b16 %v45
  %v224 = vunpack.c.l.b16 %v46
  %v225 = vunpack.c.l.b16 %v47
  %v226 = vunpack.c.l.b16 %v48
  %v227 = vunpack.c.l.b16 %v49
  %v228 = vunpack.c.l.b16 %v50
  %v229 = vunpack.c.l.b16 %v51
  %v230 = vunpack.c.l.b16 %v52
  %v231 = vunpack.c.l.b16 %v53
  %v232 = vunpack.c.l.b16 %v54
  %v233 = vunpack.c.l.b16 %v55
  %v234 = vunpack.c.l.b16 %v56
  %v235 = vunpack.c.l.b16 %v57
  %v236 = vunpack.c.l.b16 %v58
  %v237 = vunpack.c.l.b16 %v59
  %v238 = vunpack.c.l.b16 %v60
  %v239 = vunpack.c.l.b16 %v61
  %v240 = vunpack.c.l.b16 %v62
  %v241 = vunpack.c.l.b16 %v63
  %v242 = vunpack.c.l.b16 %v64
  %v243 = vunpack.c.l.b16 %v65
  %v244 = vunpack.c.l.b16 %v66
  %v245 = vunpack.c.l.b16 %v67
  %v246 = vunpack.c.l.b16 %v68
  %v247 = vunpack.c.l.b16 %v69
  %v248 = vunpack.c.l.b16 %v70
  %v249 = vunpack.c.l.b16 %v71
  %v250 = vunpack.c.l.b16 %v72
  %v251 = vunpack.c.l.b16 %v73
  %v252 = vunpack.c.l.b16 %v74
  %v253 = vunpack.c.l.b16 %v75
  %v254 = vunpack.c.l.b16 %v76
  %v255 = vunpack.c.l.b16 %v77
  %v256 = vunpack.c.l.b16 %v78
  %v257 = vunpack.c.l.b16 %v79
  %v258 = vunpack.c.l.b16 %v80
  %v259 = vunpack.c.l.b16 %v81
  %v260 = vunpack.c.l.b16 %v82
  %v261 = vunpack.c.l.b16 %v83
  %v262 = vunpack.c.l.b16 %v84
  %v263 = vunpack.c.l.b16 %v85
  %v264 = vunpack.c.l.b16 %v86
  %v265 = vunpack.c.l.b16 %v87
  %v266 = vunpack.c.l.b16 %v88
  %v267 = vunpack.c.l.b16 %v89
  %v268 = vunpack.c.l.b16 %v90
  %v269 = vunpack.c.l.b16 %v91
  %v270 = vunpack.c.l.b16 %v92
  %v271 = vunpack.c.l.b16 %v93
  %v272 = vunpack.c.l.b16 %v94
  %v273 = vunpack.c.l.b16 %v95
  %v274 = vunpack.c.l.b16 %v96
  %v275 = vunpack.c.l.b16 %v97
  %v276 = vunpack.c.l.b16 %v98
  %v277 = vunpack.c.l.b16 %v99
  %v278 = vunpack.c.l.b16 %v100
  %v279 = vpack.c.b16 %v200, %v199
  %v280 = vpack.c.b16 %v202, %v201
  %v281 = vpack.c.b16 %v204, %v203
  %v282 = vpack.c.b16 %v206, %v205
  %v283 = vpack.c.b16 %v208, %v207
  %v284 = vpack.c.b16 %v210, %v209
  %v285 = vpack.c.b16 %v212, %v211
  %v286 = vpack.c.b16 %v214, %v213
  %v287 = vpack.c.b16 %v216, %v215
  %v288 = vpack.c.b16 %v218, %v217
  %v289 = vpack.c.b16 %v220, %v219
  %v290 = vpack.c.b16 %v222, %v221
  %v291 = vpack.c.b16 %v224, %v223
  %v292 = vpack.c.b16 %v226, %v225
  %v293 = vpack.c.b16 %v228, %v227
  %v294 = vpack.c.b16 %v230, %v229
  %v295 = vpack.c.b16 %v232, %v231
  %v296 = vpack.c.b16 %v234, %v233
  %v297 = vpack.c.b16 %v236, %v235
  %v298 = vpack.c.b16 %v238, %v237
  %v299 = vpack.c.b16 %v240, %v239
  %v300 = vpack.c.b16 %v242, %v241
  %v301 = vpack.c.b16 %v244, %v243
  %v302 = vpack.c.b16 %v246, %v245
  %v303 = vpack.c.b16 %v248, %v247
  %v304 = vpack.c.b16 %v250, %v249
  %v305 = vpack.c.b16 %v252, %v251
  %v306 = vpack.c.b16 %v254, %v253
  %v307 = vpack.c.b16 %v256, %v255
  %v308 = vpack.c.b16 %v258, %v257
  %v309 = vpack.c.b16 %v260, %v259
  %v310 = vpack.c.b16 %v262, %v261
  %v311 = vpack.c.b16 %v264, %v263
  %v312 = vpack.c.b16 %v266, %v265
  %v313 = vpack.c.b16 %v268, %v267
  %v314 = vpack.c.b16 %v270, %v269
  %v315 = vpack.c.b16 %v272, %v271
  %v316 = vpack.c.b16 %v274, %v273
  %v317 = vpack.c.b16 %v276, %v275
  %v318 = vpack.c.b16 %v278, %v277
  %359 = vmatprep.subr.bf16.mxu0 0
  %360 = vmatpush1.bf16.msra.mxu0 %v279
  %361 = vmatprep.subr.bf16.mxu0 0
  %362 = vmatpush1.bf16.msra.mxu0 %v280
  %363 = vmatprep.subr.bf16.mxu0 0
  %364 = vmatpush1.bf16.msra.mxu0 %v281
  %365 = vmatprep.subr.bf16.mxu0 0
  %366 = vmatpush1.bf16.msra.mxu0 %v282
  %367 = vmatprep.subr.bf16.mxu0 0
  %368 = vmatpush1.bf16.msra.mxu0 %v283
  %369 = vmatprep.subr.bf16.mxu0 0
  %370 = vmatpush1.bf16.msra.mxu0 %v284
  %371 = vmatprep.subr.bf16.mxu0 0
  %372 = vmatpush1.bf16.msra.mxu0 %v285
  %373 = vmatprep.subr.bf16.mxu0 0
  %374 = vmatpush1.bf16.msra.mxu0 %v286
  %375 = vmatprep.subr.bf16.mxu0 0
  %376 = vmatpush1.bf16.msra.mxu0 %v287
  %377 = vmatprep.subr.bf16.mxu0 0
  %378 = vmatpush1.bf16.msra.mxu0 %v288
  %379 = vmatprep.subr.bf16.mxu0 0
  %380 = vmatpush1.bf16.msra.mxu0 %v289
  %381 = vmatprep.subr.bf16.mxu0 0
  %382 = vmatpush1.bf16.msra.mxu0 %v290
  %383 = vmatprep.subr.bf16.mxu0 0
  %384 = vmatpush1.bf16.msra.mxu0 %v291
  %385 = vmatprep.subr.bf16.mxu0 0
  %386 = vmatpush1.bf16.msra.mxu0 %v292
  %387 = vmatprep.subr.bf16.mxu0 0
  %388 = vmatpush1.bf16.msra.mxu0 %v293
  %389 = vmatprep.subr.bf16.mxu0 0
  %390 = vmatpush1.bf16.msra.mxu0 %v294
  %391 = vmatprep.mubr.bf16.mxu0 %v110
  %392 = vmatmul.mubr.bf16.gmra.mrb[0].mxu0 %v109
  %v393 = vpop.f32.mrb[0].mxu0
  %v394 = vadd.f32 0.0, %v393
  %v395 = vpop.f32.mrb[0].mxu0
  %v396 = vpop.f32.mrb[0].mxu0
  %v397 = vpop.f32.mrb[0].mxu0
  %398 = vdwg.mxu0
  %399 = vmatprep.subr.bf16.mxu0 0
  %400 = vmatpush1.bf16.msra.mxu0 %v295
  %401 = vmatprep.subr.bf16.mxu0 0
  %402 = vmatpush1.bf16.msra.mxu0 %v296
  %403 = vmatprep.subr.bf16.mxu0 0
  %404 = vmatpush1.bf16.msra.mxu0 %v297
  %405 = vmatprep.subr.bf16.mxu0 0
  %406 = vmatpush1.bf16.msra.mxu0 %v298
  %407 = vmatprep.subr.bf16.mxu0 0
  %408 = vmatpush1.bf16.msra.mxu0 %v299
  %409 = vmatprep.subr.bf16.mxu0 0
  %410 = vmatpush1.bf16.msra.mxu0 %v300
  %411 = vmatprep.subr.bf16.mxu0 0
  %412 = vmatpush1.bf16.msra.mxu0 %v301
  %413 = vmatprep.subr.bf16.mxu0 0
  %414 = vmatpush1.bf16.msra.mxu0 %v302
  %415 = vmatprep.subr.bf16.mxu0 0
  %416 = vmatpush1.bf16.msra.mxu0 %v303
  %417 = vmatprep.subr.bf16.mxu0 0
  %418 = vmatpush1.bf16.msra.mxu0 %v304
  %419 = vmatprep.subr.bf16.mxu0 0
  %420 = vmatpush1.bf16.msra.mxu0 %v305
  %421 = vmatprep.subr.bf16.mxu0 0
  %422 = vmatpush1.bf16.msra.mxu0 %v306
  %423 = vmatprep.subr.bf16.mxu0 0
  %424 = vmatpush1.bf16.msra.mxu0 %v307
  %425 = vmatprep.subr.bf16.mxu0 0
  %426 = vmatpush1.bf16.msra.mxu0 %v308
  %427 = vmatprep.subr.bf16.mxu0 0
  %428 = vmatpush1.bf16.msra.mxu0 %v309
  %429 = vmatprep.subr.bf16.mxu0 0
  %430 = vmatpush1.bf16.msra.mxu0 %v310
  %431 = vmatprep.mubr.bf16.mxu0 %v112
  %432 = vmatmul.mubr.bf16.gmra.mrb[0].mxu0 %v111
  %v433 = vpop.f32.mrb[0].mxu0
  %v434 = vadd.f32 %v394, %v433
  %v435 = vpop.f32.mrb[0].mxu0
  %v436 = vpop.f32.mrb[0].mxu0
  %v437 = vpop.f32.mrb[0].mxu0
  %438 = vdwg.mxu0
  %439 = vmatprep.subr.bf16.mxu0 0
  %440 = vmatpush1.bf16.msra.mxu0 %v311
  %441 = vmatprep.subr.bf16.mxu0 0
  %442 = vmatpush1.bf16.msra.mxu0 %v312
  %443 = vmatprep.subr.bf16.mxu0 0
  %444 = vmatpush1.bf16.msra.mxu0 %v313
  %445 = vmatprep.subr.bf16.mxu0 0
  %446 = vmatpush1.bf16.msra.mxu0 %v314
  %447 = vmatprep.subr.bf16.mxu0 0
  %448 = vmatpush1.bf16.msra.mxu0 %v315
  %449 = vmatprep.subr.bf16.mxu0 0
  %450 = vmatpush1.bf16.msra.mxu0 %v316
  %451 = vmatprep.subr.bf16.mxu0 0
  %452 = vmatpush1.bf16.msra.mxu0 %v317
  %453 = vmatprep.subr.bf16.mxu0 0
  %454 = vmatpush1.bf16.msra.mxu0 %v318
  %455 = vmatprep.subr.bf16.mxu0 0
  %456 = vmatpush1.bf16.msra.mxu0 0
  %457 = vmatprep.subr.bf16.mxu0 0
  %458 = vmatpush1.bf16.msra.mxu0 0
  %459 = vmatprep.subr.bf16.mxu0 0
  %460 = vmatpush1.bf16.msra.mxu0 0
  %461 = vmatprep.subr.bf16.mxu0 0
  %462 = vmatpush1.bf16.msra.mxu0 0
  %463 = vmatprep.subr.bf16.mxu0 0
  %464 = vmatpush1.bf16.msra.mxu0 0
  %465 = vmatprep.subr.bf16.mxu0 0
  %466 = vmatpush1.bf16.msra.mxu0 0
  %467 = vmatprep.subr.bf16.mxu0 0
  %468 = vmatpush1.bf16.msra.mxu0 0
  %469 = vmatprep.subr.bf16.mxu0 0
  %470 = vmatpush1.bf16.msra.mxu0 0
  %471 = vmatprep.mubr.bf16.mxu0 0
  %472 = vmatmul.mubr.bf16.gmra.mrb[0].mxu0 %v113
  %v473 = vpop.f32.mrb[0].mxu0
  %v474 = vadd.f32 %v434, %v473
  %v475 = vpop.f32.mrb[0].mxu0
  %v476 = vpop.f32.mrb[0].mxu0
  %v477 = vpop.f32.mrb[0].mxu0
  %478 = vdwg.mxu0
  %v479 = vld [vmem:[%s2] sm:$0x1]
  %v481 = vlaneseq
  %v482 = vshrl.u32 %v481, 7
  %v483 = vsub.s32 0, %v482
  %v484 = vrot.slane %v479, %v483
  %v486 = vmul.f32 %v474, %v484
  %v487 = vld [vmem:[%s3] sm:$0x1]
  %v489 = vlaneseq
  %v490 = vshrl.u32 %v489, 7
  %v491 = vsub.s32 0, %v490
  %v492 = vrot.slane %v487, %v491
  %v494 = vadd.f32 %v486, %v492
  %v495 = vmax.f32 %v494, 0.0
  %v496 = vpack.c.bf16 %v495, %v495
  %497 = vst [vmem:[%s4] sm:$0xf] %v496
  // Predicated region
  $region18: #{vae_forward.12} parent=0 // pred_check
    _
  $region19: #{vae_forward.12} parent=0 // pred_check_branch
    %499 = sbr.rel (0) target = $region21
  $region20: #{vae_forward.12} parent=0 // pred_region
    _
  $region21: #{vae_forward.12} parent=0 // pred_fallthru
    _
  // Predicated region
  $region22: #{vae_forward.12} parent=0 // pred_check
    _
  $region23: #{vae_forward.12} parent=0 // pred_check_branch
    %501 = sbr.rel (0) target = $region25
  $region24: #{vae_forward.12} parent=0 // pred_region
    _
  $region25: #{vae_forward.12} parent=0 // pred_fallthru
    _

// kernel: vae_forward.13
$region0: #{vae_forward.13}
  #allocation0 [shape = 'u32[]', space=smem, size = 0x4, offset = 0x4, fixed_abs, tag = 'smem constant byte address 0x4 - core index']
  #allocation1 [shape = 'u32[144,128]{1,0:T(1,128)}', space=vmem, size = 0x12000, scoped, tag = 'internal scratch']
  %s0 = inlined_call_operand.vmem [shape: bf16[8,256], index: 0, kind: input, shape index: {}]
  %s1 = inlined_call_operand.vmem [shape: bf16[256,512], index: 1, kind: input, shape index: {}]
  %s2 = inlined_call_operand.vmem [shape: f32[1,512], index: 2, kind: input, shape index: {}]
  %s3 = inlined_call_operand.vmem [shape: f32[1,512], index: 3, kind: input, shape index: {}]
  %s4 = inlined_call_operand.vmem [shape: bf16[512,128], index: 4, kind: input, shape index: {}]
  %s5 = inlined_call_operand.vmem [shape: f32[1,128], index: 5, kind: input, shape index: {}]
  %s6 = inlined_call_operand.vmem [shape: f32[8,128], index: 6, kind: output, shape index: {}]
  %s7 = sld [smem:[#allocation0]]
  $region34: #{vae_forward.13} parent=0
    _
  %s9 = ssub.s32 1, %s7
  %s10 = scalar_select 0, %s9, %s7
  // Predicated region
  $region2: #{vae_forward.13} parent=0 // pred_check
    _
  $region3: #{vae_forward.13} parent=0 // pred_check_branch
    %12 = sbr.rel (0) target = $region5
  $region4: #{vae_forward.13} parent=0 // pred_region
    _
  $region5: #{vae_forward.13} parent=0 // pred_fallthru
    _
  // Predicated region
  $region6: #{vae_forward.13} parent=0 // pred_check
    _
  $region7: #{vae_forward.13} parent=0 // pred_check_branch
    %14 = sbr.rel (0) target = $region9
  $region8: #{vae_forward.13} parent=0 // pred_region
    _
  $region9: #{vae_forward.13} parent=0 // pred_fallthru
    _
  // Predicated region
  $region10: #{vae_forward.13} parent=0 // pred_check
    _
  $region11: #{vae_forward.13} parent=0 // pred_check_branch
    %16 = sbr.rel (0) target = $region13
  $region12: #{vae_forward.13} parent=0 // pred_region
    _
  $region13: #{vae_forward.13} parent=0 // pred_fallthru
    _
  // Predicated region
  $region14: #{vae_forward.13} parent=0 // pred_check
    _
  $region15: #{vae_forward.13} parent=0 // pred_check_branch
    %18 = sbr.rel (0) target = $region17
  $region16: #{vae_forward.13} parent=0 // pred_region
    _
  $region17: #{vae_forward.13} parent=0 // pred_fallthru
    _
  // Predicated region
  $region18: #{vae_forward.13} parent=0 // pred_check
    _
  $region19: #{vae_forward.13} parent=0 // pred_check_branch
    %20 = sbr.rel (0) target = $region21
  $region20: #{vae_forward.13} parent=0 // pred_region
    _
  $region21: #{vae_forward.13} parent=0 // pred_fallthru
    _
  // Predicated region
  $region22: #{vae_forward.13} parent=0 // pred_check
    _
  $region23: #{vae_forward.13} parent=0 // pred_check_branch
    %22 = sbr.rel (0) target = $region25
  $region24: #{vae_forward.13} parent=0 // pred_region
    _
  $region25: #{vae_forward.13} parent=0 // pred_fallthru
    _
  %v24 = vld [vmem:[%s0] sm:$0xff]
  %v25 = vld [vmem:[%s1] sm:$0xff]
  %v26 = vld [vmem:[%s1 + $0x8] sm:$0xff]
  %v27 = vld [vmem:[%s1 + $0x10] sm:$0xff]
  %v28 = vld [vmem:[%s1 + $0x18] sm:$0xff]
  %v29 = vld [vmem:[%s1 + $0x20] sm:$0xff]
  %v30 = vld [vmem:[%s1 + $0x28] sm:$0xff]
  %v31 = vld [vmem:[%s1 + $0x30] sm:$0xff]
  %v32 = vld [vmem:[%s1 + $0x38] sm:$0xff]
  %v33 = vld [vmem:[%s1 + $0x40] sm:$0xff]
  %v34 = vld [vmem:[%s1 + $0x48] sm:$0xff]
  %v35 = vld [vmem:[%s1 + $0x50] sm:$0xff]
  %v36 = vld [vmem:[%s1 + $0x58] sm:$0xff]
  %v37 = vld [vmem:[%s1 + $0x60] sm:$0xff]
  %v38 = vld [vmem:[%s1 + $0x68] sm:$0xff]
  %v39 = vld [vmem:[%s1 + $0x70] sm:$0xff]
  %v40 = vld [vmem:[%s1 + $0x78] sm:$0xff]
  %v41 = vld [vmem:[%s1 + $0x80] sm:$0xff]
  %v42 = vld [vmem:[%s1 + $0x88] sm:$0xff]
  %v43 = vld [vmem:[%s1 + $0x90] sm:$0xff]
  %v44 = vld [vmem:[%s1 + $0x98] sm:$0xff]
  %v45 = vld [vmem:[%s1 + $0xa0] sm:$0xff]
  %v46 = vld [vmem:[%s1 + $0xa8] sm:$0xff]
  %v47 = vld [vmem:[%s1 + $0xb0] sm:$0xff]
  %v48 = vld [vmem:[%s1 + $0xb8] sm:$0xff]
  %v49 = vld [vmem:[%s1 + $0xc0] sm:$0xff]
  %v50 = vld [vmem:[%s1 + $0xc8] sm:$0xff]
  %v51 = vld [vmem:[%s1 + $0xd0] sm:$0xff]
  %v52 = vld [vmem:[%s1 + $0xd8] sm:$0xff]
  %v53 = vld [vmem:[%s1 + $0xe0] sm:$0xff]
  %v54 = vld [vmem:[%s1 + $0xe8] sm:$0xff]
  %v55 = vld [vmem:[%s1 + $0xf0] sm:$0xff]
  %v56 = vld [vmem:[%s1 + $0xf8] sm:$0xff]
  %v57 = vld [vmem:[%s1 + $0x100] sm:$0xff]
  %v58 = vld [vmem:[%s1 + $0x108] sm:$0xff]
  %v59 = vld [vmem:[%s1 + $0x110] sm:$0xff]
  %v60 = vld [vmem:[%s1 + $0x118] sm:$0xff]
  %v61 = vld [vmem:[%s1 + $0x120] sm:$0xff]
  %v62 = vld [vmem:[%s1 + $0x128] sm:$0xff]
  %v63 = vld [vmem:[%s1 + $0x130] sm:$0xff]
  %v64 = vld [vmem:[%s1 + $0x138] sm:$0xff]
  %v65 = vld [vmem:[%s1 + $0x140] sm:$0xff]
  %v66 = vld [vmem:[%s1 + $0x148] sm:$0xff]
  %v67 = vld [vmem:[%s1 + $0x150] sm:$0xff]
  %v68 = vld [vmem:[%s1 + $0x158] sm:$0xff]
  %v69 = vld [vmem:[%s1 + $0x160] sm:$0xff]
  %v70 = vld [vmem:[%s1 + $0x168] sm:$0xff]
  %v71 = vld [vmem:[%s1 + $0x170] sm:$0xff]
  %v72 = vld [vmem:[%s1 + $0x178] sm:$0xff]
  %v73 = vld [vmem:[%s1 + $0x180] sm:$0xff]
  %v74 = vld [vmem:[%s1 + $0x188] sm:$0xff]
  %v75 = vld [vmem:[%s1 + $0x190] sm:$0xff]
  %v76 = vld [vmem:[%s1 + $0x198] sm:$0xff]
  %v77 = vld [vmem:[%s1 + $0x1a0] sm:$0xff]
  %v78 = vld [vmem:[%s1 + $0x1a8] sm:$0xff]
  %v79 = vld [vmem:[%s1 + $0x1b0] sm:$0xff]
  %v80 = vld [vmem:[%s1 + $0x1b8] sm:$0xff]
  %v81 = vld [vmem:[%s1 + $0x1c0] sm:$0xff]
  %v82 = vld [vmem:[%s1 + $0x1c8] sm:$0xff]
  %v83 = vld [vmem:[%s1 + $0x1d0] sm:$0xff]
  %v84 = vld [vmem:[%s1 + $0x1d8] sm:$0xff]
  %v85 = vld [vmem:[%s1 + $0x1e0] sm:$0xff]
  %v86 = vld [vmem:[%s1 + $0x1e8] sm:$0xff]
  %v87 = vld [vmem:[%s1 + $0x1f0] sm:$0xff]
  %v88 = vld [vmem:[%s1 + $0x1f8] sm:$0xff]
  %v90 = vunpack.c.l.b16 %v24
  %v91 = vunpack.c.h.b16 %v24
  %v92 = vpack.c.b16 %v90, %v90
  %v93 = vpack.c.b16 %v91, %v91
  %v160 = vunpack.c.l.b16 %v25
  %v161 = vunpack.c.h.b16 %v25
  %v162 = vunpack.c.l.b16 %v26
  %v163 = vunpack.c.h.b16 %v26
  %v164 = vunpack.c.l.b16 %v27
  %v165 = vunpack.c.h.b16 %v27
  %v166 = vunpack.c.l.b16 %v28
  %v167 = vunpack.c.h.b16 %v28
  %v168 = vunpack.c.l.b16 %v29
  %v169 = vunpack.c.h.b16 %v29
  %v170 = vunpack.c.l.b16 %v30
  %v171 = vunpack.c.h.b16 %v30
  %v172 = vunpack.c.l.b16 %v31
  %v173 = vunpack.c.h.b16 %v31
  %v174 = vunpack.c.l.b16 %v32
  %v175 = vunpack.c.h.b16 %v32
  %v176 = vunpack.c.l.b16 %v33
  %v177 = vunpack.c.h.b16 %v33
  %v178 = vunpack.c.l.b16 %v34
  %v179 = vunpack.c.h.b16 %v34
  %v180 = vunpack.c.l.b16 %v35
  %v181 = vunpack.c.h.b16 %v35
  %v182 = vunpack.c.l.b16 %v36
  %v183 = vunpack.c.h.b16 %v36
  %v184 = vunpack.c.l.b16 %v37
  %v185 = vunpack.c.h.b16 %v37
  %v186 = vunpack.c.l.b16 %v38
  %v187 = vunpack.c.h.b16 %v38
  %v188 = vunpack.c.l.b16 %v39
  %v189 = vunpack.c.h.b16 %v39
  %v190 = vunpack.c.l.b16 %v40
  %v191 = vunpack.c.h.b16 %v40
  %v192 = vunpack.c.l.b16 %v41
  %v193 = vunpack.c.h.b16 %v41
  %v194 = vunpack.c.l.b16 %v42
  %v195 = vunpack.c.h.b16 %v42
  %v196 = vunpack.c.l.b16 %v43
  %v197 = vunpack.c.h.b16 %v43
  %v198 = vunpack.c.l.b16 %v44
  %v199 = vunpack.c.h.b16 %v44
  %v200 = vunpack.c.l.b16 %v45
  %v201 = vunpack.c.h.b16 %v45
  %v202 = vunpack.c.l.b16 %v46
  %v203 = vunpack.c.h.b16 %v46
  %v204 = vunpack.c.l.b16 %v47
  %v205 = vunpack.c.h.b16 %v47
  %v206 = vunpack.c.l.b16 %v48
  %v207 = vunpack.c.h.b16 %v48
  %v208 = vunpack.c.l.b16 %v49
  %v209 = vunpack.c.h.b16 %v49
  %v210 = vunpack.c.l.b16 %v50
  %v211 = vunpack.c.h.b16 %v50
  %v212 = vunpack.c.l.b16 %v51
  %v213 = vunpack.c.h.b16 %v51
  %v214 = vunpack.c.l.b16 %v52
  %v215 = vunpack.c.h.b16 %v52
  %v216 = vunpack.c.l.b16 %v53
  %v217 = vunpack.c.h.b16 %v53
  %v218 = vunpack.c.l.b16 %v54
  %v219 = vunpack.c.h.b16 %v54
  %v220 = vunpack.c.l.b16 %v55
  %v221 = vunpack.c.h.b16 %v55
  %v222 = vunpack.c.l.b16 %v56
  %v223 = vunpack.c.h.b16 %v56
  %v224 = vunpack.c.l.b16 %v57
  %v225 = vunpack.c.h.b16 %v57
  %v226 = vunpack.c.l.b16 %v58
  %v227 = vunpack.c.h.b16 %v58
  %v228 = vunpack.c.l.b16 %v59
  %v229 = vunpack.c.h.b16 %v59
  %v230 = vunpack.c.l.b16 %v60
  %v231 = vunpack.c.h.b16 %v60
  %v232 = vunpack.c.l.b16 %v61
  %v233 = vunpack.c.h.b16 %v61
  %v234 = vunpack.c.l.b16 %v62
  %v235 = vunpack.c.h.b16 %v62
  %v236 = vunpack.c.l.b16 %v63
  %v237 = vunpack.c.h.b16 %v63
  %v238 = vunpack.c.l.b16 %v64
  %v239 = vunpack.c.h.b16 %v64
  %v240 = vunpack.c.l.b16 %v65
  %v241 = vunpack.c.h.b16 %v65
  %v242 = vunpack.c.l.b16 %v66
  %v243 = vunpack.c.h.b16 %v66
  %v244 = vunpack.c.l.b16 %v67
  %v245 = vunpack.c.h.b16 %v67
  %v246 = vunpack.c.l.b16 %v68
  %v247 = vunpack.c.h.b16 %v68
  %v248 = vunpack.c.l.b16 %v69
  %v249 = vunpack.c.h.b16 %v69
  %v250 = vunpack.c.l.b16 %v70
  %v251 = vunpack.c.h.b16 %v70
  %v252 = vunpack.c.l.b16 %v71
  %v253 = vunpack.c.h.b16 %v71
  %v254 = vunpack.c.l.b16 %v72
  %v255 = vunpack.c.h.b16 %v72
  %v256 = vunpack.c.l.b16 %v73
  %v257 = vunpack.c.h.b16 %v73
  %v258 = vunpack.c.l.b16 %v74
  %v259 = vunpack.c.h.b16 %v74
  %v260 = vunpack.c.l.b16 %v75
  %v261 = vunpack.c.h.b16 %v75
  %v262 = vunpack.c.l.b16 %v76
  %v263 = vunpack.c.h.b16 %v76
  %v264 = vunpack.c.l.b16 %v77
  %v265 = vunpack.c.h.b16 %v77
  %v266 = vunpack.c.l.b16 %v78
  %v267 = vunpack.c.h.b16 %v78
  %v268 = vunpack.c.l.b16 %v79
  %v269 = vunpack.c.h.b16 %v79
  %v270 = vunpack.c.l.b16 %v80
  %v271 = vunpack.c.h.b16 %v80
  %v272 = vunpack.c.l.b16 %v81
  %v273 = vunpack.c.h.b16 %v81
  %v274 = vunpack.c.l.b16 %v82
  %v275 = vunpack.c.h.b16 %v82
  %v276 = vunpack.c.l.b16 %v83
  %v277 = vunpack.c.h.b16 %v83
  %v278 = vunpack.c.l.b16 %v84
  %v279 = vunpack.c.h.b16 %v84
  %v280 = vunpack.c.l.b16 %v85
  %v281 = vunpack.c.h.b16 %v85
  %v282 = vunpack.c.l.b16 %v86
  %v283 = vunpack.c.h.b16 %v86
  %v284 = vunpack.c.l.b16 %v87
  %v285 = vunpack.c.h.b16 %v87
  %v286 = vunpack.c.l.b16 %v88
  %v287 = vunpack.c.h.b16 %v88
  %v288 = vpack.c.b16 %v164, %v160
  %v289 = vpack.c.b16 %v165, %v161
  %v290 = vpack.c.b16 %v166, %v162
  %v291 = vpack.c.b16 %v167, %v163
  %v292 = vpack.c.b16 %v172, %v168
  %v293 = vpack.c.b16 %v173, %v169
  %v294 = vpack.c.b16 %v174, %v170
  %v295 = vpack.c.b16 %v175, %v171
  %v296 = vpack.c.b16 %v180, %v176
  %v297 = vpack.c.b16 %v181, %v177
  %v298 = vpack.c.b16 %v182, %v178
  %v299 = vpack.c.b16 %v183, %v179
  %v300 = vpack.c.b16 %v188, %v184
  %v301 = vpack.c.b16 %v189, %v185
  %v302 = vpack.c.b16 %v190, %v186
  %v303 = vpack.c.b16 %v191, %v187
  %v304 = vpack.c.b16 %v196, %v192
  %v305 = vpack.c.b16 %v197, %v193
  %v306 = vpack.c.b16 %v198, %v194
  %v307 = vpack.c.b16 %v199, %v195
  %v308 = vpack.c.b16 %v204, %v200
  %v309 = vpack.c.b16 %v205, %v201
  %v310 = vpack.c.b16 %v206, %v202
  %v311 = vpack.c.b16 %v207, %v203
  %v312 = vpack.c.b16 %v212, %v208
  %v313 = vpack.c.b16 %v213, %v209
  %v314 = vpack.c.b16 %v214, %v210
  %v315 = vpack.c.b16 %v215, %v211
  %v316 = vpack.c.b16 %v220, %v216
  %v317 = vpack.c.b16 %v221, %v217
  %v318 = vpack.c.b16 %v222, %v218
  %v319 = vpack.c.b16 %v223, %v219
  %v320 = vpack.c.b16 %v228, %v224
  %v321 = vpack.c.b16 %v229, %v225
  %v322 = vpack.c.b16 %v230, %v226
  %v323 = vpack.c.b16 %v231, %v227
  %v324 = vpack.c.b16 %v236, %v232
  %v325 = vpack.c.b16 %v237, %v233
  %v326 = vpack.c.b16 %v238, %v234
  %v327 = vpack.c.b16 %v239, %v235
  %v328 = vpack.c.b16 %v244, %v240
  %v329 = vpack.c.b16 %v245, %v241
  %v330 = vpack.c.b16 %v246, %v242
  %v331 = vpack.c.b16 %v247, %v243
  %v332 = vpack.c.b16 %v252, %v248
  %v333 = vpack.c.b16 %v253, %v249
  %v334 = vpack.c.b16 %v254, %v250
  %v335 = vpack.c.b16 %v255, %v251
  %v336 = vpack.c.b16 %v260, %v256
  %v337 = vpack.c.b16 %v261, %v257
  %v338 = vpack.c.b16 %v262, %v258
  %v339 = vpack.c.b16 %v263, %v259
  %v340 = vpack.c.b16 %v268, %v264
  %v341 = vpack.c.b16 %v269, %v265
  %v342 = vpack.c.b16 %v270, %v266
  %v343 = vpack.c.b16 %v271, %v267
  %v344 = vpack.c.b16 %v276, %v272
  %v345 = vpack.c.b16 %v277, %v273
  %v346 = vpack.c.b16 %v278, %v274
  %v347 = vpack.c.b16 %v279, %v275
  %v348 = vpack.c.b16 %v284, %v280
  %v349 = vpack.c.b16 %v285, %v281
  %v350 = vpack.c.b16 %v286, %v282
  %v351 = vpack.c.b16 %v287, %v283
  %416 = vmatprep.subr.bf16.mxu0 %v289
  %417 = vmatpush1.bf16.msra.mxu0 %v288
  %418 = vmatprep.subr.bf16.mxu0 %v293
  %419 = vmatpush1.bf16.msra.mxu0 %v292
  %420 = vmatprep.subr.bf16.mxu0 %v297
  %421 = vmatpush1.bf16.msra.mxu0 %v296
  %422 = vmatprep.subr.bf16.mxu0 %v301
  %423 = vmatpush1.bf16.msra.mxu0 %v300
  %424 = vmatprep.subr.bf16.mxu0 %v305
  %425 = vmatpush1.bf16.msra.mxu0 %v304
  %426 = vmatprep.subr.bf16.mxu0 %v309
  %427 = vmatpush1.bf16.msra.mxu0 %v308
  %428 = vmatprep.subr.bf16.mxu0 %v313
  %429 = vmatpush1.bf16.msra.mxu0 %v312
  %430 = vmatprep.subr.bf16.mxu0 %v317
  %431 = vmatpush1.bf16.msra.mxu0 %v316
  %432 = vmatprep.subr.bf16.mxu0 %v321
  %433 = vmatpush1.bf16.msra.mxu0 %v320
  %434 = vmatprep.subr.bf16.mxu0 %v325
  %435 = vmatpush1.bf16.msra.mxu0 %v324
  %436 = vmatprep.subr.bf16.mxu0 %v329
  %437 = vmatpush1.bf16.msra.mxu0 %v328
  %438 = vmatprep.subr.bf16.mxu0 %v333
  %439 = vmatpush1.bf16.msra.mxu0 %v332
  %440 = vmatprep.subr.bf16.mxu0 %v337
  %441 = vmatpush1.bf16.msra.mxu0 %v336
  %442 = vmatprep.subr.bf16.mxu0 %v341
  %443 = vmatpush1.bf16.msra.mxu0 %v340
  %444 = vmatprep.subr.bf16.mxu0 %v345
  %445 = vmatpush1.bf16.msra.mxu0 %v344
  %446 = vmatprep.subr.bf16.mxu0 %v349
  %447 = vmatpush1.bf16.msra.mxu0 %v348
  %448 = vmatprep.mubr.bf16.mxu0 %v93
  %449 = vmatmul.mubr.bf16.gmra.mrb[0].mxu0 %v92
  %v450 = vpop.f32.mrb[0].mxu0
  %v451 = vadd.f32 0.0, %v450
  %v452 = vpop.f32.mrb[0].mxu0
  %v453 = vadd.f32 0.0, %v452
  %v454 = vpop.f32.mrb[0].mxu0
  %v455 = vpop.f32.mrb[0].mxu0
  %456 = vdwg.mxu0
  %457 = vmatprep.subr.bf16.mxu0 %v291
  %458 = vmatpush1.bf16.msra.mxu0 %v290
  %459 = vmatprep.subr.bf16.mxu0 %v295
  %460 = vmatpush1.bf16.msra.mxu0 %v294
  %461 = vmatprep.subr.bf16.mxu0 %v299
  %462 = vmatpush1.bf16.msra.mxu0 %v298
  %463 = vmatprep.subr.bf16.mxu0 %v303
  %464 = vmatpush1.bf16.msra.mxu0 %v302
  %465 = vmatprep.subr.bf16.mxu0 %v307
  %466 = vmatpush1.bf16.msra.mxu0 %v306
  %467 = vmatprep.subr.bf16.mxu0 %v311
  %468 = vmatpush1.bf16.msra.mxu0 %v310
  %469 = vmatprep.subr.bf16.mxu0 %v315
  %470 = vmatpush1.bf16.msra.mxu0 %v314
  %471 = vmatprep.subr.bf16.mxu0 %v319
  %472 = vmatpush1.bf16.msra.mxu0 %v318
  %473 = vmatprep.subr.bf16.mxu0 %v323
  %474 = vmatpush1.bf16.msra.mxu0 %v322
  %475 = vmatprep.subr.bf16.mxu0 %v327
  %476 = vmatpush1.bf16.msra.mxu0 %v326
  %477 = vmatprep.subr.bf16.mxu0 %v331
  %478 = vmatpush1.bf16.msra.mxu0 %v330
  %479 = vmatprep.subr.bf16.mxu0 %v335
  %480 = vmatpush1.bf16.msra.mxu0 %v334
  %481 = vmatprep.subr.bf16.mxu0 %v339
  %482 = vmatpush1.bf16.msra.mxu0 %v338
  %483 = vmatprep.subr.bf16.mxu0 %v343
  %484 = vmatpush1.bf16.msra.mxu0 %v342
  %485 = vmatprep.subr.bf16.mxu0 %v347
  %486 = vmatpush1.bf16.msra.mxu0 %v346
  %487 = vmatprep.subr.bf16.mxu0 %v351
  %488 = vmatpush1.bf16.msra.mxu0 %v350
  %489 = vmatprep.mubr.bf16.mxu0 %v93
  %490 = vmatmul.mubr.bf16.gmra.mrb[0].mxu0 %v92
  %v491 = vpop.f32.mrb[0].mxu0
  %v492 = vadd.f32 0.0, %v491
  %v493 = vpop.f32.mrb[0].mxu0
  %v494 = vadd.f32 0.0, %v493
  %v495 = vpop.f32.mrb[0].mxu0
  %v496 = vpop.f32.mrb[0].mxu0
  %497 = vdwg.mxu0
  %v498 = vld [vmem:[%s2] sm:$0xf]
  %v500 = vlaneseq
  %v501 = vshrl.u32 %v500, 7
  %v502 = vsub.s32 0, %v501
  %v503 = vrot.slane %v498, %v502
  %v504 = vlaneseq
  %v505 = vshrl.u32 %v504, 7
  %v506 = vsub.s32 1, %v505
  %v507 = vrot.slane %v498, %v506
  %v508 = vlaneseq
  %v509 = vshrl.u32 %v508, 7
  %v510 = vsub.s32 2, %v509
  %v511 = vrot.slane %v498, %v510
  %v512 = vlaneseq
  %v513 = vshrl.u32 %v512, 7
  %v514 = vsub.s32 3, %v513
  %v515 = vrot.slane %v498, %v514
  %v520 = vmul.f32 %v451, %v503
  %v521 = vmul.f32 %v453, %v507
  %v522 = vmul.f32 %v492, %v511
  %v523 = vmul.f32 %v494, %v515
  %v524 = vld [vmem:[%s3] sm:$0xf]
  %v526 = vlaneseq
  %v527 = vshrl.u32 %v526, 7
  %v528 = vsub.s32 0, %v527
  %v529 = vrot.slane %v524, %v528
  %v530 = vlaneseq
  %v531 = vshrl.u32 %v530, 7
  %v532 = vsub.s32 1, %v531
  %v533 = vrot.slane %v524, %v532
  %v534 = vlaneseq
  %v535 = vshrl.u32 %v534, 7
  %v536 = vsub.s32 2, %v535
  %v537 = vrot.slane %v524, %v536
  %v538 = vlaneseq
  %v539 = vshrl.u32 %v538, 7
  %v540 = vsub.s32 3, %v539
  %v541 = vrot.slane %v524, %v540
  %v546 = vadd.f32 %v520, %v529
  %v547 = vadd.f32 %v521, %v533
  %v548 = vadd.f32 %v522, %v537
  %v549 = vadd.f32 %v523, %v541
  %v550 = vmax.f32 %v546, 0.0
  %v551 = vmax.f32 %v547, 0.0
  %v552 = vmax.f32 %v548, 0.0
  %v553 = vmax.f32 %v549, 0.0
  %v554 = vpack.c.bf16 %v550, %v550
  %v555 = vpack.c.bf16 %v551, %v551
  %v556 = vpack.c.bf16 %v552, %v552
  %v557 = vpack.c.bf16 %v553, %v553
  %v558 = vld [vmem:[%s4] sm:$0xf]
  %v559 = vld [vmem:[%s4 + $0x4] sm:$0xf]
  %v560 = vld [vmem:[%s4 + $0x8] sm:$0xf]
  %v561 = vld [vmem:[%s4 + $0xc] sm:$0xf]
  %v562 = vld [vmem:[%s4 + $0x10] sm:$0xf]
  %v563 = vld [vmem:[%s4 + $0x14] sm:$0xf]
  %v564 = vld [vmem:[%s4 + $0x18] sm:$0xf]
  %v565 = vld [vmem:[%s4 + $0x1c] sm:$0xf]
  %v566 = vld [vmem:[%s4 + $0x20] sm:$0xf]
  %v567 = vld [vmem:[%s4 + $0x24] sm:$0xf]
  %v568 = vld [vmem:[%s4 + $0x28] sm:$0xf]
  %v569 = vld [vmem:[%s4 + $0x2c] sm:$0xf]
  %v570 = vld [vmem:[%s4 + $0x30] sm:$0xf]
  %v571 = vld [vmem:[%s4 + $0x34] sm:$0xf]
  %v572 = vld [vmem:[%s4 + $0x38] sm:$0xf]
  %v573 = vld [vmem:[%s4 + $0x3c] sm:$0xf]
  %v574 = vld [vmem:[%s4 + $0x40] sm:$0xf]
  %v575 = vld [vmem:[%s4 + $0x44] sm:$0xf]
  %v576 = vld [vmem:[%s4 + $0x48] sm:$0xf]
  %v577 = vld [vmem:[%s4 + $0x4c] sm:$0xf]
  %v578 = vld [vmem:[%s4 + $0x50] sm:$0xf]
  %v579 = vld [vmem:[%s4 + $0x54] sm:$0xf]
  %v580 = vld [vmem:[%s4 + $0x58] sm:$0xf]
  %v581 = vld [vmem:[%s4 + $0x5c] sm:$0xf]
  %v582 = vld [vmem:[%s4 + $0x60] sm:$0xf]
  %v583 = vld [vmem:[%s4 + $0x64] sm:$0xf]
  %v584 = vld [vmem:[%s4 + $0x68] sm:$0xf]
  %v585 = vld [vmem:[%s4 + $0x6c] sm:$0xf]
  %v586 = vld [vmem:[%s4 + $0x70] sm:$0xf]
  %v587 = vld [vmem:[%s4 + $0x74] sm:$0xf]
  %v588 = vld [vmem:[%s4 + $0x78] sm:$0xf]
  %v589 = vld [vmem:[%s4 + $0x7c] sm:$0xf]
  %v590 = vld [vmem:[%s4 + $0x80] sm:$0xf]
  %v591 = vld [vmem:[%s4 + $0x84] sm:$0xf]
  %v592 = vld [vmem:[%s4 + $0x88] sm:$0xf]
  %v593 = vld [vmem:[%s4 + $0x8c] sm:$0xf]
  %v594 = vld [vmem:[%s4 + $0x90] sm:$0xf]
  %v595 = vld [vmem:[%s4 + $0x94] sm:$0xf]
  %v596 = vld [vmem:[%s4 + $0x98] sm:$0xf]
  %v597 = vld [vmem:[%s4 + $0x9c] sm:$0xf]
  %v598 = vld [vmem:[%s4 + $0xa0] sm:$0xf]
  %v599 = vld [vmem:[%s4 + $0xa4] sm:$0xf]
  %v600 = vld [vmem:[%s4 + $0xa8] sm:$0xf]
  %v601 = vld [vmem:[%s4 + $0xac] sm:$0xf]
  %v602 = vld [vmem:[%s4 + $0xb0] sm:$0xf]
  %v603 = vld [vmem:[%s4 + $0xb4] sm:$0xf]
  %v604 = vld [vmem:[%s4 + $0xb8] sm:$0xf]
  %v605 = vld [vmem:[%s4 + $0xbc] sm:$0xf]
  %v606 = vld [vmem:[%s4 + $0xc0] sm:$0xf]
  %v607 = vld [vmem:[%s4 + $0xc4] sm:$0xf]
  %v608 = vld [vmem:[%s4 + $0xc8] sm:$0xf]
  %v609 = vld [vmem:[%s4 + $0xcc] sm:$0xf]
  %v610 = vld [vmem:[%s4 + $0xd0] sm:$0xf]
  %v611 = vld [vmem:[%s4 + $0xd4] sm:$0xf]
  %v612 = vld [vmem:[%s4 + $0xd8] sm:$0xf]
  %v613 = vld [vmem:[%s4 + $0xdc] sm:$0xf]
  %v614 = vld [vmem:[%s4 + $0xe0] sm:$0xf]
  %v615 = vld [vmem:[%s4 + $0xe4] sm:$0xf]
  %v616 = vld [vmem:[%s4 + $0xe8] sm:$0xf]
  %v617 = vld [vmem:[%s4 + $0xec] sm:$0xf]
  %v618 = vld [vmem:[%s4 + $0xf0] sm:$0xf]
  %v619 = vld [vmem:[%s4 + $0xf4] sm:$0xf]
  %v620 = vld [vmem:[%s4 + $0xf8] sm:$0xf]
  %v621 = vld [vmem:[%s4 + $0xfc] sm:$0xf]
  %v622 = vld [vmem:[%s5] sm:$0x1]
  %v624 = vlaneseq
  %v625 = vshrl.u32 %v624, 7
  %v626 = vsub.s32 0, %v625
  %v627 = vrot.slane %v622, %v626
  %v693 = vunpack.c.l.b16 %v558
  %v694 = vunpack.c.l.b16 %v559
  %v695 = vunpack.c.l.b16 %v560
  %v696 = vunpack.c.l.b16 %v561
  %v697 = vunpack.c.l.b16 %v562
  %v698 = vunpack.c.l.b16 %v563
  %v699 = vunpack.c.l.b16 %v564
  %v700 = vunpack.c.l.b16 %v565
  %v701 = vunpack.c.l.b16 %v566
  %v702 = vunpack.c.l.b16 %v567
  %v703 = vunpack.c.l.b16 %v568
  %v704 = vunpack.c.l.b16 %v569
  %v705 = vunpack.c.l.b16 %v570
  %v706 = vunpack.c.l.b16 %v571
  %v707 = vunpack.c.l.b16 %v572
  %v708 = vunpack.c.l.b16 %v573
  %v709 = vunpack.c.l.b16 %v574
  %v710 = vunpack.c.l.b16 %v575
  %v711 = vunpack.c.l.b16 %v576
  %v712 = vunpack.c.l.b16 %v577
  %v713 = vunpack.c.l.b16 %v578
  %v714 = vunpack.c.l.b16 %v579
  %v715 = vunpack.c.l.b16 %v580
  %v716 = vunpack.c.l.b16 %v581
  %v717 = vunpack.c.l.b16 %v582
  %v718 = vunpack.c.l.b16 %v583
  %v719 = vunpack.c.l.b16 %v584
  %v720 = vunpack.c.l.b16 %v585
  %v721 = vunpack.c.l.b16 %v586
  %v722 = vunpack.c.l.b16 %v587
  %v723 = vunpack.c.l.b16 %v588
  %v724 = vunpack.c.l.b16 %v589
  %v725 = vunpack.c.l.b16 %v590
  %v726 = vunpack.c.l.b16 %v591
  %v727 = vunpack.c.l.b16 %v592
  %v728 = vunpack.c.l.b16 %v593
  %v729 = vunpack.c.l.b16 %v594
  %v730 = vunpack.c.l.b16 %v595
  %v731 = vunpack.c.l.b16 %v596
  %v732 = vunpack.c.l.b16 %v597
  %v733 = vunpack.c.l.b16 %v598
  %v734 = vunpack.c.l.b16 %v599
  %v735 = vunpack.c.l.b16 %v600
  %v736 = vunpack.c.l.b16 %v601
  %v737 = vunpack.c.l.b16 %v602
  %v738 = vunpack.c.l.b16 %v603
  %v739 = vunpack.c.l.b16 %v604
  %v740 = vunpack.c.l.b16 %v605
  %v741 = vunpack.c.l.b16 %v606
  %v742 = vunpack.c.l.b16 %v607
  %v743 = vunpack.c.l.b16 %v608
  %v744 = vunpack.c.l.b16 %v609
  %v745 = vunpack.c.l.b16 %v610
  %v746 = vunpack.c.l.b16 %v611
  %v747 = vunpack.c.l.b16 %v612
  %v748 = vunpack.c.l.b16 %v613
  %v749 = vunpack.c.l.b16 %v614
  %v750 = vunpack.c.l.b16 %v615
  %v751 = vunpack.c.l.b16 %v616
  %v752 = vunpack.c.l.b16 %v617
  %v753 = vunpack.c.l.b16 %v618
  %v754 = vunpack.c.l.b16 %v619
  %v755 = vunpack.c.l.b16 %v620
  %v756 = vunpack.c.l.b16 %v621
  %v757 = vpack.c.b16 %v694, %v693
  %v758 = vpack.c.b16 %v696, %v695
  %v759 = vpack.c.b16 %v698, %v697
  %v760 = vpack.c.b16 %v700, %v699
  %v761 = vpack.c.b16 %v702, %v701
  %v762 = vpack.c.b16 %v704, %v703
  %v763 = vpack.c.b16 %v706, %v705
  %v764 = vpack.c.b16 %v708, %v707
  %v765 = vpack.c.b16 %v710, %v709
  %v766 = vpack.c.b16 %v712, %v711
  %v767 = vpack.c.b16 %v714, %v713
  %v768 = vpack.c.b16 %v716, %v715
  %v769 = vpack.c.b16 %v718, %v717
  %v770 = vpack.c.b16 %v720, %v719
  %v771 = vpack.c.b16 %v722, %v721
  %v772 = vpack.c.b16 %v724, %v723
  %v773 = vpack.c.b16 %v726, %v725
  %v774 = vpack.c.b16 %v728, %v727
  %v775 = vpack.c.b16 %v730, %v729
  %v776 = vpack.c.b16 %v732, %v731
  %v777 = vpack.c.b16 %v734, %v733
  %v778 = vpack.c.b16 %v736, %v735
  %v779 = vpack.c.b16 %v738, %v737
  %v780 = vpack.c.b16 %v740, %v739
  %v781 = vpack.c.b16 %v742, %v741
  %v782 = vpack.c.b16 %v744, %v743
  %v783 = vpack.c.b16 %v746, %v745
  %v784 = vpack.c.b16 %v748, %v747
  %v785 = vpack.c.b16 %v750, %v749
  %v786 = vpack.c.b16 %v752, %v751
  %v787 = vpack.c.b16 %v754, %v753
  %v788 = vpack.c.b16 %v756, %v755
  %821 = vmatprep.subr.bf16.mxu0 0
  %822 = vmatpush1.bf16.msra.mxu0 %v757
  %823 = vmatprep.subr.bf16.mxu0 0
  %824 = vmatpush1.bf16.msra.mxu0 %v758
  %825 = vmatprep.subr.bf16.mxu0 0
  %826 = vmatpush1.bf16.msra.mxu0 %v759
  %827 = vmatprep.subr.bf16.mxu0 0
  %828 = vmatpush1.bf16.msra.mxu0 %v760
  %829 = vmatprep.subr.bf16.mxu0 0
  %830 = vmatpush1.bf16.msra.mxu0 %v761
  %831 = vmatprep.subr.bf16.mxu0 0
  %832 = vmatpush1.bf16.msra.mxu0 %v762
  %833 = vmatprep.subr.bf16.mxu0 0
  %834 = vmatpush1.bf16.msra.mxu0 %v763
  %835 = vmatprep.subr.bf16.mxu0 0
  %836 = vmatpush1.bf16.msra.mxu0 %v764
  %837 = vmatprep.subr.bf16.mxu0 0
  %838 = vmatpush1.bf16.msra.mxu0 %v765
  %839 = vmatprep.subr.bf16.mxu0 0
  %840 = vmatpush1.bf16.msra.mxu0 %v766
  %841 = vmatprep.subr.bf16.mxu0 0
  %842 = vmatpush1.bf16.msra.mxu0 %v767
  %843 = vmatprep.subr.bf16.mxu0 0
  %844 = vmatpush1.bf16.msra.mxu0 %v768
  %845 = vmatprep.subr.bf16.mxu0 0
  %846 = vmatpush1.bf16.msra.mxu0 %v769
  %847 = vmatprep.subr.bf16.mxu0 0
  %848 = vmatpush1.bf16.msra.mxu0 %v770
  %849 = vmatprep.subr.bf16.mxu0 0
  %850 = vmatpush1.bf16.msra.mxu0 %v771
  %851 = vmatprep.subr.bf16.mxu0 0
  %852 = vmatpush1.bf16.msra.mxu0 %v772
  %853 = vmatprep.mubr.bf16.mxu0 %v555
  %854 = vmatmul.mubr.bf16.gmra.mrb[0].mxu0 %v554
  %v855 = vpop.f32.mrb[0].mxu0
  %v856 = vadd.f32 %v627, %v855
  %v857 = vpop.f32.mrb[0].mxu0
  %v858 = vpop.f32.mrb[0].mxu0
  %v859 = vpop.f32.mrb[0].mxu0
  %860 = vdwg.mxu0
  %861 = vmatprep.subr.bf16.mxu0 0
  %862 = vmatpush1.bf16.msra.mxu0 %v773
  %863 = vmatprep.subr.bf16.mxu0 0
  %864 = vmatpush1.bf16.msra.mxu0 %v774
  %865 = vmatprep.subr.bf16.mxu0 0
  %866 = vmatpush1.bf16.msra.mxu0 %v775
  %867 = vmatprep.subr.bf16.mxu0 0
  %868 = vmatpush1.bf16.msra.mxu0 %v776
  %869 = vmatprep.subr.bf16.mxu0 0
  %870 = vmatpush1.bf16.msra.mxu0 %v777
  %871 = vmatprep.subr.bf16.mxu0 0
  %872 = vmatpush1.bf16.msra.mxu0 %v778
  %873 = vmatprep.subr.bf16.mxu0 0
  %874 = vmatpush1.bf16.msra.mxu0 %v779
  %875 = vmatprep.subr.bf16.mxu0 0
  %876 = vmatpush1.bf16.msra.mxu0 %v780
  %877 = vmatprep.subr.bf16.mxu0 0
  %878 = vmatpush1.bf16.msra.mxu0 %v781
  %879 = vmatprep.subr.bf16.mxu0 0
  %880 = vmatpush1.bf16.msra.mxu0 %v782
  %881 = vmatprep.subr.bf16.mxu0 0
  %882 = vmatpush1.bf16.msra.mxu0 %v783
  %883 = vmatprep.subr.bf16.mxu0 0
  %884 = vmatpush1.bf16.msra.mxu0 %v784
  %885 = vmatprep.subr.bf16.mxu0 0
  %886 = vmatpush1.bf16.msra.mxu0 %v785
  %887 = vmatprep.subr.bf16.mxu0 0
  %888 = vmatpush1.bf16.msra.mxu0 %v786
  %889 = vmatprep.subr.bf16.mxu0 0
  %890 = vmatpush1.bf16.msra.mxu0 %v787
  %891 = vmatprep.subr.bf16.mxu0 0
  %892 = vmatpush1.bf16.msra.mxu0 %v788
  %893 = vmatprep.mubr.bf16.mxu0 %v557
  %894 = vmatmul.mubr.bf16.gmra.mrb[0].mxu0 %v556
  %v895 = vpop.f32.mrb[0].mxu0
  %v896 = vadd.f32 %v856, %v895
  %v897 = vpop.f32.mrb[0].mxu0
  %v898 = vpop.f32.mrb[0].mxu0
  %v899 = vpop.f32.mrb[0].mxu0
  %900 = vdwg.mxu0
  %901 = vst [vmem:[%s6] sm:$0xff] %v896
  // Predicated region
  $region26: #{vae_forward.13} parent=0 // pred_check
    _
  $region27: #{vae_forward.13} parent=0 // pred_check_branch
    %903 = sbr.rel (0) target = $region29
  $region28: #{vae_forward.13} parent=0 // pred_region
    _
  $region29: #{vae_forward.13} parent=0 // pred_fallthru
    _
  // Predicated region
  $region30: #{vae_forward.13} parent=0 // pred_check
    _
  $region31: #{vae_forward.13} parent=0 // pred_check_branch
    %905 = sbr.rel (0) target = $region33
  $region32: #{vae_forward.13} parent=0 // pred_region
    _
  $region33: #{vae_forward.13} parent=0 // pred_fallthru
    _

// kernel: vae_forward.15
$region0: #{vae_forward.15}
  #allocation0 [shape = 'u32[]', space=smem, size = 0x4, offset = 0x4, fixed_abs, tag = 'smem constant byte address 0x4 - core index']
  #allocation1 [shape = 'u32[144,128]{1,0:T(1,128)}', space=vmem, size = 0x12000, scoped, tag = 'internal scratch']
  %s0 = inlined_call_operand.vmem [shape: bf16[128,512], index: 0, kind: input, shape index: {}]
  %s1 = inlined_call_operand.vmem [shape: bf16[512,256], index: 1, kind: input, shape index: {}]
  %s2 = inlined_call_operand.vmem [shape: f32[1,256], index: 2, kind: input, shape index: {}]
  %s3 = inlined_call_operand.vmem [shape: bf16[128,256], index: 3, kind: output, shape index: {}]
  %s4 = sld [smem:[#allocation0]]
  $region22: #{vae_forward.15} parent=0
    _
  %s6 = ssub.s32 1, %s4
  %s7 = scalar_select 0, %s6, %s4
  // Predicated region
  $region2: #{vae_forward.15} parent=0 // pred_check
    _
  $region3: #{vae_forward.15} parent=0 // pred_check_branch
    %9 = sbr.rel (0) target = $region5
  $region4: #{vae_forward.15} parent=0 // pred_region
    _
  $region5: #{vae_forward.15} parent=0 // pred_fallthru
    _
  // Predicated region
  $region6: #{vae_forward.15} parent=0 // pred_check
    _
  $region7: #{vae_forward.15} parent=0 // pred_check_branch
    %11 = sbr.rel (0) target = $region9
  $region8: #{vae_forward.15} parent=0 // pred_region
    _
  $region9: #{vae_forward.15} parent=0 // pred_fallthru
    _
  // Predicated region
  $region10: #{vae_forward.15} parent=0 // pred_check
    _
  $region11: #{vae_forward.15} parent=0 // pred_check_branch
    %13 = sbr.rel (0) target = $region13
  $region12: #{vae_forward.15} parent=0 // pred_region
    _
  $region13: #{vae_forward.15} parent=0 // pred_fallthru
    _
  %v14 = vld [vmem:[%s0] sm:$0xff]
  %v15 = vld [vmem:[%s0 + $0x8] sm:$0xff]
  %v16 = vld [vmem:[%s0 + $0x10] sm:$0xff]
  %v17 = vld [vmem:[%s0 + $0x18] sm:$0xff]
  %v18 = vld [vmem:[%s0 + $0x20] sm:$0xff]
  %v19 = vld [vmem:[%s0 + $0x28] sm:$0xff]
  %v20 = vld [vmem:[%s0 + $0x30] sm:$0xff]
  %v21 = vld [vmem:[%s0 + $0x38] sm:$0xff]
  %v22 = vld [vmem:[%s0 + $0x40] sm:$0xff]
  %v23 = vld [vmem:[%s0 + $0x48] sm:$0xff]
  %v24 = vld [vmem:[%s0 + $0x50] sm:$0xff]
  %v25 = vld [vmem:[%s0 + $0x58] sm:$0xff]
  %v26 = vld [vmem:[%s0 + $0x60] sm:$0xff]
  %v27 = vld [vmem:[%s0 + $0x68] sm:$0xff]
  %v28 = vld [vmem:[%s0 + $0x70] sm:$0xff]
  %v29 = vld [vmem:[%s0 + $0x78] sm:$0xff]
  %v30 = vld [vmem:[%s0 + $0x80] sm:$0xff]
  %v31 = vld [vmem:[%s0 + $0x88] sm:$0xff]
  %v32 = vld [vmem:[%s0 + $0x90] sm:$0xff]
  %v33 = vld [vmem:[%s0 + $0x98] sm:$0xff]
  %v34 = vld [vmem:[%s0 + $0xa0] sm:$0xff]
  %v35 = vld [vmem:[%s0 + $0xa8] sm:$0xff]
  %v36 = vld [vmem:[%s0 + $0xb0] sm:$0xff]
  %v37 = vld [vmem:[%s0 + $0xb8] sm:$0xff]
  %v38 = vld [vmem:[%s0 + $0xc0] sm:$0xff]
  %v39 = vld [vmem:[%s0 + $0xc8] sm:$0xff]
  %v40 = vld [vmem:[%s0 + $0xd0] sm:$0xff]
  %v41 = vld [vmem:[%s0 + $0xd8] sm:$0xff]
  %v42 = vld [vmem:[%s0 + $0xe0] sm:$0xff]
  %v43 = vld [vmem:[%s0 + $0xe8] sm:$0xff]
  %v44 = vld [vmem:[%s0 + $0xf0] sm:$0xff]
  %v45 = vld [vmem:[%s0 + $0xf8] sm:$0xff]
  %v46 = vld [vmem:[%s1] sm:$0xff]
  %v47 = vld [vmem:[%s1 + $0x8] sm:$0xff]
  %v48 = vld [vmem:[%s1 + $0x10] sm:$0xff]
  %v49 = vld [vmem:[%s1 + $0x18] sm:$0xff]
  %v50 = vld [vmem:[%s1 + $0x20] sm:$0xff]
  %v51 = vld [vmem:[%s1 + $0x28] sm:$0xff]
  %v52 = vld [vmem:[%s1 + $0x30] sm:$0xff]
  %v53 = vld [vmem:[%s1 + $0x38] sm:$0xff]
  %v54 = vld [vmem:[%s1 + $0x40] sm:$0xff]
  %v55 = vld [vmem:[%s1 + $0x48] sm:$0xff]
  %v56 = vld [vmem:[%s1 + $0x50] sm:$0xff]
  %v57 = vld [vmem:[%s1 + $0x58] sm:$0xff]
  %v58 = vld [vmem:[%s1 + $0x60] sm:$0xff]
  %v59 = vld [vmem:[%s1 + $0x68] sm:$0xff]
  %v60 = vld [vmem:[%s1 + $0x70] sm:$0xff]
  %v61 = vld [vmem:[%s1 + $0x78] sm:$0xff]
  %v62 = vld [vmem:[%s1 + $0x80] sm:$0xff]
  %v63 = vld [vmem:[%s1 + $0x88] sm:$0xff]
  %v64 = vld [vmem:[%s1 + $0x90] sm:$0xff]
  %v65 = vld [vmem:[%s1 + $0x98] sm:$0xff]
  %v66 = vld [vmem:[%s1 + $0xa0] sm:$0xff]
  %v67 = vld [vmem:[%s1 + $0xa8] sm:$0xff]
  %v68 = vld [vmem:[%s1 + $0xb0] sm:$0xff]
  %v69 = vld [vmem:[%s1 + $0xb8] sm:$0xff]
  %v70 = vld [vmem:[%s1 + $0xc0] sm:$0xff]
  %v71 = vld [vmem:[%s1 + $0xc8] sm:$0xff]
  %v72 = vld [vmem:[%s1 + $0xd0] sm:$0xff]
  %v73 = vld [vmem:[%s1 + $0xd8] sm:$0xff]
  %v74 = vld [vmem:[%s1 + $0xe0] sm:$0xff]
  %v75 = vld [vmem:[%s1 + $0xe8] sm:$0xff]
  %v76 = vld [vmem:[%s1 + $0xf0] sm:$0xff]
  %v77 = vld [vmem:[%s1 + $0xf8] sm:$0xff]
  %v78 = vld [vmem:[%s1 + $0x100] sm:$0xff]
  %v79 = vld [vmem:[%s1 + $0x108] sm:$0xff]
  %v80 = vld [vmem:[%s1 + $0x110] sm:$0xff]
  %v81 = vld [vmem:[%s1 + $0x118] sm:$0xff]
  %v82 = vld [vmem:[%s1 + $0x120] sm:$0xff]
  %v83 = vld [vmem:[%s1 + $0x128] sm:$0xff]
  %v84 = vld [vmem:[%s1 + $0x130] sm:$0xff]
  %v85 = vld [vmem:[%s1 + $0x138] sm:$0xff]
  %v86 = vld [vmem:[%s1 + $0x140] sm:$0xff]
  %v87 = vld [vmem:[%s1 + $0x148] sm:$0xff]
  %v88 = vld [vmem:[%s1 + $0x150] sm:$0xff]
  %v89 = vld [vmem:[%s1 + $0x158] sm:$0xff]
  %v90 = vld [vmem:[%s1 + $0x160] sm:$0xff]
  %v91 = vld [vmem:[%s1 + $0x168] sm:$0xff]
  %v92 = vld [vmem:[%s1 + $0x170] sm:$0xff]
  %v93 = vld [vmem:[%s1 + $0x178] sm:$0xff]
  %v94 = vld [vmem:[%s1 + $0x180] sm:$0xff]
  %v95 = vld [vmem:[%s1 + $0x188] sm:$0xff]
  %v96 = vld [vmem:[%s1 + $0x190] sm:$0xff]
  %v97 = vld [vmem:[%s1 + $0x198] sm:$0xff]
  %v98 = vld [vmem:[%s1 + $0x1a0] sm:$0xff]
  %v99 = vld [vmem:[%s1 + $0x1a8] sm:$0xff]
  %v100 = vld [vmem:[%s1 + $0x1b0] sm:$0xff]
  %v101 = vld [vmem:[%s1 + $0x1b8] sm:$0xff]
  %v102 = vld [vmem:[%s1 + $0x1c0] sm:$0xff]
  %v103 = vld [vmem:[%s1 + $0x1c8] sm:$0xff]
  %v104 = vld [vmem:[%s1 + $0x1d0] sm:$0xff]
  %v105 = vld [vmem:[%s1 + $0x1d8] sm:$0xff]
  %v106 = vld [vmem:[%s1 + $0x1e0] sm:$0xff]
  %v107 = vld [vmem:[%s1 + $0x1e8] sm:$0xff]
  %v108 = vld [vmem:[%s1 + $0x1f0] sm:$0xff]
  %v109 = vld [vmem:[%s1 + $0x1f8] sm:$0xff]
  %v110 = vld [vmem:[%s2] sm:$0x3]
  %v112 = vlaneseq
  %v113 = vshrl.u32 %v112, 7
  %v114 = vsub.s32 0, %v113
  %v115 = vrot.slane %v110, %v114
  %v116 = vlaneseq
  %v117 = vshrl.u32 %v116, 7
  %v118 = vsub.s32 1, %v117
  %v119 = vrot.slane %v110, %v118
  %v154 = vunpack.c.l.b16 %v14
  %v155 = vunpack.c.h.b16 %v14
  %v156 = vunpack.c.l.b16 %v15
  %v157 = vunpack.c.h.b16 %v15
  %v158 = vunpack.c.l.b16 %v16
  %v159 = vunpack.c.h.b16 %v16
  %v160 = vunpack.c.l.b16 %v17
  %v161 = vunpack.c.h.b16 %v17
  %v162 = vunpack.c.l.b16 %v18
  %v163 = vunpack.c.h.b16 %v18
  %v164 = vunpack.c.l.b16 %v19
  %v165 = vunpack.c.h.b16 %v19
  %v166 = vunpack.c.l.b16 %v20
  %v167 = vunpack.c.h.b16 %v20
  %v168 = vunpack.c.l.b16 %v21
  %v169 = vunpack.c.h.b16 %v21
  %v170 = vunpack.c.l.b16 %v22
  %v171 = vunpack.c.h.b16 %v22
  %v172 = vunpack.c.l.b16 %v23
  %v173 = vunpack.c.h.b16 %v23
  %v174 = vunpack.c.l.b16 %v24
  %v175 = vunpack.c.h.b16 %v24
  %v176 = vunpack.c.l.b16 %v25
  %v177 = vunpack.c.h.b16 %v25
  %v178 = vunpack.c.l.b16 %v26
  %v179 = vunpack.c.h.b16 %v26
  %v180 = vunpack.c.l.b16 %v27
  %v181 = vunpack.c.h.b16 %v27
  %v182 = vunpack.c.l.b16 %v28
  %v183 = vunpack.c.h.b16 %v28
  %v184 = vunpack.c.l.b16 %v29
  %v185 = vunpack.c.h.b16 %v29
  %v186 = vunpack.c.l.b16 %v30
  %v187 = vunpack.c.h.b16 %v30
  %v188 = vunpack.c.l.b16 %v31
  %v189 = vunpack.c.h.b16 %v31
  %v190 = vunpack.c.l.b16 %v32
  %v191 = vunpack.c.h.b16 %v32
  %v192 = vunpack.c.l.b16 %v33
  %v193 = vunpack.c.h.b16 %v33
  %v194 = vunpack.c.l.b16 %v34
  %v195 = vunpack.c.h.b16 %v34
  %v196 = vunpack.c.l.b16 %v35
  %v197 = vunpack.c.h.b16 %v35
  %v198 = vunpack.c.l.b16 %v36
  %v199 = vunpack.c.h.b16 %v36
  %v200 = vunpack.c.l.b16 %v37
  %v201 = vunpack.c.h.b16 %v37
  %v202 = vunpack.c.l.b16 %v38
  %v203 = vunpack.c.h.b16 %v38
  %v204 = vunpack.c.l.b16 %v39
  %v205 = vunpack.c.h.b16 %v39
  %v206 = vunpack.c.l.b16 %v40
  %v207 = vunpack.c.h.b16 %v40
  %v208 = vunpack.c.l.b16 %v41
  %v209 = vunpack.c.h.b16 %v41
  %v210 = vunpack.c.l.b16 %v42
  %v211 = vunpack.c.h.b16 %v42
  %v212 = vunpack.c.l.b16 %v43
  %v213 = vunpack.c.h.b16 %v43
  %v214 = vunpack.c.l.b16 %v44
  %v215 = vunpack.c.h.b16 %v44
  %v216 = vunpack.c.l.b16 %v45
  %v217 = vunpack.c.h.b16 %v45
  %v218 = vpack.c.b16 %v158, %v154
  %v219 = vpack.c.b16 %v159, %v155
  %v220 = vpack.c.b16 %v160, %v156
  %v221 = vpack.c.b16 %v161, %v157
  %v222 = vpack.c.b16 %v166, %v162
  %v223 = vpack.c.b16 %v167, %v163
  %v224 = vpack.c.b16 %v168, %v164
  %v225 = vpack.c.b16 %v169, %v165
  %v226 = vpack.c.b16 %v174, %v170
  %v227 = vpack.c.b16 %v175, %v171
  %v228 = vpack.c.b16 %v176, %v172
  %v229 = vpack.c.b16 %v177, %v173
  %v230 = vpack.c.b16 %v182, %v178
  %v231 = vpack.c.b16 %v183, %v179
  %v232 = vpack.c.b16 %v184, %v180
  %v233 = vpack.c.b16 %v185, %v181
  %v234 = vpack.c.b16 %v190, %v186
  %v235 = vpack.c.b16 %v191, %v187
  %v236 = vpack.c.b16 %v192, %v188
  %v237 = vpack.c.b16 %v193, %v189
  %v238 = vpack.c.b16 %v198, %v194
  %v239 = vpack.c.b16 %v199, %v195
  %v240 = vpack.c.b16 %v200, %v196
  %v241 = vpack.c.b16 %v201, %v197
  %v242 = vpack.c.b16 %v206, %v202
  %v243 = vpack.c.b16 %v207, %v203
  %v244 = vpack.c.b16 %v208, %v204
  %v245 = vpack.c.b16 %v209, %v205
  %v246 = vpack.c.b16 %v214, %v210
  %v247 = vpack.c.b16 %v215, %v211
  %v248 = vpack.c.b16 %v216, %v212
  %v249 = vpack.c.b16 %v217, %v213
  %v346 = vunpack.c.l.b16 %v46
  %v347 = vunpack.c.h.b16 %v46
  %v348 = vunpack.c.l.b16 %v47
  %v349 = vunpack.c.h.b16 %v47
  %v350 = vunpack.c.l.b16 %v48
  %v351 = vunpack.c.h.b16 %v48
  %v352 = vunpack.c.l.b16 %v49
  %v353 = vunpack.c.h.b16 %v49
  %v354 = vunpack.c.l.b16 %v50
  %v355 = vunpack.c.h.b16 %v50
  %v356 = vunpack.c.l.b16 %v51
  %v357 = vunpack.c.h.b16 %v51
  %v358 = vunpack.c.l.b16 %v52
  %v359 = vunpack.c.h.b16 %v52
  %v360 = vunpack.c.l.b16 %v53
  %v361 = vunpack.c.h.b16 %v53
  %v362 = vunpack.c.l.b16 %v54
  %v363 = vunpack.c.h.b16 %v54
  %v364 = vunpack.c.l.b16 %v55
  %v365 = vunpack.c.h.b16 %v55
  %v366 = vunpack.c.l.b16 %v56
  %v367 = vunpack.c.h.b16 %v56
  %v368 = vunpack.c.l.b16 %v57
  %v369 = vunpack.c.h.b16 %v57
  %v370 = vunpack.c.l.b16 %v58
  %v371 = vunpack.c.h.b16 %v58
  %v372 = vunpack.c.l.b16 %v59
  %v373 = vunpack.c.h.b16 %v59
  %v374 = vunpack.c.l.b16 %v60
  %v375 = vunpack.c.h.b16 %v60
  %v376 = vunpack.c.l.b16 %v61
  %v377 = vunpack.c.h.b16 %v61
  %v378 = vunpack.c.l.b16 %v62
  %v379 = vunpack.c.h.b16 %v62
  %v380 = vunpack.c.l.b16 %v63
  %v381 = vunpack.c.h.b16 %v63
  %v382 = vunpack.c.l.b16 %v64
  %v383 = vunpack.c.h.b16 %v64
  %v384 = vunpack.c.l.b16 %v65
  %v385 = vunpack.c.h.b16 %v65
  %v386 = vunpack.c.l.b16 %v66
  %v387 = vunpack.c.h.b16 %v66
  %v388 = vunpack.c.l.b16 %v67
  %v389 = vunpack.c.h.b16 %v67
  %v390 = vunpack.c.l.b16 %v68
  %v391 = vunpack.c.h.b16 %v68
  %v392 = vunpack.c.l.b16 %v69
  %v393 = vunpack.c.h.b16 %v69
  %v394 = vunpack.c.l.b16 %v70
  %v395 = vunpack.c.h.b16 %v70
  %v396 = vunpack.c.l.b16 %v71
  %v397 = vunpack.c.h.b16 %v71
  %v398 = vunpack.c.l.b16 %v72
  %v399 = vunpack.c.h.b16 %v72
  %v400 = vunpack.c.l.b16 %v73
  %v401 = vunpack.c.h.b16 %v73
  %v402 = vunpack.c.l.b16 %v74
  %v403 = vunpack.c.h.b16 %v74
  %v404 = vunpack.c.l.b16 %v75
  %v405 = vunpack.c.h.b16 %v75
  %v406 = vunpack.c.l.b16 %v76
  %v407 = vunpack.c.h.b16 %v76
  %v408 = vunpack.c.l.b16 %v77
  %v409 = vunpack.c.h.b16 %v77
  %v410 = vunpack.c.l.b16 %v78
  %v411 = vunpack.c.h.b16 %v78
  %v412 = vunpack.c.l.b16 %v79
  %v413 = vunpack.c.h.b16 %v79
  %v414 = vunpack.c.l.b16 %v80
  %v415 = vunpack.c.h.b16 %v80
  %v416 = vunpack.c.l.b16 %v81
  %v417 = vunpack.c.h.b16 %v81
  %v418 = vunpack.c.l.b16 %v82
  %v419 = vunpack.c.h.b16 %v82
  %v420 = vunpack.c.l.b16 %v83
  %v421 = vunpack.c.h.b16 %v83
  %v422 = vunpack.c.l.b16 %v84
  %v423 = vunpack.c.h.b16 %v84
  %v424 = vunpack.c.l.b16 %v85
  %v425 = vunpack.c.h.b16 %v85
  %v426 = vunpack.c.l.b16 %v86
  %v427 = vunpack.c.h.b16 %v86
  %v428 = vunpack.c.l.b16 %v87
  %v429 = vunpack.c.h.b16 %v87
  %v430 = vunpack.c.l.b16 %v88
  %v431 = vunpack.c.h.b16 %v88
  %v432 = vunpack.c.l.b16 %v89
  %v433 = vunpack.c.h.b16 %v89
  %v434 = vunpack.c.l.b16 %v90
  %v435 = vunpack.c.h.b16 %v90
  %v436 = vunpack.c.l.b16 %v91
  %v437 = vunpack.c.h.b16 %v91
  %v438 = vunpack.c.l.b16 %v92
  %v439 = vunpack.c.h.b16 %v92
  %v440 = vunpack.c.l.b16 %v93
  %v441 = vunpack.c.h.b16 %v93
  %v442 = vunpack.c.l.b16 %v94
  %v443 = vunpack.c.h.b16 %v94
  %v444 = vunpack.c.l.b16 %v95
  %v445 = vunpack.c.h.b16 %v95
  %v446 = vunpack.c.l.b16 %v96
  %v447 = vunpack.c.h.b16 %v96
  %v448 = vunpack.c.l.b16 %v97
  %v449 = vunpack.c.h.b16 %v97
  %v450 = vunpack.c.l.b16 %v98
  %v451 = vunpack.c.h.b16 %v98
  %v452 = vunpack.c.l.b16 %v99
  %v453 = vunpack.c.h.b16 %v99
  %v454 = vunpack.c.l.b16 %v100
  %v455 = vunpack.c.h.b16 %v100
  %v456 = vunpack.c.l.b16 %v101
  %v457 = vunpack.c.h.b16 %v101
  %v458 = vunpack.c.l.b16 %v102
  %v459 = vunpack.c.h.b16 %v102
  %v460 = vunpack.c.l.b16 %v103
  %v461 = vunpack.c.h.b16 %v103
  %v462 = vunpack.c.l.b16 %v104
  %v463 = vunpack.c.h.b16 %v104
  %v464 = vunpack.c.l.b16 %v105
  %v465 = vunpack.c.h.b16 %v105
  %v466 = vunpack.c.l.b16 %v106
  %v467 = vunpack.c.h.b16 %v106
  %v468 = vunpack.c.l.b16 %v107
  %v469 = vunpack.c.h.b16 %v107
  %v470 = vunpack.c.l.b16 %v108
  %v471 = vunpack.c.h.b16 %v108
  %v472 = vunpack.c.l.b16 %v109
  %v473 = vunpack.c.h.b16 %v109
  %v474 = vpack.c.b16 %v348, %v346
  %v475 = vpack.c.b16 %v349, %v347
  %v476 = vpack.c.b16 %v352, %v350
  %v477 = vpack.c.b16 %v353, %v351
  %v478 = vpack.c.b16 %v356, %v354
  %v479 = vpack.c.b16 %v357, %v355
  %v480 = vpack.c.b16 %v360, %v358
  %v481 = vpack.c.b16 %v361, %v359
  %v482 = vpack.c.b16 %v364, %v362
  %v483 = vpack.c.b16 %v365, %v363
  %v484 = vpack.c.b16 %v368, %v366
  %v485 = vpack.c.b16 %v369, %v367
  %v486 = vpack.c.b16 %v372, %v370
  %v487 = vpack.c.b16 %v373, %v371
  %v488 = vpack.c.b16 %v376, %v374
  %v489 = vpack.c.b16 %v377, %v375
  %v490 = vpack.c.b16 %v380, %v378
  %v491 = vpack.c.b16 %v381, %v379
  %v492 = vpack.c.b16 %v384, %v382
  %v493 = vpack.c.b16 %v385, %v383
  %v494 = vpack.c.b16 %v388, %v386
  %v495 = vpack.c.b16 %v389, %v387
  %v496 = vpack.c.b16 %v392, %v390
  %v497 = vpack.c.b16 %v393, %v391
  %v498 = vpack.c.b16 %v396, %v394
  %v499 = vpack.c.b16 %v397, %v395
  %v500 = vpack.c.b16 %v400, %v398
  %v501 = vpack.c.b16 %v401, %v399
  %v502 = vpack.c.b16 %v404, %v402
  %v503 = vpack.c.b16 %v405, %v403
  %v504 = vpack.c.b16 %v408, %v406
  %v505 = vpack.c.b16 %v409, %v407
  %v506 = vpack.c.b16 %v412, %v410
  %v507 = vpack.c.b16 %v413, %v411
  %v508 = vpack.c.b16 %v416, %v414
  %v509 = vpack.c.b16 %v417, %v415
  %v510 = vpack.c.b16 %v420, %v418
  %v511 = vpack.c.b16 %v421, %v419
  %v512 = vpack.c.b16 %v424, %v422
  %v513 = vpack.c.b16 %v425, %v423
  %v514 = vpack.c.b16 %v428, %v426
  %v515 = vpack.c.b16 %v429, %v427
  %v516 = vpack.c.b16 %v432, %v430
  %v517 = vpack.c.b16 %v433, %v431
  %v518 = vpack.c.b16 %v436, %v434
  %v519 = vpack.c.b16 %v437, %v435
  %v520 = vpack.c.b16 %v440, %v438
  %v521 = vpack.c.b16 %v441, %v439
  %v522 = vpack.c.b16 %v444, %v442
  %v523 = vpack.c.b16 %v445, %v443
  %v524 = vpack.c.b16 %v448, %v446
  %v525 = vpack.c.b16 %v449, %v447
  %v526 = vpack.c.b16 %v452, %v450
  %v527 = vpack.c.b16 %v453, %v451
  %v528 = vpack.c.b16 %v456, %v454
  %v529 = vpack.c.b16 %v457, %v455
  %v530 = vpack.c.b16 %v460, %v458
  %v531 = vpack.c.b16 %v461, %v459
  %v532 = vpack.c.b16 %v464, %v462
  %v533 = vpack.c.b16 %v465, %v463
  %v534 = vpack.c.b16 %v468, %v466
  %v535 = vpack.c.b16 %v469, %v467
  %v536 = vpack.c.b16 %v472, %v470
  %v537 = vpack.c.b16 %v473, %v471
  %602 = vmatprep.subr.bf16.mxu0 %v475
  %603 = vmatpush1.bf16.msra.mxu0 %v474
  %604 = vmatprep.subr.bf16.mxu0 %v477
  %605 = vmatpush1.bf16.msra.mxu0 %v476
  %606 = vmatprep.subr.bf16.mxu0 %v479
  %607 = vmatpush1.bf16.msra.mxu0 %v478
  %608 = vmatprep.subr.bf16.mxu0 %v481
  %609 = vmatpush1.bf16.msra.mxu0 %v480
  %610 = vmatprep.subr.bf16.mxu0 %v483
  %611 = vmatpush1.bf16.msra.mxu0 %v482
  %612 = vmatprep.subr.bf16.mxu0 %v485
  %613 = vmatpush1.bf16.msra.mxu0 %v484
  %614 = vmatprep.subr.bf16.mxu0 %v487
  %615 = vmatpush1.bf16.msra.mxu0 %v486
  %616 = vmatprep.subr.bf16.mxu0 %v489
  %617 = vmatpush1.bf16.msra.mxu0 %v488
  %618 = vmatprep.subr.bf16.mxu0 %v491
  %619 = vmatpush1.bf16.msra.mxu0 %v490
  %620 = vmatprep.subr.bf16.mxu0 %v493
  %621 = vmatpush1.bf16.msra.mxu0 %v492
  %622 = vmatprep.subr.bf16.mxu0 %v495
  %623 = vmatpush1.bf16.msra.mxu0 %v494
  %624 = vmatprep.subr.bf16.mxu0 %v497
  %625 = vmatpush1.bf16.msra.mxu0 %v496
  %626 = vmatprep.subr.bf16.mxu0 %v499
  %627 = vmatpush1.bf16.msra.mxu0 %v498
  %628 = vmatprep.subr.bf16.mxu0 %v501
  %629 = vmatpush1.bf16.msra.mxu0 %v500
  %630 = vmatprep.subr.bf16.mxu0 %v503
  %631 = vmatpush1.bf16.msra.mxu0 %v502
  %632 = vmatprep.subr.bf16.mxu0 %v505
  %633 = vmatpush1.bf16.msra.mxu0 %v504
  %634 = vmatprep.mubr.bf16.mxu0 %v219
  %635 = vmatmul.mubr.bf16.gmra.mrb[0].mxu0 %v218
  %v636 = vpop.f32.mrb[0].mxu0
  %v637 = vadd.f32 %v115, %v636
  %v638 = vpop.f32.mrb[0].mxu0
  %v639 = vadd.f32 %v119, %v638
  %v640 = vpop.f32.mrb[0].mxu0
  %v641 = vadd.f32 %v115, %v640
  %v642 = vpop.f32.mrb[0].mxu0
  %v643 = vadd.f32 %v119, %v642
  %644 = vmatprep.mubr.bf16.mxu0 %v223
  %645 = vmatmul.mubr.bf16.gmra.mrb[0].mxu0 %v222
  %v646 = vpop.f32.mrb[0].mxu0
  %v647 = vadd.f32 %v115, %v646
  %v648 = vpop.f32.mrb[0].mxu0
  %v649 = vadd.f32 %v119, %v648
  %v650 = vpop.f32.mrb[0].mxu0
  %v651 = vadd.f32 %v115, %v650
  %v652 = vpop.f32.mrb[0].mxu0
  %v653 = vadd.f32 %v119, %v652
  %654 = vmatprep.mubr.bf16.mxu0 %v227
  %655 = vmatmul.mubr.bf16.gmra.mrb[0].mxu0 %v226
  %v656 = vpop.f32.mrb[0].mxu0
  %v657 = vadd.f32 %v115, %v656
  %v658 = vpop.f32.mrb[0].mxu0
  %v659 = vadd.f32 %v119, %v658
  %v660 = vpop.f32.mrb[0].mxu0
  %v661 = vadd.f32 %v115, %v660
  %v662 = vpop.f32.mrb[0].mxu0
  %v663 = vadd.f32 %v119, %v662
  %664 = vmatprep.mubr.bf16.mxu0 %v231
  %665 = vmatmul.mubr.bf16.gmra.mrb[0].mxu0 %v230
  %v666 = vpop.f32.mrb[0].mxu0
  %v667 = vadd.f32 %v115, %v666
  %v668 = vpop.f32.mrb[0].mxu0
  %v669 = vadd.f32 %v119, %v668
  %v670 = vpop.f32.mrb[0].mxu0
  %v671 = vadd.f32 %v115, %v670
  %v672 = vpop.f32.mrb[0].mxu0
  %v673 = vadd.f32 %v119, %v672
  %674 = vmatprep.mubr.bf16.mxu0 %v235
  %675 = vmatmul.mubr.bf16.gmra.mrb[0].mxu0 %v234
  %v676 = vpop.f32.mrb[0].mxu0
  %v677 = vadd.f32 %v115, %v676
  %v678 = vpop.f32.mrb[0].mxu0
  %v679 = vadd.f32 %v119, %v678
  %v680 = vpop.f32.mrb[0].mxu0
  %v681 = vadd.f32 %v115, %v680
  %v682 = vpop.f32.mrb[0].mxu0
  %v683 = vadd.f32 %v119, %v682
  %684 = vmatprep.mubr.bf16.mxu0 %v239
  %685 = vmatmul.mubr.bf16.gmra.mrb[0].mxu0 %v238
  %v686 = vpop.f32.mrb[0].mxu0
  %v687 = vadd.f32 %v115, %v686
  %v688 = vpop.f32.mrb[0].mxu0
  %v689 = vadd.f32 %v119, %v688
  %v690 = vpop.f32.mrb[0].mxu0
  %v691 = vadd.f32 %v115, %v690
  %v692 = vpop.f32.mrb[0].mxu0
  %v693 = vadd.f32 %v119, %v692
  %694 = vmatprep.mubr.bf16.mxu0 %v243
  %695 = vmatmul.mubr.bf16.gmra.mrb[0].mxu0 %v242
  %v696 = vpop.f32.mrb[0].mxu0
  %v697 = vadd.f32 %v115, %v696
  %v698 = vpop.f32.mrb[0].mxu0
  %v699 = vadd.f32 %v119, %v698
  %v700 = vpop.f32.mrb[0].mxu0
  %v701 = vadd.f32 %v115, %v700
  %v702 = vpop.f32.mrb[0].mxu0
  %v703 = vadd.f32 %v119, %v702
  %704 = vmatprep.mubr.bf16.mxu0 %v247
  %705 = vmatmul.mubr.bf16.gmra.mrb[0].mxu0 %v246
  %v706 = vpop.f32.mrb[0].mxu0
  %v707 = vadd.f32 %v115, %v706
  %v708 = vpop.f32.mrb[0].mxu0
  %v709 = vadd.f32 %v119, %v708
  %v710 = vpop.f32.mrb[0].mxu0
  %v711 = vadd.f32 %v115, %v710
  %v712 = vpop.f32.mrb[0].mxu0
  %v713 = vadd.f32 %v119, %v712
  %714 = vdwg.mxu0
  %715 = vmatprep.subr.bf16.mxu0 %v507
  %716 = vmatpush1.bf16.msra.mxu0 %v506
  %717 = vmatprep.subr.bf16.mxu0 %v509
  %718 = vmatpush1.bf16.msra.mxu0 %v508
  %719 = vmatprep.subr.bf16.mxu0 %v511
  %720 = vmatpush1.bf16.msra.mxu0 %v510
  %721 = vmatprep.subr.bf16.mxu0 %v513
  %722 = vmatpush1.bf16.msra.mxu0 %v512
  %723 = vmatprep.subr.bf16.mxu0 %v515
  %724 = vmatpush1.bf16.msra.mxu0 %v514
  %725 = vmatprep.subr.bf16.mxu0 %v517
  %726 = vmatpush1.bf16.msra.mxu0 %v516
  %727 = vmatprep.subr.bf16.mxu0 %v519
  %728 = vmatpush1.bf16.msra.mxu0 %v518
  %729 = vmatprep.subr.bf16.mxu0 %v521
  %730 = vmatpush1.bf16.msra.mxu0 %v520
  %731 = vmatprep.subr.bf16.mxu0 %v523
  %732 = vmatpush1.bf16.msra.mxu0 %v522
  %733 = vmatprep.subr.bf16.mxu0 %v525
  %734 = vmatpush1.bf16.msra.mxu0 %v524
  %735 = vmatprep.subr.bf16.mxu0 %v527
  %736 = vmatpush1.bf16.msra.mxu0 %v526
  %737 = vmatprep.subr.bf16.mxu0 %v529
  %738 = vmatpush1.bf16.msra.mxu0 %v528
  %739 = vmatprep.subr.bf16.mxu0 %v531
  %740 = vmatpush1.bf16.msra.mxu0 %v530
  %741 = vmatprep.subr.bf16.mxu0 %v533
  %742 = vmatpush1.bf16.msra.mxu0 %v532
  %743 = vmatprep.subr.bf16.mxu0 %v535
  %744 = vmatpush1.bf16.msra.mxu0 %v534
  %745 = vmatprep.subr.bf16.mxu0 %v537
  %746 = vmatpush1.bf16.msra.mxu0 %v536
  %747 = vmatprep.mubr.bf16.mxu0 %v221
  %748 = vmatmul.mubr.bf16.gmra.mrb[0].mxu0 %v220
  %v749 = vpop.f32.mrb[0].mxu0
  %v750 = vadd.f32 %v637, %v749
  %v751 = vpop.f32.mrb[0].mxu0
  %v752 = vadd.f32 %v639, %v751
  %v753 = vpop.f32.mrb[0].mxu0
  %v754 = vadd.f32 %v641, %v753
  %v755 = vpop.f32.mrb[0].mxu0
  %v756 = vadd.f32 %v643, %v755
  %757 = vmatprep.mubr.bf16.mxu0 %v225
  %758 = vmatmul.mubr.bf16.gmra.mrb[0].mxu0 %v224
  %v759 = vpop.f32.mrb[0].mxu0
  %v760 = vadd.f32 %v647, %v759
  %v761 = vpop.f32.mrb[0].mxu0
  %v762 = vadd.f32 %v649, %v761
  %v763 = vpop.f32.mrb[0].mxu0
  %v764 = vadd.f32 %v651, %v763
  %v765 = vpop.f32.mrb[0].mxu0
  %v766 = vadd.f32 %v653, %v765
  %767 = vmatprep.mubr.bf16.mxu0 %v229
  %768 = vmatmul.mubr.bf16.gmra.mrb[0].mxu0 %v228
  %v769 = vpop.f32.mrb[0].mxu0
  %v770 = vadd.f32 %v657, %v769
  %v771 = vpop.f32.mrb[0].mxu0
  %v772 = vadd.f32 %v659, %v771
  %v773 = vpop.f32.mrb[0].mxu0
  %v774 = vadd.f32 %v661, %v773
  %v775 = vpop.f32.mrb[0].mxu0
  %v776 = vadd.f32 %v663, %v775
  %777 = vmatprep.mubr.bf16.mxu0 %v233
  %778 = vmatmul.mubr.bf16.gmra.mrb[0].mxu0 %v232
  %v779 = vpop.f32.mrb[0].mxu0
  %v780 = vadd.f32 %v667, %v779
  %v781 = vpop.f32.mrb[0].mxu0
  %v782 = vadd.f32 %v669, %v781
  %v783 = vpop.f32.mrb[0].mxu0
  %v784 = vadd.f32 %v671, %v783
  %v785 = vpop.f32.mrb[0].mxu0
  %v786 = vadd.f32 %v673, %v785
  %787 = vmatprep.mubr.bf16.mxu0 %v237
  %788 = vmatmul.mubr.bf16.gmra.mrb[0].mxu0 %v236
  %v789 = vpop.f32.mrb[0].mxu0
  %v790 = vadd.f32 %v677, %v789
  %v791 = vpop.f32.mrb[0].mxu0
  %v792 = vadd.f32 %v679, %v791
  %v793 = vpop.f32.mrb[0].mxu0
  %v794 = vadd.f32 %v681, %v793
  %v795 = vpop.f32.mrb[0].mxu0
  %v796 = vadd.f32 %v683, %v795
  %797 = vmatprep.mubr.bf16.mxu0 %v241
  %798 = vmatmul.mubr.bf16.gmra.mrb[0].mxu0 %v240
  %v799 = vpop.f32.mrb[0].mxu0
  %v800 = vadd.f32 %v687, %v799
  %v801 = vpop.f32.mrb[0].mxu0
  %v802 = vadd.f32 %v689, %v801
  %v803 = vpop.f32.mrb[0].mxu0
  %v804 = vadd.f32 %v691, %v803
  %v805 = vpop.f32.mrb[0].mxu0
  %v806 = vadd.f32 %v693, %v805
  %807 = vmatprep.mubr.bf16.mxu0 %v245
  %808 = vmatmul.mubr.bf16.gmra.mrb[0].mxu0 %v244
  %v809 = vpop.f32.mrb[0].mxu0
  %v810 = vadd.f32 %v697, %v809
  %v811 = vpop.f32.mrb[0].mxu0
  %v812 = vadd.f32 %v699, %v811
  %v813 = vpop.f32.mrb[0].mxu0
  %v814 = vadd.f32 %v701, %v813
  %v815 = vpop.f32.mrb[0].mxu0
  %v816 = vadd.f32 %v703, %v815
  %817 = vmatprep.mubr.bf16.mxu0 %v249
  %818 = vmatmul.mubr.bf16.gmra.mrb[0].mxu0 %v248
  %v819 = vpop.f32.mrb[0].mxu0
  %v820 = vadd.f32 %v707, %v819
  %v821 = vpop.f32.mrb[0].mxu0
  %v822 = vadd.f32 %v709, %v821
  %v823 = vpop.f32.mrb[0].mxu0
  %v824 = vadd.f32 %v711, %v823
  %v825 = vpop.f32.mrb[0].mxu0
  %v826 = vadd.f32 %v713, %v825
  %827 = vdwg.mxu0
  %v828 = vmax.f32 %v750, 0.0
  %v829 = vmax.f32 %v752, 0.0
  %v830 = vmax.f32 %v754, 0.0
  %v831 = vmax.f32 %v756, 0.0
  %v832 = vmax.f32 %v760, 0.0
  %v833 = vmax.f32 %v762, 0.0
  %v834 = vmax.f32 %v764, 0.0
  %v835 = vmax.f32 %v766, 0.0
  %v836 = vmax.f32 %v770, 0.0
  %v837 = vmax.f32 %v772, 0.0
  %v838 = vmax.f32 %v774, 0.0
  %v839 = vmax.f32 %v776, 0.0
  %v840 = vmax.f32 %v780, 0.0
  %v841 = vmax.f32 %v782, 0.0
  %v842 = vmax.f32 %v784, 0.0
  %v843 = vmax.f32 %v786, 0.0
  %v844 = vmax.f32 %v790, 0.0
  %v845 = vmax.f32 %v792, 0.0
  %v846 = vmax.f32 %v794, 0.0
  %v847 = vmax.f32 %v796, 0.0
  %v848 = vmax.f32 %v800, 0.0
  %v849 = vmax.f32 %v802, 0.0
  %v850 = vmax.f32 %v804, 0.0
  %v851 = vmax.f32 %v806, 0.0
  %v852 = vmax.f32 %v810, 0.0
  %v853 = vmax.f32 %v812, 0.0
  %v854 = vmax.f32 %v814, 0.0
  %v855 = vmax.f32 %v816, 0.0
  %v856 = vmax.f32 %v820, 0.0
  %v857 = vmax.f32 %v822, 0.0
  %v858 = vmax.f32 %v824, 0.0
  %v859 = vmax.f32 %v826, 0.0
  %v860 = vpack.c.bf16 %v830, %v828
  %v861 = vpack.c.bf16 %v831, %v829
  %v862 = vpack.c.bf16 %v834, %v832
  %v863 = vpack.c.bf16 %v835, %v833
  %v864 = vpack.c.bf16 %v838, %v836
  %v865 = vpack.c.bf16 %v839, %v837
  %v866 = vpack.c.bf16 %v842, %v840
  %v867 = vpack.c.bf16 %v843, %v841
  %v868 = vpack.c.bf16 %v846, %v844
  %v869 = vpack.c.bf16 %v847, %v845
  %v870 = vpack.c.bf16 %v850, %v848
  %v871 = vpack.c.bf16 %v851, %v849
  %v872 = vpack.c.bf16 %v854, %v852
  %v873 = vpack.c.bf16 %v855, %v853
  %v874 = vpack.c.bf16 %v858, %v856
  %v875 = vpack.c.bf16 %v859, %v857
  %v892 = vunpack.c.l.b16 %v860
  %v893 = vunpack.c.l.b16 %v861
  %v894 = vunpack.c.h.b16 %v860
  %v895 = vunpack.c.h.b16 %v861
  %v896 = vunpack.c.l.b16 %v862
  %v897 = vunpack.c.l.b16 %v863
  %v898 = vunpack.c.h.b16 %v862
  %v899 = vunpack.c.h.b16 %v863
  %v900 = vunpack.c.l.b16 %v864
  %v901 = vunpack.c.l.b16 %v865
  %v902 = vunpack.c.h.b16 %v864
  %v903 = vunpack.c.h.b16 %v865
  %v904 = vunpack.c.l.b16 %v866
  %v905 = vunpack.c.l.b16 %v867
  %v906 = vunpack.c.h.b16 %v866
  %v907 = vunpack.c.h.b16 %v867
  %v908 = vunpack.c.l.b16 %v868
  %v909 = vunpack.c.l.b16 %v869
  %v910 = vunpack.c.h.b16 %v868
  %v911 = vunpack.c.h.b16 %v869
  %v912 = vunpack.c.l.b16 %v870
  %v913 = vunpack.c.l.b16 %v871
  %v914 = vunpack.c.h.b16 %v870
  %v915 = vunpack.c.h.b16 %v871
  %v916 = vunpack.c.l.b16 %v872
  %v917 = vunpack.c.l.b16 %v873
  %v918 = vunpack.c.h.b16 %v872
  %v919 = vunpack.c.h.b16 %v873
  %v920 = vunpack.c.l.b16 %v874
  %v921 = vunpack.c.l.b16 %v875
  %v922 = vunpack.c.h.b16 %v874
  %v923 = vunpack.c.h.b16 %v875
  %v924 = vpack.c.b16 %v893, %v892
  %v925 = vpack.c.b16 %v895, %v894
  %v926 = vpack.c.b16 %v897, %v896
  %v927 = vpack.c.b16 %v899, %v898
  %v928 = vpack.c.b16 %v901, %v900
  %v929 = vpack.c.b16 %v903, %v902
  %v930 = vpack.c.b16 %v905, %v904
  %v931 = vpack.c.b16 %v907, %v906
  %v932 = vpack.c.b16 %v909, %v908
  %v933 = vpack.c.b16 %v911, %v910
  %v934 = vpack.c.b16 %v913, %v912
  %v935 = vpack.c.b16 %v915, %v914
  %v936 = vpack.c.b16 %v917, %v916
  %v937 = vpack.c.b16 %v919, %v918
  %v938 = vpack.c.b16 %v921, %v920
  %v939 = vpack.c.b16 %v923, %v922
  %956 = vst [vmem:[%s3] sm:$0xff] %v924
  %957 = vst [vmem:[%s3 + $0x8] sm:$0xff] %v925
  %958 = vst [vmem:[%s3 + $0x10] sm:$0xff] %v926
  %959 = vst [vmem:[%s3 + $0x18] sm:$0xff] %v927
  %960 = vst [vmem:[%s3 + $0x20] sm:$0xff] %v928
  %961 = vst [vmem:[%s3 + $0x28] sm:$0xff] %v929
  %962 = vst [vmem:[%s3 + $0x30] sm:$0xff] %v930
  %963 = vst [vmem:[%s3 + $0x38] sm:$0xff] %v931
  %964 = vst [vmem:[%s3 + $0x40] sm:$0xff] %v932
  %965 = vst [vmem:[%s3 + $0x48] sm:$0xff] %v933
  %966 = vst [vmem:[%s3 + $0x50] sm:$0xff] %v934
  %967 = vst [vmem:[%s3 + $0x58] sm:$0xff] %v935
  %968 = vst [vmem:[%s3 + $0x60] sm:$0xff] %v936
  %969 = vst [vmem:[%s3 + $0x68] sm:$0xff] %v937
  %970 = vst [vmem:[%s3 + $0x70] sm:$0xff] %v938
  %971 = vst [vmem:[%s3 + $0x78] sm:$0xff] %v939
  // Predicated region
  $region14: #{vae_forward.15} parent=0 // pred_check
    _
  $region15: #{vae_forward.15} parent=0 // pred_check_branch
    %973 = sbr.rel (0) target = $region17
  $region16: #{vae_forward.15} parent=0 // pred_region
    _
  $region17: #{vae_forward.15} parent=0 // pred_fallthru
    _
  // Predicated region
  $region18: #{vae_forward.15} parent=0 // pred_check
    _
  $region19: #{vae_forward.15} parent=0 // pred_check_branch
    %975 = sbr.rel (0) target = $region21
  $region20: #{vae_forward.15} parent=0 // pred_region
    _
  $region21: #{vae_forward.15} parent=0 // pred_fallthru
    _

// kernel: vae_forward.14
$region0: #{vae_forward.14}
  #allocation0 [shape = 'u32[]', space=smem, size = 0x4, offset = 0x4, fixed_abs, tag = 'smem constant byte address 0x4 - core index']
  #allocation1 [shape = 'u32[144,128]{1,0:T(1,128)}', space=vmem, size = 0x12000, scoped, tag = 'internal scratch']
  %s0 = inlined_call_operand.vmem [shape: f32[8,128], index: 0, kind: input, shape index: {}]
  %s1 = inlined_call_operand.vmem [shape: f32[8,128], index: 1, kind: input, shape index: {}]
  %s2 = inlined_call_operand.vmem [shape: f32[8,128], index: 2, kind: input, shape index: {}]
  %s3 = inlined_call_operand.vmem [shape: bf16[128,6272], index: 3, kind: input, shape index: {}]
  %s4 = inlined_call_operand.vmem [shape: f32[1,6272], index: 4, kind: input, shape index: {}]
  %s5 = inlined_call_operand.vmem [shape: bf16[8,6272], index: 5, kind: output, shape index: {}]
  %s6 = sld [smem:[#allocation0]]
  $region30: #{vae_forward.14} parent=0
    _
  %s8 = ssub.s32 1, %s6
  %s9 = scalar_select 0, %s8, %s6
  // Predicated region
  $region2: #{vae_forward.14} parent=0 // pred_check
    _
  $region3: #{vae_forward.14} parent=0 // pred_check_branch
    %11 = sbr.rel (0) target = $region5
  $region4: #{vae_forward.14} parent=0 // pred_region
    _
  $region5: #{vae_forward.14} parent=0 // pred_fallthru
    _
  // Predicated region
  $region6: #{vae_forward.14} parent=0 // pred_check
    _
  $region7: #{vae_forward.14} parent=0 // pred_check_branch
    %13 = sbr.rel (0) target = $region9
  $region8: #{vae_forward.14} parent=0 // pred_region
    _
  $region9: #{vae_forward.14} parent=0 // pred_fallthru
    _
  // Predicated region
  $region10: #{vae_forward.14} parent=0 // pred_check
    _
  $region11: #{vae_forward.14} parent=0 // pred_check_branch
    %15 = sbr.rel (0) target = $region13
  $region12: #{vae_forward.14} parent=0 // pred_region
    _
  $region13: #{vae_forward.14} parent=0 // pred_fallthru
    _
  // Predicated region
  $region14: #{vae_forward.14} parent=0 // pred_check
    _
  $region15: #{vae_forward.14} parent=0 // pred_check_branch
    %17 = sbr.rel (0) target = $region17
  $region16: #{vae_forward.14} parent=0 // pred_region
    _
  $region17: #{vae_forward.14} parent=0 // pred_fallthru
    _
  // Predicated region
  $region18: #{vae_forward.14} parent=0 // pred_check
    _
  $region19: #{vae_forward.14} parent=0 // pred_check_branch
    %19 = sbr.rel (0) target = $region21
  $region20: #{vae_forward.14} parent=0 // pred_region
    _
  $region21: #{vae_forward.14} parent=0 // pred_fallthru
    _
  %v21 = vld [vmem:[%s0] sm:$0xff]
  %v22 = vld [vmem:[%s2] sm:$0xff]
  %v23 = vld [vmem:[%s1] sm:$0xff]
  %v24 = vmul.f32 %v23, 0.5
  %v25 = vmul.f32 %v24, 1.442695
  %v26 = vpow.pop %v25
  %v27 = vmul.f32 %v22, %v26
  %v28 = vadd.f32 %v21, %v27
  %v29 = vpack.c.bf16 %v28, %v28
  %v30 = vld [vmem:[%s3] sm:$0xff]
  %v31 = vld [vmem:[%s3 + $0x8] sm:$0xff]
  %v32 = vld [vmem:[%s3 + $0x10] sm:$0xff]
  %v33 = vld [vmem:[%s3 + $0x18] sm:$0xff]
  %v34 = vld [vmem:[%s3 + $0x20] sm:$0xff]
  %v35 = vld [vmem:[%s3 + $0x28] sm:$0xff]
  %v36 = vld [vmem:[%s3 + $0x30] sm:$0xff]
  %v37 = vld [vmem:[%s3 + $0x38] sm:$0xff]
  %v38 = vld [vmem:[%s3 + $0x40] sm:$0xff]
  %v39 = vld [vmem:[%s3 + $0x48] sm:$0xff]
  %v40 = vld [vmem:[%s3 + $0x50] sm:$0xff]
  %v41 = vld [vmem:[%s3 + $0x58] sm:$0xff]
  %v42 = vld [vmem:[%s3 + $0x60] sm:$0xff]
  %v43 = vld [vmem:[%s3 + $0x68] sm:$0xff]
  %v44 = vld [vmem:[%s3 + $0x70] sm:$0xff]
  %v45 = vld [vmem:[%s3 + $0x78] sm:$0xff]
  %v46 = vld [vmem:[%s3 + $0x80] sm:$0xff]
  %v47 = vld [vmem:[%s3 + $0x88] sm:$0xff]
  %v48 = vld [vmem:[%s3 + $0x90] sm:$0xff]
  %v49 = vld [vmem:[%s3 + $0x98] sm:$0xff]
  %v50 = vld [vmem:[%s3 + $0xa0] sm:$0xff]
  %v51 = vld [vmem:[%s3 + $0xa8] sm:$0xff]
  %v52 = vld [vmem:[%s3 + $0xb0] sm:$0xff]
  %v53 = vld [vmem:[%s3 + $0xb8] sm:$0xff]
  %v54 = vld [vmem:[%s3 + $0xc0] sm:$0xf]
  %v55 = vld [vmem:[%s3 + $0xc4] sm:$0xff]
  %v56 = vld [vmem:[%s3 + $0xcc] sm:$0xff]
  %v57 = vld [vmem:[%s3 + $0xd4] sm:$0xff]
  %v58 = vld [vmem:[%s3 + $0xdc] sm:$0xff]
  %v59 = vld [vmem:[%s3 + $0xe4] sm:$0xff]
  %v60 = vld [vmem:[%s3 + $0xec] sm:$0xff]
  %v61 = vld [vmem:[%s3 + $0xf4] sm:$0xff]
  %v62 = vld [vmem:[%s3 + $0xfc] sm:$0xff]
  %v63 = vld [vmem:[%s3 + $0x104] sm:$0xff]
  %v64 = vld [vmem:[%s3 + $0x10c] sm:$0xff]
  %v65 = vld [vmem:[%s3 + $0x114] sm:$0xff]
  %v66 = vld [vmem:[%s3 + $0x11c] sm:$0xff]
  %v67 = vld [vmem:[%s3 + $0x124] sm:$0xff]
  %v68 = vld [vmem:[%s3 + $0x12c] sm:$0xff]
  %v69 = vld [vmem:[%s3 + $0x134] sm:$0xff]
  %v70 = vld [vmem:[%s3 + $0x13c] sm:$0xff]
  %v71 = vld [vmem:[%s3 + $0x144] sm:$0xff]
  %v72 = vld [vmem:[%s3 + $0x14c] sm:$0xff]
  %v73 = vld [vmem:[%s3 + $0x154] sm:$0xff]
  %v74 = vld [vmem:[%s3 + $0x15c] sm:$0xff]
  %v75 = vld [vmem:[%s3 + $0x164] sm:$0xff]
  %v76 = vld [vmem:[%s3 + $0x16c] sm:$0xff]
  %v77 = vld [vmem:[%s3 + $0x174] sm:$0xff]
  %v78 = vld [vmem:[%s3 + $0x17c] sm:$0xff]
  %v79 = vld [vmem:[%s3 + $0x184] sm:$0xf]
  %v80 = vld [vmem:[%s3 + $0x188] sm:$0xff]
  %v81 = vld [vmem:[%s3 + $0x190] sm:$0xff]
  %v82 = vld [vmem:[%s3 + $0x198] sm:$0xff]
  %v83 = vld [vmem:[%s3 + $0x1a0] sm:$0xff]
  %v84 = vld [vmem:[%s3 + $0x1a8] sm:$0xff]
  %v85 = vld [vmem:[%s3 + $0x1b0] sm:$0xff]
  %v86 = vld [vmem:[%s3 + $0x1b8] sm:$0xff]
  %v87 = vld [vmem:[%s3 + $0x1c0] sm:$0xff]
  %v88 = vld [vmem:[%s3 + $0x1c8] sm:$0xff]
  %v89 = vld [vmem:[%s3 + $0x1d0] sm:$0xff]
  %v90 = vld [vmem:[%s3 + $0x1d8] sm:$0xff]
  %v91 = vld [vmem:[%s3 + $0x1e0] sm:$0xff]
  %v92 = vld [vmem:[%s3 + $0x1e8] sm:$0xff]
  %v93 = vld [vmem:[%s3 + $0x1f0] sm:$0xff]
  %v94 = vld [vmem:[%s3 + $0x1f8] sm:$0xff]
  %v95 = vld [vmem:[%s3 + $0x200] sm:$0xff]
  %v96 = vld [vmem:[%s3 + $0x208] sm:$0xff]
  %v97 = vld [vmem:[%s3 + $0x210] sm:$0xff]
  %v98 = vld [vmem:[%s3 + $0x218] sm:$0xff]
  %v99 = vld [vmem:[%s3 + $0x220] sm:$0xff]
  %v100 = vld [vmem:[%s3 + $0x228] sm:$0xff]
  %v101 = vld [vmem:[%s3 + $0x230] sm:$0xff]
  %v102 = vld [vmem:[%s3 + $0x238] sm:$0xff]
  %v103 = vld [vmem:[%s3 + $0x240] sm:$0xff]
  %v104 = vld [vmem:[%s3 + $0x248] sm:$0xf]
  %v105 = vld [vmem:[%s3 + $0x24c] sm:$0xff]
  %v106 = vld [vmem:[%s3 + $0x254] sm:$0xff]
  %v107 = vld [vmem:[%s3 + $0x25c] sm:$0xff]
  %v108 = vld [vmem:[%s3 + $0x264] sm:$0xff]
  %v109 = vld [vmem:[%s3 + $0x26c] sm:$0xff]
  %v110 = vld [vmem:[%s3 + $0x274] sm:$0xff]
  %v111 = vld [vmem:[%s3 + $0x27c] sm:$0xff]
  %v112 = vld [vmem:[%s3 + $0x284] sm:$0xff]
  %v113 = vld [vmem:[%s3 + $0x28c] sm:$0xff]
  %v114 = vld [vmem:[%s3 + $0x294] sm:$0xff]
  %v115 = vld [vmem:[%s3 + $0x29c] sm:$0xff]
  %v116 = vld [vmem:[%s3 + $0x2a4] sm:$0xff]
  %v117 = vld [vmem:[%s3 + $0x2ac] sm:$0xff]
  %v118 = vld [vmem:[%s3 + $0x2b4] sm:$0xff]
  %v119 = vld [vmem:[%s3 + $0x2bc] sm:$0xff]
  %v120 = vld [vmem:[%s3 + $0x2c4] sm:$0xff]
  %v121 = vld [vmem:[%s3 + $0x2cc] sm:$0xff]
  %v122 = vld [vmem:[%s3 + $0x2d4] sm:$0xff]
  %v123 = vld [vmem:[%s3 + $0x2dc] sm:$0xff]
  %v124 = vld [vmem:[%s3 + $0x2e4] sm:$0xff]
  %v125 = vld [vmem:[%s3 + $0x2ec] sm:$0xff]
  %v126 = vld [vmem:[%s3 + $0x2f4] sm:$0xff]
  %v127 = vld [vmem:[%s3 + $0x2fc] sm:$0xff]
  %v128 = vld [vmem:[%s3 + $0x304] sm:$0xff]
  %v129 = vld [vmem:[%s3 + $0x30c] sm:$0xf]
  %v130 = vld [vmem:[%s3 + $0x310] sm:$0xff]
  %v131 = vld [vmem:[%s3 + $0x318] sm:$0xff]
  %v132 = vld [vmem:[%s3 + $0x320] sm:$0xff]
  %v133 = vld [vmem:[%s3 + $0x328] sm:$0xff]
  %v134 = vld [vmem:[%s3 + $0x330] sm:$0xff]
  %v135 = vld [vmem:[%s3 + $0x338] sm:$0xff]
  %v136 = vld [vmem:[%s3 + $0x340] sm:$0xff]
  %v137 = vld [vmem:[%s3 + $0x348] sm:$0xff]
  %v138 = vld [vmem:[%s3 + $0x350] sm:$0xff]
  %v139 = vld [vmem:[%s3 + $0x358] sm:$0xff]
  %v140 = vld [vmem:[%s3 + $0x360] sm:$0xff]
  %v141 = vld [vmem:[%s3 + $0x368] sm:$0xff]
  %v142 = vld [vmem:[%s3 + $0x370] sm:$0xff]
  %v143 = vld [vmem:[%s3 + $0x378] sm:$0xff]
  %v144 = vld [vmem:[%s3 + $0x380] sm:$0xff]
  %v145 = vld [vmem:[%s3 + $0x388] sm:$0xff]
  %v146 = vld [vmem:[%s3 + $0x390] sm:$0xff]
  %v147 = vld [vmem:[%s3 + $0x398] sm:$0xff]
  %v148 = vld [vmem:[%s3 + $0x3a0] sm:$0xff]
  %v149 = vld [vmem:[%s3 + $0x3a8] sm:$0xff]
  %v150 = vld [vmem:[%s3 + $0x3b0] sm:$0xff]
  %v151 = vld [vmem:[%s3 + $0x3b8] sm:$0xff]
  %v152 = vld [vmem:[%s3 + $0x3c0] sm:$0xff]
  %v153 = vld [vmem:[%s3 + $0x3c8] sm:$0xff]
  %v154 = vld [vmem:[%s3 + $0x3d0] sm:$0xf]
  %v155 = vld [vmem:[%s3 + $0x3d4] sm:$0xff]
  %v156 = vld [vmem:[%s3 + $0x3dc] sm:$0xff]
  %v157 = vld [vmem:[%s3 + $0x3e4] sm:$0xff]
  %v158 = vld [vmem:[%s3 + $0x3ec] sm:$0xff]
  %v159 = vld [vmem:[%s3 + $0x3f4] sm:$0xff]
  %v160 = vld [vmem:[%s3 + $0x3fc] sm:$0xff]
  %v161 = vld [vmem:[%s3 + $0x404] sm:$0xff]
  %v162 = vld [vmem:[%s3 + $0x40c] sm:$0xff]
  %v163 = vld [vmem:[%s3 + $0x414] sm:$0xff]
  %v164 = vld [vmem:[%s3 + $0x41c] sm:$0xff]
  %v165 = vld [vmem:[%s3 + $0x424] sm:$0xff]
  %v166 = vld [vmem:[%s3 + $0x42c] sm:$0xff]
  %v167 = vld [vmem:[%s3 + $0x434] sm:$0xff]
  %v168 = vld [vmem:[%s3 + $0x43c] sm:$0xff]
  %v169 = vld [vmem:[%s3 + $0x444] sm:$0xff]
  %v170 = vld [vmem:[%s3 + $0x44c] sm:$0xff]
  %v171 = vld [vmem:[%s3 + $0x454] sm:$0xff]
  %v172 = vld [vmem:[%s3 + $0x45c] sm:$0xff]
  %v173 = vld [vmem:[%s3 + $0x464] sm:$0xff]
  %v174 = vld [vmem:[%s3 + $0x46c] sm:$0xff]
  %v175 = vld [vmem:[%s3 + $0x474] sm:$0xff]
  %v176 = vld [vmem:[%s3 + $0x47c] sm:$0xff]
  %v177 = vld [vmem:[%s3 + $0x484] sm:$0xff]
  %v178 = vld [vmem:[%s3 + $0x48c] sm:$0xff]
  %v179 = vld [vmem:[%s3 + $0x494] sm:$0xf]
  %v180 = vld [vmem:[%s3 + $0x498] sm:$0xff]
  %v181 = vld [vmem:[%s3 + $0x4a0] sm:$0xff]
  %v182 = vld [vmem:[%s3 + $0x4a8] sm:$0xff]
  %v183 = vld [vmem:[%s3 + $0x4b0] sm:$0xff]
  %v184 = vld [vmem:[%s3 + $0x4b8] sm:$0xff]
  %v185 = vld [vmem:[%s3 + $0x4c0] sm:$0xff]
  %v186 = vld [vmem:[%s3 + $0x4c8] sm:$0xff]
  %v187 = vld [vmem:[%s3 + $0x4d0] sm:$0xff]
  %v188 = vld [vmem:[%s3 + $0x4d8] sm:$0xff]
  %v189 = vld [vmem:[%s3 + $0x4e0] sm:$0xff]
  %v190 = vld [vmem:[%s3 + $0x4e8] sm:$0xff]
  %v191 = vld [vmem:[%s3 + $0x4f0] sm:$0xff]
  %v192 = vld [vmem:[%s3 + $0x4f8] sm:$0xff]
  %v193 = vld [vmem:[%s3 + $0x500] sm:$0xff]
  %v194 = vld [vmem:[%s3 + $0x508] sm:$0xff]
  %v195 = vld [vmem:[%s3 + $0x510] sm:$0xff]
  %v196 = vld [vmem:[%s3 + $0x518] sm:$0xff]
  %v197 = vld [vmem:[%s3 + $0x520] sm:$0xff]
  %v198 = vld [vmem:[%s3 + $0x528] sm:$0xff]
  %v199 = vld [vmem:[%s3 + $0x530] sm:$0xff]
  %v200 = vld [vmem:[%s3 + $0x538] sm:$0xff]
  %v201 = vld [vmem:[%s3 + $0x540] sm:$0xff]
  %v202 = vld [vmem:[%s3 + $0x548] sm:$0xff]
  %v203 = vld [vmem:[%s3 + $0x550] sm:$0xff]
  %v204 = vld [vmem:[%s3 + $0x558] sm:$0xf]
  %v205 = vld [vmem:[%s3 + $0x55c] sm:$0xff]
  %v206 = vld [vmem:[%s3 + $0x564] sm:$0xff]
  %v207 = vld [vmem:[%s3 + $0x56c] sm:$0xff]
  %v208 = vld [vmem:[%s3 + $0x574] sm:$0xff]
  %v209 = vld [vmem:[%s3 + $0x57c] sm:$0xff]
  %v210 = vld [vmem:[%s3 + $0x584] sm:$0xff]
  %v211 = vld [vmem:[%s3 + $0x58c] sm:$0xff]
  %v212 = vld [vmem:[%s3 + $0x594] sm:$0xff]
  %v213 = vld [vmem:[%s3 + $0x59c] sm:$0xff]
  %v214 = vld [vmem:[%s3 + $0x5a4] sm:$0xff]
  %v215 = vld [vmem:[%s3 + $0x5ac] sm:$0xff]
  %v216 = vld [vmem:[%s3 + $0x5b4] sm:$0xff]
  %v217 = vld [vmem:[%s3 + $0x5bc] sm:$0xff]
  %v218 = vld [vmem:[%s3 + $0x5c4] sm:$0xff]
  %v219 = vld [vmem:[%s3 + $0x5cc] sm:$0xff]
  %v220 = vld [vmem:[%s3 + $0x5d4] sm:$0xff]
  %v221 = vld [vmem:[%s3 + $0x5dc] sm:$0xff]
  %v222 = vld [vmem:[%s3 + $0x5e4] sm:$0xff]
  %v223 = vld [vmem:[%s3 + $0x5ec] sm:$0xff]
  %v224 = vld [vmem:[%s3 + $0x5f4] sm:$0xff]
  %v225 = vld [vmem:[%s3 + $0x5fc] sm:$0xff]
  %v226 = vld [vmem:[%s3 + $0x604] sm:$0xff]
  %v227 = vld [vmem:[%s3 + $0x60c] sm:$0xff]
  %v228 = vld [vmem:[%s3 + $0x614] sm:$0xff]
  %v229 = vld [vmem:[%s3 + $0x61c] sm:$0xf]
  %v230 = vld [vmem:[%s3 + $0x620] sm:$0xff]
  %v231 = vld [vmem:[%s3 + $0x628] sm:$0xff]
  %v232 = vld [vmem:[%s3 + $0x630] sm:$0xff]
  %v233 = vld [vmem:[%s3 + $0x638] sm:$0xff]
  %v234 = vld [vmem:[%s3 + $0x640] sm:$0xff]
  %v235 = vld [vmem:[%s3 + $0x648] sm:$0xff]
  %v236 = vld [vmem:[%s3 + $0x650] sm:$0xff]
  %v237 = vld [vmem:[%s3 + $0x658] sm:$0xff]
  %v238 = vld [vmem:[%s3 + $0x660] sm:$0xff]
  %v239 = vld [vmem:[%s3 + $0x668] sm:$0xff]
  %v240 = vld [vmem:[%s3 + $0x670] sm:$0xff]
  %v241 = vld [vmem:[%s3 + $0x678] sm:$0xff]
  %v242 = vld [vmem:[%s3 + $0x680] sm:$0xff]
  %v243 = vld [vmem:[%s3 + $0x688] sm:$0xff]
  %v244 = vld [vmem:[%s3 + $0x690] sm:$0xff]
  %v245 = vld [vmem:[%s3 + $0x698] sm:$0xff]
  %v246 = vld [vmem:[%s3 + $0x6a0] sm:$0xff]
  %v247 = vld [vmem:[%s3 + $0x6a8] sm:$0xff]
  %v248 = vld [vmem:[%s3 + $0x6b0] sm:$0xff]
  %v249 = vld [vmem:[%s3 + $0x6b8] sm:$0xff]
  %v250 = vld [vmem:[%s3 + $0x6c0] sm:$0xff]
  %v251 = vld [vmem:[%s3 + $0x6c8] sm:$0xff]
  %v252 = vld [vmem:[%s3 + $0x6d0] sm:$0xff]
  %v253 = vld [vmem:[%s3 + $0x6d8] sm:$0xff]
  %v254 = vld [vmem:[%s3 + $0x6e0] sm:$0xf]
  %v255 = vld [vmem:[%s3 + $0x6e4] sm:$0xff]
  %v256 = vld [vmem:[%s3 + $0x6ec] sm:$0xff]
  %v257 = vld [vmem:[%s3 + $0x6f4] sm:$0xff]
  %v258 = vld [vmem:[%s3 + $0x6fc] sm:$0xff]
  %v259 = vld [vmem:[%s3 + $0x704] sm:$0xff]
  %v260 = vld [vmem:[%s3 + $0x70c] sm:$0xff]
  %v261 = vld [vmem:[%s3 + $0x714] sm:$0xff]
  %v262 = vld [vmem:[%s3 + $0x71c] sm:$0xff]
  %v263 = vld [vmem:[%s3 + $0x724] sm:$0xff]
  %v264 = vld [vmem:[%s3 + $0x72c] sm:$0xff]
  %v265 = vld [vmem:[%s3 + $0x734] sm:$0xff]
  %v266 = vld [vmem:[%s3 + $0x73c] sm:$0xff]
  %v267 = vld [vmem:[%s3 + $0x744] sm:$0xff]
  %v268 = vld [vmem:[%s3 + $0x74c] sm:$0xff]
  %v269 = vld [vmem:[%s3 + $0x754] sm:$0xff]
  %v270 = vld [vmem:[%s3 + $0x75c] sm:$0xff]
  %v271 = vld [vmem:[%s3 + $0x764] sm:$0xff]
  %v272 = vld [vmem:[%s3 + $0x76c] sm:$0xff]
  %v273 = vld [vmem:[%s3 + $0x774] sm:$0xff]
  %v274 = vld [vmem:[%s3 + $0x77c] sm:$0xff]
  %v275 = vld [vmem:[%s3 + $0x784] sm:$0xff]
  %v276 = vld [vmem:[%s3 + $0x78c] sm:$0xff]
  %v277 = vld [vmem:[%s3 + $0x794] sm:$0xff]
  %v278 = vld [vmem:[%s3 + $0x79c] sm:$0xff]
  %v279 = vld [vmem:[%s3 + $0x7a4] sm:$0xf]
  %v280 = vld [vmem:[%s3 + $0x7a8] sm:$0xff]
  %v281 = vld [vmem:[%s3 + $0x7b0] sm:$0xff]
  %v282 = vld [vmem:[%s3 + $0x7b8] sm:$0xff]
  %v283 = vld [vmem:[%s3 + $0x7c0] sm:$0xff]
  %v284 = vld [vmem:[%s3 + $0x7c8] sm:$0xff]
  %v285 = vld [vmem:[%s3 + $0x7d0] sm:$0xff]
  %v286 = vld [vmem:[%s3 + $0x7d8] sm:$0xff]
  %v287 = vld [vmem:[%s3 + $0x7e0] sm:$0xff]
  %v288 = vld [vmem:[%s3 + $0x7e8] sm:$0xff]
  %v289 = vld [vmem:[%s3 + $0x7f0] sm:$0xff]
  %v290 = vld [vmem:[%s3 + $0x7f8] sm:$0xff]
  %v291 = vld [vmem:[%s3 + $0x800] sm:$0xff]
  %v292 = vld [vmem:[%s3 + $0x808] sm:$0xff]
  %v293 = vld [vmem:[%s3 + $0x810] sm:$0xff]
  %v294 = vld [vmem:[%s3 + $0x818] sm:$0xff]
  %v295 = vld [vmem:[%s3 + $0x820] sm:$0xff]
  %v296 = vld [vmem:[%s3 + $0x828] sm:$0xff]
  %v297 = vld [vmem:[%s3 + $0x830] sm:$0xff]
  %v298 = vld [vmem:[%s3 + $0x838] sm:$0xff]
  %v299 = vld [vmem:[%s3 + $0x840] sm:$0xff]
  %v300 = vld [vmem:[%s3 + $0x848] sm:$0xff]
  %v301 = vld [vmem:[%s3 + $0x850] sm:$0xff]
  %v302 = vld [vmem:[%s3 + $0x858] sm:$0xff]
  %v303 = vld [vmem:[%s3 + $0x860] sm:$0xff]
  %v304 = vld [vmem:[%s3 + $0x868] sm:$0xf]
  %v305 = vld [vmem:[%s3 + $0x86c] sm:$0xff]
  %v306 = vld [vmem:[%s3 + $0x874] sm:$0xff]
  %v307 = vld [vmem:[%s3 + $0x87c] sm:$0xff]
  %v308 = vld [vmem:[%s3 + $0x884] sm:$0xff]
  %v309 = vld [vmem:[%s3 + $0x88c] sm:$0xff]
  %v310 = vld [vmem:[%s3 + $0x894] sm:$0xff]
  %v311 = vld [vmem:[%s3 + $0x89c] sm:$0xff]
  %v312 = vld [vmem:[%s3 + $0x8a4] sm:$0xff]
  %v313 = vld [vmem:[%s3 + $0x8ac] sm:$0xff]
  %v314 = vld [vmem:[%s3 + $0x8b4] sm:$0xff]
  %v315 = vld [vmem:[%s3 + $0x8bc] sm:$0xff]
  %v316 = vld [vmem:[%s3 + $0x8c4] sm:$0xff]
  %v317 = vld [vmem:[%s3 + $0x8cc] sm:$0xff]
  %v318 = vld [vmem:[%s3 + $0x8d4] sm:$0xff]
  %v319 = vld [vmem:[%s3 + $0x8dc] sm:$0xff]
  %v320 = vld [vmem:[%s3 + $0x8e4] sm:$0xff]
  %v321 = vld [vmem:[%s3 + $0x8ec] sm:$0xff]
  %v322 = vld [vmem:[%s3 + $0x8f4] sm:$0xff]
  %v323 = vld [vmem:[%s3 + $0x8fc] sm:$0xff]
  %v324 = vld [vmem:[%s3 + $0x904] sm:$0xff]
  %v325 = vld [vmem:[%s3 + $0x90c] sm:$0xff]
  %v326 = vld [vmem:[%s3 + $0x914] sm:$0xff]
  %v327 = vld [vmem:[%s3 + $0x91c] sm:$0xff]
  %v328 = vld [vmem:[%s3 + $0x924] sm:$0xff]
  %v329 = vld [vmem:[%s3 + $0x92c] sm:$0xf]
  %v330 = vld [vmem:[%s3 + $0x930] sm:$0xff]
  %v331 = vld [vmem:[%s3 + $0x938] sm:$0xff]
  %v332 = vld [vmem:[%s3 + $0x940] sm:$0xff]
  %v333 = vld [vmem:[%s3 + $0x948] sm:$0xff]
  %v334 = vld [vmem:[%s3 + $0x950] sm:$0xff]
  %v335 = vld [vmem:[%s3 + $0x958] sm:$0xff]
  %v336 = vld [vmem:[%s3 + $0x960] sm:$0xff]
  %v337 = vld [vmem:[%s3 + $0x968] sm:$0xff]
  %v338 = vld [vmem:[%s3 + $0x970] sm:$0xff]
  %v339 = vld [vmem:[%s3 + $0x978] sm:$0xff]
  %v340 = vld [vmem:[%s3 + $0x980] sm:$0xff]
  %v341 = vld [vmem:[%s3 + $0x988] sm:$0xff]
  %v342 = vld [vmem:[%s3 + $0x990] sm:$0xff]
  %v343 = vld [vmem:[%s3 + $0x998] sm:$0xff]
  %v344 = vld [vmem:[%s3 + $0x9a0] sm:$0xff]
  %v345 = vld [vmem:[%s3 + $0x9a8] sm:$0xff]
  %v346 = vld [vmem:[%s3 + $0x9b0] sm:$0xff]
  %v347 = vld [vmem:[%s3 + $0x9b8] sm:$0xff]
  %v348 = vld [vmem:[%s3 + $0x9c0] sm:$0xff]
  %v349 = vld [vmem:[%s3 + $0x9c8] sm:$0xff]
  %v350 = vld [vmem:[%s3 + $0x9d0] sm:$0xff]
  %v351 = vld [vmem:[%s3 + $0x9d8] sm:$0xff]
  %v352 = vld [vmem:[%s3 + $0x9e0] sm:$0xff]
  %v353 = vld [vmem:[%s3 + $0x9e8] sm:$0xff]
  %v354 = vld [vmem:[%s3 + $0x9f0] sm:$0xf]
  %v355 = vld [vmem:[%s3 + $0x9f4] sm:$0xff]
  %v356 = vld [vmem:[%s3 + $0x9fc] sm:$0xff]
  %v357 = vld [vmem:[%s3 + $0xa04] sm:$0xff]
  %v358 = vld [vmem:[%s3 + $0xa0c] sm:$0xff]
  %v359 = vld [vmem:[%s3 + $0xa14] sm:$0xff]
  %v360 = vld [vmem:[%s3 + $0xa1c] sm:$0xff]
  %v361 = vld [vmem:[%s3 + $0xa24] sm:$0xff]
  %v362 = vld [vmem:[%s3 + $0xa2c] sm:$0xff]
  %v363 = vld [vmem:[%s3 + $0xa34] sm:$0xff]
  %v364 = vld [vmem:[%s3 + $0xa3c] sm:$0xff]
  %v365 = vld [vmem:[%s3 + $0xa44] sm:$0xff]
  %v366 = vld [vmem:[%s3 + $0xa4c] sm:$0xff]
  %v367 = vld [vmem:[%s3 + $0xa54] sm:$0xff]
  %v368 = vld [vmem:[%s3 + $0xa5c] sm:$0xff]
  %v369 = vld [vmem:[%s3 + $0xa64] sm:$0xff]
  %v370 = vld [vmem:[%s3 + $0xa6c] sm:$0xff]
  %v371 = vld [vmem:[%s3 + $0xa74] sm:$0xff]
  %v372 = vld [vmem:[%s3 + $0xa7c] sm:$0xff]
  %v373 = vld [vmem:[%s3 + $0xa84] sm:$0xff]
  %v374 = vld [vmem:[%s3 + $0xa8c] sm:$0xff]
  %v375 = vld [vmem:[%s3 + $0xa94] sm:$0xff]
  %v376 = vld [vmem:[%s3 + $0xa9c] sm:$0xff]
  %v377 = vld [vmem:[%s3 + $0xaa4] sm:$0xff]
  %v378 = vld [vmem:[%s3 + $0xaac] sm:$0xff]
  %v379 = vld [vmem:[%s3 + $0xab4] sm:$0xf]
  %v380 = vld [vmem:[%s3 + $0xab8] sm:$0xff]
  %v381 = vld [vmem:[%s3 + $0xac0] sm:$0xff]
  %v382 = vld [vmem:[%s3 + $0xac8] sm:$0xff]
  %v383 = vld [vmem:[%s3 + $0xad0] sm:$0xff]
  %v384 = vld [vmem:[%s3 + $0xad8] sm:$0xff]
  %v385 = vld [vmem:[%s3 + $0xae0] sm:$0xff]
  %v386 = vld [vmem:[%s3 + $0xae8] sm:$0xff]
  %v387 = vld [vmem:[%s3 + $0xaf0] sm:$0xff]
  %v388 = vld [vmem:[%s3 + $0xaf8] sm:$0xff]
  %v389 = vld [vmem:[%s3 + $0xb00] sm:$0xff]
  %v390 = vld [vmem:[%s3 + $0xb08] sm:$0xff]
  %v391 = vld [vmem:[%s3 + $0xb10] sm:$0xff]
  %v392 = vld [vmem:[%s3 + $0xb18] sm:$0xff]
  %v393 = vld [vmem:[%s3 + $0xb20] sm:$0xff]
  %v394 = vld [vmem:[%s3 + $0xb28] sm:$0xff]
  %v395 = vld [vmem:[%s3 + $0xb30] sm:$0xff]
  %v396 = vld [vmem:[%s3 + $0xb38] sm:$0xff]
  %v397 = vld [vmem:[%s3 + $0xb40] sm:$0xff]
  %v398 = vld [vmem:[%s3 + $0xb48] sm:$0xff]
  %v399 = vld [vmem:[%s3 + $0xb50] sm:$0xff]
  %v400 = vld [vmem:[%s3 + $0xb58] sm:$0xff]
  %v401 = vld [vmem:[%s3 + $0xb60] sm:$0xff]
  %v402 = vld [vmem:[%s3 + $0xb68] sm:$0xff]
  %v403 = vld [vmem:[%s3 + $0xb70] sm:$0xff]
  %v404 = vld [vmem:[%s3 + $0xb78] sm:$0xf]
  %v405 = vld [vmem:[%s3 + $0xb7c] sm:$0xff]
  %v406 = vld [vmem:[%s3 + $0xb84] sm:$0xff]
  %v407 = vld [vmem:[%s3 + $0xb8c] sm:$0xff]
  %v408 = vld [vmem:[%s3 + $0xb94] sm:$0xff]
  %v409 = vld [vmem:[%s3 + $0xb9c] sm:$0xff]
  %v410 = vld [vmem:[%s3 + $0xba4] sm:$0xff]
  %v411 = vld [vmem:[%s3 + $0xbac] sm:$0xff]
  %v412 = vld [vmem:[%s3 + $0xbb4] sm:$0xff]
  %v413 = vld [vmem:[%s3 + $0xbbc] sm:$0xff]
  %v414 = vld [vmem:[%s3 + $0xbc4] sm:$0xff]
  %v415 = vld [vmem:[%s3 + $0xbcc] sm:$0xff]
  %v416 = vld [vmem:[%s3 + $0xbd4] sm:$0xff]
  %v417 = vld [vmem:[%s3 + $0xbdc] sm:$0xff]
  %v418 = vld [vmem:[%s3 + $0xbe4] sm:$0xff]
  %v419 = vld [vmem:[%s3 + $0xbec] sm:$0xff]
  %v420 = vld [vmem:[%s3 + $0xbf4] sm:$0xff]
  %v421 = vld [vmem:[%s3 + $0xbfc] sm:$0xff]
  %v422 = vld [vmem:[%s3 + $0xc04] sm:$0xff]
  %v423 = vld [vmem:[%s3 + $0xc0c] sm:$0xff]
  %v424 = vld [vmem:[%s3 + $0xc14] sm:$0xff]
  %v425 = vld [vmem:[%s3 + $0xc1c] sm:$0xff]
  %v426 = vld [vmem:[%s3 + $0xc24] sm:$0xff]
  %v427 = vld [vmem:[%s3 + $0xc2c] sm:$0xff]
  %v428 = vld [vmem:[%s3 + $0xc34] sm:$0xff]
  %v429 = vld [vmem:[%s3 + $0xc3c] sm:$0xf]
  %v430 = vld [vmem:[%s4] sm:$0xff]
  %v431 = vld [vmem:[%s4 + $0x8] sm:$0xff]
  %v432 = vld [vmem:[%s4 + $0x10] sm:$0xff]
  %v433 = vld [vmem:[%s4 + $0x18] sm:$0xff]
  %v434 = vld [vmem:[%s4 + $0x20] sm:$0xff]
  %v435 = vld [vmem:[%s4 + $0x28] sm:$0xff]
  %v436 = vld [vmem:[%s4 + $0x30] sm:$0x1]
  %v444 = vlaneseq
  %v445 = vshrl.u32 %v444, 7
  %v446 = vsub.s32 0, %v445
  %v447 = vrot.slane %v430, %v446
  %v448 = vlaneseq
  %v449 = vshrl.u32 %v448, 7
  %v450 = vsub.s32 1, %v449
  %v451 = vrot.slane %v430, %v450
  %v452 = vlaneseq
  %v453 = vshrl.u32 %v452, 7
  %v454 = vsub.s32 2, %v453
  %v455 = vrot.slane %v430, %v454
  %v456 = vlaneseq
  %v457 = vshrl.u32 %v456, 7
  %v458 = vsub.s32 3, %v457
  %v459 = vrot.slane %v430, %v458
  %v460 = vlaneseq
  %v461 = vshrl.u32 %v460, 7
  %v462 = vsub.s32 4, %v461
  %v463 = vrot.slane %v430, %v462
  %v464 = vlaneseq
  %v465 = vshrl.u32 %v464, 7
  %v466 = vsub.s32 5, %v465
  %v467 = vrot.slane %v430, %v466
  %v468 = vlaneseq
  %v469 = vshrl.u32 %v468, 7
  %v470 = vsub.s32 6, %v469
  %v471 = vrot.slane %v430, %v470
  %v472 = vlaneseq
  %v473 = vshrl.u32 %v472, 7
  %v474 = vsub.s32 7, %v473
  %v475 = vrot.slane %v430, %v474
  %v476 = vlaneseq
  %v477 = vshrl.u32 %v476, 7
  %v478 = vsub.s32 0, %v477
  %v479 = vrot.slane %v431, %v478
  %v480 = vlaneseq
  %v481 = vshrl.u32 %v480, 7
  %v482 = vsub.s32 1, %v481
  %v483 = vrot.slane %v431, %v482
  %v484 = vlaneseq
  %v485 = vshrl.u32 %v484, 7
  %v486 = vsub.s32 2, %v485
  %v487 = vrot.slane %v431, %v486
  %v488 = vlaneseq
  %v489 = vshrl.u32 %v488, 7
  %v490 = vsub.s32 3, %v489
  %v491 = vrot.slane %v431, %v490
  %v492 = vlaneseq
  %v493 = vshrl.u32 %v492, 7
  %v494 = vsub.s32 4, %v493
  %v495 = vrot.slane %v431, %v494
  %v496 = vlaneseq
  %v497 = vshrl.u32 %v496, 7
  %v498 = vsub.s32 5, %v497
  %v499 = vrot.slane %v431, %v498
  %v500 = vlaneseq
  %v501 = vshrl.u32 %v500, 7
  %v502 = vsub.s32 6, %v501
  %v503 = vrot.slane %v431, %v502
  %v504 = vlaneseq
  %v505 = vshrl.u32 %v504, 7
  %v506 = vsub.s32 7, %v505
  %v507 = vrot.slane %v431, %v506
  %v508 = vlaneseq
  %v509 = vshrl.u32 %v508, 7
  %v510 = vsub.s32 0, %v509
  %v511 = vrot.slane %v432, %v510
  %v512 = vlaneseq
  %v513 = vshrl.u32 %v512, 7
  %v514 = vsub.s32 1, %v513
  %v515 = vrot.slane %v432, %v514
  %v516 = vlaneseq
  %v517 = vshrl.u32 %v516, 7
  %v518 = vsub.s32 2, %v517
  %v519 = vrot.slane %v432, %v518
  %v520 = vlaneseq
  %v521 = vshrl.u32 %v520, 7
  %v522 = vsub.s32 3, %v521
  %v523 = vrot.slane %v432, %v522
  %v524 = vlaneseq
  %v525 = vshrl.u32 %v524, 7
  %v526 = vsub.s32 4, %v525
  %v527 = vrot.slane %v432, %v526
  %v528 = vlaneseq
  %v529 = vshrl.u32 %v528, 7
  %v530 = vsub.s32 5, %v529
  %v531 = vrot.slane %v432, %v530
  %v532 = vlaneseq
  %v533 = vshrl.u32 %v532, 7
  %v534 = vsub.s32 6, %v533
  %v535 = vrot.slane %v432, %v534
  %v536 = vlaneseq
  %v537 = vshrl.u32 %v536, 7
  %v538 = vsub.s32 7, %v537
  %v539 = vrot.slane %v432, %v538
  %v540 = vlaneseq
  %v541 = vshrl.u32 %v540, 7
  %v542 = vsub.s32 0, %v541
  %v543 = vrot.slane %v433, %v542
  %v544 = vlaneseq
  %v545 = vshrl.u32 %v544, 7
  %v546 = vsub.s32 1, %v545
  %v547 = vrot.slane %v433, %v546
  %v548 = vlaneseq
  %v549 = vshrl.u32 %v548, 7
  %v550 = vsub.s32 2, %v549
  %v551 = vrot.slane %v433, %v550
  %v552 = vlaneseq
  %v553 = vshrl.u32 %v552, 7
  %v554 = vsub.s32 3, %v553
  %v555 = vrot.slane %v433, %v554
  %v556 = vlaneseq
  %v557 = vshrl.u32 %v556, 7
  %v558 = vsub.s32 4, %v557
  %v559 = vrot.slane %v433, %v558
  %v560 = vlaneseq
  %v561 = vshrl.u32 %v560, 7
  %v562 = vsub.s32 5, %v561
  %v563 = vrot.slane %v433, %v562
  %v564 = vlaneseq
  %v565 = vshrl.u32 %v564, 7
  %v566 = vsub.s32 6, %v565
  %v567 = vrot.slane %v433, %v566
  %v568 = vlaneseq
  %v569 = vshrl.u32 %v568, 7
  %v570 = vsub.s32 7, %v569
  %v571 = vrot.slane %v433, %v570
  %v572 = vlaneseq
  %v573 = vshrl.u32 %v572, 7
  %v574 = vsub.s32 0, %v573
  %v575 = vrot.slane %v434, %v574
  %v576 = vlaneseq
  %v577 = vshrl.u32 %v576, 7
  %v578 = vsub.s32 1, %v577
  %v579 = vrot.slane %v434, %v578
  %v580 = vlaneseq
  %v581 = vshrl.u32 %v580, 7
  %v582 = vsub.s32 2, %v581
  %v583 = vrot.slane %v434, %v582
  %v584 = vlaneseq
  %v585 = vshrl.u32 %v584, 7
  %v586 = vsub.s32 3, %v585
  %v587 = vrot.slane %v434, %v586
  %v588 = vlaneseq
  %v589 = vshrl.u32 %v588, 7
  %v590 = vsub.s32 4, %v589
  %v591 = vrot.slane %v434, %v590
  %v592 = vlaneseq
  %v593 = vshrl.u32 %v592, 7
  %v594 = vsub.s32 5, %v593
  %v595 = vrot.slane %v434, %v594
  %v596 = vlaneseq
  %v597 = vshrl.u32 %v596, 7
  %v598 = vsub.s32 6, %v597
  %v599 = vrot.slane %v434, %v598
  %v600 = vlaneseq
  %v601 = vshrl.u32 %v600, 7
  %v602 = vsub.s32 7, %v601
  %v603 = vrot.slane %v434, %v602
  %v604 = vlaneseq
  %v605 = vshrl.u32 %v604, 7
  %v606 = vsub.s32 0, %v605
  %v607 = vrot.slane %v435, %v606
  %v608 = vlaneseq
  %v609 = vshrl.u32 %v608, 7
  %v610 = vsub.s32 1, %v609
  %v611 = vrot.slane %v435, %v610
  %v612 = vlaneseq
  %v613 = vshrl.u32 %v612, 7
  %v614 = vsub.s32 2, %v613
  %v615 = vrot.slane %v435, %v614
  %v616 = vlaneseq
  %v617 = vshrl.u32 %v616, 7
  %v618 = vsub.s32 3, %v617
  %v619 = vrot.slane %v435, %v618
  %v620 = vlaneseq
  %v621 = vshrl.u32 %v620, 7
  %v622 = vsub.s32 4, %v621
  %v623 = vrot.slane %v435, %v622
  %v624 = vlaneseq
  %v625 = vshrl.u32 %v624, 7
  %v626 = vsub.s32 5, %v625
  %v627 = vrot.slane %v435, %v626
  %v628 = vlaneseq
  %v629 = vshrl.u32 %v628, 7
  %v630 = vsub.s32 6, %v629
  %v631 = vrot.slane %v435, %v630
  %v632 = vlaneseq
  %v633 = vshrl.u32 %v632, 7
  %v634 = vsub.s32 7, %v633
  %v635 = vrot.slane %v435, %v634
  %v636 = vlaneseq
  %v637 = vshrl.u32 %v636, 7
  %v638 = vsub.s32 0, %v637
  %v639 = vrot.slane %v436, %v638
  %v1089 = vunpack.c.l.b16 %v30
  %v1090 = vunpack.c.h.b16 %v30
  %v1091 = vunpack.c.l.b16 %v31
  %v1092 = vunpack.c.h.b16 %v31
  %v1093 = vunpack.c.l.b16 %v32
  %v1094 = vunpack.c.h.b16 %v32
  %v1095 = vunpack.c.l.b16 %v33
  %v1096 = vunpack.c.h.b16 %v33
  %v1097 = vunpack.c.l.b16 %v34
  %v1098 = vunpack.c.h.b16 %v34
  %v1099 = vunpack.c.l.b16 %v35
  %v1100 = vunpack.c.h.b16 %v35
  %v1101 = vunpack.c.l.b16 %v36
  %v1102 = vunpack.c.h.b16 %v36
  %v1103 = vunpack.c.l.b16 %v37
  %v1104 = vunpack.c.h.b16 %v37
  %v1105 = vunpack.c.l.b16 %v38
  %v1106 = vunpack.c.h.b16 %v38
  %v1107 = vunpack.c.l.b16 %v39
  %v1108 = vunpack.c.h.b16 %v39
  %v1109 = vunpack.c.l.b16 %v40
  %v1110 = vunpack.c.h.b16 %v40
  %v1111 = vunpack.c.l.b16 %v41
  %v1112 = vunpack.c.h.b16 %v41
  %v1113 = vunpack.c.l.b16 %v42
  %v1114 = vunpack.c.h.b16 %v42
  %v1115 = vunpack.c.l.b16 %v43
  %v1116 = vunpack.c.h.b16 %v43
  %v1117 = vunpack.c.l.b16 %v44
  %v1118 = vunpack.c.h.b16 %v44
  %v1119 = vunpack.c.l.b16 %v45
  %v1120 = vunpack.c.h.b16 %v45
  %v1121 = vunpack.c.l.b16 %v46
  %v1122 = vunpack.c.h.b16 %v46
  %v1123 = vunpack.c.l.b16 %v47
  %v1124 = vunpack.c.h.b16 %v47
  %v1125 = vunpack.c.l.b16 %v48
  %v1126 = vunpack.c.h.b16 %v48
  %v1127 = vunpack.c.l.b16 %v49
  %v1128 = vunpack.c.h.b16 %v49
  %v1129 = vunpack.c.l.b16 %v50
  %v1130 = vunpack.c.h.b16 %v50
  %v1131 = vunpack.c.l.b16 %v51
  %v1132 = vunpack.c.h.b16 %v51
  %v1133 = vunpack.c.l.b16 %v52
  %v1134 = vunpack.c.h.b16 %v52
  %v1135 = vunpack.c.l.b16 %v53
  %v1136 = vunpack.c.h.b16 %v53
  %v1137 = vunpack.c.l.b16 %v54
  %v1138 = vunpack.c.l.b16 %v55
  %v1139 = vunpack.c.h.b16 %v55
  %v1140 = vunpack.c.l.b16 %v56
  %v1141 = vunpack.c.h.b16 %v56
  %v1142 = vunpack.c.l.b16 %v57
  %v1143 = vunpack.c.h.b16 %v57
  %v1144 = vunpack.c.l.b16 %v58
  %v1145 = vunpack.c.h.b16 %v58
  %v1146 = vunpack.c.l.b16 %v59
  %v1147 = vunpack.c.h.b16 %v59
  %v1148 = vunpack.c.l.b16 %v60
  %v1149 = vunpack.c.h.b16 %v60
  %v1150 = vunpack.c.l.b16 %v61
  %v1151 = vunpack.c.h.b16 %v61
  %v1152 = vunpack.c.l.b16 %v62
  %v1153 = vunpack.c.h.b16 %v62
  %v1154 = vunpack.c.l.b16 %v63
  %v1155 = vunpack.c.h.b16 %v63
  %v1156 = vunpack.c.l.b16 %v64
  %v1157 = vunpack.c.h.b16 %v64
  %v1158 = vunpack.c.l.b16 %v65
  %v1159 = vunpack.c.h.b16 %v65
  %v1160 = vunpack.c.l.b16 %v66
  %v1161 = vunpack.c.h.b16 %v66
  %v1162 = vunpack.c.l.b16 %v67
  %v1163 = vunpack.c.h.b16 %v67
  %v1164 = vunpack.c.l.b16 %v68
  %v1165 = vunpack.c.h.b16 %v68
  %v1166 = vunpack.c.l.b16 %v69
  %v1167 = vunpack.c.h.b16 %v69
  %v1168 = vunpack.c.l.b16 %v70
  %v1169 = vunpack.c.h.b16 %v70
  %v1170 = vunpack.c.l.b16 %v71
  %v1171 = vunpack.c.h.b16 %v71
  %v1172 = vunpack.c.l.b16 %v72
  %v1173 = vunpack.c.h.b16 %v72
  %v1174 = vunpack.c.l.b16 %v73
  %v1175 = vunpack.c.h.b16 %v73
  %v1176 = vunpack.c.l.b16 %v74
  %v1177 = vunpack.c.h.b16 %v74
  %v1178 = vunpack.c.l.b16 %v75
  %v1179 = vunpack.c.h.b16 %v75
  %v1180 = vunpack.c.l.b16 %v76
  %v1181 = vunpack.c.h.b16 %v76
  %v1182 = vunpack.c.l.b16 %v77
  %v1183 = vunpack.c.h.b16 %v77
  %v1184 = vunpack.c.l.b16 %v78
  %v1185 = vunpack.c.h.b16 %v78
  %v1186 = vunpack.c.l.b16 %v79
  %v1187 = vunpack.c.l.b16 %v80
  %v1188 = vunpack.c.h.b16 %v80
  %v1189 = vunpack.c.l.b16 %v81
  %v1190 = vunpack.c.h.b16 %v81
  %v1191 = vunpack.c.l.b16 %v82
  %v1192 = vunpack.c.h.b16 %v82
  %v1193 = vunpack.c.l.b16 %v83
  %v1194 = vunpack.c.h.b16 %v83
  %v1195 = vunpack.c.l.b16 %v84
  %v1196 = vunpack.c.h.b16 %v84
  %v1197 = vunpack.c.l.b16 %v85
  %v1198 = vunpack.c.h.b16 %v85
  %v1199 = vunpack.c.l.b16 %v86
  %v1200 = vunpack.c.h.b16 %v86
  %v1201 = vunpack.c.l.b16 %v87
  %v1202 = vunpack.c.h.b16 %v87
  %v1203 = vunpack.c.l.b16 %v88
  %v1204 = vunpack.c.h.b16 %v88
  %v1205 = vunpack.c.l.b16 %v89
  %v1206 = vunpack.c.h.b16 %v89
  %v1207 = vunpack.c.l.b16 %v90
  %v1208 = vunpack.c.h.b16 %v90
  %v1209 = vunpack.c.l.b16 %v91
  %v1210 = vunpack.c.h.b16 %v91
  %v1211 = vunpack.c.l.b16 %v92
  %v1212 = vunpack.c.h.b16 %v92
  %v1213 = vunpack.c.l.b16 %v93
  %v1214 = vunpack.c.h.b16 %v93
  %v1215 = vunpack.c.l.b16 %v94
  %v1216 = vunpack.c.h.b16 %v94
  %v1217 = vunpack.c.l.b16 %v95
  %v1218 = vunpack.c.h.b16 %v95
  %v1219 = vunpack.c.l.b16 %v96
  %v1220 = vunpack.c.h.b16 %v96
  %v1221 = vunpack.c.l.b16 %v97
  %v1222 = vunpack.c.h.b16 %v97
  %v1223 = vunpack.c.l.b16 %v98
  %v1224 = vunpack.c.h.b16 %v98
  %v1225 = vunpack.c.l.b16 %v99
  %v1226 = vunpack.c.h.b16 %v99
  %v1227 = vunpack.c.l.b16 %v100
  %v1228 = vunpack.c.h.b16 %v100
  %v1229 = vunpack.c.l.b16 %v101
  %v1230 = vunpack.c.h.b16 %v101
  %v1231 = vunpack.c.l.b16 %v102
  %v1232 = vunpack.c.h.b16 %v102
  %v1233 = vunpack.c.l.b16 %v103
  %v1234 = vunpack.c.h.b16 %v103
  %v1235 = vunpack.c.l.b16 %v104
  %v1236 = vunpack.c.l.b16 %v105
  %v1237 = vunpack.c.h.b16 %v105
  %v1238 = vunpack.c.l.b16 %v106
  %v1239 = vunpack.c.h.b16 %v106
  %v1240 = vunpack.c.l.b16 %v107
  %v1241 = vunpack.c.h.b16 %v107
  %v1242 = vunpack.c.l.b16 %v108
  %v1243 = vunpack.c.h.b16 %v108
  %v1244 = vunpack.c.l.b16 %v109
  %v1245 = vunpack.c.h.b16 %v109
  %v1246 = vunpack.c.l.b16 %v110
  %v1247 = vunpack.c.h.b16 %v110
  %v1248 = vunpack.c.l.b16 %v111
  %v1249 = vunpack.c.h.b16 %v111
  %v1250 = vunpack.c.l.b16 %v112
  %v1251 = vunpack.c.h.b16 %v112
  %v1252 = vunpack.c.l.b16 %v113
  %v1253 = vunpack.c.h.b16 %v113
  %v1254 = vunpack.c.l.b16 %v114
  %v1255 = vunpack.c.h.b16 %v114
  %v1256 = vunpack.c.l.b16 %v115
  %v1257 = vunpack.c.h.b16 %v115
  %v1258 = vunpack.c.l.b16 %v116
  %v1259 = vunpack.c.h.b16 %v116
  %v1260 = vunpack.c.l.b16 %v117
  %v1261 = vunpack.c.h.b16 %v117
  %v1262 = vunpack.c.l.b16 %v118
  %v1263 = vunpack.c.h.b16 %v118
  %v1264 = vunpack.c.l.b16 %v119
  %v1265 = vunpack.c.h.b16 %v119
  %v1266 = vunpack.c.l.b16 %v120
  %v1267 = vunpack.c.h.b16 %v120
  %v1268 = vunpack.c.l.b16 %v121
  %v1269 = vunpack.c.h.b16 %v121
  %v1270 = vunpack.c.l.b16 %v122
  %v1271 = vunpack.c.h.b16 %v122
  %v1272 = vunpack.c.l.b16 %v123
  %v1273 = vunpack.c.h.b16 %v123
  %v1274 = vunpack.c.l.b16 %v124
  %v1275 = vunpack.c.h.b16 %v124
  %v1276 = vunpack.c.l.b16 %v125
  %v1277 = vunpack.c.h.b16 %v125
  %v1278 = vunpack.c.l.b16 %v126
  %v1279 = vunpack.c.h.b16 %v126
  %v1280 = vunpack.c.l.b16 %v127
  %v1281 = vunpack.c.h.b16 %v127
  %v1282 = vunpack.c.l.b16 %v128
  %v1283 = vunpack.c.h.b16 %v128
  %v1284 = vunpack.c.l.b16 %v129
  %v1285 = vunpack.c.l.b16 %v130
  %v1286 = vunpack.c.h.b16 %v130
  %v1287 = vunpack.c.l.b16 %v131
  %v1288 = vunpack.c.h.b16 %v131
  %v1289 = vunpack.c.l.b16 %v132
  %v1290 = vunpack.c.h.b16 %v132
  %v1291 = vunpack.c.l.b16 %v133
  %v1292 = vunpack.c.h.b16 %v133
  %v1293 = vunpack.c.l.b16 %v134
  %v1294 = vunpack.c.h.b16 %v134
  %v1295 = vunpack.c.l.b16 %v135
  %v1296 = vunpack.c.h.b16 %v135
  %v1297 = vunpack.c.l.b16 %v136
  %v1298 = vunpack.c.h.b16 %v136
  %v1299 = vunpack.c.l.b16 %v137
  %v1300 = vunpack.c.h.b16 %v137
  %v1301 = vunpack.c.l.b16 %v138
  %v1302 = vunpack.c.h.b16 %v138
  %v1303 = vunpack.c.l.b16 %v139
  %v1304 = vunpack.c.h.b16 %v139
  %v1305 = vunpack.c.l.b16 %v140
  %v1306 = vunpack.c.h.b16 %v140
  %v1307 = vunpack.c.l.b16 %v141
  %v1308 = vunpack.c.h.b16 %v141
  %v1309 = vunpack.c.l.b16 %v142
  %v1310 = vunpack.c.h.b16 %v142
  %v1311 = vunpack.c.l.b16 %v143
  %v1312 = vunpack.c.h.b16 %v143
  %v1313 = vunpack.c.l.b16 %v144
  %v1314 = vunpack.c.h.b16 %v144
  %v1315 = vunpack.c.l.b16 %v145
  %v1316 = vunpack.c.h.b16 %v145
  %v1317 = vunpack.c.l.b16 %v146
  %v1318 = vunpack.c.h.b16 %v146
  %v1319 = vunpack.c.l.b16 %v147
  %v1320 = vunpack.c.h.b16 %v147
  %v1321 = vunpack.c.l.b16 %v148
  %v1322 = vunpack.c.h.b16 %v148
  %v1323 = vunpack.c.l.b16 %v149
  %v1324 = vunpack.c.h.b16 %v149
  %v1325 = vunpack.c.l.b16 %v150
  %v1326 = vunpack.c.h.b16 %v150
  %v1327 = vunpack.c.l.b16 %v151
  %v1328 = vunpack.c.h.b16 %v151
  %v1329 = vunpack.c.l.b16 %v152
  %v1330 = vunpack.c.h.b16 %v152
  %v1331 = vunpack.c.l.b16 %v153
  %v1332 = vunpack.c.h.b16 %v153
  %v1333 = vunpack.c.l.b16 %v154
  %v1334 = vunpack.c.l.b16 %v155
  %v1335 = vunpack.c.h.b16 %v155
  %v1336 = vunpack.c.l.b16 %v156
  %v1337 = vunpack.c.h.b16 %v156
  %v1338 = vunpack.c.l.b16 %v157
  %v1339 = vunpack.c.h.b16 %v157
  %v1340 = vunpack.c.l.b16 %v158
  %v1341 = vunpack.c.h.b16 %v158
  %v1342 = vunpack.c.l.b16 %v159
  %v1343 = vunpack.c.h.b16 %v159
  %v1344 = vunpack.c.l.b16 %v160
  %v1345 = vunpack.c.h.b16 %v160
  %v1346 = vunpack.c.l.b16 %v161
  %v1347 = vunpack.c.h.b16 %v161
  %v1348 = vunpack.c.l.b16 %v162
  %v1349 = vunpack.c.h.b16 %v162
  %v1350 = vunpack.c.l.b16 %v163
  %v1351 = vunpack.c.h.b16 %v163
  %v1352 = vunpack.c.l.b16 %v164
  %v1353 = vunpack.c.h.b16 %v164
  %v1354 = vunpack.c.l.b16 %v165
  %v1355 = vunpack.c.h.b16 %v165
  %v1356 = vunpack.c.l.b16 %v166
  %v1357 = vunpack.c.h.b16 %v166
  %v1358 = vunpack.c.l.b16 %v167
  %v1359 = vunpack.c.h.b16 %v167
  %v1360 = vunpack.c.l.b16 %v168
  %v1361 = vunpack.c.h.b16 %v168
  %v1362 = vunpack.c.l.b16 %v169
  %v1363 = vunpack.c.h.b16 %v169
  %v1364 = vunpack.c.l.b16 %v170
  %v1365 = vunpack.c.h.b16 %v170
  %v1366 = vunpack.c.l.b16 %v171
  %v1367 = vunpack.c.h.b16 %v171
  %v1368 = vunpack.c.l.b16 %v172
  %v1369 = vunpack.c.h.b16 %v172
  %v1370 = vunpack.c.l.b16 %v173
  %v1371 = vunpack.c.h.b16 %v173
  %v1372 = vunpack.c.l.b16 %v174
  %v1373 = vunpack.c.h.b16 %v174
  %v1374 = vunpack.c.l.b16 %v175
  %v1375 = vunpack.c.h.b16 %v175
  %v1376 = vunpack.c.l.b16 %v176
  %v1377 = vunpack.c.h.b16 %v176
  %v1378 = vunpack.c.l.b16 %v177
  %v1379 = vunpack.c.h.b16 %v177
  %v1380 = vunpack.c.l.b16 %v178
  %v1381 = vunpack.c.h.b16 %v178
  %v1382 = vunpack.c.l.b16 %v179
  %v1383 = vunpack.c.l.b16 %v180
  %v1384 = vunpack.c.h.b16 %v180
  %v1385 = vunpack.c.l.b16 %v181
  %v1386 = vunpack.c.h.b16 %v181
  %v1387 = vunpack.c.l.b16 %v182
  %v1388 = vunpack.c.h.b16 %v182
  %v1389 = vunpack.c.l.b16 %v183
  %v1390 = vunpack.c.h.b16 %v183
  %v1391 = vunpack.c.l.b16 %v184
  %v1392 = vunpack.c.h.b16 %v184
  %v1393 = vunpack.c.l.b16 %v185
  %v1394 = vunpack.c.h.b16 %v185
  %v1395 = vunpack.c.l.b16 %v186
  %v1396 = vunpack.c.h.b16 %v186
  %v1397 = vunpack.c.l.b16 %v187
  %v1398 = vunpack.c.h.b16 %v187
  %v1399 = vunpack.c.l.b16 %v188
  %v1400 = vunpack.c.h.b16 %v188
  %v1401 = vunpack.c.l.b16 %v189
  %v1402 = vunpack.c.h.b16 %v189
  %v1403 = vunpack.c.l.b16 %v190
  %v1404 = vunpack.c.h.b16 %v190
  %v1405 = vunpack.c.l.b16 %v191
  %v1406 = vunpack.c.h.b16 %v191
  %v1407 = vunpack.c.l.b16 %v192
  %v1408 = vunpack.c.h.b16 %v192
  %v1409 = vunpack.c.l.b16 %v193
  %v1410 = vunpack.c.h.b16 %v193
  %v1411 = vunpack.c.l.b16 %v194
  %v1412 = vunpack.c.h.b16 %v194
  %v1413 = vunpack.c.l.b16 %v195
  %v1414 = vunpack.c.h.b16 %v195
  %v1415 = vunpack.c.l.b16 %v196
  %v1416 = vunpack.c.h.b16 %v196
  %v1417 = vunpack.c.l.b16 %v197
  %v1418 = vunpack.c.h.b16 %v197
  %v1419 = vunpack.c.l.b16 %v198
  %v1420 = vunpack.c.h.b16 %v198
  %v1421 = vunpack.c.l.b16 %v199
  %v1422 = vunpack.c.h.b16 %v199
  %v1423 = vunpack.c.l.b16 %v200
  %v1424 = vunpack.c.h.b16 %v200
  %v1425 = vunpack.c.l.b16 %v201
  %v1426 = vunpack.c.h.b16 %v201
  %v1427 = vunpack.c.l.b16 %v202
  %v1428 = vunpack.c.h.b16 %v202
  %v1429 = vunpack.c.l.b16 %v203
  %v1430 = vunpack.c.h.b16 %v203
  %v1431 = vunpack.c.l.b16 %v204
  %v1432 = vunpack.c.l.b16 %v205
  %v1433 = vunpack.c.h.b16 %v205
  %v1434 = vunpack.c.l.b16 %v206
  %v1435 = vunpack.c.h.b16 %v206
  %v1436 = vunpack.c.l.b16 %v207
  %v1437 = vunpack.c.h.b16 %v207
  %v1438 = vunpack.c.l.b16 %v208
  %v1439 = vunpack.c.h.b16 %v208
  %v1440 = vunpack.c.l.b16 %v209
  %v1441 = vunpack.c.h.b16 %v209
  %v1442 = vunpack.c.l.b16 %v210
  %v1443 = vunpack.c.h.b16 %v210
  %v1444 = vunpack.c.l.b16 %v211
  %v1445 = vunpack.c.h.b16 %v211
  %v1446 = vunpack.c.l.b16 %v212
  %v1447 = vunpack.c.h.b16 %v212
  %v1448 = vunpack.c.l.b16 %v213
  %v1449 = vunpack.c.h.b16 %v213
  %v1450 = vunpack.c.l.b16 %v214
  %v1451 = vunpack.c.h.b16 %v214
  %v1452 = vunpack.c.l.b16 %v215
  %v1453 = vunpack.c.h.b16 %v215
  %v1454 = vunpack.c.l.b16 %v216
  %v1455 = vunpack.c.h.b16 %v216
  %v1456 = vunpack.c.l.b16 %v217
  %v1457 = vunpack.c.h.b16 %v217
  %v1458 = vunpack.c.l.b16 %v218
  %v1459 = vunpack.c.h.b16 %v218
  %v1460 = vunpack.c.l.b16 %v219
  %v1461 = vunpack.c.h.b16 %v219
  %v1462 = vunpack.c.l.b16 %v220
  %v1463 = vunpack.c.h.b16 %v220
  %v1464 = vunpack.c.l.b16 %v221
  %v1465 = vunpack.c.h.b16 %v221
  %v1466 = vunpack.c.l.b16 %v222
  %v1467 = vunpack.c.h.b16 %v222
  %v1468 = vunpack.c.l.b16 %v223
  %v1469 = vunpack.c.h.b16 %v223
  %v1470 = vunpack.c.l.b16 %v224
  %v1471 = vunpack.c.h.b16 %v224
  %v1472 = vunpack.c.l.b16 %v225
  %v1473 = vunpack.c.h.b16 %v225
  %v1474 = vunpack.c.l.b16 %v226
  %v1475 = vunpack.c.h.b16 %v226
  %v1476 = vunpack.c.l.b16 %v227
  %v1477 = vunpack.c.h.b16 %v227
  %v1478 = vunpack.c.l.b16 %v228
  %v1479 = vunpack.c.h.b16 %v228
  %v1480 = vunpack.c.l.b16 %v229
  %v1481 = vunpack.c.l.b16 %v230
  %v1482 = vunpack.c.h.b16 %v230
  %v1483 = vunpack.c.l.b16 %v231
  %v1484 = vunpack.c.h.b16 %v231
  %v1485 = vunpack.c.l.b16 %v232
  %v1486 = vunpack.c.h.b16 %v232
  %v1487 = vunpack.c.l.b16 %v233
  %v1488 = vunpack.c.h.b16 %v233
  %v1489 = vunpack.c.l.b16 %v234
  %v1490 = vunpack.c.h.b16 %v234
  %v1491 = vunpack.c.l.b16 %v235
  %v1492 = vunpack.c.h.b16 %v235
  %v1493 = vunpack.c.l.b16 %v236
  %v1494 = vunpack.c.h.b16 %v236
  %v1495 = vunpack.c.l.b16 %v237
  %v1496 = vunpack.c.h.b16 %v237
  %v1497 = vunpack.c.l.b16 %v238
  %v1498 = vunpack.c.h.b16 %v238
  %v1499 = vunpack.c.l.b16 %v239
  %v1500 = vunpack.c.h.b16 %v239
  %v1501 = vunpack.c.l.b16 %v240
  %v1502 = vunpack.c.h.b16 %v240
  %v1503 = vunpack.c.l.b16 %v241
  %v1504 = vunpack.c.h.b16 %v241
  %v1505 = vunpack.c.l.b16 %v242
  %v1506 = vunpack.c.h.b16 %v242
  %v1507 = vunpack.c.l.b16 %v243
  %v1508 = vunpack.c.h.b16 %v243
  %v1509 = vunpack.c.l.b16 %v244
  %v1510 = vunpack.c.h.b16 %v244
  %v1511 = vunpack.c.l.b16 %v245
  %v1512 = vunpack.c.h.b16 %v245
  %v1513 = vunpack.c.l.b16 %v246
  %v1514 = vunpack.c.h.b16 %v246
  %v1515 = vunpack.c.l.b16 %v247
  %v1516 = vunpack.c.h.b16 %v247
  %v1517 = vunpack.c.l.b16 %v248
  %v1518 = vunpack.c.h.b16 %v248
  %v1519 = vunpack.c.l.b16 %v249
  %v1520 = vunpack.c.h.b16 %v249
  %v1521 = vunpack.c.l.b16 %v250
  %v1522 = vunpack.c.h.b16 %v250
  %v1523 = vunpack.c.l.b16 %v251
  %v1524 = vunpack.c.h.b16 %v251
  %v1525 = vunpack.c.l.b16 %v252
  %v1526 = vunpack.c.h.b16 %v252
  %v1527 = vunpack.c.l.b16 %v253
  %v1528 = vunpack.c.h.b16 %v253
  %v1529 = vunpack.c.l.b16 %v254
  %v1530 = vunpack.c.l.b16 %v255
  %v1531 = vunpack.c.h.b16 %v255
  %v1532 = vunpack.c.l.b16 %v256
  %v1533 = vunpack.c.h.b16 %v256
  %v1534 = vunpack.c.l.b16 %v257
  %v1535 = vunpack.c.h.b16 %v257
  %v1536 = vunpack.c.l.b16 %v258
  %v1537 = vunpack.c.h.b16 %v258
  %v1538 = vunpack.c.l.b16 %v259
  %v1539 = vunpack.c.h.b16 %v259
  %v1540 = vunpack.c.l.b16 %v260
  %v1541 = vunpack.c.h.b16 %v260
  %v1542 = vunpack.c.l.b16 %v261
  %v1543 = vunpack.c.h.b16 %v261
  %v1544 = vunpack.c.l.b16 %v262
  %v1545 = vunpack.c.h.b16 %v262
  %v1546 = vunpack.c.l.b16 %v263
  %v1547 = vunpack.c.h.b16 %v263
  %v1548 = vunpack.c.l.b16 %v264
  %v1549 = vunpack.c.h.b16 %v264
  %v1550 = vunpack.c.l.b16 %v265
  %v1551 = vunpack.c.h.b16 %v265
  %v1552 = vunpack.c.l.b16 %v266
  %v1553 = vunpack.c.h.b16 %v266
  %v1554 = vunpack.c.l.b16 %v267
  %v1555 = vunpack.c.h.b16 %v267
  %v1556 = vunpack.c.l.b16 %v268
  %v1557 = vunpack.c.h.b16 %v268
  %v1558 = vunpack.c.l.b16 %v269
  %v1559 = vunpack.c.h.b16 %v269
  %v1560 = vunpack.c.l.b16 %v270
  %v1561 = vunpack.c.h.b16 %v270
  %v1562 = vunpack.c.l.b16 %v271
  %v1563 = vunpack.c.h.b16 %v271
  %v1564 = vunpack.c.l.b16 %v272
  %v1565 = vunpack.c.h.b16 %v272
  %v1566 = vunpack.c.l.b16 %v273
  %v1567 = vunpack.c.h.b16 %v273
  %v1568 = vunpack.c.l.b16 %v274
  %v1569 = vunpack.c.h.b16 %v274
  %v1570 = vunpack.c.l.b16 %v275
  %v1571 = vunpack.c.h.b16 %v275
  %v1572 = vunpack.c.l.b16 %v276
  %v1573 = vunpack.c.h.b16 %v276
  %v1574 = vunpack.c.l.b16 %v277
  %v1575 = vunpack.c.h.b16 %v277
  %v1576 = vunpack.c.l.b16 %v278
  %v1577 = vunpack.c.h.b16 %v278
  %v1578 = vunpack.c.l.b16 %v279
  %v1579 = vunpack.c.l.b16 %v280
  %v1580 = vunpack.c.h.b16 %v280
  %v1581 = vunpack.c.l.b16 %v281
  %v1582 = vunpack.c.h.b16 %v281
  %v1583 = vunpack.c.l.b16 %v282
  %v1584 = vunpack.c.h.b16 %v282
  %v1585 = vunpack.c.l.b16 %v283
  %v1586 = vunpack.c.h.b16 %v283
  %v1587 = vunpack.c.l.b16 %v284
  %v1588 = vunpack.c.h.b16 %v284
  %v1589 = vunpack.c.l.b16 %v285
  %v1590 = vunpack.c.h.b16 %v285
  %v1591 = vunpack.c.l.b16 %v286
  %v1592 = vunpack.c.h.b16 %v286
  %v1593 = vunpack.c.l.b16 %v287
  %v1594 = vunpack.c.h.b16 %v287
  %v1595 = vunpack.c.l.b16 %v288
  %v1596 = vunpack.c.h.b16 %v288
  %v1597 = vunpack.c.l.b16 %v289
  %v1598 = vunpack.c.h.b16 %v289
  %v1599 = vunpack.c.l.b16 %v290
  %v1600 = vunpack.c.h.b16 %v290
  %v1601 = vunpack.c.l.b16 %v291
  %v1602 = vunpack.c.h.b16 %v291
  %v1603 = vunpack.c.l.b16 %v292
  %v1604 = vunpack.c.h.b16 %v292
  %v1605 = vunpack.c.l.b16 %v293
  %v1606 = vunpack.c.h.b16 %v293
  %v1607 = vunpack.c.l.b16 %v294
  %v1608 = vunpack.c.h.b16 %v294
  %v1609 = vunpack.c.l.b16 %v295
  %v1610 = vunpack.c.h.b16 %v295
  %v1611 = vunpack.c.l.b16 %v296
  %v1612 = vunpack.c.h.b16 %v296
  %v1613 = vunpack.c.l.b16 %v297
  %v1614 = vunpack.c.h.b16 %v297
  %v1615 = vunpack.c.l.b16 %v298
  %v1616 = vunpack.c.h.b16 %v298
  %v1617 = vunpack.c.l.b16 %v299
  %v1618 = vunpack.c.h.b16 %v299
  %v1619 = vunpack.c.l.b16 %v300
  %v1620 = vunpack.c.h.b16 %v300
  %v1621 = vunpack.c.l.b16 %v301
  %v1622 = vunpack.c.h.b16 %v301
  %v1623 = vunpack.c.l.b16 %v302
  %v1624 = vunpack.c.h.b16 %v302
  %v1625 = vunpack.c.l.b16 %v303
  %v1626 = vunpack.c.h.b16 %v303
  %v1627 = vunpack.c.l.b16 %v304
  %v1628 = vunpack.c.l.b16 %v305
  %v1629 = vunpack.c.h.b16 %v305
  %v1630 = vunpack.c.l.b16 %v306
  %v1631 = vunpack.c.h.b16 %v306
  %v1632 = vunpack.c.l.b16 %v307
  %v1633 = vunpack.c.h.b16 %v307
  %v1634 = vunpack.c.l.b16 %v308
  %v1635 = vunpack.c.h.b16 %v308
  %v1636 = vunpack.c.l.b16 %v309
  %v1637 = vunpack.c.h.b16 %v309
  %v1638 = vunpack.c.l.b16 %v310
  %v1639 = vunpack.c.h.b16 %v310
  %v1640 = vunpack.c.l.b16 %v311
  %v1641 = vunpack.c.h.b16 %v311
  %v1642 = vunpack.c.l.b16 %v312
  %v1643 = vunpack.c.h.b16 %v312
  %v1644 = vunpack.c.l.b16 %v313
  %v1645 = vunpack.c.h.b16 %v313
  %v1646 = vunpack.c.l.b16 %v314
  %v1647 = vunpack.c.h.b16 %v314
  %v1648 = vunpack.c.l.b16 %v315
  %v1649 = vunpack.c.h.b16 %v315
  %v1650 = vunpack.c.l.b16 %v316
  %v1651 = vunpack.c.h.b16 %v316
  %v1652 = vunpack.c.l.b16 %v317
  %v1653 = vunpack.c.h.b16 %v317
  %v1654 = vunpack.c.l.b16 %v318
  %v1655 = vunpack.c.h.b16 %v318
  %v1656 = vunpack.c.l.b16 %v319
  %v1657 = vunpack.c.h.b16 %v319
  %v1658 = vunpack.c.l.b16 %v320
  %v1659 = vunpack.c.h.b16 %v320
  %v1660 = vunpack.c.l.b16 %v321
  %v1661 = vunpack.c.h.b16 %v321
  %v1662 = vunpack.c.l.b16 %v322
  %v1663 = vunpack.c.h.b16 %v322
  %v1664 = vunpack.c.l.b16 %v323
  %v1665 = vunpack.c.h.b16 %v323
  %v1666 = vunpack.c.l.b16 %v324
  %v1667 = vunpack.c.h.b16 %v324
  %v1668 = vunpack.c.l.b16 %v325
  %v1669 = vunpack.c.h.b16 %v325
  %v1670 = vunpack.c.l.b16 %v326
  %v1671 = vunpack.c.h.b16 %v326
  %v1672 = vunpack.c.l.b16 %v327
  %v1673 = vunpack.c.h.b16 %v327
  %v1674 = vunpack.c.l.b16 %v328
  %v1675 = vunpack.c.h.b16 %v328
  %v1676 = vunpack.c.l.b16 %v329
  %v1677 = vunpack.c.l.b16 %v330
  %v1678 = vunpack.c.h.b16 %v330
  %v1679 = vunpack.c.l.b16 %v331
  %v1680 = vunpack.c.h.b16 %v331
  %v1681 = vunpack.c.l.b16 %v332
  %v1682 = vunpack.c.h.b16 %v332
  %v1683 = vunpack.c.l.b16 %v333
  %v1684 = vunpack.c.h.b16 %v333
  %v1685 = vunpack.c.l.b16 %v334
  %v1686 = vunpack.c.h.b16 %v334
  %v1687 = vunpack.c.l.b16 %v335
  %v1688 = vunpack.c.h.b16 %v335
  %v1689 = vunpack.c.l.b16 %v336
  %v1690 = vunpack.c.h.b16 %v336
  %v1691 = vunpack.c.l.b16 %v337
  %v1692 = vunpack.c.h.b16 %v337
  %v1693 = vunpack.c.l.b16 %v338
  %v1694 = vunpack.c.h.b16 %v338
  %v1695 = vunpack.c.l.b16 %v339
  %v1696 = vunpack.c.h.b16 %v339
  %v1697 = vunpack.c.l.b16 %v340
  %v1698 = vunpack.c.h.b16 %v340
  %v1699 = vunpack.c.l.b16 %v341
  %v1700 = vunpack.c.h.b16 %v341
  %v1701 = vunpack.c.l.b16 %v342
  %v1702 = vunpack.c.h.b16 %v342
  %v1703 = vunpack.c.l.b16 %v343
  %v1704 = vunpack.c.h.b16 %v343
  %v1705 = vunpack.c.l.b16 %v344
  %v1706 = vunpack.c.h.b16 %v344
  %v1707 = vunpack.c.l.b16 %v345
  %v1708 = vunpack.c.h.b16 %v345
  %v1709 = vunpack.c.l.b16 %v346
  %v1710 = vunpack.c.h.b16 %v346
  %v1711 = vunpack.c.l.b16 %v347
  %v1712 = vunpack.c.h.b16 %v347
  %v1713 = vunpack.c.l.b16 %v348
  %v1714 = vunpack.c.h.b16 %v348
  %v1715 = vunpack.c.l.b16 %v349
  %v1716 = vunpack.c.h.b16 %v349
  %v1717 = vunpack.c.l.b16 %v350
  %v1718 = vunpack.c.h.b16 %v350
  %v1719 = vunpack.c.l.b16 %v351
  %v1720 = vunpack.c.h.b16 %v351
  %v1721 = vunpack.c.l.b16 %v352
  %v1722 = vunpack.c.h.b16 %v352
  %v1723 = vunpack.c.l.b16 %v353
  %v1724 = vunpack.c.h.b16 %v353
  %v1725 = vunpack.c.l.b16 %v354
  %v1726 = vunpack.c.l.b16 %v355
  %v1727 = vunpack.c.h.b16 %v355
  %v1728 = vunpack.c.l.b16 %v356
  %v1729 = vunpack.c.h.b16 %v356
  %v1730 = vunpack.c.l.b16 %v357
  %v1731 = vunpack.c.h.b16 %v357
  %v1732 = vunpack.c.l.b16 %v358
  %v1733 = vunpack.c.h.b16 %v358
  %v1734 = vunpack.c.l.b16 %v359
  %v1735 = vunpack.c.h.b16 %v359
  %v1736 = vunpack.c.l.b16 %v360
  %v1737 = vunpack.c.h.b16 %v360
  %v1738 = vunpack.c.l.b16 %v361
  %v1739 = vunpack.c.h.b16 %v361
  %v1740 = vunpack.c.l.b16 %v362
  %v1741 = vunpack.c.h.b16 %v362
  %v1742 = vunpack.c.l.b16 %v363
  %v1743 = vunpack.c.h.b16 %v363
  %v1744 = vunpack.c.l.b16 %v364
  %v1745 = vunpack.c.h.b16 %v364
  %v1746 = vunpack.c.l.b16 %v365
  %v1747 = vunpack.c.h.b16 %v365
  %v1748 = vunpack.c.l.b16 %v366
  %v1749 = vunpack.c.h.b16 %v366
  %v1750 = vunpack.c.l.b16 %v367
  %v1751 = vunpack.c.h.b16 %v367
  %v1752 = vunpack.c.l.b16 %v368
  %v1753 = vunpack.c.h.b16 %v368
  %v1754 = vunpack.c.l.b16 %v369
  %v1755 = vunpack.c.h.b16 %v369
  %v1756 = vunpack.c.l.b16 %v370
  %v1757 = vunpack.c.h.b16 %v370
  %v1758 = vunpack.c.l.b16 %v371
  %v1759 = vunpack.c.h.b16 %v371
  %v1760 = vunpack.c.l.b16 %v372
  %v1761 = vunpack.c.h.b16 %v372
  %v1762 = vunpack.c.l.b16 %v373
  %v1763 = vunpack.c.h.b16 %v373
  %v1764 = vunpack.c.l.b16 %v374
  %v1765 = vunpack.c.h.b16 %v374
  %v1766 = vunpack.c.l.b16 %v375
  %v1767 = vunpack.c.h.b16 %v375
  %v1768 = vunpack.c.l.b16 %v376
  %v1769 = vunpack.c.h.b16 %v376
  %v1770 = vunpack.c.l.b16 %v377
  %v1771 = vunpack.c.h.b16 %v377
  %v1772 = vunpack.c.l.b16 %v378
  %v1773 = vunpack.c.h.b16 %v378
  %v1774 = vunpack.c.l.b16 %v379
  %v1775 = vunpack.c.l.b16 %v380
  %v1776 = vunpack.c.h.b16 %v380
  %v1777 = vunpack.c.l.b16 %v381
  %v1778 = vunpack.c.h.b16 %v381
  %v1779 = vunpack.c.l.b16 %v382
  %v1780 = vunpack.c.h.b16 %v382
  %v1781 = vunpack.c.l.b16 %v383
  %v1782 = vunpack.c.h.b16 %v383
  %v1783 = vunpack.c.l.b16 %v384
  %v1784 = vunpack.c.h.b16 %v384
  %v1785 = vunpack.c.l.b16 %v385
  %v1786 = vunpack.c.h.b16 %v385
  %v1787 = vunpack.c.l.b16 %v386
  %v1788 = vunpack.c.h.b16 %v386
  %v1789 = vunpack.c.l.b16 %v387
  %v1790 = vunpack.c.h.b16 %v387
  %v1791 = vunpack.c.l.b16 %v388
  %v1792 = vunpack.c.h.b16 %v388
  %v1793 = vunpack.c.l.b16 %v389
  %v1794 = vunpack.c.h.b16 %v389
  %v1795 = vunpack.c.l.b16 %v390
  %v1796 = vunpack.c.h.b16 %v390
  %v1797 = vunpack.c.l.b16 %v391
  %v1798 = vunpack.c.h.b16 %v391
  %v1799 = vunpack.c.l.b16 %v392
  %v1800 = vunpack.c.h.b16 %v392
  %v1801 = vunpack.c.l.b16 %v393
  %v1802 = vunpack.c.h.b16 %v393
  %v1803 = vunpack.c.l.b16 %v394
  %v1804 = vunpack.c.h.b16 %v394
  %v1805 = vunpack.c.l.b16 %v395
  %v1806 = vunpack.c.h.b16 %v395
  %v1807 = vunpack.c.l.b16 %v396
  %v1808 = vunpack.c.h.b16 %v396
  %v1809 = vunpack.c.l.b16 %v397
  %v1810 = vunpack.c.h.b16 %v397
  %v1811 = vunpack.c.l.b16 %v398
  %v1812 = vunpack.c.h.b16 %v398
  %v1813 = vunpack.c.l.b16 %v399
  %v1814 = vunpack.c.h.b16 %v399
  %v1815 = vunpack.c.l.b16 %v400
  %v1816 = vunpack.c.h.b16 %v400
  %v1817 = vunpack.c.l.b16 %v401
  %v1818 = vunpack.c.h.b16 %v401
  %v1819 = vunpack.c.l.b16 %v402
  %v1820 = vunpack.c.h.b16 %v402
  %v1821 = vunpack.c.l.b16 %v403
  %v1822 = vunpack.c.h.b16 %v403
  %v1823 = vunpack.c.l.b16 %v404
  %v1824 = vunpack.c.l.b16 %v405
  %v1825 = vunpack.c.h.b16 %v405
  %v1826 = vunpack.c.l.b16 %v406
  %v1827 = vunpack.c.h.b16 %v406
  %v1828 = vunpack.c.l.b16 %v407
  %v1829 = vunpack.c.h.b16 %v407
  %v1830 = vunpack.c.l.b16 %v408
  %v1831 = vunpack.c.h.b16 %v408
  %v1832 = vunpack.c.l.b16 %v409
  %v1833 = vunpack.c.h.b16 %v409
  %v1834 = vunpack.c.l.b16 %v410
  %v1835 = vunpack.c.h.b16 %v410
  %v1836 = vunpack.c.l.b16 %v411
  %v1837 = vunpack.c.h.b16 %v411
  %v1838 = vunpack.c.l.b16 %v412
  %v1839 = vunpack.c.h.b16 %v412
  %v1840 = vunpack.c.l.b16 %v413
  %v1841 = vunpack.c.h.b16 %v413
  %v1842 = vunpack.c.l.b16 %v414
  %v1843 = vunpack.c.h.b16 %v414
  %v1844 = vunpack.c.l.b16 %v415
  %v1845 = vunpack.c.h.b16 %v415
  %v1846 = vunpack.c.l.b16 %v416
  %v1847 = vunpack.c.h.b16 %v416
  %v1848 = vunpack.c.l.b16 %v417
  %v1849 = vunpack.c.h.b16 %v417
  %v1850 = vunpack.c.l.b16 %v418
  %v1851 = vunpack.c.h.b16 %v418
  %v1852 = vunpack.c.l.b16 %v419
  %v1853 = vunpack.c.h.b16 %v419
  %v1854 = vunpack.c.l.b16 %v420
  %v1855 = vunpack.c.h.b16 %v420
  %v1856 = vunpack.c.l.b16 %v421
  %v1857 = vunpack.c.h.b16 %v421
  %v1858 = vunpack.c.l.b16 %v422
  %v1859 = vunpack.c.h.b16 %v422
  %v1860 = vunpack.c.l.b16 %v423
  %v1861 = vunpack.c.h.b16 %v423
  %v1862 = vunpack.c.l.b16 %v424
  %v1863 = vunpack.c.h.b16 %v424
  %v1864 = vunpack.c.l.b16 %v425
  %v1865 = vunpack.c.h.b16 %v425
  %v1866 = vunpack.c.l.b16 %v426
  %v1867 = vunpack.c.h.b16 %v426
  %v1868 = vunpack.c.l.b16 %v427
  %v1869 = vunpack.c.h.b16 %v427
  %v1870 = vunpack.c.l.b16 %v428
  %v1871 = vunpack.c.h.b16 %v428
  %v1872 = vunpack.c.l.b16 %v429
  %v1873 = vpack.c.b16 %v1138, %v1089
  %v1874 = vpack.c.b16 %v1139, %v1090
  %v1875 = vpack.c.b16 %v1140, %v1091
  %v1876 = vpack.c.b16 %v1141, %v1092
  %v1877 = vpack.c.b16 %v1142, %v1093
  %v1878 = vpack.c.b16 %v1143, %v1094
  %v1879 = vpack.c.b16 %v1144, %v1095
  %v1880 = vpack.c.b16 %v1145, %v1096
  %v1881 = vpack.c.b16 %v1146, %v1097
  %v1882 = vpack.c.b16 %v1147, %v1098
  %v1883 = vpack.c.b16 %v1148, %v1099
  %v1884 = vpack.c.b16 %v1149, %v1100
  %v1885 = vpack.c.b16 %v1150, %v1101
  %v1886 = vpack.c.b16 %v1151, %v1102
  %v1887 = vpack.c.b16 %v1152, %v1103
  %v1888 = vpack.c.b16 %v1153, %v1104
  %v1889 = vpack.c.b16 %v1154, %v1105
  %v1890 = vpack.c.b16 %v1155, %v1106
  %v1891 = vpack.c.b16 %v1156, %v1107
  %v1892 = vpack.c.b16 %v1157, %v1108
  %v1893 = vpack.c.b16 %v1158, %v1109
  %v1894 = vpack.c.b16 %v1159, %v1110
  %v1895 = vpack.c.b16 %v1160, %v1111
  %v1896 = vpack.c.b16 %v1161, %v1112
  %v1897 = vpack.c.b16 %v1162, %v1113
  %v1898 = vpack.c.b16 %v1163, %v1114
  %v1899 = vpack.c.b16 %v1164, %v1115
  %v1900 = vpack.c.b16 %v1165, %v1116
  %v1901 = vpack.c.b16 %v1166, %v1117
  %v1902 = vpack.c.b16 %v1167, %v1118
  %v1903 = vpack.c.b16 %v1168, %v1119
  %v1904 = vpack.c.b16 %v1169, %v1120
  %v1905 = vpack.c.b16 %v1170, %v1121
  %v1906 = vpack.c.b16 %v1171, %v1122
  %v1907 = vpack.c.b16 %v1172, %v1123
  %v1908 = vpack.c.b16 %v1173, %v1124
  %v1909 = vpack.c.b16 %v1174, %v1125
  %v1910 = vpack.c.b16 %v1175, %v1126
  %v1911 = vpack.c.b16 %v1176, %v1127
  %v1912 = vpack.c.b16 %v1177, %v1128
  %v1913 = vpack.c.b16 %v1178, %v1129
  %v1914 = vpack.c.b16 %v1179, %v1130
  %v1915 = vpack.c.b16 %v1180, %v1131
  %v1916 = vpack.c.b16 %v1181, %v1132
  %v1917 = vpack.c.b16 %v1182, %v1133
  %v1918 = vpack.c.b16 %v1183, %v1134
  %v1919 = vpack.c.b16 %v1184, %v1135
  %v1920 = vpack.c.b16 %v1185, %v1136
  %v1921 = vpack.c.b16 %v1186, %v1137
  %v1922 = vpack.c.b16 %v1236, %v1187
  %v1923 = vpack.c.b16 %v1237, %v1188
  %v1924 = vpack.c.b16 %v1238, %v1189
  %v1925 = vpack.c.b16 %v1239, %v1190
  %v1926 = vpack.c.b16 %v1240, %v1191
  %v1927 = vpack.c.b16 %v1241, %v1192
  %v1928 = vpack.c.b16 %v1242, %v1193
  %v1929 = vpack.c.b16 %v1243, %v1194
  %v1930 = vpack.c.b16 %v1244, %v1195
  %v1931 = vpack.c.b16 %v1245, %v1196
  %v1932 = vpack.c.b16 %v1246, %v1197
  %v1933 = vpack.c.b16 %v1247, %v1198
  %v1934 = vpack.c.b16 %v1248, %v1199
  %v1935 = vpack.c.b16 %v1249, %v1200
  %v1936 = vpack.c.b16 %v1250, %v1201
  %v1937 = vpack.c.b16 %v1251, %v1202
  %v1938 = vpack.c.b16 %v1252, %v1203
  %v1939 = vpack.c.b16 %v1253, %v1204
  %v1940 = vpack.c.b16 %v1254, %v1205
  %v1941 = vpack.c.b16 %v1255, %v1206
  %v1942 = vpack.c.b16 %v1256, %v1207
  %v1943 = vpack.c.b16 %v1257, %v1208
  %v1944 = vpack.c.b16 %v1258, %v1209
  %v1945 = vpack.c.b16 %v1259, %v1210
  %v1946 = vpack.c.b16 %v1260, %v1211
  %v1947 = vpack.c.b16 %v1261, %v1212
  %v1948 = vpack.c.b16 %v1262, %v1213
  %v1949 = vpack.c.b16 %v1263, %v1214
  %v1950 = vpack.c.b16 %v1264, %v1215
  %v1951 = vpack.c.b16 %v1265, %v1216
  %v1952 = vpack.c.b16 %v1266, %v1217
  %v1953 = vpack.c.b16 %v1267, %v1218
  %v1954 = vpack.c.b16 %v1268, %v1219
  %v1955 = vpack.c.b16 %v1269, %v1220
  %v1956 = vpack.c.b16 %v1270, %v1221
  %v1957 = vpack.c.b16 %v1271, %v1222
  %v1958 = vpack.c.b16 %v1272, %v1223
  %v1959 = vpack.c.b16 %v1273, %v1224
  %v1960 = vpack.c.b16 %v1274, %v1225
  %v1961 = vpack.c.b16 %v1275, %v1226
  %v1962 = vpack.c.b16 %v1276, %v1227
  %v1963 = vpack.c.b16 %v1277, %v1228
  %v1964 = vpack.c.b16 %v1278, %v1229
  %v1965 = vpack.c.b16 %v1279, %v1230
  %v1966 = vpack.c.b16 %v1280, %v1231
  %v1967 = vpack.c.b16 %v1281, %v1232
  %v1968 = vpack.c.b16 %v1282, %v1233
  %v1969 = vpack.c.b16 %v1283, %v1234
  %v1970 = vpack.c.b16 %v1284, %v1235
  %v1971 = vpack.c.b16 %v1334, %v1285
  %v1972 = vpack.c.b16 %v1335, %v1286
  %v1973 = vpack.c.b16 %v1336, %v1287
  %v1974 = vpack.c.b16 %v1337, %v1288
  %v1975 = vpack.c.b16 %v1338, %v1289
  %v1976 = vpack.c.b16 %v1339, %v1290
  %v1977 = vpack.c.b16 %v1340, %v1291
  %v1978 = vpack.c.b16 %v1341, %v1292
  %v1979 = vpack.c.b16 %v1342, %v1293
  %v1980 = vpack.c.b16 %v1343, %v1294
  %v1981 = vpack.c.b16 %v1344, %v1295
  %v1982 = vpack.c.b16 %v1345, %v1296
  %v1983 = vpack.c.b16 %v1346, %v1297
  %v1984 = vpack.c.b16 %v1347, %v1298
  %v1985 = vpack.c.b16 %v1348, %v1299
  %v1986 = vpack.c.b16 %v1349, %v1300
  %v1987 = vpack.c.b16 %v1350, %v1301
  %v1988 = vpack.c.b16 %v1351, %v1302
  %v1989 = vpack.c.b16 %v1352, %v1303
  %v1990 = vpack.c.b16 %v1353, %v1304
  %v1991 = vpack.c.b16 %v1354, %v1305
  %v1992 = vpack.c.b16 %v1355, %v1306
  %v1993 = vpack.c.b16 %v1356, %v1307
  %v1994 = vpack.c.b16 %v1357, %v1308
  %v1995 = vpack.c.b16 %v1358, %v1309
  %v1996 = vpack.c.b16 %v1359, %v1310
  %v1997 = vpack.c.b16 %v1360, %v1311
  %v1998 = vpack.c.b16 %v1361, %v1312
  %v1999 = vpack.c.b16 %v1362, %v1313
  %v2000 = vpack.c.b16 %v1363, %v1314
  %v2001 = vpack.c.b16 %v1364, %v1315
  %v2002 = vpack.c.b16 %v1365, %v1316
  %v2003 = vpack.c.b16 %v1366, %v1317
  %v2004 = vpack.c.b16 %v1367, %v1318
  %v2005 = vpack.c.b16 %v1368, %v1319
  %v2006 = vpack.c.b16 %v1369, %v1320
  %v2007 = vpack.c.b16 %v1370, %v1321
  %v2008 = vpack.c.b16 %v1371, %v1322
  %v2009 = vpack.c.b16 %v1372, %v1323
  %v2010 = vpack.c.b16 %v1373, %v1324
  %v2011 = vpack.c.b16 %v1374, %v1325
  %v2012 = vpack.c.b16 %v1375, %v1326
  %v2013 = vpack.c.b16 %v1376, %v1327
  %v2014 = vpack.c.b16 %v1377, %v1328
  %v2015 = vpack.c.b16 %v1378, %v1329
  %v2016 = vpack.c.b16 %v1379, %v1330
  %v2017 = vpack.c.b16 %v1380, %v1331
  %v2018 = vpack.c.b16 %v1381, %v1332
  %v2019 = vpack.c.b16 %v1382, %v1333
  %v2020 = vpack.c.b16 %v1432, %v1383
  %v2021 = vpack.c.b16 %v1433, %v1384
  %v2022 = vpack.c.b16 %v1434, %v1385
  %v2023 = vpack.c.b16 %v1435, %v1386
  %v2024 = vpack.c.b16 %v1436, %v1387
  %v2025 = vpack.c.b16 %v1437, %v1388
  %v2026 = vpack.c.b16 %v1438, %v1389
  %v2027 = vpack.c.b16 %v1439, %v1390
  %v2028 = vpack.c.b16 %v1440, %v1391
  %v2029 = vpack.c.b16 %v1441, %v1392
  %v2030 = vpack.c.b16 %v1442, %v1393
  %v2031 = vpack.c.b16 %v1443, %v1394
  %v2032 = vpack.c.b16 %v1444, %v1395
  %v2033 = vpack.c.b16 %v1445, %v1396
  %v2034 = vpack.c.b16 %v1446, %v1397
  %v2035 = vpack.c.b16 %v1447, %v1398
  %v2036 = vpack.c.b16 %v1448, %v1399
  %v2037 = vpack.c.b16 %v1449, %v1400
  %v2038 = vpack.c.b16 %v1450, %v1401
  %v2039 = vpack.c.b16 %v1451, %v1402
  %v2040 = vpack.c.b16 %v1452, %v1403
  %v2041 = vpack.c.b16 %v1453, %v1404
  %v2042 = vpack.c.b16 %v1454, %v1405
  %v2043 = vpack.c.b16 %v1455, %v1406
  %v2044 = vpack.c.b16 %v1456, %v1407
  %v2045 = vpack.c.b16 %v1457, %v1408
  %v2046 = vpack.c.b16 %v1458, %v1409
  %v2047 = vpack.c.b16 %v1459, %v1410
  %v2048 = vpack.c.b16 %v1460, %v1411
  %v2049 = vpack.c.b16 %v1461, %v1412
  %v2050 = vpack.c.b16 %v1462, %v1413
  %v2051 = vpack.c.b16 %v1463, %v1414
  %v2052 = vpack.c.b16 %v1464, %v1415
  %v2053 = vpack.c.b16 %v1465, %v1416
  %v2054 = vpack.c.b16 %v1466, %v1417
  %v2055 = vpack.c.b16 %v1467, %v1418
  %v2056 = vpack.c.b16 %v1468, %v1419
  %v2057 = vpack.c.b16 %v1469, %v1420
  %v2058 = vpack.c.b16 %v1470, %v1421
  %v2059 = vpack.c.b16 %v1471, %v1422
  %v2060 = vpack.c.b16 %v1472, %v1423
  %v2061 = vpack.c.b16 %v1473, %v1424
  %v2062 = vpack.c.b16 %v1474, %v1425
  %v2063 = vpack.c.b16 %v1475, %v1426
  %v2064 = vpack.c.b16 %v1476, %v1427
  %v2065 = vpack.c.b16 %v1477, %v1428
  %v2066 = vpack.c.b16 %v1478, %v1429
  %v2067 = vpack.c.b16 %v1479, %v1430
  %v2068 = vpack.c.b16 %v1480, %v1431
  %v2069 = vpack.c.b16 %v1530, %v1481
  %v2070 = vpack.c.b16 %v1531, %v1482
  %v2071 = vpack.c.b16 %v1532, %v1483
  %v2072 = vpack.c.b16 %v1533, %v1484
  %v2073 = vpack.c.b16 %v1534, %v1485
  %v2074 = vpack.c.b16 %v1535, %v1486
  %v2075 = vpack.c.b16 %v1536, %v1487
  %v2076 = vpack.c.b16 %v1537, %v1488
  %v2077 = vpack.c.b16 %v1538, %v1489
  %v2078 = vpack.c.b16 %v1539, %v1490
  %v2079 = vpack.c.b16 %v1540, %v1491
  %v2080 = vpack.c.b16 %v1541, %v1492
  %v2081 = vpack.c.b16 %v1542, %v1493
  %v2082 = vpack.c.b16 %v1543, %v1494
  %v2083 = vpack.c.b16 %v1544, %v1495
  %v2084 = vpack.c.b16 %v1545, %v1496
  %v2085 = vpack.c.b16 %v1546, %v1497
  %v2086 = vpack.c.b16 %v1547, %v1498
  %v2087 = vpack.c.b16 %v1548, %v1499
  %v2088 = vpack.c.b16 %v1549, %v1500
  %v2089 = vpack.c.b16 %v1550, %v1501
  %v2090 = vpack.c.b16 %v1551, %v1502
  %v2091 = vpack.c.b16 %v1552, %v1503
  %v2092 = vpack.c.b16 %v1553, %v1504
  %v2093 = vpack.c.b16 %v1554, %v1505
  %v2094 = vpack.c.b16 %v1555, %v1506
  %v2095 = vpack.c.b16 %v1556, %v1507
  %v2096 = vpack.c.b16 %v1557, %v1508
  %v2097 = vpack.c.b16 %v1558, %v1509
  %v2098 = vpack.c.b16 %v1559, %v1510
  %v2099 = vpack.c.b16 %v1560, %v1511
  %v2100 = vpack.c.b16 %v1561, %v1512
  %v2101 = vpack.c.b16 %v1562, %v1513
  %v2102 = vpack.c.b16 %v1563, %v1514
  %v2103 = vpack.c.b16 %v1564, %v1515
  %v2104 = vpack.c.b16 %v1565, %v1516
  %v2105 = vpack.c.b16 %v1566, %v1517
  %v2106 = vpack.c.b16 %v1567, %v1518
  %v2107 = vpack.c.b16 %v1568, %v1519
  %v2108 = vpack.c.b16 %v1569, %v1520
  %v2109 = vpack.c.b16 %v1570, %v1521
  %v2110 = vpack.c.b16 %v1571, %v1522
  %v2111 = vpack.c.b16 %v1572, %v1523
  %v2112 = vpack.c.b16 %v1573, %v1524
  %v2113 = vpack.c.b16 %v1574, %v1525
  %v2114 = vpack.c.b16 %v1575, %v1526
  %v2115 = vpack.c.b16 %v1576, %v1527
  %v2116 = vpack.c.b16 %v1577, %v1528
  %v2117 = vpack.c.b16 %v1578, %v1529
  %v2118 = vpack.c.b16 %v1628, %v1579
  %v2119 = vpack.c.b16 %v1629, %v1580
  %v2120 = vpack.c.b16 %v1630, %v1581
  %v2121 = vpack.c.b16 %v1631, %v1582
  %v2122 = vpack.c.b16 %v1632, %v1583
  %v2123 = vpack.c.b16 %v1633, %v1584
  %v2124 = vpack.c.b16 %v1634, %v1585
  %v2125 = vpack.c.b16 %v1635, %v1586
  %v2126 = vpack.c.b16 %v1636, %v1587
  %v2127 = vpack.c.b16 %v1637, %v1588
  %v2128 = vpack.c.b16 %v1638, %v1589
  %v2129 = vpack.c.b16 %v1639, %v1590
  %v2130 = vpack.c.b16 %v1640, %v1591
  %v2131 = vpack.c.b16 %v1641, %v1592
  %v2132 = vpack.c.b16 %v1642, %v1593
  %v2133 = vpack.c.b16 %v1643, %v1594
  %v2134 = vpack.c.b16 %v1644, %v1595
  %v2135 = vpack.c.b16 %v1645, %v1596
  %v2136 = vpack.c.b16 %v1646, %v1597
  %v2137 = vpack.c.b16 %v1647, %v1598
  %v2138 = vpack.c.b16 %v1648, %v1599
  %v2139 = vpack.c.b16 %v1649, %v1600
  %v2140 = vpack.c.b16 %v1650, %v1601
  %v2141 = vpack.c.b16 %v1651, %v1602
  %v2142 = vpack.c.b16 %v1652, %v1603
  %v2143 = vpack.c.b16 %v1653, %v1604
  %v2144 = vpack.c.b16 %v1654, %v1605
  %v2145 = vpack.c.b16 %v1655, %v1606
  %v2146 = vpack.c.b16 %v1656, %v1607
  %v2147 = vpack.c.b16 %v1657, %v1608
  %v2148 = vpack.c.b16 %v1658, %v1609
  %v2149 = vpack.c.b16 %v1659, %v1610
  %v2150 = vpack.c.b16 %v1660, %v1611
  %v2151 = vpack.c.b16 %v1661, %v1612
  %v2152 = vpack.c.b16 %v1662, %v1613
  %v2153 = vpack.c.b16 %v1663, %v1614
  %v2154 = vpack.c.b16 %v1664, %v1615
  %v2155 = vpack.c.b16 %v1665, %v1616
  %v2156 = vpack.c.b16 %v1666, %v1617
  %v2157 = vpack.c.b16 %v1667, %v1618
  %v2158 = vpack.c.b16 %v1668, %v1619
  %v2159 = vpack.c.b16 %v1669, %v1620
  %v2160 = vpack.c.b16 %v1670, %v1621
  %v2161 = vpack.c.b16 %v1671, %v1622
  %v2162 = vpack.c.b16 %v1672, %v1623
  %v2163 = vpack.c.b16 %v1673, %v1624
  %v2164 = vpack.c.b16 %v1674, %v1625
  %v2165 = vpack.c.b16 %v1675, %v1626
  %v2166 = vpack.c.b16 %v1676, %v1627
  %v2167 = vpack.c.b16 %v1726, %v1677
  %v2168 = vpack.c.b16 %v1727, %v1678
  %v2169 = vpack.c.b16 %v1728, %v1679
  %v2170 = vpack.c.b16 %v1729, %v1680
  %v2171 = vpack.c.b16 %v1730, %v1681
  %v2172 = vpack.c.b16 %v1731, %v1682
  %v2173 = vpack.c.b16 %v1732, %v1683
  %v2174 = vpack.c.b16 %v1733, %v1684
  %v2175 = vpack.c.b16 %v1734, %v1685
  %v2176 = vpack.c.b16 %v1735, %v1686
  %v2177 = vpack.c.b16 %v1736, %v1687
  %v2178 = vpack.c.b16 %v1737, %v1688
  %v2179 = vpack.c.b16 %v1738, %v1689
  %v2180 = vpack.c.b16 %v1739, %v1690
  %v2181 = vpack.c.b16 %v1740, %v1691
  %v2182 = vpack.c.b16 %v1741, %v1692
  %v2183 = vpack.c.b16 %v1742, %v1693
  %v2184 = vpack.c.b16 %v1743, %v1694
  %v2185 = vpack.c.b16 %v1744, %v1695
  %v2186 = vpack.c.b16 %v1745, %v1696
  %v2187 = vpack.c.b16 %v1746, %v1697
  %v2188 = vpack.c.b16 %v1747, %v1698
  %v2189 = vpack.c.b16 %v1748, %v1699
  %v2190 = vpack.c.b16 %v1749, %v1700
  %v2191 = vpack.c.b16 %v1750, %v1701
  %v2192 = vpack.c.b16 %v1751, %v1702
  %v2193 = vpack.c.b16 %v1752, %v1703
  %v2194 = vpack.c.b16 %v1753, %v1704
  %v2195 = vpack.c.b16 %v1754, %v1705
  %v2196 = vpack.c.b16 %v1755, %v1706
  %v2197 = vpack.c.b16 %v1756, %v1707
  %v2198 = vpack.c.b16 %v1757, %v1708
  %v2199 = vpack.c.b16 %v1758, %v1709
  %v2200 = vpack.c.b16 %v1759, %v1710
  %v2201 = vpack.c.b16 %v1760, %v1711
  %v2202 = vpack.c.b16 %v1761, %v1712
  %v2203 = vpack.c.b16 %v1762, %v1713
  %v2204 = vpack.c.b16 %v1763, %v1714
  %v2205 = vpack.c.b16 %v1764, %v1715
  %v2206 = vpack.c.b16 %v1765, %v1716
  %v2207 = vpack.c.b16 %v1766, %v1717
  %v2208 = vpack.c.b16 %v1767, %v1718
  %v2209 = vpack.c.b16 %v1768, %v1719
  %v2210 = vpack.c.b16 %v1769, %v1720
  %v2211 = vpack.c.b16 %v1770, %v1721
  %v2212 = vpack.c.b16 %v1771, %v1722
  %v2213 = vpack.c.b16 %v1772, %v1723
  %v2214 = vpack.c.b16 %v1773, %v1724
  %v2215 = vpack.c.b16 %v1774, %v1725
  %v2216 = vpack.c.b16 %v1824, %v1775
  %v2217 = vpack.c.b16 %v1825, %v1776
  %v2218 = vpack.c.b16 %v1826, %v1777
  %v2219 = vpack.c.b16 %v1827, %v1778
  %v2220 = vpack.c.b16 %v1828, %v1779
  %v2221 = vpack.c.b16 %v1829, %v1780
  %v2222 = vpack.c.b16 %v1830, %v1781
  %v2223 = vpack.c.b16 %v1831, %v1782
  %v2224 = vpack.c.b16 %v1832, %v1783
  %v2225 = vpack.c.b16 %v1833, %v1784
  %v2226 = vpack.c.b16 %v1834, %v1785
  %v2227 = vpack.c.b16 %v1835, %v1786
  %v2228 = vpack.c.b16 %v1836, %v1787
  %v2229 = vpack.c.b16 %v1837, %v1788
  %v2230 = vpack.c.b16 %v1838, %v1789
  %v2231 = vpack.c.b16 %v1839, %v1790
  %v2232 = vpack.c.b16 %v1840, %v1791
  %v2233 = vpack.c.b16 %v1841, %v1792
  %v2234 = vpack.c.b16 %v1842, %v1793
  %v2235 = vpack.c.b16 %v1843, %v1794
  %v2236 = vpack.c.b16 %v1844, %v1795
  %v2237 = vpack.c.b16 %v1845, %v1796
  %v2238 = vpack.c.b16 %v1846, %v1797
  %v2239 = vpack.c.b16 %v1847, %v1798
  %v2240 = vpack.c.b16 %v1848, %v1799
  %v2241 = vpack.c.b16 %v1849, %v1800
  %v2242 = vpack.c.b16 %v1850, %v1801
  %v2243 = vpack.c.b16 %v1851, %v1802
  %v2244 = vpack.c.b16 %v1852, %v1803
  %v2245 = vpack.c.b16 %v1853, %v1804
  %v2246 = vpack.c.b16 %v1854, %v1805
  %v2247 = vpack.c.b16 %v1855, %v1806
  %v2248 = vpack.c.b16 %v1856, %v1807
  %v2249 = vpack.c.b16 %v1857, %v1808
  %v2250 = vpack.c.b16 %v1858, %v1809
  %v2251 = vpack.c.b16 %v1859, %v1810
  %v2252 = vpack.c.b16 %v1860, %v1811
  %v2253 = vpack.c.b16 %v1861, %v1812
  %v2254 = vpack.c.b16 %v1862, %v1813
  %v2255 = vpack.c.b16 %v1863, %v1814
  %v2256 = vpack.c.b16 %v1864, %v1815
  %v2257 = vpack.c.b16 %v1865, %v1816
  %v2258 = vpack.c.b16 %v1866, %v1817
  %v2259 = vpack.c.b16 %v1867, %v1818
  %v2260 = vpack.c.b16 %v1868, %v1819
  %v2261 = vpack.c.b16 %v1869, %v1820
  %v2262 = vpack.c.b16 %v1870, %v1821
  %v2263 = vpack.c.b16 %v1871, %v1822
  %v2264 = vpack.c.b16 %v1872, %v1823
  %2657 = vmatprep.subr.bf16.mxu0 %v1874
  %2658 = vmatpush1.bf16.msra.mxu0 %v1873
  %2659 = vmatprep.subr.bf16.mxu0 %v1923
  %2660 = vmatpush1.bf16.msra.mxu0 %v1922
  %2661 = vmatprep.subr.bf16.mxu0 %v1972
  %2662 = vmatpush1.bf16.msra.mxu0 %v1971
  %2663 = vmatprep.subr.bf16.mxu0 %v2021
  %2664 = vmatpush1.bf16.msra.mxu0 %v2020
  %2665 = vmatprep.subr.bf16.mxu0 %v2070
  %2666 = vmatpush1.bf16.msra.mxu0 %v2069
  %2667 = vmatprep.subr.bf16.mxu0 %v2119
  %2668 = vmatpush1.bf16.msra.mxu0 %v2118
  %2669 = vmatprep.subr.bf16.mxu0 %v2168
  %2670 = vmatpush1.bf16.msra.mxu0 %v2167
  %2671 = vmatprep.subr.bf16.mxu0 %v2217
  %2672 = vmatpush1.bf16.msra.mxu0 %v2216
  %2673 = vmatprep.subr.bf16.mxu0 0
  %2674 = vmatpush1.bf16.msra.mxu0 0
  %2675 = vmatprep.subr.bf16.mxu0 0
  %2676 = vmatpush1.bf16.msra.mxu0 0
  %2677 = vmatprep.subr.bf16.mxu0 0
  %2678 = vmatpush1.bf16.msra.mxu0 0
  %2679 = vmatprep.subr.bf16.mxu0 0
  %2680 = vmatpush1.bf16.msra.mxu0 0
  %2681 = vmatprep.subr.bf16.mxu0 0
  %2682 = vmatpush1.bf16.msra.mxu0 0
  %2683 = vmatprep.subr.bf16.mxu0 0
  %2684 = vmatpush1.bf16.msra.mxu0 0
  %2685 = vmatprep.subr.bf16.mxu0 0
  %2686 = vmatpush1.bf16.msra.mxu0 0
  %2687 = vmatprep.subr.bf16.mxu0 0
  %2688 = vmatpush1.bf16.msra.mxu0 0
  %2689 = vmatprep.mubr.bf16.mxu0 0
  %2690 = vmatmul.mubr.bf16.gmra.mrb[0].mxu0 %v29
  %v2691 = vpop.f32.mrb[0].mxu0
  %v2692 = vadd.f32 %v447, %v2691
  %v2693 = vpop.f32.mrb[0].mxu0
  %v2694 = vadd.f32 %v451, %v2693
  %v2695 = vpop.f32.mrb[0].mxu0
  %v2696 = vpop.f32.mrb[0].mxu0
  %2697 = vdwg.mxu0
  %2698 = vmatprep.subr.bf16.mxu0 %v1876
  %2699 = vmatpush1.bf16.msra.mxu0 %v1875
  %2700 = vmatprep.subr.bf16.mxu0 %v1925
  %2701 = vmatpush1.bf16.msra.mxu0 %v1924
  %2702 = vmatprep.subr.bf16.mxu0 %v1974
  %2703 = vmatpush1.bf16.msra.mxu0 %v1973
  %2704 = vmatprep.subr.bf16.mxu0 %v2023
  %2705 = vmatpush1.bf16.msra.mxu0 %v2022
  %2706 = vmatprep.subr.bf16.mxu0 %v2072
  %2707 = vmatpush1.bf16.msra.mxu0 %v2071
  %2708 = vmatprep.subr.bf16.mxu0 %v2121
  %2709 = vmatpush1.bf16.msra.mxu0 %v2120
  %2710 = vmatprep.subr.bf16.mxu0 %v2170
  %2711 = vmatpush1.bf16.msra.mxu0 %v2169
  %2712 = vmatprep.subr.bf16.mxu0 %v2219
  %2713 = vmatpush1.bf16.msra.mxu0 %v2218
  %2714 = vmatprep.subr.bf16.mxu0 0
  %2715 = vmatpush1.bf16.msra.mxu0 0
  %2716 = vmatprep.subr.bf16.mxu0 0
  %2717 = vmatpush1.bf16.msra.mxu0 0
  %2718 = vmatprep.subr.bf16.mxu0 0
  %2719 = vmatpush1.bf16.msra.mxu0 0
  %2720 = vmatprep.subr.bf16.mxu0 0
  %2721 = vmatpush1.bf16.msra.mxu0 0
  %2722 = vmatprep.subr.bf16.mxu0 0
  %2723 = vmatpush1.bf16.msra.mxu0 0
  %2724 = vmatprep.subr.bf16.mxu0 0
  %2725 = vmatpush1.bf16.msra.mxu0 0
  %2726 = vmatprep.subr.bf16.mxu0 0
  %2727 = vmatpush1.bf16.msra.mxu0 0
  %2728 = vmatprep.subr.bf16.mxu0 0
  %2729 = vmatpush1.bf16.msra.mxu0 0
  %2730 = vmatprep.mubr.bf16.mxu0 0
  %2731 = vmatmul.mubr.bf16.gmra.mrb[0].mxu0 %v29
  %v2732 = vpop.f32.mrb[0].mxu0
  %v2733 = vadd.f32 %v455, %v2732
  %v2734 = vpop.f32.mrb[0].mxu0
  %v2735 = vadd.f32 %v459, %v2734
  %v2736 = vpop.f32.mrb[0].mxu0
  %v2737 = vpop.f32.mrb[0].mxu0
  %2738 = vdwg.mxu0
  %2739 = vmatprep.subr.bf16.mxu0 %v1878
  %2740 = vmatpush1.bf16.msra.mxu0 %v1877
  %2741 = vmatprep.subr.bf16.mxu0 %v1927
  %2742 = vmatpush1.bf16.msra.mxu0 %v1926
  %2743 = vmatprep.subr.bf16.mxu0 %v1976
  %2744 = vmatpush1.bf16.msra.mxu0 %v1975
  %2745 = vmatprep.subr.bf16.mxu0 %v2025
  %2746 = vmatpush1.bf16.msra.mxu0 %v2024
  %2747 = vmatprep.subr.bf16.mxu0 %v2074
  %2748 = vmatpush1.bf16.msra.mxu0 %v2073
  %2749 = vmatprep.subr.bf16.mxu0 %v2123
  %2750 = vmatpush1.bf16.msra.mxu0 %v2122
  %2751 = vmatprep.subr.bf16.mxu0 %v2172
  %2752 = vmatpush1.bf16.msra.mxu0 %v2171
  %2753 = vmatprep.subr.bf16.mxu0 %v2221
  %2754 = vmatpush1.bf16.msra.mxu0 %v2220
  %2755 = vmatprep.subr.bf16.mxu0 0
  %2756 = vmatpush1.bf16.msra.mxu0 0
  %2757 = vmatprep.subr.bf16.mxu0 0
  %2758 = vmatpush1.bf16.msra.mxu0 0
  %2759 = vmatprep.subr.bf16.mxu0 0
  %2760 = vmatpush1.bf16.msra.mxu0 0
  %2761 = vmatprep.subr.bf16.mxu0 0
  %2762 = vmatpush1.bf16.msra.mxu0 0
  %2763 = vmatprep.subr.bf16.mxu0 0
  %2764 = vmatpush1.bf16.msra.mxu0 0
  %2765 = vmatprep.subr.bf16.mxu0 0
  %2766 = vmatpush1.bf16.msra.mxu0 0
  %2767 = vmatprep.subr.bf16.mxu0 0
  %2768 = vmatpush1.bf16.msra.mxu0 0
  %2769 = vmatprep.subr.bf16.mxu0 0
  %2770 = vmatpush1.bf16.msra.mxu0 0
  %2771 = vmatprep.mubr.bf16.mxu0 0
  %2772 = vmatmul.mubr.bf16.gmra.mrb[0].mxu0 %v29
  %v2773 = vpop.f32.mrb[0].mxu0
  %v2774 = vadd.f32 %v463, %v2773
  %v2775 = vpop.f32.mrb[0].mxu0
  %v2776 = vadd.f32 %v467, %v2775
  %v2777 = vpop.f32.mrb[0].mxu0
  %v2778 = vpop.f32.mrb[0].mxu0
  %2779 = vdwg.mxu0
  %2780 = vmatprep.subr.bf16.mxu0 %v1880
  %2781 = vmatpush1.bf16.msra.mxu0 %v1879
  %2782 = vmatprep.subr.bf16.mxu0 %v1929
  %2783 = vmatpush1.bf16.msra.mxu0 %v1928
  %2784 = vmatprep.subr.bf16.mxu0 %v1978
  %2785 = vmatpush1.bf16.msra.mxu0 %v1977
  %2786 = vmatprep.subr.bf16.mxu0 %v2027
  %2787 = vmatpush1.bf16.msra.mxu0 %v2026
  %2788 = vmatprep.subr.bf16.mxu0 %v2076
  %2789 = vmatpush1.bf16.msra.mxu0 %v2075
  %2790 = vmatprep.subr.bf16.mxu0 %v2125
  %2791 = vmatpush1.bf16.msra.mxu0 %v2124
  %2792 = vmatprep.subr.bf16.mxu0 %v2174
  %2793 = vmatpush1.bf16.msra.mxu0 %v2173
  %2794 = vmatprep.subr.bf16.mxu0 %v2223
  %2795 = vmatpush1.bf16.msra.mxu0 %v2222
  %2796 = vmatprep.subr.bf16.mxu0 0
  %2797 = vmatpush1.bf16.msra.mxu0 0
  %2798 = vmatprep.subr.bf16.mxu0 0
  %2799 = vmatpush1.bf16.msra.mxu0 0
  %2800 = vmatprep.subr.bf16.mxu0 0
  %2801 = vmatpush1.bf16.msra.mxu0 0
  %2802 = vmatprep.subr.bf16.mxu0 0
  %2803 = vmatpush1.bf16.msra.mxu0 0
  %2804 = vmatprep.subr.bf16.mxu0 0
  %2805 = vmatpush1.bf16.msra.mxu0 0
  %2806 = vmatprep.subr.bf16.mxu0 0
  %2807 = vmatpush1.bf16.msra.mxu0 0
  %2808 = vmatprep.subr.bf16.mxu0 0
  %2809 = vmatpush1.bf16.msra.mxu0 0
  %2810 = vmatprep.subr.bf16.mxu0 0
  %2811 = vmatpush1.bf16.msra.mxu0 0
  %2812 = vmatprep.mubr.bf16.mxu0 0
  %2813 = vmatmul.mubr.bf16.gmra.mrb[0].mxu0 %v29
  %v2814 = vpop.f32.mrb[0].mxu0
  %v2815 = vadd.f32 %v471, %v2814
  %v2816 = vpop.f32.mrb[0].mxu0
  %v2817 = vadd.f32 %v475, %v2816
  %v2818 = vpop.f32.mrb[0].mxu0
  %v2819 = vpop.f32.mrb[0].mxu0
  %2820 = vdwg.mxu0
  %2821 = vmatprep.subr.bf16.mxu0 %v1882
  %2822 = vmatpush1.bf16.msra.mxu0 %v1881
  %2823 = vmatprep.subr.bf16.mxu0 %v1931
  %2824 = vmatpush1.bf16.msra.mxu0 %v1930
  %2825 = vmatprep.subr.bf16.mxu0 %v1980
  %2826 = vmatpush1.bf16.msra.mxu0 %v1979
  %2827 = vmatprep.subr.bf16.mxu0 %v2029
  %2828 = vmatpush1.bf16.msra.mxu0 %v2028
  %2829 = vmatprep.subr.bf16.mxu0 %v2078
  %2830 = vmatpush1.bf16.msra.mxu0 %v2077
  %2831 = vmatprep.subr.bf16.mxu0 %v2127
  %2832 = vmatpush1.bf16.msra.mxu0 %v2126
  %2833 = vmatprep.subr.bf16.mxu0 %v2176
  %2834 = vmatpush1.bf16.msra.mxu0 %v2175
  %2835 = vmatprep.subr.bf16.mxu0 %v2225
  %2836 = vmatpush1.bf16.msra.mxu0 %v2224
  %2837 = vmatprep.subr.bf16.mxu0 0
  %2838 = vmatpush1.bf16.msra.mxu0 0
  %2839 = vmatprep.subr.bf16.mxu0 0
  %2840 = vmatpush1.bf16.msra.mxu0 0
  %2841 = vmatprep.subr.bf16.mxu0 0
  %2842 = vmatpush1.bf16.msra.mxu0 0
  %2843 = vmatprep.subr.bf16.mxu0 0
  %2844 = vmatpush1.bf16.msra.mxu0 0
  %2845 = vmatprep.subr.bf16.mxu0 0
  %2846 = vmatpush1.bf16.msra.mxu0 0
  %2847 = vmatprep.subr.bf16.mxu0 0
  %2848 = vmatpush1.bf16.msra.mxu0 0
  %2849 = vmatprep.subr.bf16.mxu0 0
  %2850 = vmatpush1.bf16.msra.mxu0 0
  %2851 = vmatprep.subr.bf16.mxu0 0
  %2852 = vmatpush1.bf16.msra.mxu0 0
  %2853 = vmatprep.mubr.bf16.mxu0 0
  %2854 = vmatmul.mubr.bf16.gmra.mrb[0].mxu0 %v29
  %v2855 = vpop.f32.mrb[0].mxu0
  %v2856 = vadd.f32 %v479, %v2855
  %v2857 = vpop.f32.mrb[0].mxu0
  %v2858 = vadd.f32 %v483, %v2857
  %v2859 = vpop.f32.mrb[0].mxu0
  %v2860 = vpop.f32.mrb[0].mxu0
  %2861 = vdwg.mxu0
  %2862 = vmatprep.subr.bf16.mxu0 %v1884
  %2863 = vmatpush1.bf16.msra.mxu0 %v1883
  %2864 = vmatprep.subr.bf16.mxu0 %v1933
  %2865 = vmatpush1.bf16.msra.mxu0 %v1932
  %2866 = vmatprep.subr.bf16.mxu0 %v1982
  %2867 = vmatpush1.bf16.msra.mxu0 %v1981
  %2868 = vmatprep.subr.bf16.mxu0 %v2031
  %2869 = vmatpush1.bf16.msra.mxu0 %v2030
  %2870 = vmatprep.subr.bf16.mxu0 %v2080
  %2871 = vmatpush1.bf16.msra.mxu0 %v2079
  %2872 = vmatprep.subr.bf16.mxu0 %v2129
  %2873 = vmatpush1.bf16.msra.mxu0 %v2128
  %2874 = vmatprep.subr.bf16.mxu0 %v2178
  %2875 = vmatpush1.bf16.msra.mxu0 %v2177
  %2876 = vmatprep.subr.bf16.mxu0 %v2227
  %2877 = vmatpush1.bf16.msra.mxu0 %v2226
  %2878 = vmatprep.subr.bf16.mxu0 0
  %2879 = vmatpush1.bf16.msra.mxu0 0
  %2880 = vmatprep.subr.bf16.mxu0 0
  %2881 = vmatpush1.bf16.msra.mxu0 0
  %2882 = vmatprep.subr.bf16.mxu0 0
  %2883 = vmatpush1.bf16.msra.mxu0 0
  %2884 = vmatprep.subr.bf16.mxu0 0
  %2885 = vmatpush1.bf16.msra.mxu0 0
  %2886 = vmatprep.subr.bf16.mxu0 0
  %2887 = vmatpush1.bf16.msra.mxu0 0
  %2888 = vmatprep.subr.bf16.mxu0 0
  %2889 = vmatpush1.bf16.msra.mxu0 0
  %2890 = vmatprep.subr.bf16.mxu0 0
  %2891 = vmatpush1.bf16.msra.mxu0 0
  %2892 = vmatprep.subr.bf16.mxu0 0
  %2893 = vmatpush1.bf16.msra.mxu0 0
  %2894 = vmatprep.mubr.bf16.mxu0 0
  %2895 = vmatmul.mubr.bf16.gmra.mrb[0].mxu0 %v29
  %v2896 = vpop.f32.mrb[0].mxu0
  %v2897 = vadd.f32 %v487, %v2896
  %v2898 = vpop.f32.mrb[0].mxu0
  %v2899 = vadd.f32 %v491, %v2898
  %v2900 = vpop.f32.mrb[0].mxu0
  %v2901 = vpop.f32.mrb[0].mxu0
  %2902 = vdwg.mxu0
  %2903 = vmatprep.subr.bf16.mxu0 %v1886
  %2904 = vmatpush1.bf16.msra.mxu0 %v1885
  %2905 = vmatprep.subr.bf16.mxu0 %v1935
  %2906 = vmatpush1.bf16.msra.mxu0 %v1934
  %2907 = vmatprep.subr.bf16.mxu0 %v1984
  %2908 = vmatpush1.bf16.msra.mxu0 %v1983
  %2909 = vmatprep.subr.bf16.mxu0 %v2033
  %2910 = vmatpush1.bf16.msra.mxu0 %v2032
  %2911 = vmatprep.subr.bf16.mxu0 %v2082
  %2912 = vmatpush1.bf16.msra.mxu0 %v2081
  %2913 = vmatprep.subr.bf16.mxu0 %v2131
  %2914 = vmatpush1.bf16.msra.mxu0 %v2130
  %2915 = vmatprep.subr.bf16.mxu0 %v2180
  %2916 = vmatpush1.bf16.msra.mxu0 %v2179
  %2917 = vmatprep.subr.bf16.mxu0 %v2229
  %2918 = vmatpush1.bf16.msra.mxu0 %v2228
  %2919 = vmatprep.subr.bf16.mxu0 0
  %2920 = vmatpush1.bf16.msra.mxu0 0
  %2921 = vmatprep.subr.bf16.mxu0 0
  %2922 = vmatpush1.bf16.msra.mxu0 0
  %2923 = vmatprep.subr.bf16.mxu0 0
  %2924 = vmatpush1.bf16.msra.mxu0 0
  %2925 = vmatprep.subr.bf16.mxu0 0
  %2926 = vmatpush1.bf16.msra.mxu0 0
  %2927 = vmatprep.subr.bf16.mxu0 0
  %2928 = vmatpush1.bf16.msra.mxu0 0
  %2929 = vmatprep.subr.bf16.mxu0 0
  %2930 = vmatpush1.bf16.msra.mxu0 0
  %2931 = vmatprep.subr.bf16.mxu0 0
  %2932 = vmatpush1.bf16.msra.mxu0 0
  %2933 = vmatprep.subr.bf16.mxu0 0
  %2934 = vmatpush1.bf16.msra.mxu0 0
  %2935 = vmatprep.mubr.bf16.mxu0 0
  %2936 = vmatmul.mubr.bf16.gmra.mrb[0].mxu0 %v29
  %v2937 = vpop.f32.mrb[0].mxu0
  %v2938 = vadd.f32 %v495, %v2937
  %v2939 = vpop.f32.mrb[0].mxu0
  %v2940 = vadd.f32 %v499, %v2939
  %v2941 = vpop.f32.mrb[0].mxu0
  %v2942 = vpop.f32.mrb[0].mxu0
  %2943 = vdwg.mxu0
  %2944 = vmatprep.subr.bf16.mxu0 %v1888
  %2945 = vmatpush1.bf16.msra.mxu0 %v1887
  %2946 = vmatprep.subr.bf16.mxu0 %v1937
  %2947 = vmatpush1.bf16.msra.mxu0 %v1936
  %2948 = vmatprep.subr.bf16.mxu0 %v1986
  %2949 = vmatpush1.bf16.msra.mxu0 %v1985
  %2950 = vmatprep.subr.bf16.mxu0 %v2035
  %2951 = vmatpush1.bf16.msra.mxu0 %v2034
  %2952 = vmatprep.subr.bf16.mxu0 %v2084
  %2953 = vmatpush1.bf16.msra.mxu0 %v2083
  %2954 = vmatprep.subr.bf16.mxu0 %v2133
  %2955 = vmatpush1.bf16.msra.mxu0 %v2132
  %2956 = vmatprep.subr.bf16.mxu0 %v2182
  %2957 = vmatpush1.bf16.msra.mxu0 %v2181
  %2958 = vmatprep.subr.bf16.mxu0 %v2231
  %2959 = vmatpush1.bf16.msra.mxu0 %v2230
  %2960 = vmatprep.subr.bf16.mxu0 0
  %2961 = vmatpush1.bf16.msra.mxu0 0
  %2962 = vmatprep.subr.bf16.mxu0 0
  %2963 = vmatpush1.bf16.msra.mxu0 0
  %2964 = vmatprep.subr.bf16.mxu0 0
  %2965 = vmatpush1.bf16.msra.mxu0 0
  %2966 = vmatprep.subr.bf16.mxu0 0
  %2967 = vmatpush1.bf16.msra.mxu0 0
  %2968 = vmatprep.subr.bf16.mxu0 0
  %2969 = vmatpush1.bf16.msra.mxu0 0
  %2970 = vmatprep.subr.bf16.mxu0 0
  %2971 = vmatpush1.bf16.msra.mxu0 0
  %2972 = vmatprep.subr.bf16.mxu0 0
  %2973 = vmatpush1.bf16.msra.mxu0 0
  %2974 = vmatprep.subr.bf16.mxu0 0
  %2975 = vmatpush1.bf16.msra.mxu0 0
  %2976 = vmatprep.mubr.bf16.mxu0 0
  %2977 = vmatmul.mubr.bf16.gmra.mrb[0].mxu0 %v29
  %v2978 = vpop.f32.mrb[0].mxu0
  %v2979 = vadd.f32 %v503, %v2978
  %v2980 = vpop.f32.mrb[0].mxu0
  %v2981 = vadd.f32 %v507, %v2980
  %v2982 = vpop.f32.mrb[0].mxu0
  %v2983 = vpop.f32.mrb[0].mxu0
  %2984 = vdwg.mxu0
  %2985 = vmatprep.subr.bf16.mxu0 %v1890
  %2986 = vmatpush1.bf16.msra.mxu0 %v1889
  %2987 = vmatprep.subr.bf16.mxu0 %v1939
  %2988 = vmatpush1.bf16.msra.mxu0 %v1938
  %2989 = vmatprep.subr.bf16.mxu0 %v1988
  %2990 = vmatpush1.bf16.msra.mxu0 %v1987
  %2991 = vmatprep.subr.bf16.mxu0 %v2037
  %2992 = vmatpush1.bf16.msra.mxu0 %v2036
  %2993 = vmatprep.subr.bf16.mxu0 %v2086
  %2994 = vmatpush1.bf16.msra.mxu0 %v2085
  %2995 = vmatprep.subr.bf16.mxu0 %v2135
  %2996 = vmatpush1.bf16.msra.mxu0 %v2134
  %2997 = vmatprep.subr.bf16.mxu0 %v2184
  %2998 = vmatpush1.bf16.msra.mxu0 %v2183
  %2999 = vmatprep.subr.bf16.mxu0 %v2233
  %3000 = vmatpush1.bf16.msra.mxu0 %v2232
  %3001 = vmatprep.subr.bf16.mxu0 0
  %3002 = vmatpush1.bf16.msra.mxu0 0
  %3003 = vmatprep.subr.bf16.mxu0 0
  %3004 = vmatpush1.bf16.msra.mxu0 0
  %3005 = vmatprep.subr.bf16.mxu0 0
  %3006 = vmatpush1.bf16.msra.mxu0 0
  %3007 = vmatprep.subr.bf16.mxu0 0
  %3008 = vmatpush1.bf16.msra.mxu0 0
  %3009 = vmatprep.subr.bf16.mxu0 0
  %3010 = vmatpush1.bf16.msra.mxu0 0
  %3011 = vmatprep.subr.bf16.mxu0 0
  %3012 = vmatpush1.bf16.msra.mxu0 0
  %3013 = vmatprep.subr.bf16.mxu0 0
  %3014 = vmatpush1.bf16.msra.mxu0 0
  %3015 = vmatprep.subr.bf16.mxu0 0
  %3016 = vmatpush1.bf16.msra.mxu0 0
  %3017 = vmatprep.mubr.bf16.mxu0 0
  %3018 = vmatmul.mubr.bf16.gmra.mrb[0].mxu0 %v29
  %v3019 = vpop.f32.mrb[0].mxu0
  %v3020 = vadd.f32 %v511, %v3019
  %v3021 = vpop.f32.mrb[0].mxu0
  %v3022 = vadd.f32 %v515, %v3021
  %v3023 = vpop.f32.mrb[0].mxu0
  %v3024 = vpop.f32.mrb[0].mxu0
  %3025 = vdwg.mxu0
  %3026 = vmatprep.subr.bf16.mxu0 %v1892
  %3027 = vmatpush1.bf16.msra.mxu0 %v1891
  %3028 = vmatprep.subr.bf16.mxu0 %v1941
  %3029 = vmatpush1.bf16.msra.mxu0 %v1940
  %3030 = vmatprep.subr.bf16.mxu0 %v1990
  %3031 = vmatpush1.bf16.msra.mxu0 %v1989
  %3032 = vmatprep.subr.bf16.mxu0 %v2039
  %3033 = vmatpush1.bf16.msra.mxu0 %v2038
  %3034 = vmatprep.subr.bf16.mxu0 %v2088
  %3035 = vmatpush1.bf16.msra.mxu0 %v2087
  %3036 = vmatprep.subr.bf16.mxu0 %v2137
  %3037 = vmatpush1.bf16.msra.mxu0 %v2136
  %3038 = vmatprep.subr.bf16.mxu0 %v2186
  %3039 = vmatpush1.bf16.msra.mxu0 %v2185
  %3040 = vmatprep.subr.bf16.mxu0 %v2235
  %3041 = vmatpush1.bf16.msra.mxu0 %v2234
  %3042 = vmatprep.subr.bf16.mxu0 0
  %3043 = vmatpush1.bf16.msra.mxu0 0
  %3044 = vmatprep.subr.bf16.mxu0 0
  %3045 = vmatpush1.bf16.msra.mxu0 0
  %3046 = vmatprep.subr.bf16.mxu0 0
  %3047 = vmatpush1.bf16.msra.mxu0 0
  %3048 = vmatprep.subr.bf16.mxu0 0
  %3049 = vmatpush1.bf16.msra.mxu0 0
  %3050 = vmatprep.subr.bf16.mxu0 0
  %3051 = vmatpush1.bf16.msra.mxu0 0
  %3052 = vmatprep.subr.bf16.mxu0 0
  %3053 = vmatpush1.bf16.msra.mxu0 0
  %3054 = vmatprep.subr.bf16.mxu0 0
  %3055 = vmatpush1.bf16.msra.mxu0 0
  %3056 = vmatprep.subr.bf16.mxu0 0
  %3057 = vmatpush1.bf16.msra.mxu0 0
  %3058 = vmatprep.mubr.bf16.mxu0 0
  %3059 = vmatmul.mubr.bf16.gmra.mrb[0].mxu0 %v29
  %v3060 = vpop.f32.mrb[0].mxu0
  %v3061 = vadd.f32 %v519, %v3060
  %v3062 = vpop.f32.mrb[0].mxu0
  %v3063 = vadd.f32 %v523, %v3062
  %v3064 = vpop.f32.mrb[0].mxu0
  %v3065 = vpop.f32.mrb[0].mxu0
  %3066 = vdwg.mxu0
  %3067 = vmatprep.subr.bf16.mxu0 %v1894
  %3068 = vmatpush1.bf16.msra.mxu0 %v1893
  %3069 = vmatprep.subr.bf16.mxu0 %v1943
  %3070 = vmatpush1.bf16.msra.mxu0 %v1942
  %3071 = vmatprep.subr.bf16.mxu0 %v1992
  %3072 = vmatpush1.bf16.msra.mxu0 %v1991
  %3073 = vmatprep.subr.bf16.mxu0 %v2041
  %3074 = vmatpush1.bf16.msra.mxu0 %v2040
  %3075 = vmatprep.subr.bf16.mxu0 %v2090
  %3076 = vmatpush1.bf16.msra.mxu0 %v2089
  %3077 = vmatprep.subr.bf16.mxu0 %v2139
  %3078 = vmatpush1.bf16.msra.mxu0 %v2138
  %3079 = vmatprep.subr.bf16.mxu0 %v2188
  %3080 = vmatpush1.bf16.msra.mxu0 %v2187
  %3081 = vmatprep.subr.bf16.mxu0 %v2237
  %3082 = vmatpush1.bf16.msra.mxu0 %v2236
  %3083 = vmatprep.subr.bf16.mxu0 0
  %3084 = vmatpush1.bf16.msra.mxu0 0
  %3085 = vmatprep.subr.bf16.mxu0 0
  %3086 = vmatpush1.bf16.msra.mxu0 0
  %3087 = vmatprep.subr.bf16.mxu0 0
  %3088 = vmatpush1.bf16.msra.mxu0 0
  %3089 = vmatprep.subr.bf16.mxu0 0
  %3090 = vmatpush1.bf16.msra.mxu0 0
  %3091 = vmatprep.subr.bf16.mxu0 0
  %3092 = vmatpush1.bf16.msra.mxu0 0
  %3093 = vmatprep.subr.bf16.mxu0 0
  %3094 = vmatpush1.bf16.msra.mxu0 0
  %3095 = vmatprep.subr.bf16.mxu0 0
  %3096 = vmatpush1.bf16.msra.mxu0 0
  %3097 = vmatprep.subr.bf16.mxu0 0
  %3098 = vmatpush1.bf16.msra.mxu0 0
  %3099 = vmatprep.mubr.bf16.mxu0 0
  %3100 = vmatmul.mubr.bf16.gmra.mrb[0].mxu0 %v29
  %v3101 = vpop.f32.mrb[0].mxu0
  %v3102 = vadd.f32 %v527, %v3101
  %v3103 = vpop.f32.mrb[0].mxu0
  %v3104 = vadd.f32 %v531, %v3103
  %v3105 = vpop.f32.mrb[0].mxu0
  %v3106 = vpop.f32.mrb[0].mxu0
  %3107 = vdwg.mxu0
  %3108 = vmatprep.subr.bf16.mxu0 %v1896
  %3109 = vmatpush1.bf16.msra.mxu0 %v1895
  %3110 = vmatprep.subr.bf16.mxu0 %v1945
  %3111 = vmatpush1.bf16.msra.mxu0 %v1944
  %3112 = vmatprep.subr.bf16.mxu0 %v1994
  %3113 = vmatpush1.bf16.msra.mxu0 %v1993
  %3114 = vmatprep.subr.bf16.mxu0 %v2043
  %3115 = vmatpush1.bf16.msra.mxu0 %v2042
  %3116 = vmatprep.subr.bf16.mxu0 %v2092
  %3117 = vmatpush1.bf16.msra.mxu0 %v2091
  %3118 = vmatprep.subr.bf16.mxu0 %v2141
  %3119 = vmatpush1.bf16.msra.mxu0 %v2140
  %3120 = vmatprep.subr.bf16.mxu0 %v2190
  %3121 = vmatpush1.bf16.msra.mxu0 %v2189
  %3122 = vmatprep.subr.bf16.mxu0 %v2239
  %3123 = vmatpush1.bf16.msra.mxu0 %v2238
  %3124 = vmatprep.subr.bf16.mxu0 0
  %3125 = vmatpush1.bf16.msra.mxu0 0
  %3126 = vmatprep.subr.bf16.mxu0 0
  %3127 = vmatpush1.bf16.msra.mxu0 0
  %3128 = vmatprep.subr.bf16.mxu0 0
  %3129 = vmatpush1.bf16.msra.mxu0 0
  %3130 = vmatprep.subr.bf16.mxu0 0
  %3131 = vmatpush1.bf16.msra.mxu0 0
  %3132 = vmatprep.subr.bf16.mxu0 0
  %3133 = vmatpush1.bf16.msra.mxu0 0
  %3134 = vmatprep.subr.bf16.mxu0 0
  %3135 = vmatpush1.bf16.msra.mxu0 0
  %3136 = vmatprep.subr.bf16.mxu0 0
  %3137 = vmatpush1.bf16.msra.mxu0 0
  %3138 = vmatprep.subr.bf16.mxu0 0
  %3139 = vmatpush1.bf16.msra.mxu0 0
  %3140 = vmatprep.mubr.bf16.mxu0 0
  %3141 = vmatmul.mubr.bf16.gmra.mrb[0].mxu0 %v29
  %v3142 = vpop.f32.mrb[0].mxu0
  %v3143 = vadd.f32 %v535, %v3142
  %v3144 = vpop.f32.mrb[0].mxu0
  %v3145 = vadd.f32 %v539, %v3144
  %v3146 = vpop.f32.mrb[0].mxu0
  %v3147 = vpop.f32.mrb[0].mxu0
  %3148 = vdwg.mxu0
  %3149 = vmatprep.subr.bf16.mxu0 %v1898
  %3150 = vmatpush1.bf16.msra.mxu0 %v1897
  %3151 = vmatprep.subr.bf16.mxu0 %v1947
  %3152 = vmatpush1.bf16.msra.mxu0 %v1946
  %3153 = vmatprep.subr.bf16.mxu0 %v1996
  %3154 = vmatpush1.bf16.msra.mxu0 %v1995
  %3155 = vmatprep.subr.bf16.mxu0 %v2045
  %3156 = vmatpush1.bf16.msra.mxu0 %v2044
  %3157 = vmatprep.subr.bf16.mxu0 %v2094
  %3158 = vmatpush1.bf16.msra.mxu0 %v2093
  %3159 = vmatprep.subr.bf16.mxu0 %v2143
  %3160 = vmatpush1.bf16.msra.mxu0 %v2142
  %3161 = vmatprep.subr.bf16.mxu0 %v2192
  %3162 = vmatpush1.bf16.msra.mxu0 %v2191
  %3163 = vmatprep.subr.bf16.mxu0 %v2241
  %3164 = vmatpush1.bf16.msra.mxu0 %v2240
  %3165 = vmatprep.subr.bf16.mxu0 0
  %3166 = vmatpush1.bf16.msra.mxu0 0
  %3167 = vmatprep.subr.bf16.mxu0 0
  %3168 = vmatpush1.bf16.msra.mxu0 0
  %3169 = vmatprep.subr.bf16.mxu0 0
  %3170 = vmatpush1.bf16.msra.mxu0 0
  %3171 = vmatprep.subr.bf16.mxu0 0
  %3172 = vmatpush1.bf16.msra.mxu0 0
  %3173 = vmatprep.subr.bf16.mxu0 0
  %3174 = vmatpush1.bf16.msra.mxu0 0
  %3175 = vmatprep.subr.bf16.mxu0 0
  %3176 = vmatpush1.bf16.msra.mxu0 0
  %3177 = vmatprep.subr.bf16.mxu0 0
  %3178 = vmatpush1.bf16.msra.mxu0 0
  %3179 = vmatprep.subr.bf16.mxu0 0
  %3180 = vmatpush1.bf16.msra.mxu0 0
  %3181 = vmatprep.mubr.bf16.mxu0 0
  %3182 = vmatmul.mubr.bf16.gmra.mrb[0].mxu0 %v29
  %v3183 = vpop.f32.mrb[0].mxu0
  %v3184 = vadd.f32 %v543, %v3183
  %v3185 = vpop.f32.mrb[0].mxu0
  %v3186 = vadd.f32 %v547, %v3185
  %v3187 = vpop.f32.mrb[0].mxu0
  %v3188 = vpop.f32.mrb[0].mxu0
  %3189 = vdwg.mxu0
  %3190 = vmatprep.subr.bf16.mxu0 %v1900
  %3191 = vmatpush1.bf16.msra.mxu0 %v1899
  %3192 = vmatprep.subr.bf16.mxu0 %v1949
  %3193 = vmatpush1.bf16.msra.mxu0 %v1948
  %3194 = vmatprep.subr.bf16.mxu0 %v1998
  %3195 = vmatpush1.bf16.msra.mxu0 %v1997
  %3196 = vmatprep.subr.bf16.mxu0 %v2047
  %3197 = vmatpush1.bf16.msra.mxu0 %v2046
  %3198 = vmatprep.subr.bf16.mxu0 %v2096
  %3199 = vmatpush1.bf16.msra.mxu0 %v2095
  %3200 = vmatprep.subr.bf16.mxu0 %v2145
  %3201 = vmatpush1.bf16.msra.mxu0 %v2144
  %3202 = vmatprep.subr.bf16.mxu0 %v2194
  %3203 = vmatpush1.bf16.msra.mxu0 %v2193
  %3204 = vmatprep.subr.bf16.mxu0 %v2243
  %3205 = vmatpush1.bf16.msra.mxu0 %v2242
  %3206 = vmatprep.subr.bf16.mxu0 0
  %3207 = vmatpush1.bf16.msra.mxu0 0
  %3208 = vmatprep.subr.bf16.mxu0 0
  %3209 = vmatpush1.bf16.msra.mxu0 0
  %3210 = vmatprep.subr.bf16.mxu0 0
  %3211 = vmatpush1.bf16.msra.mxu0 0
  %3212 = vmatprep.subr.bf16.mxu0 0
  %3213 = vmatpush1.bf16.msra.mxu0 0
  %3214 = vmatprep.subr.bf16.mxu0 0
  %3215 = vmatpush1.bf16.msra.mxu0 0
  %3216 = vmatprep.subr.bf16.mxu0 0
  %3217 = vmatpush1.bf16.msra.mxu0 0
  %3218 = vmatprep.subr.bf16.mxu0 0
  %3219 = vmatpush1.bf16.msra.mxu0 0
  %3220 = vmatprep.subr.bf16.mxu0 0
  %3221 = vmatpush1.bf16.msra.mxu0 0
  %3222 = vmatprep.mubr.bf16.mxu0 0
  %3223 = vmatmul.mubr.bf16.gmra.mrb[0].mxu0 %v29
  %v3224 = vpop.f32.mrb[0].mxu0
  %v3225 = vadd.f32 %v551, %v3224
  %v3226 = vpop.f32.mrb[0].mxu0
  %v3227 = vadd.f32 %v555, %v3226
  %v3228 = vpop.f32.mrb[0].mxu0
  %v3229 = vpop.f32.mrb[0].mxu0
  %3230 = vdwg.mxu0
  %3231 = vmatprep.subr.bf16.mxu0 %v1902
  %3232 = vmatpush1.bf16.msra.mxu0 %v1901
  %3233 = vmatprep.subr.bf16.mxu0 %v1951
  %3234 = vmatpush1.bf16.msra.mxu0 %v1950
  %3235 = vmatprep.subr.bf16.mxu0 %v2000
  %3236 = vmatpush1.bf16.msra.mxu0 %v1999
  %3237 = vmatprep.subr.bf16.mxu0 %v2049
  %3238 = vmatpush1.bf16.msra.mxu0 %v2048
  %3239 = vmatprep.subr.bf16.mxu0 %v2098
  %3240 = vmatpush1.bf16.msra.mxu0 %v2097
  %3241 = vmatprep.subr.bf16.mxu0 %v2147
  %3242 = vmatpush1.bf16.msra.mxu0 %v2146
  %3243 = vmatprep.subr.bf16.mxu0 %v2196
  %3244 = vmatpush1.bf16.msra.mxu0 %v2195
  %3245 = vmatprep.subr.bf16.mxu0 %v2245
  %3246 = vmatpush1.bf16.msra.mxu0 %v2244
  %3247 = vmatprep.subr.bf16.mxu0 0
  %3248 = vmatpush1.bf16.msra.mxu0 0
  %3249 = vmatprep.subr.bf16.mxu0 0
  %3250 = vmatpush1.bf16.msra.mxu0 0
  %3251 = vmatprep.subr.bf16.mxu0 0
  %3252 = vmatpush1.bf16.msra.mxu0 0
  %3253 = vmatprep.subr.bf16.mxu0 0
  %3254 = vmatpush1.bf16.msra.mxu0 0
  %3255 = vmatprep.subr.bf16.mxu0 0
  %3256 = vmatpush1.bf16.msra.mxu0 0
  %3257 = vmatprep.subr.bf16.mxu0 0
  %3258 = vmatpush1.bf16.msra.mxu0 0
  %3259 = vmatprep.subr.bf16.mxu0 0
  %3260 = vmatpush1.bf16.msra.mxu0 0
  %3261 = vmatprep.subr.bf16.mxu0 0
  %3262 = vmatpush1.bf16.msra.mxu0 0
  %3263 = vmatprep.mubr.bf16.mxu0 0
  %3264 = vmatmul.mubr.bf16.gmra.mrb[0].mxu0 %v29
  %v3265 = vpop.f32.mrb[0].mxu0
  %v3266 = vadd.f32 %v559, %v3265
  %v3267 = vpop.f32.mrb[0].mxu0
  %v3268 = vadd.f32 %v563, %v3267
  %v3269 = vpop.f32.mrb[0].mxu0
  %v3270 = vpop.f32.mrb[0].mxu0
  %3271 = vdwg.mxu0
  %3272 = vmatprep.subr.bf16.mxu0 %v1904
  %3273 = vmatpush1.bf16.msra.mxu0 %v1903
  %3274 = vmatprep.subr.bf16.mxu0 %v1953
  %3275 = vmatpush1.bf16.msra.mxu0 %v1952
  %3276 = vmatprep.subr.bf16.mxu0 %v2002
  %3277 = vmatpush1.bf16.msra.mxu0 %v2001
  %3278 = vmatprep.subr.bf16.mxu0 %v2051
  %3279 = vmatpush1.bf16.msra.mxu0 %v2050
  %3280 = vmatprep.subr.bf16.mxu0 %v2100
  %3281 = vmatpush1.bf16.msra.mxu0 %v2099
  %3282 = vmatprep.subr.bf16.mxu0 %v2149
  %3283 = vmatpush1.bf16.msra.mxu0 %v2148
  %3284 = vmatprep.subr.bf16.mxu0 %v2198
  %3285 = vmatpush1.bf16.msra.mxu0 %v2197
  %3286 = vmatprep.subr.bf16.mxu0 %v2247
  %3287 = vmatpush1.bf16.msra.mxu0 %v2246
  %3288 = vmatprep.subr.bf16.mxu0 0
  %3289 = vmatpush1.bf16.msra.mxu0 0
  %3290 = vmatprep.subr.bf16.mxu0 0
  %3291 = vmatpush1.bf16.msra.mxu0 0
  %3292 = vmatprep.subr.bf16.mxu0 0
  %3293 = vmatpush1.bf16.msra.mxu0 0
  %3294 = vmatprep.subr.bf16.mxu0 0
  %3295 = vmatpush1.bf16.msra.mxu0 0
  %3296 = vmatprep.subr.bf16.mxu0 0
  %3297 = vmatpush1.bf16.msra.mxu0 0
  %3298 = vmatprep.subr.bf16.mxu0 0
  %3299 = vmatpush1.bf16.msra.mxu0 0
  %3300 = vmatprep.subr.bf16.mxu0 0
  %3301 = vmatpush1.bf16.msra.mxu0 0
  %3302 = vmatprep.subr.bf16.mxu0 0
  %3303 = vmatpush1.bf16.msra.mxu0 0
  %3304 = vmatprep.mubr.bf16.mxu0 0
  %3305 = vmatmul.mubr.bf16.gmra.mrb[0].mxu0 %v29
  %v3306 = vpop.f32.mrb[0].mxu0
  %v3307 = vadd.f32 %v567, %v3306
  %v3308 = vpop.f32.mrb[0].mxu0
  %v3309 = vadd.f32 %v571, %v3308
  %v3310 = vpop.f32.mrb[0].mxu0
  %v3311 = vpop.f32.mrb[0].mxu0
  %3312 = vdwg.mxu0
  %3313 = vmatprep.subr.bf16.mxu0 %v1906
  %3314 = vmatpush1.bf16.msra.mxu0 %v1905
  %3315 = vmatprep.subr.bf16.mxu0 %v1955
  %3316 = vmatpush1.bf16.msra.mxu0 %v1954
  %3317 = vmatprep.subr.bf16.mxu0 %v2004
  %3318 = vmatpush1.bf16.msra.mxu0 %v2003
  %3319 = vmatprep.subr.bf16.mxu0 %v2053
  %3320 = vmatpush1.bf16.msra.mxu0 %v2052
  %3321 = vmatprep.subr.bf16.mxu0 %v2102
  %3322 = vmatpush1.bf16.msra.mxu0 %v2101
  %3323 = vmatprep.subr.bf16.mxu0 %v2151
  %3324 = vmatpush1.bf16.msra.mxu0 %v2150
  %3325 = vmatprep.subr.bf16.mxu0 %v2200
  %3326 = vmatpush1.bf16.msra.mxu0 %v2199
  %3327 = vmatprep.subr.bf16.mxu0 %v2249
  %3328 = vmatpush1.bf16.msra.mxu0 %v2248
  %3329 = vmatprep.subr.bf16.mxu0 0
  %3330 = vmatpush1.bf16.msra.mxu0 0
  %3331 = vmatprep.subr.bf16.mxu0 0
  %3332 = vmatpush1.bf16.msra.mxu0 0
  %3333 = vmatprep.subr.bf16.mxu0 0
  %3334 = vmatpush1.bf16.msra.mxu0 0
  %3335 = vmatprep.subr.bf16.mxu0 0
  %3336 = vmatpush1.bf16.msra.mxu0 0
  %3337 = vmatprep.subr.bf16.mxu0 0
  %3338 = vmatpush1.bf16.msra.mxu0 0
  %3339 = vmatprep.subr.bf16.mxu0 0
  %3340 = vmatpush1.bf16.msra.mxu0 0
  %3341 = vmatprep.subr.bf16.mxu0 0
  %3342 = vmatpush1.bf16.msra.mxu0 0
  %3343 = vmatprep.subr.bf16.mxu0 0
  %3344 = vmatpush1.bf16.msra.mxu0 0
  %3345 = vmatprep.mubr.bf16.mxu0 0
  %3346 = vmatmul.mubr.bf16.gmra.mrb[0].mxu0 %v29
  %v3347 = vpop.f32.mrb[0].mxu0
  %v3348 = vadd.f32 %v575, %v3347
  %v3349 = vpop.f32.mrb[0].mxu0
  %v3350 = vadd.f32 %v579, %v3349
  %v3351 = vpop.f32.mrb[0].mxu0
  %v3352 = vpop.f32.mrb[0].mxu0
  %3353 = vdwg.mxu0
  %3354 = vmatprep.subr.bf16.mxu0 %v1908
  %3355 = vmatpush1.bf16.msra.mxu0 %v1907
  %3356 = vmatprep.subr.bf16.mxu0 %v1957
  %3357 = vmatpush1.bf16.msra.mxu0 %v1956
  %3358 = vmatprep.subr.bf16.mxu0 %v2006
  %3359 = vmatpush1.bf16.msra.mxu0 %v2005
  %3360 = vmatprep.subr.bf16.mxu0 %v2055
  %3361 = vmatpush1.bf16.msra.mxu0 %v2054
  %3362 = vmatprep.subr.bf16.mxu0 %v2104
  %3363 = vmatpush1.bf16.msra.mxu0 %v2103
  %3364 = vmatprep.subr.bf16.mxu0 %v2153
  %3365 = vmatpush1.bf16.msra.mxu0 %v2152
  %3366 = vmatprep.subr.bf16.mxu0 %v2202
  %3367 = vmatpush1.bf16.msra.mxu0 %v2201
  %3368 = vmatprep.subr.bf16.mxu0 %v2251
  %3369 = vmatpush1.bf16.msra.mxu0 %v2250
  %3370 = vmatprep.subr.bf16.mxu0 0
  %3371 = vmatpush1.bf16.msra.mxu0 0
  %3372 = vmatprep.subr.bf16.mxu0 0
  %3373 = vmatpush1.bf16.msra.mxu0 0
  %3374 = vmatprep.subr.bf16.mxu0 0
  %3375 = vmatpush1.bf16.msra.mxu0 0
  %3376 = vmatprep.subr.bf16.mxu0 0
  %3377 = vmatpush1.bf16.msra.mxu0 0
  %3378 = vmatprep.subr.bf16.mxu0 0
  %3379 = vmatpush1.bf16.msra.mxu0 0
  %3380 = vmatprep.subr.bf16.mxu0 0
  %3381 = vmatpush1.bf16.msra.mxu0 0
  %3382 = vmatprep.subr.bf16.mxu0 0
  %3383 = vmatpush1.bf16.msra.mxu0 0
  %3384 = vmatprep.subr.bf16.mxu0 0
  %3385 = vmatpush1.bf16.msra.mxu0 0
  %3386 = vmatprep.mubr.bf16.mxu0 0
  %3387 = vmatmul.mubr.bf16.gmra.mrb[0].mxu0 %v29
  %v3388 = vpop.f32.mrb[0].mxu0
  %v3389 = vadd.f32 %v583, %v3388
  %v3390 = vpop.f32.mrb[0].mxu0
  %v3391 = vadd.f32 %v587, %v3390
  %v3392 = vpop.f32.mrb[0].mxu0
  %v3393 = vpop.f32.mrb[0].mxu0
  %3394 = vdwg.mxu0
  %3395 = vmatprep.subr.bf16.mxu0 %v1910
  %3396 = vmatpush1.bf16.msra.mxu0 %v1909
  %3397 = vmatprep.subr.bf16.mxu0 %v1959
  %3398 = vmatpush1.bf16.msra.mxu0 %v1958
  %3399 = vmatprep.subr.bf16.mxu0 %v2008
  %3400 = vmatpush1.bf16.msra.mxu0 %v2007
  %3401 = vmatprep.subr.bf16.mxu0 %v2057
  %3402 = vmatpush1.bf16.msra.mxu0 %v2056
  %3403 = vmatprep.subr.bf16.mxu0 %v2106
  %3404 = vmatpush1.bf16.msra.mxu0 %v2105
  %3405 = vmatprep.subr.bf16.mxu0 %v2155
  %3406 = vmatpush1.bf16.msra.mxu0 %v2154
  %3407 = vmatprep.subr.bf16.mxu0 %v2204
  %3408 = vmatpush1.bf16.msra.mxu0 %v2203
  %3409 = vmatprep.subr.bf16.mxu0 %v2253
  %3410 = vmatpush1.bf16.msra.mxu0 %v2252
  %3411 = vmatprep.subr.bf16.mxu0 0
  %3412 = vmatpush1.bf16.msra.mxu0 0
  %3413 = vmatprep.subr.bf16.mxu0 0
  %3414 = vmatpush1.bf16.msra.mxu0 0
  %3415 = vmatprep.subr.bf16.mxu0 0
  %3416 = vmatpush1.bf16.msra.mxu0 0
  %3417 = vmatprep.subr.bf16.mxu0 0
  %3418 = vmatpush1.bf16.msra.mxu0 0
  %3419 = vmatprep.subr.bf16.mxu0 0
  %3420 = vmatpush1.bf16.msra.mxu0 0
  %3421 = vmatprep.subr.bf16.mxu0 0
  %3422 = vmatpush1.bf16.msra.mxu0 0
  %3423 = vmatprep.subr.bf16.mxu0 0
  %3424 = vmatpush1.bf16.msra.mxu0 0
  %3425 = vmatprep.subr.bf16.mxu0 0
  %3426 = vmatpush1.bf16.msra.mxu0 0
  %3427 = vmatprep.mubr.bf16.mxu0 0
  %3428 = vmatmul.mubr.bf16.gmra.mrb[0].mxu0 %v29
  %v3429 = vpop.f32.mrb[0].mxu0
  %v3430 = vadd.f32 %v591, %v3429
  %v3431 = vpop.f32.mrb[0].mxu0
  %v3432 = vadd.f32 %v595, %v3431
  %v3433 = vpop.f32.mrb[0].mxu0
  %v3434 = vpop.f32.mrb[0].mxu0
  %3435 = vdwg.mxu0
  %3436 = vmatprep.subr.bf16.mxu0 %v1912
  %3437 = vmatpush1.bf16.msra.mxu0 %v1911
  %3438 = vmatprep.subr.bf16.mxu0 %v1961
  %3439 = vmatpush1.bf16.msra.mxu0 %v1960
  %3440 = vmatprep.subr.bf16.mxu0 %v2010
  %3441 = vmatpush1.bf16.msra.mxu0 %v2009
  %3442 = vmatprep.subr.bf16.mxu0 %v2059
  %3443 = vmatpush1.bf16.msra.mxu0 %v2058
  %3444 = vmatprep.subr.bf16.mxu0 %v2108
  %3445 = vmatpush1.bf16.msra.mxu0 %v2107
  %3446 = vmatprep.subr.bf16.mxu0 %v2157
  %3447 = vmatpush1.bf16.msra.mxu0 %v2156
  %3448 = vmatprep.subr.bf16.mxu0 %v2206
  %3449 = vmatpush1.bf16.msra.mxu0 %v2205
  %3450 = vmatprep.subr.bf16.mxu0 %v2255
  %3451 = vmatpush1.bf16.msra.mxu0 %v2254
  %3452 = vmatprep.subr.bf16.mxu0 0
  %3453 = vmatpush1.bf16.msra.mxu0 0
  %3454 = vmatprep.subr.bf16.mxu0 0
  %3455 = vmatpush1.bf16.msra.mxu0 0
  %3456 = vmatprep.subr.bf16.mxu0 0
  %3457 = vmatpush1.bf16.msra.mxu0 0
  %3458 = vmatprep.subr.bf16.mxu0 0
  %3459 = vmatpush1.bf16.msra.mxu0 0
  %3460 = vmatprep.subr.bf16.mxu0 0
  %3461 = vmatpush1.bf16.msra.mxu0 0
  %3462 = vmatprep.subr.bf16.mxu0 0
  %3463 = vmatpush1.bf16.msra.mxu0 0
  %3464 = vmatprep.subr.bf16.mxu0 0
  %3465 = vmatpush1.bf16.msra.mxu0 0
  %3466 = vmatprep.subr.bf16.mxu0 0
  %3467 = vmatpush1.bf16.msra.mxu0 0
  %3468 = vmatprep.mubr.bf16.mxu0 0
  %3469 = vmatmul.mubr.bf16.gmra.mrb[0].mxu0 %v29
  %v3470 = vpop.f32.mrb[0].mxu0
  %v3471 = vadd.f32 %v599, %v3470
  %v3472 = vpop.f32.mrb[0].mxu0
  %v3473 = vadd.f32 %v603, %v3472
  %v3474 = vpop.f32.mrb[0].mxu0
  %v3475 = vpop.f32.mrb[0].mxu0
  %3476 = vdwg.mxu0
  %3477 = vmatprep.subr.bf16.mxu0 %v1914
  %3478 = vmatpush1.bf16.msra.mxu0 %v1913
  %3479 = vmatprep.subr.bf16.mxu0 %v1963
  %3480 = vmatpush1.bf16.msra.mxu0 %v1962
  %3481 = vmatprep.subr.bf16.mxu0 %v2012
  %3482 = vmatpush1.bf16.msra.mxu0 %v2011
  %3483 = vmatprep.subr.bf16.mxu0 %v2061
  %3484 = vmatpush1.bf16.msra.mxu0 %v2060
  %3485 = vmatprep.subr.bf16.mxu0 %v2110
  %3486 = vmatpush1.bf16.msra.mxu0 %v2109
  %3487 = vmatprep.subr.bf16.mxu0 %v2159
  %3488 = vmatpush1.bf16.msra.mxu0 %v2158
  %3489 = vmatprep.subr.bf16.mxu0 %v2208
  %3490 = vmatpush1.bf16.msra.mxu0 %v2207
  %3491 = vmatprep.subr.bf16.mxu0 %v2257
  %3492 = vmatpush1.bf16.msra.mxu0 %v2256
  %3493 = vmatprep.subr.bf16.mxu0 0
  %3494 = vmatpush1.bf16.msra.mxu0 0
  %3495 = vmatprep.subr.bf16.mxu0 0
  %3496 = vmatpush1.bf16.msra.mxu0 0
  %3497 = vmatprep.subr.bf16.mxu0 0
  %3498 = vmatpush1.bf16.msra.mxu0 0
  %3499 = vmatprep.subr.bf16.mxu0 0
  %3500 = vmatpush1.bf16.msra.mxu0 0
  %3501 = vmatprep.subr.bf16.mxu0 0
  %3502 = vmatpush1.bf16.msra.mxu0 0
  %3503 = vmatprep.subr.bf16.mxu0 0
  %3504 = vmatpush1.bf16.msra.mxu0 0
  %3505 = vmatprep.subr.bf16.mxu0 0
  %3506 = vmatpush1.bf16.msra.mxu0 0
  %3507 = vmatprep.subr.bf16.mxu0 0
  %3508 = vmatpush1.bf16.msra.mxu0 0
  %3509 = vmatprep.mubr.bf16.mxu0 0
  %3510 = vmatmul.mubr.bf16.gmra.mrb[0].mxu0 %v29
  %v3511 = vpop.f32.mrb[0].mxu0
  %v3512 = vadd.f32 %v607, %v3511
  %v3513 = vpop.f32.mrb[0].mxu0
  %v3514 = vadd.f32 %v611, %v3513
  %v3515 = vpop.f32.mrb[0].mxu0
  %v3516 = vpop.f32.mrb[0].mxu0
  %3517 = vdwg.mxu0
  %3518 = vmatprep.subr.bf16.mxu0 %v1916
  %3519 = vmatpush1.bf16.msra.mxu0 %v1915
  %3520 = vmatprep.subr.bf16.mxu0 %v1965
  %3521 = vmatpush1.bf16.msra.mxu0 %v1964
  %3522 = vmatprep.subr.bf16.mxu0 %v2014
  %3523 = vmatpush1.bf16.msra.mxu0 %v2013
  %3524 = vmatprep.subr.bf16.mxu0 %v2063
  %3525 = vmatpush1.bf16.msra.mxu0 %v2062
  %3526 = vmatprep.subr.bf16.mxu0 %v2112
  %3527 = vmatpush1.bf16.msra.mxu0 %v2111
  %3528 = vmatprep.subr.bf16.mxu0 %v2161
  %3529 = vmatpush1.bf16.msra.mxu0 %v2160
  %3530 = vmatprep.subr.bf16.mxu0 %v2210
  %3531 = vmatpush1.bf16.msra.mxu0 %v2209
  %3532 = vmatprep.subr.bf16.mxu0 %v2259
  %3533 = vmatpush1.bf16.msra.mxu0 %v2258
  %3534 = vmatprep.subr.bf16.mxu0 0
  %3535 = vmatpush1.bf16.msra.mxu0 0
  %3536 = vmatprep.subr.bf16.mxu0 0
  %3537 = vmatpush1.bf16.msra.mxu0 0
  %3538 = vmatprep.subr.bf16.mxu0 0
  %3539 = vmatpush1.bf16.msra.mxu0 0
  %3540 = vmatprep.subr.bf16.mxu0 0
  %3541 = vmatpush1.bf16.msra.mxu0 0
  %3542 = vmatprep.subr.bf16.mxu0 0
  %3543 = vmatpush1.bf16.msra.mxu0 0
  %3544 = vmatprep.subr.bf16.mxu0 0
  %3545 = vmatpush1.bf16.msra.mxu0 0
  %3546 = vmatprep.subr.bf16.mxu0 0
  %3547 = vmatpush1.bf16.msra.mxu0 0
  %3548 = vmatprep.subr.bf16.mxu0 0
  %3549 = vmatpush1.bf16.msra.mxu0 0
  %3550 = vmatprep.mubr.bf16.mxu0 0
  %3551 = vmatmul.mubr.bf16.gmra.mrb[0].mxu0 %v29
  %v3552 = vpop.f32.mrb[0].mxu0
  %v3553 = vadd.f32 %v615, %v3552
  %v3554 = vpop.f32.mrb[0].mxu0
  %v3555 = vadd.f32 %v619, %v3554
  %v3556 = vpop.f32.mrb[0].mxu0
  %v3557 = vpop.f32.mrb[0].mxu0
  %3558 = vdwg.mxu0
  %3559 = vmatprep.subr.bf16.mxu0 %v1918
  %3560 = vmatpush1.bf16.msra.mxu0 %v1917
  %3561 = vmatprep.subr.bf16.mxu0 %v1967
  %3562 = vmatpush1.bf16.msra.mxu0 %v1966
  %3563 = vmatprep.subr.bf16.mxu0 %v2016
  %3564 = vmatpush1.bf16.msra.mxu0 %v2015
  %3565 = vmatprep.subr.bf16.mxu0 %v2065
  %3566 = vmatpush1.bf16.msra.mxu0 %v2064
  %3567 = vmatprep.subr.bf16.mxu0 %v2114
  %3568 = vmatpush1.bf16.msra.mxu0 %v2113
  %3569 = vmatprep.subr.bf16.mxu0 %v2163
  %3570 = vmatpush1.bf16.msra.mxu0 %v2162
  %3571 = vmatprep.subr.bf16.mxu0 %v2212
  %3572 = vmatpush1.bf16.msra.mxu0 %v2211
  %3573 = vmatprep.subr.bf16.mxu0 %v2261
  %3574 = vmatpush1.bf16.msra.mxu0 %v2260
  %3575 = vmatprep.subr.bf16.mxu0 0
  %3576 = vmatpush1.bf16.msra.mxu0 0
  %3577 = vmatprep.subr.bf16.mxu0 0
  %3578 = vmatpush1.bf16.msra.mxu0 0
  %3579 = vmatprep.subr.bf16.mxu0 0
  %3580 = vmatpush1.bf16.msra.mxu0 0
  %3581 = vmatprep.subr.bf16.mxu0 0
  %3582 = vmatpush1.bf16.msra.mxu0 0
  %3583 = vmatprep.subr.bf16.mxu0 0
  %3584 = vmatpush1.bf16.msra.mxu0 0
  %3585 = vmatprep.subr.bf16.mxu0 0
  %3586 = vmatpush1.bf16.msra.mxu0 0
  %3587 = vmatprep.subr.bf16.mxu0 0
  %3588 = vmatpush1.bf16.msra.mxu0 0
  %3589 = vmatprep.subr.bf16.mxu0 0
  %3590 = vmatpush1.bf16.msra.mxu0 0
  %3591 = vmatprep.mubr.bf16.mxu0 0
  %3592 = vmatmul.mubr.bf16.gmra.mrb[0].mxu0 %v29
  %v3593 = vpop.f32.mrb[0].mxu0
  %v3594 = vadd.f32 %v623, %v3593
  %v3595 = vpop.f32.mrb[0].mxu0
  %v3596 = vadd.f32 %v627, %v3595
  %v3597 = vpop.f32.mrb[0].mxu0
  %v3598 = vpop.f32.mrb[0].mxu0
  %3599 = vdwg.mxu0
  %3600 = vmatprep.subr.bf16.mxu0 %v1920
  %3601 = vmatpush1.bf16.msra.mxu0 %v1919
  %3602 = vmatprep.subr.bf16.mxu0 %v1969
  %3603 = vmatpush1.bf16.msra.mxu0 %v1968
  %3604 = vmatprep.subr.bf16.mxu0 %v2018
  %3605 = vmatpush1.bf16.msra.mxu0 %v2017
  %3606 = vmatprep.subr.bf16.mxu0 %v2067
  %3607 = vmatpush1.bf16.msra.mxu0 %v2066
  %3608 = vmatprep.subr.bf16.mxu0 %v2116
  %3609 = vmatpush1.bf16.msra.mxu0 %v2115
  %3610 = vmatprep.subr.bf16.mxu0 %v2165
  %3611 = vmatpush1.bf16.msra.mxu0 %v2164
  %3612 = vmatprep.subr.bf16.mxu0 %v2214
  %3613 = vmatpush1.bf16.msra.mxu0 %v2213
  %3614 = vmatprep.subr.bf16.mxu0 %v2263
  %3615 = vmatpush1.bf16.msra.mxu0 %v2262
  %3616 = vmatprep.subr.bf16.mxu0 0
  %3617 = vmatpush1.bf16.msra.mxu0 0
  %3618 = vmatprep.subr.bf16.mxu0 0
  %3619 = vmatpush1.bf16.msra.mxu0 0
  %3620 = vmatprep.subr.bf16.mxu0 0
  %3621 = vmatpush1.bf16.msra.mxu0 0
  %3622 = vmatprep.subr.bf16.mxu0 0
  %3623 = vmatpush1.bf16.msra.mxu0 0
  %3624 = vmatprep.subr.bf16.mxu0 0
  %3625 = vmatpush1.bf16.msra.mxu0 0
  %3626 = vmatprep.subr.bf16.mxu0 0
  %3627 = vmatpush1.bf16.msra.mxu0 0
  %3628 = vmatprep.subr.bf16.mxu0 0
  %3629 = vmatpush1.bf16.msra.mxu0 0
  %3630 = vmatprep.subr.bf16.mxu0 0
  %3631 = vmatpush1.bf16.msra.mxu0 0
  %3632 = vmatprep.mubr.bf16.mxu0 0
  %3633 = vmatmul.mubr.bf16.gmra.mrb[0].mxu0 %v29
  %v3634 = vpop.f32.mrb[0].mxu0
  %v3635 = vadd.f32 %v631, %v3634
  %v3636 = vpop.f32.mrb[0].mxu0
  %v3637 = vadd.f32 %v635, %v3636
  %v3638 = vpop.f32.mrb[0].mxu0
  %v3639 = vpop.f32.mrb[0].mxu0
  %3640 = vdwg.mxu0
  %3641 = vmatprep.subr.bf16.mxu0 0
  %3642 = vmatpush1.bf16.msra.mxu0 %v1921
  %3643 = vmatprep.subr.bf16.mxu0 0
  %3644 = vmatpush1.bf16.msra.mxu0 %v1970
  %3645 = vmatprep.subr.bf16.mxu0 0
  %3646 = vmatpush1.bf16.msra.mxu0 %v2019
  %3647 = vmatprep.subr.bf16.mxu0 0
  %3648 = vmatpush1.bf16.msra.mxu0 %v2068
  %3649 = vmatprep.subr.bf16.mxu0 0
  %3650 = vmatpush1.bf16.msra.mxu0 %v2117
  %3651 = vmatprep.subr.bf16.mxu0 0
  %3652 = vmatpush1.bf16.msra.mxu0 %v2166
  %3653 = vmatprep.subr.bf16.mxu0 0
  %3654 = vmatpush1.bf16.msra.mxu0 %v2215
  %3655 = vmatprep.subr.bf16.mxu0 0
  %3656 = vmatpush1.bf16.msra.mxu0 %v2264
  %3657 = vmatprep.subr.bf16.mxu0 0
  %3658 = vmatpush1.bf16.msra.mxu0 0
  %3659 = vmatprep.subr.bf16.mxu0 0
  %3660 = vmatpush1.bf16.msra.mxu0 0
  %3661 = vmatprep.subr.bf16.mxu0 0
  %3662 = vmatpush1.bf16.msra.mxu0 0
  %3663 = vmatprep.subr.bf16.mxu0 0
  %3664 = vmatpush1.bf16.msra.mxu0 0
  %3665 = vmatprep.subr.bf16.mxu0 0
  %3666 = vmatpush1.bf16.msra.mxu0 0
  %3667 = vmatprep.subr.bf16.mxu0 0
  %3668 = vmatpush1.bf16.msra.mxu0 0
  %3669 = vmatprep.subr.bf16.mxu0 0
  %3670 = vmatpush1.bf16.msra.mxu0 0
  %3671 = vmatprep.subr.bf16.mxu0 0
  %3672 = vmatpush1.bf16.msra.mxu0 0
  %3673 = vmatprep.mubr.bf16.mxu0 0
  %3674 = vmatmul.mubr.bf16.gmra.mrb[0].mxu0 %v29
  %v3675 = vpop.f32.mrb[0].mxu0
  %v3676 = vadd.f32 %v639, %v3675
  %v3677 = vpop.f32.mrb[0].mxu0
  %v3678 = vpop.f32.mrb[0].mxu0
  %v3679 = vpop.f32.mrb[0].mxu0
  %3680 = vdwg.mxu0
  %v3681 = vpack.c.bf16 %v2692, %v2692
  %v3682 = vpack.c.bf16 %v2694, %v2694
  %v3683 = vpack.c.bf16 %v2733, %v2733
  %v3684 = vpack.c.bf16 %v2735, %v2735
  %v3685 = vpack.c.bf16 %v2774, %v2774
  %v3686 = vpack.c.bf16 %v2776, %v2776
  %v3687 = vpack.c.bf16 %v2815, %v2815
  %v3688 = vpack.c.bf16 %v2817, %v2817
  %v3689 = vpack.c.bf16 %v2856, %v2856
  %v3690 = vpack.c.bf16 %v2858, %v2858
  %v3691 = vpack.c.bf16 %v2897, %v2897
  %v3692 = vpack.c.bf16 %v2899, %v2899
  %v3693 = vpack.c.bf16 %v2938, %v2938
  %v3694 = vpack.c.bf16 %v2940, %v2940
  %v3695 = vpack.c.bf16 %v2979, %v2979
  %v3696 = vpack.c.bf16 %v2981, %v2981
  %v3697 = vpack.c.bf16 %v3020, %v3020
  %v3698 = vpack.c.bf16 %v3022, %v3022
  %v3699 = vpack.c.bf16 %v3061, %v3061
  %v3700 = vpack.c.bf16 %v3063, %v3063
  %v3701 = vpack.c.bf16 %v3102, %v3102
  %v3702 = vpack.c.bf16 %v3104, %v3104
  %v3703 = vpack.c.bf16 %v3143, %v3143
  %v3704 = vpack.c.bf16 %v3145, %v3145
  %v3705 = vpack.c.bf16 %v3184, %v3184
  %v3706 = vpack.c.bf16 %v3186, %v3186
  %v3707 = vpack.c.bf16 %v3225, %v3225
  %v3708 = vpack.c.bf16 %v3227, %v3227
  %v3709 = vpack.c.bf16 %v3266, %v3266
  %v3710 = vpack.c.bf16 %v3268, %v3268
  %v3711 = vpack.c.bf16 %v3307, %v3307
  %v3712 = vpack.c.bf16 %v3309, %v3309
  %v3713 = vpack.c.bf16 %v3348, %v3348
  %v3714 = vpack.c.bf16 %v3350, %v3350
  %v3715 = vpack.c.bf16 %v3389, %v3389
  %v3716 = vpack.c.bf16 %v3391, %v3391
  %v3717 = vpack.c.bf16 %v3430, %v3430
  %v3718 = vpack.c.bf16 %v3432, %v3432
  %v3719 = vpack.c.bf16 %v3471, %v3471
  %v3720 = vpack.c.bf16 %v3473, %v3473
  %v3721 = vpack.c.bf16 %v3512, %v3512
  %v3722 = vpack.c.bf16 %v3514, %v3514
  %v3723 = vpack.c.bf16 %v3553, %v3553
  %v3724 = vpack.c.bf16 %v3555, %v3555
  %v3725 = vpack.c.bf16 %v3594, %v3594
  %v3726 = vpack.c.bf16 %v3596, %v3596
  %v3727 = vpack.c.bf16 %v3635, %v3635
  %v3728 = vpack.c.bf16 %v3637, %v3637
  %v3729 = vpack.c.bf16 %v3676, %v3676
  %v3779 = vunpack.c.l.b16 %v3681
  %v3780 = vunpack.c.l.b16 %v3682
  %v3781 = vunpack.c.l.b16 %v3683
  %v3782 = vunpack.c.l.b16 %v3684
  %v3783 = vunpack.c.l.b16 %v3685
  %v3784 = vunpack.c.l.b16 %v3686
  %v3785 = vunpack.c.l.b16 %v3687
  %v3786 = vunpack.c.l.b16 %v3688
  %v3787 = vunpack.c.l.b16 %v3689
  %v3788 = vunpack.c.l.b16 %v3690
  %v3789 = vunpack.c.l.b16 %v3691
  %v3790 = vunpack.c.l.b16 %v3692
  %v3791 = vunpack.c.l.b16 %v3693
  %v3792 = vunpack.c.l.b16 %v3694
  %v3793 = vunpack.c.l.b16 %v3695
  %v3794 = vunpack.c.l.b16 %v3696
  %v3795 = vunpack.c.l.b16 %v3697
  %v3796 = vunpack.c.l.b16 %v3698
  %v3797 = vunpack.c.l.b16 %v3699
  %v3798 = vunpack.c.l.b16 %v3700
  %v3799 = vunpack.c.l.b16 %v3701
  %v3800 = vunpack.c.l.b16 %v3702
  %v3801 = vunpack.c.l.b16 %v3703
  %v3802 = vunpack.c.l.b16 %v3704
  %v3803 = vunpack.c.l.b16 %v3705
  %v3804 = vunpack.c.l.b16 %v3706
  %v3805 = vunpack.c.l.b16 %v3707
  %v3806 = vunpack.c.l.b16 %v3708
  %v3807 = vunpack.c.l.b16 %v3709
  %v3808 = vunpack.c.l.b16 %v3710
  %v3809 = vunpack.c.l.b16 %v3711
  %v3810 = vunpack.c.l.b16 %v3712
  %v3811 = vunpack.c.l.b16 %v3713
  %v3812 = vunpack.c.l.b16 %v3714
  %v3813 = vunpack.c.l.b16 %v3715
  %v3814 = vunpack.c.l.b16 %v3716
  %v3815 = vunpack.c.l.b16 %v3717
  %v3816 = vunpack.c.l.b16 %v3718
  %v3817 = vunpack.c.l.b16 %v3719
  %v3818 = vunpack.c.l.b16 %v3720
  %v3819 = vunpack.c.l.b16 %v3721
  %v3820 = vunpack.c.l.b16 %v3722
  %v3821 = vunpack.c.l.b16 %v3723
  %v3822 = vunpack.c.l.b16 %v3724
  %v3823 = vunpack.c.l.b16 %v3725
  %v3824 = vunpack.c.l.b16 %v3726
  %v3825 = vunpack.c.l.b16 %v3727
  %v3826 = vunpack.c.l.b16 %v3728
  %v3827 = vunpack.c.l.b16 %v3729
  %v3828 = vpack.c.b16 %v3780, %v3779
  %v3829 = vpack.c.b16 %v3782, %v3781
  %v3830 = vpack.c.b16 %v3784, %v3783
  %v3831 = vpack.c.b16 %v3786, %v3785
  %v3832 = vpack.c.b16 %v3788, %v3787
  %v3833 = vpack.c.b16 %v3790, %v3789
  %v3834 = vpack.c.b16 %v3792, %v3791
  %v3835 = vpack.c.b16 %v3794, %v3793
  %v3836 = vpack.c.b16 %v3796, %v3795
  %v3837 = vpack.c.b16 %v3798, %v3797
  %v3838 = vpack.c.b16 %v3800, %v3799
  %v3839 = vpack.c.b16 %v3802, %v3801
  %v3840 = vpack.c.b16 %v3804, %v3803
  %v3841 = vpack.c.b16 %v3806, %v3805
  %v3842 = vpack.c.b16 %v3808, %v3807
  %v3843 = vpack.c.b16 %v3810, %v3809
  %v3844 = vpack.c.b16 %v3812, %v3811
  %v3845 = vpack.c.b16 %v3814, %v3813
  %v3846 = vpack.c.b16 %v3816, %v3815
  %v3847 = vpack.c.b16 %v3818, %v3817
  %v3848 = vpack.c.b16 %v3820, %v3819
  %v3849 = vpack.c.b16 %v3822, %v3821
  %v3850 = vpack.c.b16 %v3824, %v3823
  %v3851 = vpack.c.b16 %v3826, %v3825
  %v3852 = vpack.c.b16 %v3827, %v3827
  %3878 = vst [vmem:[%s5] sm:$0xff] %v3828
  %3879 = vst [vmem:[%s5 + $0x8] sm:$0xff] %v3829
  %3880 = vst [vmem:[%s5 + $0x10] sm:$0xff] %v3830
  %3881 = vst [vmem:[%s5 + $0x18] sm:$0xff] %v3831
  %3882 = vst [vmem:[%s5 + $0x20] sm:$0xff] %v3832
  %3883 = vst [vmem:[%s5 + $0x28] sm:$0xff] %v3833
  %3884 = vst [vmem:[%s5 + $0x30] sm:$0xff] %v3834
  %3885 = vst [vmem:[%s5 + $0x38] sm:$0xff] %v3835
  %3886 = vst [vmem:[%s5 + $0x40] sm:$0xff] %v3836
  %3887 = vst [vmem:[%s5 + $0x48] sm:$0xff] %v3837
  %3888 = vst [vmem:[%s5 + $0x50] sm:$0xff] %v3838
  %3889 = vst [vmem:[%s5 + $0x58] sm:$0xff] %v3839
  %3890 = vst [vmem:[%s5 + $0x60] sm:$0xff] %v3840
  %3891 = vst [vmem:[%s5 + $0x68] sm:$0xff] %v3841
  %3892 = vst [vmem:[%s5 + $0x70] sm:$0xff] %v3842
  %3893 = vst [vmem:[%s5 + $0x78] sm:$0xff] %v3843
  %3894 = vst [vmem:[%s5 + $0x80] sm:$0xff] %v3844
  %3895 = vst [vmem:[%s5 + $0x88] sm:$0xff] %v3845
  %3896 = vst [vmem:[%s5 + $0x90] sm:$0xff] %v3846
  %3897 = vst [vmem:[%s5 + $0x98] sm:$0xff] %v3847
  %3898 = vst [vmem:[%s5 + $0xa0] sm:$0xff] %v3848
  %3899 = vst [vmem:[%s5 + $0xa8] sm:$0xff] %v3849
  %3900 = vst [vmem:[%s5 + $0xb0] sm:$0xff] %v3850
  %3901 = vst [vmem:[%s5 + $0xb8] sm:$0xff] %v3851
  %3902 = vst [vmem:[%s5 + $0xc0] sm:$0xf] %v3852
  // Predicated region
  $region22: #{vae_forward.14} parent=0 // pred_check
    _
  $region23: #{vae_forward.14} parent=0 // pred_check_branch
    %3904 = sbr.rel (0) target = $region25
  $region24: #{vae_forward.14} parent=0 // pred_region
    _
  $region25: #{vae_forward.14} parent=0 // pred_fallthru
    _
  // Predicated region
  $region26: #{vae_forward.14} parent=0 // pred_check
    _
  $region27: #{vae_forward.14} parent=0 // pred_check_branch
    %3906 = sbr.rel (0) target = $region29
  $region28: #{vae_forward.14} parent=0 // pred_region
    _
  $region29: #{vae_forward.14} parent=0 // pred_fallthru
    _

// kernel: vae_forward.16
$region0: #{vae_forward.16}
  #allocation0 [shape = 'u32[]', space=smem, size = 0x4, offset = 0x4, fixed_abs, tag = 'smem constant byte address 0x4 - core index']
  #allocation1 [shape = 'u32[144,128]{1,0:T(1,128)}', space=vmem, size = 0x12000, scoped, tag = 'internal scratch']
  %s0 = inlined_call_operand.vmem [shape: bf16[512,256], index: 0, kind: input, shape index: {}]
  %s1 = inlined_call_operand.vmem [shape: bf16[256,128], index: 1, kind: input, shape index: {}]
  %s2 = inlined_call_operand.vmem [shape: f32[1,128], index: 2, kind: input, shape index: {}]
  %s3 = inlined_call_operand.vmem [shape: bf16[512,128], index: 3, kind: output, shape index: {}]
  %s4 = sld [smem:[#allocation0]]
  $region45: #{vae_forward.16} parent=0
    _
  %s6 = ssub.s32 1, %s4
  %s7 = scalar_select 0, %s6, %s4
  loop: start=0, step=1, limit=4
  $region2: #{vae_forward.16} parent=0 // loop_pre_header
    _
  $region3: #{vae_forward.16} parent=0 // loop_header
    %s9 = sphi 0, %s13
    %p10 = scmp.ge.s32.totalorder %s9, 4
    %s19 = sphi 0, %s21
    %s22 = sphi 0, %s19
    %s23 = sphi 0, %s22
    %s39 = sphi 0, %s23
    %s43 = sphi 0, %s43
    %s45 = sphi 0, %s43
    %s46 = sphi 0, %s45
    %s60 = sphi 0, %s46
    %s64 = sphi 0, %s64
    %s66 = sphi 0, %s64
    %s67 = sphi 0, %s66
    %s81 = sphi 0, %s67
    %s87 = sphi 0, %s89
    %s90 = sphi 0, %s87
    %s91 = sphi 0, %s90
    %s107 = sphi 0, %s91
  $region4: #{vae_forward.16} parent=0 // loop_header_branch
    %12 = sbr.rel (%p10) target = $region8
  $region5: #{vae_forward.16} parent=0 // loop_body
    %s14 = ssub.s32 %s9, 1
    %s15 = ssub.s32 %s9, 2
    %s16 = sadd.s32 %s9, 1
    %s17 = ssub.s32 %s9, %s16
    %p18 = scmp.eq.s32.totalorder %s17, 0
    %s20 = sadd.s32 %s19, 1
    %s21 = scalar_select %p18, %s19, %s20
    %p24 = pneg %p18
    %p25 = scmp.eq.s32.totalorder %s9, 1
    %p26 = por %p24, %p25
    %p27 = scmp.ne.s32.totalorder %s19, %s22
    %p28 = scmp.eq.s32.totalorder %s9, 0
    %p29 = por %p27, %p28
    %p30 = scmp.ne.s32.totalorder %s19, %s22
    %p31 = scmp.eq.s32.totalorder %s14, 1
    %p32 = por %p30, %p31
    %p33 = scmp.ne.s32.totalorder %s22, %s23
    %p34 = scmp.eq.s32.totalorder %s14, 0
    %p35 = por %p33, %p34
    %p36 = scmp.ne.s32.totalorder %s22, %s23
    %p37 = scmp.eq.s32.totalorder %s15, 1
    %p38 = por %p36, %p37
    %p40 = scmp.ne.s32.totalorder %s23, %s39
    %p41 = scmp.eq.s32.totalorder %s15, 0
    %p42 = por %p40, %p41
    %s44 = sadd.s32 %s43, 1
    %p47 = scmp.eq.s32.totalorder %s9, 1
    %p48 = scmp.ne.s32.totalorder %s43, %s45
    %p49 = scmp.eq.s32.totalorder %s9, 0
    %p50 = por %p48, %p49
    %p51 = scmp.ne.s32.totalorder %s43, %s45
    %p52 = scmp.eq.s32.totalorder %s14, 1
    %p53 = por %p51, %p52
    %p54 = scmp.ne.s32.totalorder %s45, %s46
    %p55 = scmp.eq.s32.totalorder %s14, 0
    %p56 = por %p54, %p55
    %p57 = scmp.ne.s32.totalorder %s45, %s46
    %p58 = scmp.eq.s32.totalorder %s15, 1
    %p59 = por %p57, %p58
    %p61 = scmp.ne.s32.totalorder %s46, %s60
    %p62 = scmp.eq.s32.totalorder %s15, 0
    %p63 = por %p61, %p62
    %s65 = sadd.s32 %s64, 1
    %p68 = scmp.eq.s32.totalorder %s9, 1
    %p69 = scmp.ne.s32.totalorder %s64, %s66
    %p70 = scmp.eq.s32.totalorder %s9, 0
    %p71 = por %p69, %p70
    %p72 = scmp.ne.s32.totalorder %s64, %s66
    %p73 = scmp.eq.s32.totalorder %s14, 1
    %p74 = por %p72, %p73
    %p75 = scmp.ne.s32.totalorder %s66, %s67
    %p76 = scmp.eq.s32.totalorder %s14, 0
    %p77 = por %p75, %p76
    %p78 = scmp.ne.s32.totalorder %s66, %s67
    %p79 = scmp.eq.s32.totalorder %s15, 1
    %p80 = por %p78, %p79
    %p82 = scmp.ne.s32.totalorder %s67, %s81
    %p83 = scmp.eq.s32.totalorder %s15, 0
    %p84 = por %p82, %p83
    %s85 = ssub.s32 %s9, %s16
    %p86 = scmp.eq.s32.totalorder %s85, 0
    %s88 = sadd.s32 %s87, 1
    %s89 = scalar_select %p86, %s87, %s88
    %p92 = pneg %p86
    %p93 = scmp.eq.s32.totalorder %s9, 1
    %p94 = por %p92, %p93
    %p95 = scmp.ne.s32.totalorder %s87, %s90
    %p96 = scmp.eq.s32.totalorder %s9, 0
    %p97 = por %p95, %p96
    %p98 = scmp.ne.s32.totalorder %s87, %s90
    %p99 = scmp.eq.s32.totalorder %s14, 1
    %p100 = por %p98, %p99
    %p101 = scmp.ne.s32.totalorder %s90, %s91
    %p102 = scmp.eq.s32.totalorder %s14, 0
    %p103 = por %p101, %p102
    %p104 = scmp.ne.s32.totalorder %s90, %s91
    %p105 = scmp.eq.s32.totalorder %s15, 1
    %p106 = por %p104, %p105
    %p108 = scmp.ne.s32.totalorder %s91, %s107
    %p109 = scmp.eq.s32.totalorder %s15, 0
    %p110 = por %p108, %p109
    %p111 = scmp.le.s32.totalorder 1, %s9
    %p112 = scmp.lt.s32.totalorder %s9, 3
    %p113 = pnand %p111, %p112
    %p114 = pneg %p113
    // Predicated region
    $region9: #{vae_forward.16} parent=5 // pred_check
      _
    $region10: #{vae_forward.16} parent=5 // pred_check_branch
      %116 = sbr.rel (%p113) target = $region12
    $region11: #{vae_forward.16} parent=5 // pred_region
      %s117 = ssub.s32 %s9, 1
      // Predicated region
      $region13: #{vae_forward.16} parent=11 // pred_check
        %p118 = pneg %p56
      $region14: #{vae_forward.16} parent=11 // pred_check_branch
        %120 = sbr.rel (%p118) target = $region16
      $region15: #{vae_forward.16} parent=11 // pred_region
        _
      $region16: #{vae_forward.16} parent=11 // pred_fallthru
        _
      // Predicated region
      $region17: #{vae_forward.16} parent=11 // pred_check
        %p121 = pneg %p77
      $region18: #{vae_forward.16} parent=11 // pred_check_branch
        %123 = sbr.rel (%p121) target = $region20
      $region19: #{vae_forward.16} parent=11 // pred_region
        _
      $region20: #{vae_forward.16} parent=11 // pred_fallthru
        _
    $region12: #{vae_forward.16} parent=5 // pred_fallthru
      _
    %p124 = scmp.lt.s32.totalorder %s9, 2
    // Predicated region
    $region21: #{vae_forward.16} parent=5 // pred_check
      %p125 = pneg %p124
    $region22: #{vae_forward.16} parent=5 // pred_check_branch
      %127 = sbr.rel (%p125) target = $region24
    $region23: #{vae_forward.16} parent=5 // pred_region
      // Predicated region
      $region25: #{vae_forward.16} parent=23 // pred_check
        %p128 = pneg %p29
      $region26: #{vae_forward.16} parent=23 // pred_check_branch
        %130 = sbr.rel (%p128) target = $region28
      $region27: #{vae_forward.16} parent=23 // pred_region
        %s131 = smul.u32 32, %s9
        %p132 = scmp.lt.s32.totalorder %s131, 63
        %s133 = scalar_select %p132, %s131, 63
        %s134 = smul.addr %s133, 2
        %s135 = smul.addr %s134, 4
        %s136 = scalar_lea.vmem %s0, %s135
        %s137 = smul.u32 32, %s9
      $region28: #{vae_forward.16} parent=23 // pred_fallthru
        _
    $region24: #{vae_forward.16} parent=5 // pred_fallthru
      _
    %p138 = scmp.le.s32.totalorder 1, %s9
    %p139 = scmp.lt.s32.totalorder %s9, 3
    %p140 = pnand %p138, %p139
    %p141 = pneg %p140
    // Predicated region
    $region29: #{vae_forward.16} parent=5 // pred_check
      _
    $region30: #{vae_forward.16} parent=5 // pred_check_branch
      %143 = sbr.rel (%p140) target = $region32
    $region31: #{vae_forward.16} parent=5 // pred_region
      %s144 = ssub.s32 %s9, 1
      %s145 = smul.u32 32, %s14
      %p146 = scmp.lt.s32.totalorder %s145, 63
      %s147 = scalar_select %p146, %s145, 63
      %s148 = smul.addr %s147, 2
      %s149 = smul.addr %s148, 4
      %s150 = scalar_lea.vmem %s0, %s149
      %p151 = pneg %p35
      %p152 = pneg %p32
      %p153 = pneg %p56
      %p154 = pneg %p53
      %p155 = pneg %p77
      %p156 = pneg %p74
      %p157 = pneg %p103
      %p158 = pneg %p100
      %s159 = smul.u32 32, %s14
      %p160 = scmp.lt.s32.totalorder %s159, 63
      %s161 = scalar_select %p160, %s159, 63
      %s162 = smul.addr %s161, 4
      %s163 = scalar_lea.vmem %s3, %s162
      %s164 = smul.u32 32, %s14
      %p165 = scmp.lt.s32.totalorder %s164, 63
      %s166 = scalar_select %p165, %s164, 63
      %s167 = smul.addr %s166, 2
      %s168 = smul.addr %s167, 4
      %s169 = scalar_lea.vmem %s0, %s168
      %s170 = smul.u32 32, %s14
      %s171 = smul.u32 32, %s14
      %p172 = scmp.lt.s32.totalorder %s171, 63
      %s173 = scalar_select %p172, %s171, 63
      %s174 = smul.addr %s173, 4
      %s175 = scalar_lea.vmem %s3, %s174
      %s176 = smul.u32 32, %s14
      %v178 = vld [vmem:[%s169] sm:$0xff]
      %v179 = vld [vmem:[%s169 + $0x8] sm:$0xff]
      %v180 = vld [vmem:[%s169 + $0x10] sm:$0xff]
      %v181 = vld [vmem:[%s169 + $0x18] sm:$0xff]
      %v182 = vld [vmem:[%s169 + $0x20] sm:$0xff]
      %v183 = vld [vmem:[%s169 + $0x28] sm:$0xff]
      %v184 = vld [vmem:[%s169 + $0x30] sm:$0xff]
      %v185 = vld [vmem:[%s169 + $0x38] sm:$0xff]
      %v186 = vld [vmem:[%s169 + $0x40] sm:$0xff]
      %v187 = vld [vmem:[%s169 + $0x48] sm:$0xff]
      %v188 = vld [vmem:[%s169 + $0x50] sm:$0xff]
      %v189 = vld [vmem:[%s169 + $0x58] sm:$0xff]
      %v190 = vld [vmem:[%s169 + $0x60] sm:$0xff]
      %v191 = vld [vmem:[%s169 + $0x68] sm:$0xff]
      %v192 = vld [vmem:[%s169 + $0x70] sm:$0xff]
      %v193 = vld [vmem:[%s169 + $0x78] sm:$0xff]
      %v194 = vld [vmem:[%s169 + $0x80] sm:$0xff]
      %v195 = vld [vmem:[%s169 + $0x88] sm:$0xff]
      %v196 = vld [vmem:[%s169 + $0x90] sm:$0xff]
      %v197 = vld [vmem:[%s169 + $0x98] sm:$0xff]
      %v198 = vld [vmem:[%s169 + $0xa0] sm:$0xff]
      %v199 = vld [vmem:[%s169 + $0xa8] sm:$0xff]
      %v200 = vld [vmem:[%s169 + $0xb0] sm:$0xff]
      %v201 = vld [vmem:[%s169 + $0xb8] sm:$0xff]
      %v202 = vld [vmem:[%s169 + $0xc0] sm:$0xff]
      %v203 = vld [vmem:[%s169 + $0xc8] sm:$0xff]
      %v204 = vld [vmem:[%s169 + $0xd0] sm:$0xff]
      %v205 = vld [vmem:[%s169 + $0xd8] sm:$0xff]
      %v206 = vld [vmem:[%s169 + $0xe0] sm:$0xff]
      %v207 = vld [vmem:[%s169 + $0xe8] sm:$0xff]
      %v208 = vld [vmem:[%s169 + $0xf0] sm:$0xff]
      %v209 = vld [vmem:[%s169 + $0xf8] sm:$0xff]
      %v210 = vld [vmem:[%s1] sm:$0xf]
      %v211 = vld [vmem:[%s1 + $0x4] sm:$0xf]
      %v212 = vld [vmem:[%s1 + $0x8] sm:$0xf]
      %v213 = vld [vmem:[%s1 + $0xc] sm:$0xf]
      %v214 = vld [vmem:[%s1 + $0x10] sm:$0xf]
      %v215 = vld [vmem:[%s1 + $0x14] sm:$0xf]
      %v216 = vld [vmem:[%s1 + $0x18] sm:$0xf]
      %v217 = vld [vmem:[%s1 + $0x1c] sm:$0xf]
      %v218 = vld [vmem:[%s1 + $0x20] sm:$0xf]
      %v219 = vld [vmem:[%s1 + $0x24] sm:$0xf]
      %v220 = vld [vmem:[%s1 + $0x28] sm:$0xf]
      %v221 = vld [vmem:[%s1 + $0x2c] sm:$0xf]
      %v222 = vld [vmem:[%s1 + $0x30] sm:$0xf]
      %v223 = vld [vmem:[%s1 + $0x34] sm:$0xf]
      %v224 = vld [vmem:[%s1 + $0x38] sm:$0xf]
      %v225 = vld [vmem:[%s1 + $0x3c] sm:$0xf]
      %v226 = vld [vmem:[%s1 + $0x40] sm:$0xf]
      %v227 = vld [vmem:[%s1 + $0x44] sm:$0xf]
      %v228 = vld [vmem:[%s1 + $0x48] sm:$0xf]
      %v229 = vld [vmem:[%s1 + $0x4c] sm:$0xf]
      %v230 = vld [vmem:[%s1 + $0x50] sm:$0xf]
      %v231 = vld [vmem:[%s1 + $0x54] sm:$0xf]
      %v232 = vld [vmem:[%s1 + $0x58] sm:$0xf]
      %v233 = vld [vmem:[%s1 + $0x5c] sm:$0xf]
      %v234 = vld [vmem:[%s1 + $0x60] sm:$0xf]
      %v235 = vld [vmem:[%s1 + $0x64] sm:$0xf]
      %v236 = vld [vmem:[%s1 + $0x68] sm:$0xf]
      %v237 = vld [vmem:[%s1 + $0x6c] sm:$0xf]
      %v238 = vld [vmem:[%s1 + $0x70] sm:$0xf]
      %v239 = vld [vmem:[%s1 + $0x74] sm:$0xf]
      %v240 = vld [vmem:[%s1 + $0x78] sm:$0xf]
      %v241 = vld [vmem:[%s1 + $0x7c] sm:$0xf]
      %v242 = vld [vmem:[%s2] sm:$0x1]
      %v244 = vlaneseq
      %v245 = vshrl.u32 %v244, 7
      %v246 = vsub.s32 0, %v245
      %v247 = vrot.slane %v242, %v246
      %v281 = vunpack.c.l.b16 %v178
      %v282 = vunpack.c.h.b16 %v178
      %v283 = vunpack.c.l.b16 %v179
      %v284 = vunpack.c.h.b16 %v179
      %v285 = vunpack.c.l.b16 %v180
      %v286 = vunpack.c.h.b16 %v180
      %v287 = vunpack.c.l.b16 %v181
      %v288 = vunpack.c.h.b16 %v181
      %v289 = vunpack.c.l.b16 %v182
      %v290 = vunpack.c.h.b16 %v182
      %v291 = vunpack.c.l.b16 %v183
      %v292 = vunpack.c.h.b16 %v183
      %v293 = vunpack.c.l.b16 %v184
      %v294 = vunpack.c.h.b16 %v184
      %v295 = vunpack.c.l.b16 %v185
      %v296 = vunpack.c.h.b16 %v185
      %v297 = vunpack.c.l.b16 %v186
      %v298 = vunpack.c.h.b16 %v186
      %v299 = vunpack.c.l.b16 %v187
      %v300 = vunpack.c.h.b16 %v187
      %v301 = vunpack.c.l.b16 %v188
      %v302 = vunpack.c.h.b16 %v188
      %v303 = vunpack.c.l.b16 %v189
      %v304 = vunpack.c.h.b16 %v189
      %v305 = vunpack.c.l.b16 %v190
      %v306 = vunpack.c.h.b16 %v190
      %v307 = vunpack.c.l.b16 %v191
      %v308 = vunpack.c.h.b16 %v191
      %v309 = vunpack.c.l.b16 %v192
      %v310 = vunpack.c.h.b16 %v192
      %v311 = vunpack.c.l.b16 %v193
      %v312 = vunpack.c.h.b16 %v193
      %v313 = vunpack.c.l.b16 %v194
      %v314 = vunpack.c.h.b16 %v194
      %v315 = vunpack.c.l.b16 %v195
      %v316 = vunpack.c.h.b16 %v195
      %v317 = vunpack.c.l.b16 %v196
      %v318 = vunpack.c.h.b16 %v196
      %v319 = vunpack.c.l.b16 %v197
      %v320 = vunpack.c.h.b16 %v197
      %v321 = vunpack.c.l.b16 %v198
      %v322 = vunpack.c.h.b16 %v198
      %v323 = vunpack.c.l.b16 %v199
      %v324 = vunpack.c.h.b16 %v199
      %v325 = vunpack.c.l.b16 %v200
      %v326 = vunpack.c.h.b16 %v200
      %v327 = vunpack.c.l.b16 %v201
      %v328 = vunpack.c.h.b16 %v201
      %v329 = vunpack.c.l.b16 %v202
      %v330 = vunpack.c.h.b16 %v202
      %v331 = vunpack.c.l.b16 %v203
      %v332 = vunpack.c.h.b16 %v203
      %v333 = vunpack.c.l.b16 %v204
      %v334 = vunpack.c.h.b16 %v204
      %v335 = vunpack.c.l.b16 %v205
      %v336 = vunpack.c.h.b16 %v205
      %v337 = vunpack.c.l.b16 %v206
      %v338 = vunpack.c.h.b16 %v206
      %v339 = vunpack.c.l.b16 %v207
      %v340 = vunpack.c.h.b16 %v207
      %v341 = vunpack.c.l.b16 %v208
      %v342 = vunpack.c.h.b16 %v208
      %v343 = vunpack.c.l.b16 %v209
      %v344 = vunpack.c.h.b16 %v209
      %v345 = vpack.c.b16 %v283, %v281
      %v346 = vpack.c.b16 %v284, %v282
      %v347 = vpack.c.b16 %v287, %v285
      %v348 = vpack.c.b16 %v288, %v286
      %v349 = vpack.c.b16 %v291, %v289
      %v350 = vpack.c.b16 %v292, %v290
      %v351 = vpack.c.b16 %v295, %v293
      %v352 = vpack.c.b16 %v296, %v294
      %v353 = vpack.c.b16 %v299, %v297
      %v354 = vpack.c.b16 %v300, %v298
      %v355 = vpack.c.b16 %v303, %v301
      %v356 = vpack.c.b16 %v304, %v302
      %v357 = vpack.c.b16 %v307, %v305
      %v358 = vpack.c.b16 %v308, %v306
      %v359 = vpack.c.b16 %v311, %v309
      %v360 = vpack.c.b16 %v312, %v310
      %v361 = vpack.c.b16 %v315, %v313
      %v362 = vpack.c.b16 %v316, %v314
      %v363 = vpack.c.b16 %v319, %v317
      %v364 = vpack.c.b16 %v320, %v318
      %v365 = vpack.c.b16 %v323, %v321
      %v366 = vpack.c.b16 %v324, %v322
      %v367 = vpack.c.b16 %v327, %v325
      %v368 = vpack.c.b16 %v328, %v326
      %v369 = vpack.c.b16 %v331, %v329
      %v370 = vpack.c.b16 %v332, %v330
      %v371 = vpack.c.b16 %v335, %v333
      %v372 = vpack.c.b16 %v336, %v334
      %v373 = vpack.c.b16 %v339, %v337
      %v374 = vpack.c.b16 %v340, %v338
      %v375 = vpack.c.b16 %v343, %v341
      %v376 = vpack.c.b16 %v344, %v342
      %v441 = vunpack.c.l.b16 %v210
      %v442 = vunpack.c.l.b16 %v211
      %v443 = vunpack.c.l.b16 %v212
      %v444 = vunpack.c.l.b16 %v213
      %v445 = vunpack.c.l.b16 %v214
      %v446 = vunpack.c.l.b16 %v215
      %v447 = vunpack.c.l.b16 %v216
      %v448 = vunpack.c.l.b16 %v217
      %v449 = vunpack.c.l.b16 %v218
      %v450 = vunpack.c.l.b16 %v219
      %v451 = vunpack.c.l.b16 %v220
      %v452 = vunpack.c.l.b16 %v221
      %v453 = vunpack.c.l.b16 %v222
      %v454 = vunpack.c.l.b16 %v223
      %v455 = vunpack.c.l.b16 %v224
      %v456 = vunpack.c.l.b16 %v225
      %v457 = vunpack.c.l.b16 %v226
      %v458 = vunpack.c.l.b16 %v227
      %v459 = vunpack.c.l.b16 %v228
      %v460 = vunpack.c.l.b16 %v229
      %v461 = vunpack.c.l.b16 %v230
      %v462 = vunpack.c.l.b16 %v231
      %v463 = vunpack.c.l.b16 %v232
      %v464 = vunpack.c.l.b16 %v233
      %v465 = vunpack.c.l.b16 %v234
      %v466 = vunpack.c.l.b16 %v235
      %v467 = vunpack.c.l.b16 %v236
      %v468 = vunpack.c.l.b16 %v237
      %v469 = vunpack.c.l.b16 %v238
      %v470 = vunpack.c.l.b16 %v239
      %v471 = vunpack.c.l.b16 %v240
      %v472 = vunpack.c.l.b16 %v241
      %v473 = vpack.c.b16 %v442, %v441
      %v474 = vpack.c.b16 %v444, %v443
      %v475 = vpack.c.b16 %v446, %v445
      %v476 = vpack.c.b16 %v448, %v447
      %v477 = vpack.c.b16 %v450, %v449
      %v478 = vpack.c.b16 %v452, %v451
      %v479 = vpack.c.b16 %v454, %v453
      %v480 = vpack.c.b16 %v456, %v455
      %v481 = vpack.c.b16 %v458, %v457
      %v482 = vpack.c.b16 %v460, %v459
      %v483 = vpack.c.b16 %v462, %v461
      %v484 = vpack.c.b16 %v464, %v463
      %v485 = vpack.c.b16 %v466, %v465
      %v486 = vpack.c.b16 %v468, %v467
      %v487 = vpack.c.b16 %v470, %v469
      %v488 = vpack.c.b16 %v472, %v471
      %505 = vmatprep.subr.bf16.mxu0 0
      %506 = vmatpush1.bf16.msra.mxu0 %v473
      %507 = vmatprep.subr.bf16.mxu0 0
      %508 = vmatpush1.bf16.msra.mxu0 %v474
      %509 = vmatprep.subr.bf16.mxu0 0
      %510 = vmatpush1.bf16.msra.mxu0 %v475
      %511 = vmatprep.subr.bf16.mxu0 0
      %512 = vmatpush1.bf16.msra.mxu0 %v476
      %513 = vmatprep.subr.bf16.mxu0 0
      %514 = vmatpush1.bf16.msra.mxu0 %v477
      %515 = vmatprep.subr.bf16.mxu0 0
      %516 = vmatpush1.bf16.msra.mxu0 %v478
      %517 = vmatprep.subr.bf16.mxu0 0
      %518 = vmatpush1.bf16.msra.mxu0 %v479
      %519 = vmatprep.subr.bf16.mxu0 0
      %520 = vmatpush1.bf16.msra.mxu0 %v480
      %521 = vmatprep.subr.bf16.mxu0 0
      %522 = vmatpush1.bf16.msra.mxu0 %v481
      %523 = vmatprep.subr.bf16.mxu0 0
      %524 = vmatpush1.bf16.msra.mxu0 %v482
      %525 = vmatprep.subr.bf16.mxu0 0
      %526 = vmatpush1.bf16.msra.mxu0 %v483
      %527 = vmatprep.subr.bf16.mxu0 0
      %528 = vmatpush1.bf16.msra.mxu0 %v484
      %529 = vmatprep.subr.bf16.mxu0 0
      %530 = vmatpush1.bf16.msra.mxu0 %v485
      %531 = vmatprep.subr.bf16.mxu0 0
      %532 = vmatpush1.bf16.msra.mxu0 %v486
      %533 = vmatprep.subr.bf16.mxu0 0
      %534 = vmatpush1.bf16.msra.mxu0 %v487
      %535 = vmatprep.subr.bf16.mxu0 0
      %536 = vmatpush1.bf16.msra.mxu0 %v488
      %537 = vmatprep.mubr.bf16.mxu0 %v346
      %538 = vmatmul.mubr.bf16.gmra.mrb[0].mxu0 %v345
      %v539 = vpop.f32.mrb[0].mxu0
      %v540 = vadd.f32 %v247, %v539
      %v541 = vpop.f32.mrb[0].mxu0
      %v542 = vpop.f32.mrb[0].mxu0
      %v543 = vadd.f32 %v247, %v542
      %v544 = vpop.f32.mrb[0].mxu0
      %545 = vmatprep.mubr.bf16.mxu0 %v348
      %546 = vmatmul.mubr.bf16.gmra.mrb[0].mxu0 %v347
      %v547 = vpop.f32.mrb[0].mxu0
      %v548 = vadd.f32 %v247, %v547
      %v549 = vpop.f32.mrb[0].mxu0
      %v550 = vpop.f32.mrb[0].mxu0
      %v551 = vadd.f32 %v247, %v550
      %v552 = vpop.f32.mrb[0].mxu0
      %553 = vmatprep.mubr.bf16.mxu0 %v350
      %554 = vmatmul.mubr.bf16.gmra.mrb[0].mxu0 %v349
      %v555 = vpop.f32.mrb[0].mxu0
      %v556 = vadd.f32 %v247, %v555
      %v557 = vpop.f32.mrb[0].mxu0
      %v558 = vpop.f32.mrb[0].mxu0
      %v559 = vadd.f32 %v247, %v558
      %v560 = vpop.f32.mrb[0].mxu0
      %561 = vmatprep.mubr.bf16.mxu0 %v352
      %562 = vmatmul.mubr.bf16.gmra.mrb[0].mxu0 %v351
      %v563 = vpop.f32.mrb[0].mxu0
      %v564 = vadd.f32 %v247, %v563
      %v565 = vpop.f32.mrb[0].mxu0
      %v566 = vpop.f32.mrb[0].mxu0
      %v567 = vadd.f32 %v247, %v566
      %v568 = vpop.f32.mrb[0].mxu0
      %569 = vmatprep.mubr.bf16.mxu0 %v354
      %570 = vmatmul.mubr.bf16.gmra.mrb[0].mxu0 %v353
      %v571 = vpop.f32.mrb[0].mxu0
      %v572 = vadd.f32 %v247, %v571
      %v573 = vpop.f32.mrb[0].mxu0
      %v574 = vpop.f32.mrb[0].mxu0
      %v575 = vadd.f32 %v247, %v574
      %v576 = vpop.f32.mrb[0].mxu0
      %577 = vmatprep.mubr.bf16.mxu0 %v356
      %578 = vmatmul.mubr.bf16.gmra.mrb[0].mxu0 %v355
      %v579 = vpop.f32.mrb[0].mxu0
      %v580 = vadd.f32 %v247, %v579
      %v581 = vpop.f32.mrb[0].mxu0
      %v582 = vpop.f32.mrb[0].mxu0
      %v583 = vadd.f32 %v247, %v582
      %v584 = vpop.f32.mrb[0].mxu0
      %585 = vmatprep.mubr.bf16.mxu0 %v358
      %586 = vmatmul.mubr.bf16.gmra.mrb[0].mxu0 %v357
      %v587 = vpop.f32.mrb[0].mxu0
      %v588 = vadd.f32 %v247, %v587
      %v589 = vpop.f32.mrb[0].mxu0
      %v590 = vpop.f32.mrb[0].mxu0
      %v591 = vadd.f32 %v247, %v590
      %v592 = vpop.f32.mrb[0].mxu0
      %593 = vmatprep.mubr.bf16.mxu0 %v360
      %594 = vmatmul.mubr.bf16.gmra.mrb[0].mxu0 %v359
      %v595 = vpop.f32.mrb[0].mxu0
      %v596 = vadd.f32 %v247, %v595
      %v597 = vpop.f32.mrb[0].mxu0
      %v598 = vpop.f32.mrb[0].mxu0
      %v599 = vadd.f32 %v247, %v598
      %v600 = vpop.f32.mrb[0].mxu0
      %601 = vmatprep.mubr.bf16.mxu0 %v362
      %602 = vmatmul.mubr.bf16.gmra.mrb[0].mxu0 %v361
      %v603 = vpop.f32.mrb[0].mxu0
      %v604 = vadd.f32 %v247, %v603
      %v605 = vpop.f32.mrb[0].mxu0
      %v606 = vpop.f32.mrb[0].mxu0
      %v607 = vadd.f32 %v247, %v606
      %v608 = vpop.f32.mrb[0].mxu0
      %609 = vmatprep.mubr.bf16.mxu0 %v364
      %610 = vmatmul.mubr.bf16.gmra.mrb[0].mxu0 %v363
      %v611 = vpop.f32.mrb[0].mxu0
      %v612 = vadd.f32 %v247, %v611
      %v613 = vpop.f32.mrb[0].mxu0
      %v614 = vpop.f32.mrb[0].mxu0
      %v615 = vadd.f32 %v247, %v614
      %v616 = vpop.f32.mrb[0].mxu0
      %617 = vmatprep.mubr.bf16.mxu0 %v366
      %618 = vmatmul.mubr.bf16.gmra.mrb[0].mxu0 %v365
      %v619 = vpop.f32.mrb[0].mxu0
      %v620 = vadd.f32 %v247, %v619
      %v621 = vpop.f32.mrb[0].mxu0
      %v622 = vpop.f32.mrb[0].mxu0
      %v623 = vadd.f32 %v247, %v622
      %v624 = vpop.f32.mrb[0].mxu0
      %625 = vmatprep.mubr.bf16.mxu0 %v368
      %626 = vmatmul.mubr.bf16.gmra.mrb[0].mxu0 %v367
      %v627 = vpop.f32.mrb[0].mxu0
      %v628 = vadd.f32 %v247, %v627
      %v629 = vpop.f32.mrb[0].mxu0
      %v630 = vpop.f32.mrb[0].mxu0
      %v631 = vadd.f32 %v247, %v630
      %v632 = vpop.f32.mrb[0].mxu0
      %633 = vmatprep.mubr.bf16.mxu0 %v370
      %634 = vmatmul.mubr.bf16.gmra.mrb[0].mxu0 %v369
      %v635 = vpop.f32.mrb[0].mxu0
      %v636 = vadd.f32 %v247, %v635
      %v637 = vpop.f32.mrb[0].mxu0
      %v638 = vpop.f32.mrb[0].mxu0
      %v639 = vadd.f32 %v247, %v638
      %v640 = vpop.f32.mrb[0].mxu0
      %641 = vmatprep.mubr.bf16.mxu0 %v372
      %642 = vmatmul.mubr.bf16.gmra.mrb[0].mxu0 %v371
      %v643 = vpop.f32.mrb[0].mxu0
      %v644 = vadd.f32 %v247, %v643
      %v645 = vpop.f32.mrb[0].mxu0
      %v646 = vpop.f32.mrb[0].mxu0
      %v647 = vadd.f32 %v247, %v646
      %v648 = vpop.f32.mrb[0].mxu0
      %649 = vmatprep.mubr.bf16.mxu0 %v374
      %650 = vmatmul.mubr.bf16.gmra.mrb[0].mxu0 %v373
      %v651 = vpop.f32.mrb[0].mxu0
      %v652 = vadd.f32 %v247, %v651
      %v653 = vpop.f32.mrb[0].mxu0
      %v654 = vpop.f32.mrb[0].mxu0
      %v655 = vadd.f32 %v247, %v654
      %v656 = vpop.f32.mrb[0].mxu0
      %657 = vmatprep.mubr.bf16.mxu0 %v376
      %658 = vmatmul.mubr.bf16.gmra.mrb[0].mxu0 %v375
      %v659 = vpop.f32.mrb[0].mxu0
      %v660 = vadd.f32 %v247, %v659
      %v661 = vpop.f32.mrb[0].mxu0
      %v662 = vpop.f32.mrb[0].mxu0
      %v663 = vadd.f32 %v247, %v662
      %v664 = vpop.f32.mrb[0].mxu0
      %665 = vdwg.mxu0
      %v666 = vmax.f32 %v540, 0.0
      %v667 = vmax.f32 %v543, 0.0
      %v668 = vmax.f32 %v548, 0.0
      %v669 = vmax.f32 %v551, 0.0
      %v670 = vmax.f32 %v556, 0.0
      %v671 = vmax.f32 %v559, 0.0
      %v672 = vmax.f32 %v564, 0.0
      %v673 = vmax.f32 %v567, 0.0
      %v674 = vmax.f32 %v572, 0.0
      %v675 = vmax.f32 %v575, 0.0
      %v676 = vmax.f32 %v580, 0.0
      %v677 = vmax.f32 %v583, 0.0
      %v678 = vmax.f32 %v588, 0.0
      %v679 = vmax.f32 %v591, 0.0
      %v680 = vmax.f32 %v596, 0.0
      %v681 = vmax.f32 %v599, 0.0
      %v682 = vmax.f32 %v604, 0.0
      %v683 = vmax.f32 %v607, 0.0
      %v684 = vmax.f32 %v612, 0.0
      %v685 = vmax.f32 %v615, 0.0
      %v686 = vmax.f32 %v620, 0.0
      %v687 = vmax.f32 %v623, 0.0
      %v688 = vmax.f32 %v628, 0.0
      %v689 = vmax.f32 %v631, 0.0
      %v690 = vmax.f32 %v636, 0.0
      %v691 = vmax.f32 %v639, 0.0
      %v692 = vmax.f32 %v644, 0.0
      %v693 = vmax.f32 %v647, 0.0
      %v694 = vmax.f32 %v652, 0.0
      %v695 = vmax.f32 %v655, 0.0
      %v696 = vmax.f32 %v660, 0.0
      %v697 = vmax.f32 %v663, 0.0
      %v698 = vpack.c.bf16 %v667, %v666
      %v699 = vpack.c.bf16 %v669, %v668
      %v700 = vpack.c.bf16 %v671, %v670
      %v701 = vpack.c.bf16 %v673, %v672
      %v702 = vpack.c.bf16 %v675, %v674
      %v703 = vpack.c.bf16 %v677, %v676
      %v704 = vpack.c.bf16 %v679, %v678
      %v705 = vpack.c.bf16 %v681, %v680
      %v706 = vpack.c.bf16 %v683, %v682
      %v707 = vpack.c.bf16 %v685, %v684
      %v708 = vpack.c.bf16 %v687, %v686
      %v709 = vpack.c.bf16 %v689, %v688
      %v710 = vpack.c.bf16 %v691, %v690
      %v711 = vpack.c.bf16 %v693, %v692
      %v712 = vpack.c.bf16 %v695, %v694
      %v713 = vpack.c.bf16 %v697, %v696
      %v730 = vunpack.c.l.b16 %v698
      %v731 = vunpack.c.h.b16 %v698
      %v732 = vunpack.c.l.b16 %v699
      %v733 = vunpack.c.h.b16 %v699
      %v734 = vunpack.c.l.b16 %v700
      %v735 = vunpack.c.h.b16 %v700
      %v736 = vunpack.c.l.b16 %v701
      %v737 = vunpack.c.h.b16 %v701
      %v738 = vunpack.c.l.b16 %v702
      %v739 = vunpack.c.h.b16 %v702
      %v740 = vunpack.c.l.b16 %v703
      %v741 = vunpack.c.h.b16 %v703
      %v742 = vunpack.c.l.b16 %v704
      %v743 = vunpack.c.h.b16 %v704
      %v744 = vunpack.c.l.b16 %v705
      %v745 = vunpack.c.h.b16 %v705
      %v746 = vunpack.c.l.b16 %v706
      %v747 = vunpack.c.h.b16 %v706
      %v748 = vunpack.c.l.b16 %v707
      %v749 = vunpack.c.h.b16 %v707
      %v750 = vunpack.c.l.b16 %v708
      %v751 = vunpack.c.h.b16 %v708
      %v752 = vunpack.c.l.b16 %v709
      %v753 = vunpack.c.h.b16 %v709
      %v754 = vunpack.c.l.b16 %v710
      %v755 = vunpack.c.h.b16 %v710
      %v756 = vunpack.c.l.b16 %v711
      %v757 = vunpack.c.h.b16 %v711
      %v758 = vunpack.c.l.b16 %v712
      %v759 = vunpack.c.h.b16 %v712
      %v760 = vunpack.c.l.b16 %v713
      %v761 = vunpack.c.h.b16 %v713
      %v762 = vpack.c.b16 %v730, %v730
      %v763 = vpack.c.b16 %v731, %v731
      %v764 = vpack.c.b16 %v732, %v732
      %v765 = vpack.c.b16 %v733, %v733
      %v766 = vpack.c.b16 %v734, %v734
      %v767 = vpack.c.b16 %v735, %v735
      %v768 = vpack.c.b16 %v736, %v736
      %v769 = vpack.c.b16 %v737, %v737
      %v770 = vpack.c.b16 %v738, %v738
      %v771 = vpack.c.b16 %v739, %v739
      %v772 = vpack.c.b16 %v740, %v740
      %v773 = vpack.c.b16 %v741, %v741
      %v774 = vpack.c.b16 %v742, %v742
      %v775 = vpack.c.b16 %v743, %v743
      %v776 = vpack.c.b16 %v744, %v744
      %v777 = vpack.c.b16 %v745, %v745
      %v778 = vpack.c.b16 %v746, %v746
      %v779 = vpack.c.b16 %v747, %v747
      %v780 = vpack.c.b16 %v748, %v748
      %v781 = vpack.c.b16 %v749, %v749
      %v782 = vpack.c.b16 %v750, %v750
      %v783 = vpack.c.b16 %v751, %v751
      %v784 = vpack.c.b16 %v752, %v752
      %v785 = vpack.c.b16 %v753, %v753
      %v786 = vpack.c.b16 %v754, %v754
      %v787 = vpack.c.b16 %v755, %v755
      %v788 = vpack.c.b16 %v756, %v756
      %v789 = vpack.c.b16 %v757, %v757
      %v790 = vpack.c.b16 %v758, %v758
      %v791 = vpack.c.b16 %v759, %v759
      %v792 = vpack.c.b16 %v760, %v760
      %v793 = vpack.c.b16 %v761, %v761
      %826 = vst [vmem:[%s175] sm:$0xf] %v762
      %827 = vst [vmem:[%s175 + $0x4] sm:$0xf] %v763
      %828 = vst [vmem:[%s175 + $0x8] sm:$0xf] %v764
      %829 = vst [vmem:[%s175 + $0xc] sm:$0xf] %v765
      %830 = vst [vmem:[%s175 + $0x10] sm:$0xf] %v766
      %831 = vst [vmem:[%s175 + $0x14] sm:$0xf] %v767
      %832 = vst [vmem:[%s175 + $0x18] sm:$0xf] %v768
      %833 = vst [vmem:[%s175 + $0x1c] sm:$0xf] %v769
      %834 = vst [vmem:[%s175 + $0x20] sm:$0xf] %v770
      %835 = vst [vmem:[%s175 + $0x24] sm:$0xf] %v771
      %836 = vst [vmem:[%s175 + $0x28] sm:$0xf] %v772
      %837 = vst [vmem:[%s175 + $0x2c] sm:$0xf] %v773
      %838 = vst [vmem:[%s175 + $0x30] sm:$0xf] %v774
      %839 = vst [vmem:[%s175 + $0x34] sm:$0xf] %v775
      %840 = vst [vmem:[%s175 + $0x38] sm:$0xf] %v776
      %841 = vst [vmem:[%s175 + $0x3c] sm:$0xf] %v777
      %842 = vst [vmem:[%s175 + $0x40] sm:$0xf] %v778
      %843 = vst [vmem:[%s175 + $0x44] sm:$0xf] %v779
      %844 = vst [vmem:[%s175 + $0x48] sm:$0xf] %v780
      %845 = vst [vmem:[%s175 + $0x4c] sm:$0xf] %v781
      %846 = vst [vmem:[%s175 + $0x50] sm:$0xf] %v782
      %847 = vst [vmem:[%s175 + $0x54] sm:$0xf] %v783
      %848 = vst [vmem:[%s175 + $0x58] sm:$0xf] %v784
      %849 = vst [vmem:[%s175 + $0x5c] sm:$0xf] %v785
      %850 = vst [vmem:[%s175 + $0x60] sm:$0xf] %v786
      %851 = vst [vmem:[%s175 + $0x64] sm:$0xf] %v787
      %852 = vst [vmem:[%s175 + $0x68] sm:$0xf] %v788
      %853 = vst [vmem:[%s175 + $0x6c] sm:$0xf] %v789
      %854 = vst [vmem:[%s175 + $0x70] sm:$0xf] %v790
      %855 = vst [vmem:[%s175 + $0x74] sm:$0xf] %v791
      %856 = vst [vmem:[%s175 + $0x78] sm:$0xf] %v792
      %857 = vst [vmem:[%s175 + $0x7c] sm:$0xf] %v793
      %s858 = smul.u32 32, %s14
      %p859 = scmp.lt.s32.totalorder %s858, 63
      %s860 = scalar_select %p859, %s858, 63
      %s861 = smul.addr %s860, 4
      %s862 = scalar_lea.vmem %s3, %s861
      // Predicated region
      $region33: #{vae_forward.16} parent=31 // pred_check
        %p863 = pneg %p100
      $region34: #{vae_forward.16} parent=31 // pred_check_branch
        %865 = sbr.rel (%p863) target = $region36
      $region35: #{vae_forward.16} parent=31 // pred_region
        %s866 = smul.u32 32, %s14
      $region36: #{vae_forward.16} parent=31 // pred_fallthru
        _
    $region32: #{vae_forward.16} parent=5 // pred_fallthru
      _
    %p867 = scmp.le.s32.totalorder 2, %s9
    // Predicated region
    $region37: #{vae_forward.16} parent=5 // pred_check
      %p868 = pneg %p867
    $region38: #{vae_forward.16} parent=5 // pred_check_branch
      %870 = sbr.rel (%p868) target = $region40
    $region39: #{vae_forward.16} parent=5 // pred_region
      %s871 = ssub.s32 %s9, 2
      // Predicated region
      $region41: #{vae_forward.16} parent=39 // pred_check
        %p872 = pneg %p106
      $region42: #{vae_forward.16} parent=39 // pred_check_branch
        %874 = sbr.rel (%p872) target = $region44
      $region43: #{vae_forward.16} parent=39 // pred_region
        %s875 = smul.u32 32, %s15
        %p876 = scmp.lt.s32.totalorder %s875, 63
        %s877 = scalar_select %p876, %s875, 63
        %s878 = smul.addr %s877, 4
        %s879 = scalar_lea.vmem %s3, %s878
      $region44: #{vae_forward.16} parent=39 // pred_fallthru
        _
    $region40: #{vae_forward.16} parent=5 // pred_fallthru
      _
  $region6: #{vae_forward.16} parent=0 // loop_footer
    %s13 = sadd.s32 1, %s9
  $region7: #{vae_forward.16} parent=0 // loop_footer_branch
    %8 = sbr.rel target = $region3
  $region8: #{vae_forward.16} parent=0 // loop_exit
    _

// kernel: vae_forward.17
$region0: #{vae_forward.17}
  #allocation0 [shape = 'u32[]', space=smem, size = 0x4, offset = 0x4, fixed_abs, tag = 'smem constant byte address 0x4 - core index']
  #allocation1 [shape = 'u32[144,128]{1,0:T(1,128)}', space=vmem, size = 0x12000, scoped, tag = 'internal scratch']
  %s0 = inlined_call_operand.vmem [shape: bf16[1792,384], index: 0, kind: input, shape index: {}]
  %s1 = inlined_call_operand.vmem [shape: bf16[384,128], index: 1, kind: input, shape index: {}]
  %s2 = inlined_call_operand.vmem [shape: f32[1,128], index: 2, kind: input, shape index: {}]
  %s3 = inlined_call_operand.vmem [shape: f32[1792,128], index: 3, kind: output, shape index: {}]
  %s4 = sld [smem:[#allocation0]]
  $region45: #{vae_forward.17} parent=0
    _
  %s6 = ssub.s32 1, %s4
  %s7 = scalar_select 0, %s6, %s4
  loop: start=0, step=1, limit=9
  $region2: #{vae_forward.17} parent=0 // loop_pre_header
    _
  $region3: #{vae_forward.17} parent=0 // loop_header
    %s9 = sphi 0, %s13
    %p10 = scmp.ge.s32.totalorder %s9, 9
    %s19 = sphi 0, %s21
    %s22 = sphi 0, %s19
    %s23 = sphi 0, %s22
    %s39 = sphi 0, %s23
    %s43 = sphi 0, %s43
    %s45 = sphi 0, %s43
    %s46 = sphi 0, %s45
    %s60 = sphi 0, %s46
    %s64 = sphi 0, %s64
    %s66 = sphi 0, %s64
    %s67 = sphi 0, %s66
    %s81 = sphi 0, %s67
    %s87 = sphi 0, %s89
    %s90 = sphi 0, %s87
    %s91 = sphi 0, %s90
    %s107 = sphi 0, %s91
  $region4: #{vae_forward.17} parent=0 // loop_header_branch
    %12 = sbr.rel (%p10) target = $region8
  $region5: #{vae_forward.17} parent=0 // loop_body
    %s14 = ssub.s32 %s9, 1
    %s15 = ssub.s32 %s9, 2
    %s16 = sadd.s32 %s9, 1
    %s17 = ssub.s32 %s9, %s16
    %p18 = scmp.eq.s32.totalorder %s17, 0
    %s20 = sadd.s32 %s19, 1
    %s21 = scalar_select %p18, %s19, %s20
    %p24 = pneg %p18
    %p25 = scmp.eq.s32.totalorder %s9, 6
    %p26 = por %p24, %p25
    %p27 = scmp.ne.s32.totalorder %s19, %s22
    %p28 = scmp.eq.s32.totalorder %s9, 0
    %p29 = por %p27, %p28
    %p30 = scmp.ne.s32.totalorder %s19, %s22
    %p31 = scmp.eq.s32.totalorder %s14, 6
    %p32 = por %p30, %p31
    %p33 = scmp.ne.s32.totalorder %s22, %s23
    %p34 = scmp.eq.s32.totalorder %s14, 0
    %p35 = por %p33, %p34
    %p36 = scmp.ne.s32.totalorder %s22, %s23
    %p37 = scmp.eq.s32.totalorder %s15, 6
    %p38 = por %p36, %p37
    %p40 = scmp.ne.s32.totalorder %s23, %s39
    %p41 = scmp.eq.s32.totalorder %s15, 0
    %p42 = por %p40, %p41
    %s44 = sadd.s32 %s43, 1
    %p47 = scmp.eq.s32.totalorder %s9, 6
    %p48 = scmp.ne.s32.totalorder %s43, %s45
    %p49 = scmp.eq.s32.totalorder %s9, 0
    %p50 = por %p48, %p49
    %p51 = scmp.ne.s32.totalorder %s43, %s45
    %p52 = scmp.eq.s32.totalorder %s14, 6
    %p53 = por %p51, %p52
    %p54 = scmp.ne.s32.totalorder %s45, %s46
    %p55 = scmp.eq.s32.totalorder %s14, 0
    %p56 = por %p54, %p55
    %p57 = scmp.ne.s32.totalorder %s45, %s46
    %p58 = scmp.eq.s32.totalorder %s15, 6
    %p59 = por %p57, %p58
    %p61 = scmp.ne.s32.totalorder %s46, %s60
    %p62 = scmp.eq.s32.totalorder %s15, 0
    %p63 = por %p61, %p62
    %s65 = sadd.s32 %s64, 1
    %p68 = scmp.eq.s32.totalorder %s9, 6
    %p69 = scmp.ne.s32.totalorder %s64, %s66
    %p70 = scmp.eq.s32.totalorder %s9, 0
    %p71 = por %p69, %p70
    %p72 = scmp.ne.s32.totalorder %s64, %s66
    %p73 = scmp.eq.s32.totalorder %s14, 6
    %p74 = por %p72, %p73
    %p75 = scmp.ne.s32.totalorder %s66, %s67
    %p76 = scmp.eq.s32.totalorder %s14, 0
    %p77 = por %p75, %p76
    %p78 = scmp.ne.s32.totalorder %s66, %s67
    %p79 = scmp.eq.s32.totalorder %s15, 6
    %p80 = por %p78, %p79
    %p82 = scmp.ne.s32.totalorder %s67, %s81
    %p83 = scmp.eq.s32.totalorder %s15, 0
    %p84 = por %p82, %p83
    %s85 = ssub.s32 %s9, %s16
    %p86 = scmp.eq.s32.totalorder %s85, 0
    %s88 = sadd.s32 %s87, 1
    %s89 = scalar_select %p86, %s87, %s88
    %p92 = pneg %p86
    %p93 = scmp.eq.s32.totalorder %s9, 6
    %p94 = por %p92, %p93
    %p95 = scmp.ne.s32.totalorder %s87, %s90
    %p96 = scmp.eq.s32.totalorder %s9, 0
    %p97 = por %p95, %p96
    %p98 = scmp.ne.s32.totalorder %s87, %s90
    %p99 = scmp.eq.s32.totalorder %s14, 6
    %p100 = por %p98, %p99
    %p101 = scmp.ne.s32.totalorder %s90, %s91
    %p102 = scmp.eq.s32.totalorder %s14, 0
    %p103 = por %p101, %p102
    %p104 = scmp.ne.s32.totalorder %s90, %s91
    %p105 = scmp.eq.s32.totalorder %s15, 6
    %p106 = por %p104, %p105
    %p108 = scmp.ne.s32.totalorder %s91, %s107
    %p109 = scmp.eq.s32.totalorder %s15, 0
    %p110 = por %p108, %p109
    %p111 = scmp.le.s32.totalorder 1, %s9
    %p112 = scmp.lt.s32.totalorder %s9, 8
    %p113 = pnand %p111, %p112
    %p114 = pneg %p113
    // Predicated region
    $region9: #{vae_forward.17} parent=5 // pred_check
      _
    $region10: #{vae_forward.17} parent=5 // pred_check_branch
      %116 = sbr.rel (%p113) target = $region12
    $region11: #{vae_forward.17} parent=5 // pred_region
      %s117 = ssub.s32 %s9, 1
      // Predicated region
      $region13: #{vae_forward.17} parent=11 // pred_check
        %p118 = pneg %p56
      $region14: #{vae_forward.17} parent=11 // pred_check_branch
        %120 = sbr.rel (%p118) target = $region16
      $region15: #{vae_forward.17} parent=11 // pred_region
        _
      $region16: #{vae_forward.17} parent=11 // pred_fallthru
        _
      // Predicated region
      $region17: #{vae_forward.17} parent=11 // pred_check
        %p121 = pneg %p77
      $region18: #{vae_forward.17} parent=11 // pred_check_branch
        %123 = sbr.rel (%p121) target = $region20
      $region19: #{vae_forward.17} parent=11 // pred_region
        _
      $region20: #{vae_forward.17} parent=11 // pred_fallthru
        _
    $region12: #{vae_forward.17} parent=5 // pred_fallthru
      _
    %p124 = scmp.lt.s32.totalorder %s9, 7
    // Predicated region
    $region21: #{vae_forward.17} parent=5 // pred_check
      %p125 = pneg %p124
    $region22: #{vae_forward.17} parent=5 // pred_check_branch
      %127 = sbr.rel (%p125) target = $region24
    $region23: #{vae_forward.17} parent=5 // pred_region
      // Predicated region
      $region25: #{vae_forward.17} parent=23 // pred_check
        %p128 = pneg %p29
      $region26: #{vae_forward.17} parent=23 // pred_check_branch
        %130 = sbr.rel (%p128) target = $region28
      $region27: #{vae_forward.17} parent=23 // pred_region
        %s131 = smul.u32 32, %s9
        %p132 = scmp.lt.s32.totalorder %s131, 223
        %s133 = scalar_select %p132, %s131, 223
        %s134 = smul.addr %s133, 3
        %s135 = smul.addr %s134, 4
        %s136 = scalar_lea.vmem %s0, %s135
        %s137 = smul.u32 32, %s9
      $region28: #{vae_forward.17} parent=23 // pred_fallthru
        _
    $region24: #{vae_forward.17} parent=5 // pred_fallthru
      _
    %p138 = scmp.le.s32.totalorder 1, %s9
    %p139 = scmp.lt.s32.totalorder %s9, 8
    %p140 = pnand %p138, %p139
    %p141 = pneg %p140
    // Predicated region
    $region29: #{vae_forward.17} parent=5 // pred_check
      _
    $region30: #{vae_forward.17} parent=5 // pred_check_branch
      %143 = sbr.rel (%p140) target = $region32
    $region31: #{vae_forward.17} parent=5 // pred_region
      %s144 = ssub.s32 %s9, 1
      %s145 = smul.u32 32, %s14
      %p146 = scmp.lt.s32.totalorder %s145, 223
      %s147 = scalar_select %p146, %s145, 223
      %s148 = smul.addr %s147, 3
      %s149 = smul.addr %s148, 4
      %s150 = scalar_lea.vmem %s0, %s149
      %p151 = pneg %p35
      %p152 = pneg %p32
      %p153 = pneg %p56
      %p154 = pneg %p53
      %p155 = pneg %p77
      %p156 = pneg %p74
      %p157 = pneg %p103
      %p158 = pneg %p100
      %s159 = smul.u32 32, %s14
      %p160 = scmp.lt.s32.totalorder %s159, 223
      %s161 = scalar_select %p160, %s159, 223
      %s162 = smul.addr %s161, 8
      %s163 = scalar_lea.vmem %s3, %s162
      %s164 = smul.u32 32, %s14
      %p165 = scmp.lt.s32.totalorder %s164, 223
      %s166 = scalar_select %p165, %s164, 223
      %s167 = smul.addr %s166, 3
      %s168 = smul.addr %s167, 4
      %s169 = scalar_lea.vmem %s0, %s168
      %s170 = smul.u32 32, %s14
      %s171 = smul.u32 32, %s14
      %p172 = scmp.lt.s32.totalorder %s171, 223
      %s173 = scalar_select %p172, %s171, 223
      %s174 = smul.addr %s173, 8
      %s175 = scalar_lea.vmem %s3, %s174
      %s176 = smul.u32 32, %s14
      %v178 = vld [vmem:[%s169] sm:$0xff]
      %v179 = vld [vmem:[%s169 + $0x8] sm:$0xf]
      %v180 = vld [vmem:[%s169 + $0xc] sm:$0xff]
      %v181 = vld [vmem:[%s169 + $0x14] sm:$0xf]
      %v182 = vld [vmem:[%s169 + $0x18] sm:$0xff]
      %v183 = vld [vmem:[%s169 + $0x20] sm:$0xf]
      %v184 = vld [vmem:[%s169 + $0x24] sm:$0xff]
      %v185 = vld [vmem:[%s169 + $0x2c] sm:$0xf]
      %v186 = vld [vmem:[%s169 + $0x30] sm:$0xff]
      %v187 = vld [vmem:[%s169 + $0x38] sm:$0xf]
      %v188 = vld [vmem:[%s169 + $0x3c] sm:$0xff]
      %v189 = vld [vmem:[%s169 + $0x44] sm:$0xf]
      %v190 = vld [vmem:[%s169 + $0x48] sm:$0xff]
      %v191 = vld [vmem:[%s169 + $0x50] sm:$0xf]
      %v192 = vld [vmem:[%s169 + $0x54] sm:$0xff]
      %v193 = vld [vmem:[%s169 + $0x5c] sm:$0xf]
      %v194 = vld [vmem:[%s169 + $0x60] sm:$0xff]
      %v195 = vld [vmem:[%s169 + $0x68] sm:$0xf]
      %v196 = vld [vmem:[%s169 + $0x6c] sm:$0xff]
      %v197 = vld [vmem:[%s169 + $0x74] sm:$0xf]
      %v198 = vld [vmem:[%s169 + $0x78] sm:$0xff]
      %v199 = vld [vmem:[%s169 + $0x80] sm:$0xf]
      %v200 = vld [vmem:[%s169 + $0x84] sm:$0xff]
      %v201 = vld [vmem:[%s169 + $0x8c] sm:$0xf]
      %v202 = vld [vmem:[%s169 + $0x90] sm:$0xff]
      %v203 = vld [vmem:[%s169 + $0x98] sm:$0xf]
      %v204 = vld [vmem:[%s169 + $0x9c] sm:$0xff]
      %v205 = vld [vmem:[%s169 + $0xa4] sm:$0xf]
      %v206 = vld [vmem:[%s169 + $0xa8] sm:$0xff]
      %v207 = vld [vmem:[%s169 + $0xb0] sm:$0xf]
      %v208 = vld [vmem:[%s169 + $0xb4] sm:$0xff]
      %v209 = vld [vmem:[%s169 + $0xbc] sm:$0xf]
      %v210 = vld [vmem:[%s169 + $0xc0] sm:$0xff]
      %v211 = vld [vmem:[%s169 + $0xc8] sm:$0xf]
      %v212 = vld [vmem:[%s169 + $0xcc] sm:$0xff]
      %v213 = vld [vmem:[%s169 + $0xd4] sm:$0xf]
      %v214 = vld [vmem:[%s169 + $0xd8] sm:$0xff]
      %v215 = vld [vmem:[%s169 + $0xe0] sm:$0xf]
      %v216 = vld [vmem:[%s169 + $0xe4] sm:$0xff]
      %v217 = vld [vmem:[%s169 + $0xec] sm:$0xf]
      %v218 = vld [vmem:[%s169 + $0xf0] sm:$0xff]
      %v219 = vld [vmem:[%s169 + $0xf8] sm:$0xf]
      %v220 = vld [vmem:[%s169 + $0xfc] sm:$0xff]
      %v221 = vld [vmem:[%s169 + $0x104] sm:$0xf]
      %v222 = vld [vmem:[%s169 + $0x108] sm:$0xff]
      %v223 = vld [vmem:[%s169 + $0x110] sm:$0xf]
      %v224 = vld [vmem:[%s169 + $0x114] sm:$0xff]
      %v225 = vld [vmem:[%s169 + $0x11c] sm:$0xf]
      %v226 = vld [vmem:[%s169 + $0x120] sm:$0xff]
      %v227 = vld [vmem:[%s169 + $0x128] sm:$0xf]
      %v228 = vld [vmem:[%s169 + $0x12c] sm:$0xff]
      %v229 = vld [vmem:[%s169 + $0x134] sm:$0xf]
      %v230 = vld [vmem:[%s169 + $0x138] sm:$0xff]
      %v231 = vld [vmem:[%s169 + $0x140] sm:$0xf]
      %v232 = vld [vmem:[%s169 + $0x144] sm:$0xff]
      %v233 = vld [vmem:[%s169 + $0x14c] sm:$0xf]
      %v234 = vld [vmem:[%s169 + $0x150] sm:$0xff]
      %v235 = vld [vmem:[%s169 + $0x158] sm:$0xf]
      %v236 = vld [vmem:[%s169 + $0x15c] sm:$0xff]
      %v237 = vld [vmem:[%s169 + $0x164] sm:$0xf]
      %v238 = vld [vmem:[%s169 + $0x168] sm:$0xff]
      %v239 = vld [vmem:[%s169 + $0x170] sm:$0xf]
      %v240 = vld [vmem:[%s169 + $0x174] sm:$0xff]
      %v241 = vld [vmem:[%s169 + $0x17c] sm:$0xf]
      %v242 = vld [vmem:[%s1] sm:$0xf]
      %v243 = vld [vmem:[%s1 + $0x4] sm:$0xf]
      %v244 = vld [vmem:[%s1 + $0x8] sm:$0xf]
      %v245 = vld [vmem:[%s1 + $0xc] sm:$0xf]
      %v246 = vld [vmem:[%s1 + $0x10] sm:$0xf]
      %v247 = vld [vmem:[%s1 + $0x14] sm:$0xf]
      %v248 = vld [vmem:[%s1 + $0x18] sm:$0xf]
      %v249 = vld [vmem:[%s1 + $0x1c] sm:$0xf]
      %v250 = vld [vmem:[%s1 + $0x20] sm:$0xf]
      %v251 = vld [vmem:[%s1 + $0x24] sm:$0xf]
      %v252 = vld [vmem:[%s1 + $0x28] sm:$0xf]
      %v253 = vld [vmem:[%s1 + $0x2c] sm:$0xf]
      %v254 = vld [vmem:[%s1 + $0x30] sm:$0xf]
      %v255 = vld [vmem:[%s1 + $0x34] sm:$0xf]
      %v256 = vld [vmem:[%s1 + $0x38] sm:$0xf]
      %v257 = vld [vmem:[%s1 + $0x3c] sm:$0xf]
      %v258 = vld [vmem:[%s1 + $0x40] sm:$0xf]
      %v259 = vld [vmem:[%s1 + $0x44] sm:$0xf]
      %v260 = vld [vmem:[%s1 + $0x48] sm:$0xf]
      %v261 = vld [vmem:[%s1 + $0x4c] sm:$0xf]
      %v262 = vld [vmem:[%s1 + $0x50] sm:$0xf]
      %v263 = vld [vmem:[%s1 + $0x54] sm:$0xf]
      %v264 = vld [vmem:[%s1 + $0x58] sm:$0xf]
      %v265 = vld [vmem:[%s1 + $0x5c] sm:$0xf]
      %v266 = vld [vmem:[%s1 + $0x60] sm:$0xf]
      %v267 = vld [vmem:[%s1 + $0x64] sm:$0xf]
      %v268 = vld [vmem:[%s1 + $0x68] sm:$0xf]
      %v269 = vld [vmem:[%s1 + $0x6c] sm:$0xf]
      %v270 = vld [vmem:[%s1 + $0x70] sm:$0xf]
      %v271 = vld [vmem:[%s1 + $0x74] sm:$0xf]
      %v272 = vld [vmem:[%s1 + $0x78] sm:$0xf]
      %v273 = vld [vmem:[%s1 + $0x7c] sm:$0xf]
      %v274 = vld [vmem:[%s1 + $0x80] sm:$0xf]
      %v275 = vld [vmem:[%s1 + $0x84] sm:$0xf]
      %v276 = vld [vmem:[%s1 + $0x88] sm:$0xf]
      %v277 = vld [vmem:[%s1 + $0x8c] sm:$0xf]
      %v278 = vld [vmem:[%s1 + $0x90] sm:$0xf]
      %v279 = vld [vmem:[%s1 + $0x94] sm:$0xf]
      %v280 = vld [vmem:[%s1 + $0x98] sm:$0xf]
      %v281 = vld [vmem:[%s1 + $0x9c] sm:$0xf]
      %v282 = vld [vmem:[%s1 + $0xa0] sm:$0xf]
      %v283 = vld [vmem:[%s1 + $0xa4] sm:$0xf]
      %v284 = vld [vmem:[%s1 + $0xa8] sm:$0xf]
      %v285 = vld [vmem:[%s1 + $0xac] sm:$0xf]
      %v286 = vld [vmem:[%s1 + $0xb0] sm:$0xf]
      %v287 = vld [vmem:[%s1 + $0xb4] sm:$0xf]
      %v288 = vld [vmem:[%s1 + $0xb8] sm:$0xf]
      %v289 = vld [vmem:[%s1 + $0xbc] sm:$0xf]
      %v290 = vld [vmem:[%s2] sm:$0x1]
      %v292 = vlaneseq
      %v293 = vshrl.u32 %v292, 7
      %v294 = vsub.s32 0, %v293
      %v295 = vrot.slane %v290, %v294
      %v361 = vunpack.c.l.b16 %v178
      %v362 = vunpack.c.h.b16 %v178
      %v363 = vunpack.c.l.b16 %v179
      %v364 = vunpack.c.l.b16 %v180
      %v365 = vunpack.c.h.b16 %v180
      %v366 = vunpack.c.l.b16 %v181
      %v367 = vunpack.c.l.b16 %v182
      %v368 = vunpack.c.h.b16 %v182
      %v369 = vunpack.c.l.b16 %v183
      %v370 = vunpack.c.l.b16 %v184
      %v371 = vunpack.c.h.b16 %v184
      %v372 = vunpack.c.l.b16 %v185
      %v373 = vunpack.c.l.b16 %v186
      %v374 = vunpack.c.h.b16 %v186
      %v375 = vunpack.c.l.b16 %v187
      %v376 = vunpack.c.l.b16 %v188
      %v377 = vunpack.c.h.b16 %v188
      %v378 = vunpack.c.l.b16 %v189
      %v379 = vunpack.c.l.b16 %v190
      %v380 = vunpack.c.h.b16 %v190
      %v381 = vunpack.c.l.b16 %v191
      %v382 = vunpack.c.l.b16 %v192
      %v383 = vunpack.c.h.b16 %v192
      %v384 = vunpack.c.l.b16 %v193
      %v385 = vunpack.c.l.b16 %v194
      %v386 = vunpack.c.h.b16 %v194
      %v387 = vunpack.c.l.b16 %v195
      %v388 = vunpack.c.l.b16 %v196
      %v389 = vunpack.c.h.b16 %v196
      %v390 = vunpack.c.l.b16 %v197
      %v391 = vunpack.c.l.b16 %v198
      %v392 = vunpack.c.h.b16 %v198
      %v393 = vunpack.c.l.b16 %v199
      %v394 = vunpack.c.l.b16 %v200
      %v395 = vunpack.c.h.b16 %v200
      %v396 = vunpack.c.l.b16 %v201
      %v397 = vunpack.c.l.b16 %v202
      %v398 = vunpack.c.h.b16 %v202
      %v399 = vunpack.c.l.b16 %v203
      %v400 = vunpack.c.l.b16 %v204
      %v401 = vunpack.c.h.b16 %v204
      %v402 = vunpack.c.l.b16 %v205
      %v403 = vunpack.c.l.b16 %v206
      %v404 = vunpack.c.h.b16 %v206
      %v405 = vunpack.c.l.b16 %v207
      %v406 = vunpack.c.l.b16 %v208
      %v407 = vunpack.c.h.b16 %v208
      %v408 = vunpack.c.l.b16 %v209
      %v409 = vunpack.c.l.b16 %v210
      %v410 = vunpack.c.h.b16 %v210
      %v411 = vunpack.c.l.b16 %v211
      %v412 = vunpack.c.l.b16 %v212
      %v413 = vunpack.c.h.b16 %v212
      %v414 = vunpack.c.l.b16 %v213
      %v415 = vunpack.c.l.b16 %v214
      %v416 = vunpack.c.h.b16 %v214
      %v417 = vunpack.c.l.b16 %v215
      %v418 = vunpack.c.l.b16 %v216
      %v419 = vunpack.c.h.b16 %v216
      %v420 = vunpack.c.l.b16 %v217
      %v421 = vunpack.c.l.b16 %v218
      %v422 = vunpack.c.h.b16 %v218
      %v423 = vunpack.c.l.b16 %v219
      %v424 = vunpack.c.l.b16 %v220
      %v425 = vunpack.c.h.b16 %v220
      %v426 = vunpack.c.l.b16 %v221
      %v427 = vunpack.c.l.b16 %v222
      %v428 = vunpack.c.h.b16 %v222
      %v429 = vunpack.c.l.b16 %v223
      %v430 = vunpack.c.l.b16 %v224
      %v431 = vunpack.c.h.b16 %v224
      %v432 = vunpack.c.l.b16 %v225
      %v433 = vunpack.c.l.b16 %v226
      %v434 = vunpack.c.h.b16 %v226
      %v435 = vunpack.c.l.b16 %v227
      %v436 = vunpack.c.l.b16 %v228
      %v437 = vunpack.c.h.b16 %v228
      %v438 = vunpack.c.l.b16 %v229
      %v439 = vunpack.c.l.b16 %v230
      %v440 = vunpack.c.h.b16 %v230
      %v441 = vunpack.c.l.b16 %v231
      %v442 = vunpack.c.l.b16 %v232
      %v443 = vunpack.c.h.b16 %v232
      %v444 = vunpack.c.l.b16 %v233
      %v445 = vunpack.c.l.b16 %v234
      %v446 = vunpack.c.h.b16 %v234
      %v447 = vunpack.c.l.b16 %v235
      %v448 = vunpack.c.l.b16 %v236
      %v449 = vunpack.c.h.b16 %v236
      %v450 = vunpack.c.l.b16 %v237
      %v451 = vunpack.c.l.b16 %v238
      %v452 = vunpack.c.h.b16 %v238
      %v453 = vunpack.c.l.b16 %v239
      %v454 = vunpack.c.l.b16 %v240
      %v455 = vunpack.c.h.b16 %v240
      %v456 = vunpack.c.l.b16 %v241
      %v457 = vpack.c.b16 %v364, %v361
      %v458 = vpack.c.b16 %v365, %v362
      %v459 = vpack.c.b16 %v366, %v363
      %v460 = vpack.c.b16 %v370, %v367
      %v461 = vpack.c.b16 %v371, %v368
      %v462 = vpack.c.b16 %v372, %v369
      %v463 = vpack.c.b16 %v376, %v373
      %v464 = vpack.c.b16 %v377, %v374
      %v465 = vpack.c.b16 %v378, %v375
      %v466 = vpack.c.b16 %v382, %v379
      %v467 = vpack.c.b16 %v383, %v380
      %v468 = vpack.c.b16 %v384, %v381
      %v469 = vpack.c.b16 %v388, %v385
      %v470 = vpack.c.b16 %v389, %v386
      %v471 = vpack.c.b16 %v390, %v387
      %v472 = vpack.c.b16 %v394, %v391
      %v473 = vpack.c.b16 %v395, %v392
      %v474 = vpack.c.b16 %v396, %v393
      %v475 = vpack.c.b16 %v400, %v397
      %v476 = vpack.c.b16 %v401, %v398
      %v477 = vpack.c.b16 %v402, %v399
      %v478 = vpack.c.b16 %v406, %v403
      %v479 = vpack.c.b16 %v407, %v404
      %v480 = vpack.c.b16 %v408, %v405
      %v481 = vpack.c.b16 %v412, %v409
      %v482 = vpack.c.b16 %v413, %v410
      %v483 = vpack.c.b16 %v414, %v411
      %v484 = vpack.c.b16 %v418, %v415
      %v485 = vpack.c.b16 %v419, %v416
      %v486 = vpack.c.b16 %v420, %v417
      %v487 = vpack.c.b16 %v424, %v421
      %v488 = vpack.c.b16 %v425, %v422
      %v489 = vpack.c.b16 %v426, %v423
      %v490 = vpack.c.b16 %v430, %v427
      %v491 = vpack.c.b16 %v431, %v428
      %v492 = vpack.c.b16 %v432, %v429
      %v493 = vpack.c.b16 %v436, %v433
      %v494 = vpack.c.b16 %v437, %v434
      %v495 = vpack.c.b16 %v438, %v435
      %v496 = vpack.c.b16 %v442, %v439
      %v497 = vpack.c.b16 %v443, %v440
      %v498 = vpack.c.b16 %v444, %v441
      %v499 = vpack.c.b16 %v448, %v445
      %v500 = vpack.c.b16 %v449, %v446
      %v501 = vpack.c.b16 %v450, %v447
      %v502 = vpack.c.b16 %v454, %v451
      %v503 = vpack.c.b16 %v455, %v452
      %v504 = vpack.c.b16 %v456, %v453
      %v601 = vunpack.c.l.b16 %v242
      %v602 = vunpack.c.l.b16 %v243
      %v603 = vunpack.c.l.b16 %v244
      %v604 = vunpack.c.l.b16 %v245
      %v605 = vunpack.c.l.b16 %v246
      %v606 = vunpack.c.l.b16 %v247
      %v607 = vunpack.c.l.b16 %v248
      %v608 = vunpack.c.l.b16 %v249
      %v609 = vunpack.c.l.b16 %v250
      %v610 = vunpack.c.l.b16 %v251
      %v611 = vunpack.c.l.b16 %v252
      %v612 = vunpack.c.l.b16 %v253
      %v613 = vunpack.c.l.b16 %v254
      %v614 = vunpack.c.l.b16 %v255
      %v615 = vunpack.c.l.b16 %v256
      %v616 = vunpack.c.l.b16 %v257
      %v617 = vunpack.c.l.b16 %v258
      %v618 = vunpack.c.l.b16 %v259
      %v619 = vunpack.c.l.b16 %v260
      %v620 = vunpack.c.l.b16 %v261
      %v621 = vunpack.c.l.b16 %v262
      %v622 = vunpack.c.l.b16 %v263
      %v623 = vunpack.c.l.b16 %v264
      %v624 = vunpack.c.l.b16 %v265
      %v625 = vunpack.c.l.b16 %v266
      %v626 = vunpack.c.l.b16 %v267
      %v627 = vunpack.c.l.b16 %v268
      %v628 = vunpack.c.l.b16 %v269
      %v629 = vunpack.c.l.b16 %v270
      %v630 = vunpack.c.l.b16 %v271
      %v631 = vunpack.c.l.b16 %v272
      %v632 = vunpack.c.l.b16 %v273
      %v633 = vunpack.c.l.b16 %v274
      %v634 = vunpack.c.l.b16 %v275
      %v635 = vunpack.c.l.b16 %v276
      %v636 = vunpack.c.l.b16 %v277
      %v637 = vunpack.c.l.b16 %v278
      %v638 = vunpack.c.l.b16 %v279
      %v639 = vunpack.c.l.b16 %v280
      %v640 = vunpack.c.l.b16 %v281
      %v641 = vunpack.c.l.b16 %v282
      %v642 = vunpack.c.l.b16 %v283
      %v643 = vunpack.c.l.b16 %v284
      %v644 = vunpack.c.l.b16 %v285
      %v645 = vunpack.c.l.b16 %v286
      %v646 = vunpack.c.l.b16 %v287
      %v647 = vunpack.c.l.b16 %v288
      %v648 = vunpack.c.l.b16 %v289
      %v649 = vpack.c.b16 %v602, %v601
      %v650 = vpack.c.b16 %v604, %v603
      %v651 = vpack.c.b16 %v606, %v605
      %v652 = vpack.c.b16 %v608, %v607
      %v653 = vpack.c.b16 %v610, %v609
      %v654 = vpack.c.b16 %v612, %v611
      %v655 = vpack.c.b16 %v614, %v613
      %v656 = vpack.c.b16 %v616, %v615
      %v657 = vpack.c.b16 %v618, %v617
      %v658 = vpack.c.b16 %v620, %v619
      %v659 = vpack.c.b16 %v622, %v621
      %v660 = vpack.c.b16 %v624, %v623
      %v661 = vpack.c.b16 %v626, %v625
      %v662 = vpack.c.b16 %v628, %v627
      %v663 = vpack.c.b16 %v630, %v629
      %v664 = vpack.c.b16 %v632, %v631
      %v665 = vpack.c.b16 %v634, %v633
      %v666 = vpack.c.b16 %v636, %v635
      %v667 = vpack.c.b16 %v638, %v637
      %v668 = vpack.c.b16 %v640, %v639
      %v669 = vpack.c.b16 %v642, %v641
      %v670 = vpack.c.b16 %v644, %v643
      %v671 = vpack.c.b16 %v646, %v645
      %v672 = vpack.c.b16 %v648, %v647
      %697 = vmatprep.subr.bf16.mxu0 0
      %698 = vmatpush1.bf16.msra.mxu0 %v649
      %699 = vmatprep.subr.bf16.mxu0 0
      %700 = vmatpush1.bf16.msra.mxu0 %v650
      %701 = vmatprep.subr.bf16.mxu0 0
      %702 = vmatpush1.bf16.msra.mxu0 %v651
      %703 = vmatprep.subr.bf16.mxu0 0
      %704 = vmatpush1.bf16.msra.mxu0 %v652
      %705 = vmatprep.subr.bf16.mxu0 0
      %706 = vmatpush1.bf16.msra.mxu0 %v653
      %707 = vmatprep.subr.bf16.mxu0 0
      %708 = vmatpush1.bf16.msra.mxu0 %v654
      %709 = vmatprep.subr.bf16.mxu0 0
      %710 = vmatpush1.bf16.msra.mxu0 %v655
      %711 = vmatprep.subr.bf16.mxu0 0
      %712 = vmatpush1.bf16.msra.mxu0 %v656
      %713 = vmatprep.subr.bf16.mxu0 0
      %714 = vmatpush1.bf16.msra.mxu0 %v657
      %715 = vmatprep.subr.bf16.mxu0 0
      %716 = vmatpush1.bf16.msra.mxu0 %v658
      %717 = vmatprep.subr.bf16.mxu0 0
      %718 = vmatpush1.bf16.msra.mxu0 %v659
      %719 = vmatprep.subr.bf16.mxu0 0
      %720 = vmatpush1.bf16.msra.mxu0 %v660
      %721 = vmatprep.subr.bf16.mxu0 0
      %722 = vmatpush1.bf16.msra.mxu0 %v661
      %723 = vmatprep.subr.bf16.mxu0 0
      %724 = vmatpush1.bf16.msra.mxu0 %v662
      %725 = vmatprep.subr.bf16.mxu0 0
      %726 = vmatpush1.bf16.msra.mxu0 %v663
      %727 = vmatprep.subr.bf16.mxu0 0
      %728 = vmatpush1.bf16.msra.mxu0 %v664
      %729 = vmatprep.mubr.bf16.mxu0 %v458
      %730 = vmatmul.mubr.bf16.gmra.mrb[0].mxu0 %v457
      %v731 = vpop.f32.mrb[0].mxu0
      %v732 = vadd.f32 %v295, %v731
      %v733 = vpop.f32.mrb[0].mxu0
      %v734 = vpop.f32.mrb[0].mxu0
      %v735 = vadd.f32 %v295, %v734
      %v736 = vpop.f32.mrb[0].mxu0
      %737 = vmatprep.mubr.bf16.mxu0 %v461
      %738 = vmatmul.mubr.bf16.gmra.mrb[0].mxu0 %v460
      %v739 = vpop.f32.mrb[0].mxu0
      %v740 = vadd.f32 %v295, %v739
      %v741 = vpop.f32.mrb[0].mxu0
      %v742 = vpop.f32.mrb[0].mxu0
      %v743 = vadd.f32 %v295, %v742
      %v744 = vpop.f32.mrb[0].mxu0
      %745 = vmatprep.mubr.bf16.mxu0 %v464
      %746 = vmatmul.mubr.bf16.gmra.mrb[0].mxu0 %v463
      %v747 = vpop.f32.mrb[0].mxu0
      %v748 = vadd.f32 %v295, %v747
      %v749 = vpop.f32.mrb[0].mxu0
      %v750 = vpop.f32.mrb[0].mxu0
      %v751 = vadd.f32 %v295, %v750
      %v752 = vpop.f32.mrb[0].mxu0
      %753 = vmatprep.mubr.bf16.mxu0 %v467
      %754 = vmatmul.mubr.bf16.gmra.mrb[0].mxu0 %v466
      %v755 = vpop.f32.mrb[0].mxu0
      %v756 = vadd.f32 %v295, %v755
      %v757 = vpop.f32.mrb[0].mxu0
      %v758 = vpop.f32.mrb[0].mxu0
      %v759 = vadd.f32 %v295, %v758
      %v760 = vpop.f32.mrb[0].mxu0
      %761 = vmatprep.mubr.bf16.mxu0 %v470
      %762 = vmatmul.mubr.bf16.gmra.mrb[0].mxu0 %v469
      %v763 = vpop.f32.mrb[0].mxu0
      %v764 = vadd.f32 %v295, %v763
      %v765 = vpop.f32.mrb[0].mxu0
      %v766 = vpop.f32.mrb[0].mxu0
      %v767 = vadd.f32 %v295, %v766
      %v768 = vpop.f32.mrb[0].mxu0
      %769 = vmatprep.mubr.bf16.mxu0 %v473
      %770 = vmatmul.mubr.bf16.gmra.mrb[0].mxu0 %v472
      %v771 = vpop.f32.mrb[0].mxu0
      %v772 = vadd.f32 %v295, %v771
      %v773 = vpop.f32.mrb[0].mxu0
      %v774 = vpop.f32.mrb[0].mxu0
      %v775 = vadd.f32 %v295, %v774
      %v776 = vpop.f32.mrb[0].mxu0
      %777 = vmatprep.mubr.bf16.mxu0 %v476
      %778 = vmatmul.mubr.bf16.gmra.mrb[0].mxu0 %v475
      %v779 = vpop.f32.mrb[0].mxu0
      %v780 = vadd.f32 %v295, %v779
      %v781 = vpop.f32.mrb[0].mxu0
      %v782 = vpop.f32.mrb[0].mxu0
      %v783 = vadd.f32 %v295, %v782
      %v784 = vpop.f32.mrb[0].mxu0
      %785 = vmatprep.mubr.bf16.mxu0 %v479
      %786 = vmatmul.mubr.bf16.gmra.mrb[0].mxu0 %v478
      %v787 = vpop.f32.mrb[0].mxu0
      %v788 = vadd.f32 %v295, %v787
      %v789 = vpop.f32.mrb[0].mxu0
      %v790 = vpop.f32.mrb[0].mxu0
      %v791 = vadd.f32 %v295, %v790
      %v792 = vpop.f32.mrb[0].mxu0
      %793 = vmatprep.mubr.bf16.mxu0 %v482
      %794 = vmatmul.mubr.bf16.gmra.mrb[0].mxu0 %v481
      %v795 = vpop.f32.mrb[0].mxu0
      %v796 = vadd.f32 %v295, %v795
      %v797 = vpop.f32.mrb[0].mxu0
      %v798 = vpop.f32.mrb[0].mxu0
      %v799 = vadd.f32 %v295, %v798
      %v800 = vpop.f32.mrb[0].mxu0
      %801 = vmatprep.mubr.bf16.mxu0 %v485
      %802 = vmatmul.mubr.bf16.gmra.mrb[0].mxu0 %v484
      %v803 = vpop.f32.mrb[0].mxu0
      %v804 = vadd.f32 %v295, %v803
      %v805 = vpop.f32.mrb[0].mxu0
      %v806 = vpop.f32.mrb[0].mxu0
      %v807 = vadd.f32 %v295, %v806
      %v808 = vpop.f32.mrb[0].mxu0
      %809 = vmatprep.mubr.bf16.mxu0 %v488
      %810 = vmatmul.mubr.bf16.gmra.mrb[0].mxu0 %v487
      %v811 = vpop.f32.mrb[0].mxu0
      %v812 = vadd.f32 %v295, %v811
      %v813 = vpop.f32.mrb[0].mxu0
      %v814 = vpop.f32.mrb[0].mxu0
      %v815 = vadd.f32 %v295, %v814
      %v816 = vpop.f32.mrb[0].mxu0
      %817 = vmatprep.mubr.bf16.mxu0 %v491
      %818 = vmatmul.mubr.bf16.gmra.mrb[0].mxu0 %v490
      %v819 = vpop.f32.mrb[0].mxu0
      %v820 = vadd.f32 %v295, %v819
      %v821 = vpop.f32.mrb[0].mxu0
      %v822 = vpop.f32.mrb[0].mxu0
      %v823 = vadd.f32 %v295, %v822
      %v824 = vpop.f32.mrb[0].mxu0
      %825 = vmatprep.mubr.bf16.mxu0 %v494
      %826 = vmatmul.mubr.bf16.gmra.mrb[0].mxu0 %v493
      %v827 = vpop.f32.mrb[0].mxu0
      %v828 = vadd.f32 %v295, %v827
      %v829 = vpop.f32.mrb[0].mxu0
      %v830 = vpop.f32.mrb[0].mxu0
      %v831 = vadd.f32 %v295, %v830
      %v832 = vpop.f32.mrb[0].mxu0
      %833 = vmatprep.mubr.bf16.mxu0 %v497
      %834 = vmatmul.mubr.bf16.gmra.mrb[0].mxu0 %v496
      %v835 = vpop.f32.mrb[0].mxu0
      %v836 = vadd.f32 %v295, %v835
      %v837 = vpop.f32.mrb[0].mxu0
      %v838 = vpop.f32.mrb[0].mxu0
      %v839 = vadd.f32 %v295, %v838
      %v840 = vpop.f32.mrb[0].mxu0
      %841 = vmatprep.mubr.bf16.mxu0 %v500
      %842 = vmatmul.mubr.bf16.gmra.mrb[0].mxu0 %v499
      %v843 = vpop.f32.mrb[0].mxu0
      %v844 = vadd.f32 %v295, %v843
      %v845 = vpop.f32.mrb[0].mxu0
      %v846 = vpop.f32.mrb[0].mxu0
      %v847 = vadd.f32 %v295, %v846
      %v848 = vpop.f32.mrb[0].mxu0
      %849 = vmatprep.mubr.bf16.mxu0 %v503
      %850 = vmatmul.mubr.bf16.gmra.mrb[0].mxu0 %v502
      %v851 = vpop.f32.mrb[0].mxu0
      %v852 = vadd.f32 %v295, %v851
      %v853 = vpop.f32.mrb[0].mxu0
      %v854 = vpop.f32.mrb[0].mxu0
      %v855 = vadd.f32 %v295, %v854
      %v856 = vpop.f32.mrb[0].mxu0
      %857 = vdwg.mxu0
      %858 = vmatprep.subr.bf16.mxu0 0
      %859 = vmatpush1.bf16.msra.mxu0 %v665
      %860 = vmatprep.subr.bf16.mxu0 0
      %861 = vmatpush1.bf16.msra.mxu0 %v666
      %862 = vmatprep.subr.bf16.mxu0 0
      %863 = vmatpush1.bf16.msra.mxu0 %v667
      %864 = vmatprep.subr.bf16.mxu0 0
      %865 = vmatpush1.bf16.msra.mxu0 %v668
      %866 = vmatprep.subr.bf16.mxu0 0
      %867 = vmatpush1.bf16.msra.mxu0 %v669
      %868 = vmatprep.subr.bf16.mxu0 0
      %869 = vmatpush1.bf16.msra.mxu0 %v670
      %870 = vmatprep.subr.bf16.mxu0 0
      %871 = vmatpush1.bf16.msra.mxu0 %v671
      %872 = vmatprep.subr.bf16.mxu0 0
      %873 = vmatpush1.bf16.msra.mxu0 %v672
      %874 = vmatprep.subr.bf16.mxu0 0
      %875 = vmatpush1.bf16.msra.mxu0 0
      %876 = vmatprep.subr.bf16.mxu0 0
      %877 = vmatpush1.bf16.msra.mxu0 0
      %878 = vmatprep.subr.bf16.mxu0 0
      %879 = vmatpush1.bf16.msra.mxu0 0
      %880 = vmatprep.subr.bf16.mxu0 0
      %881 = vmatpush1.bf16.msra.mxu0 0
      %882 = vmatprep.subr.bf16.mxu0 0
      %883 = vmatpush1.bf16.msra.mxu0 0
      %884 = vmatprep.subr.bf16.mxu0 0
      %885 = vmatpush1.bf16.msra.mxu0 0
      %886 = vmatprep.subr.bf16.mxu0 0
      %887 = vmatpush1.bf16.msra.mxu0 0
      %888 = vmatprep.subr.bf16.mxu0 0
      %889 = vmatpush1.bf16.msra.mxu0 0
      %890 = vmatprep.mubr.bf16.mxu0 0
      %891 = vmatmul.mubr.bf16.gmra.mrb[0].mxu0 %v459
      %v892 = vpop.f32.mrb[0].mxu0
      %v893 = vadd.f32 %v732, %v892
      %v894 = vpop.f32.mrb[0].mxu0
      %v895 = vpop.f32.mrb[0].mxu0
      %v896 = vadd.f32 %v735, %v895
      %v897 = vpop.f32.mrb[0].mxu0
      %898 = vmatprep.mubr.bf16.mxu0 0
      %899 = vmatmul.mubr.bf16.gmra.mrb[0].mxu0 %v462
      %v900 = vpop.f32.mrb[0].mxu0
      %v901 = vadd.f32 %v740, %v900
      %v902 = vpop.f32.mrb[0].mxu0
      %v903 = vpop.f32.mrb[0].mxu0
      %v904 = vadd.f32 %v743, %v903
      %v905 = vpop.f32.mrb[0].mxu0
      %906 = vmatprep.mubr.bf16.mxu0 0
      %907 = vmatmul.mubr.bf16.gmra.mrb[0].mxu0 %v465
      %v908 = vpop.f32.mrb[0].mxu0
      %v909 = vadd.f32 %v748, %v908
      %v910 = vpop.f32.mrb[0].mxu0
      %v911 = vpop.f32.mrb[0].mxu0
      %v912 = vadd.f32 %v751, %v911
      %v913 = vpop.f32.mrb[0].mxu0
      %914 = vmatprep.mubr.bf16.mxu0 0
      %915 = vmatmul.mubr.bf16.gmra.mrb[0].mxu0 %v468
      %v916 = vpop.f32.mrb[0].mxu0
      %v917 = vadd.f32 %v756, %v916
      %v918 = vpop.f32.mrb[0].mxu0
      %v919 = vpop.f32.mrb[0].mxu0
      %v920 = vadd.f32 %v759, %v919
      %v921 = vpop.f32.mrb[0].mxu0
      %922 = vmatprep.mubr.bf16.mxu0 0
      %923 = vmatmul.mubr.bf16.gmra.mrb[0].mxu0 %v471
      %v924 = vpop.f32.mrb[0].mxu0
      %v925 = vadd.f32 %v764, %v924
      %v926 = vpop.f32.mrb[0].mxu0
      %v927 = vpop.f32.mrb[0].mxu0
      %v928 = vadd.f32 %v767, %v927
      %v929 = vpop.f32.mrb[0].mxu0
      %930 = vmatprep.mubr.bf16.mxu0 0
      %931 = vmatmul.mubr.bf16.gmra.mrb[0].mxu0 %v474
      %v932 = vpop.f32.mrb[0].mxu0
      %v933 = vadd.f32 %v772, %v932
      %v934 = vpop.f32.mrb[0].mxu0
      %v935 = vpop.f32.mrb[0].mxu0
      %v936 = vadd.f32 %v775, %v935
      %v937 = vpop.f32.mrb[0].mxu0
      %938 = vmatprep.mubr.bf16.mxu0 0
      %939 = vmatmul.mubr.bf16.gmra.mrb[0].mxu0 %v477
      %v940 = vpop.f32.mrb[0].mxu0
      %v941 = vadd.f32 %v780, %v940
      %v942 = vpop.f32.mrb[0].mxu0
      %v943 = vpop.f32.mrb[0].mxu0
      %v944 = vadd.f32 %v783, %v943
      %v945 = vpop.f32.mrb[0].mxu0
      %946 = vmatprep.mubr.bf16.mxu0 0
      %947 = vmatmul.mubr.bf16.gmra.mrb[0].mxu0 %v480
      %v948 = vpop.f32.mrb[0].mxu0
      %v949 = vadd.f32 %v788, %v948
      %v950 = vpop.f32.mrb[0].mxu0
      %v951 = vpop.f32.mrb[0].mxu0
      %v952 = vadd.f32 %v791, %v951
      %v953 = vpop.f32.mrb[0].mxu0
      %954 = vmatprep.mubr.bf16.mxu0 0
      %955 = vmatmul.mubr.bf16.gmra.mrb[0].mxu0 %v483
      %v956 = vpop.f32.mrb[0].mxu0
      %v957 = vadd.f32 %v796, %v956
      %v958 = vpop.f32.mrb[0].mxu0
      %v959 = vpop.f32.mrb[0].mxu0
      %v960 = vadd.f32 %v799, %v959
      %v961 = vpop.f32.mrb[0].mxu0
      %962 = vmatprep.mubr.bf16.mxu0 0
      %963 = vmatmul.mubr.bf16.gmra.mrb[0].mxu0 %v486
      %v964 = vpop.f32.mrb[0].mxu0
      %v965 = vadd.f32 %v804, %v964
      %v966 = vpop.f32.mrb[0].mxu0
      %v967 = vpop.f32.mrb[0].mxu0
      %v968 = vadd.f32 %v807, %v967
      %v969 = vpop.f32.mrb[0].mxu0
      %970 = vmatprep.mubr.bf16.mxu0 0
      %971 = vmatmul.mubr.bf16.gmra.mrb[0].mxu0 %v489
      %v972 = vpop.f32.mrb[0].mxu0
      %v973 = vadd.f32 %v812, %v972
      %v974 = vpop.f32.mrb[0].mxu0
      %v975 = vpop.f32.mrb[0].mxu0
      %v976 = vadd.f32 %v815, %v975
      %v977 = vpop.f32.mrb[0].mxu0
      %978 = vmatprep.mubr.bf16.mxu0 0
      %979 = vmatmul.mubr.bf16.gmra.mrb[0].mxu0 %v492
      %v980 = vpop.f32.mrb[0].mxu0
      %v981 = vadd.f32 %v820, %v980
      %v982 = vpop.f32.mrb[0].mxu0
      %v983 = vpop.f32.mrb[0].mxu0
      %v984 = vadd.f32 %v823, %v983
      %v985 = vpop.f32.mrb[0].mxu0
      %986 = vmatprep.mubr.bf16.mxu0 0
      %987 = vmatmul.mubr.bf16.gmra.mrb[0].mxu0 %v495
      %v988 = vpop.f32.mrb[0].mxu0
      %v989 = vadd.f32 %v828, %v988
      %v990 = vpop.f32.mrb[0].mxu0
      %v991 = vpop.f32.mrb[0].mxu0
      %v992 = vadd.f32 %v831, %v991
      %v993 = vpop.f32.mrb[0].mxu0
      %994 = vmatprep.mubr.bf16.mxu0 0
      %995 = vmatmul.mubr.bf16.gmra.mrb[0].mxu0 %v498
      %v996 = vpop.f32.mrb[0].mxu0
      %v997 = vadd.f32 %v836, %v996
      %v998 = vpop.f32.mrb[0].mxu0
      %v999 = vpop.f32.mrb[0].mxu0
      %v1000 = vadd.f32 %v839, %v999
      %v1001 = vpop.f32.mrb[0].mxu0
      %1002 = vmatprep.mubr.bf16.mxu0 0
      %1003 = vmatmul.mubr.bf16.gmra.mrb[0].mxu0 %v501
      %v1004 = vpop.f32.mrb[0].mxu0
      %v1005 = vadd.f32 %v844, %v1004
      %v1006 = vpop.f32.mrb[0].mxu0
      %v1007 = vpop.f32.mrb[0].mxu0
      %v1008 = vadd.f32 %v847, %v1007
      %v1009 = vpop.f32.mrb[0].mxu0
      %1010 = vmatprep.mubr.bf16.mxu0 0
      %1011 = vmatmul.mubr.bf16.gmra.mrb[0].mxu0 %v504
      %v1012 = vpop.f32.mrb[0].mxu0
      %v1013 = vadd.f32 %v852, %v1012
      %v1014 = vpop.f32.mrb[0].mxu0
      %v1015 = vpop.f32.mrb[0].mxu0
      %v1016 = vadd.f32 %v855, %v1015
      %v1017 = vpop.f32.mrb[0].mxu0
      %1018 = vdwg.mxu0
      %1019 = vst [vmem:[%s175] sm:$0xff] %v893
      %1020 = vst [vmem:[%s175 + $0x8] sm:$0xff] %v896
      %1021 = vst [vmem:[%s175 + $0x10] sm:$0xff] %v901
      %1022 = vst [vmem:[%s175 + $0x18] sm:$0xff] %v904
      %1023 = vst [vmem:[%s175 + $0x20] sm:$0xff] %v909
      %1024 = vst [vmem:[%s175 + $0x28] sm:$0xff] %v912
      %1025 = vst [vmem:[%s175 + $0x30] sm:$0xff] %v917
      %1026 = vst [vmem:[%s175 + $0x38] sm:$0xff] %v920
      %1027 = vst [vmem:[%s175 + $0x40] sm:$0xff] %v925
      %1028 = vst [vmem:[%s175 + $0x48] sm:$0xff] %v928
      %1029 = vst [vmem:[%s175 + $0x50] sm:$0xff] %v933
      %1030 = vst [vmem:[%s175 + $0x58] sm:$0xff] %v936
      %1031 = vst [vmem:[%s175 + $0x60] sm:$0xff] %v941
      %1032 = vst [vmem:[%s175 + $0x68] sm:$0xff] %v944
      %1033 = vst [vmem:[%s175 + $0x70] sm:$0xff] %v949
      %1034 = vst [vmem:[%s175 + $0x78] sm:$0xff] %v952
      %1035 = vst [vmem:[%s175 + $0x80] sm:$0xff] %v957
      %1036 = vst [vmem:[%s175 + $0x88] sm:$0xff] %v960
      %1037 = vst [vmem:[%s175 + $0x90] sm:$0xff] %v965
      %1038 = vst [vmem:[%s175 + $0x98] sm:$0xff] %v968
      %1039 = vst [vmem:[%s175 + $0xa0] sm:$0xff] %v973
      %1040 = vst [vmem:[%s175 + $0xa8] sm:$0xff] %v976
      %1041 = vst [vmem:[%s175 + $0xb0] sm:$0xff] %v981
      %1042 = vst [vmem:[%s175 + $0xb8] sm:$0xff] %v984
      %1043 = vst [vmem:[%s175 + $0xc0] sm:$0xff] %v989
      %1044 = vst [vmem:[%s175 + $0xc8] sm:$0xff] %v992
      %1045 = vst [vmem:[%s175 + $0xd0] sm:$0xff] %v997
      %1046 = vst [vmem:[%s175 + $0xd8] sm:$0xff] %v1000
      %1047 = vst [vmem:[%s175 + $0xe0] sm:$0xff] %v1005
      %1048 = vst [vmem:[%s175 + $0xe8] sm:$0xff] %v1008
      %1049 = vst [vmem:[%s175 + $0xf0] sm:$0xff] %v1013
      %1050 = vst [vmem:[%s175 + $0xf8] sm:$0xff] %v1016
      %s1051 = smul.u32 32, %s14
      %p1052 = scmp.lt.s32.totalorder %s1051, 223
      %s1053 = scalar_select %p1052, %s1051, 223
      %s1054 = smul.addr %s1053, 8
      %s1055 = scalar_lea.vmem %s3, %s1054
      // Predicated region
      $region33: #{vae_forward.17} parent=31 // pred_check
        %p1056 = pneg %p100
      $region34: #{vae_forward.17} parent=31 // pred_check_branch
        %1058 = sbr.rel (%p1056) target = $region36
      $region35: #{vae_forward.17} parent=31 // pred_region
        %s1059 = smul.u32 32, %s14
      $region36: #{vae_forward.17} parent=31 // pred_fallthru
        _
    $region32: #{vae_forward.17} parent=5 // pred_fallthru
      _
    %p1060 = scmp.le.s32.totalorder 2, %s9
    // Predicated region
    $region37: #{vae_forward.17} parent=5 // pred_check
      %p1061 = pneg %p1060
    $region38: #{vae_forward.17} parent=5 // pred_check_branch
      %1063 = sbr.rel (%p1061) target = $region40
    $region39: #{vae_forward.17} parent=5 // pred_region
      %s1064 = ssub.s32 %s9, 2
      // Predicated region
      $region41: #{vae_forward.17} parent=39 // pred_check
        %p1065 = pneg %p106
      $region42: #{vae_forward.17} parent=39 // pred_check_branch
        %1067 = sbr.rel (%p1065) target = $region44
      $region43: #{vae_forward.17} parent=39 // pred_region
        %s1068 = smul.u32 32, %s15
        %p1069 = scmp.lt.s32.totalorder %s1068, 223
        %s1070 = scalar_select %p1069, %s1068, 223
        %s1071 = smul.addr %s1070, 8
        %s1072 = scalar_lea.vmem %s3, %s1071
      $region44: #{vae_forward.17} parent=39 // pred_fallthru
        _
    $region40: #{vae_forward.17} parent=5 // pred_fallthru
      _
  $region6: #{vae_forward.17} parent=0 // loop_footer
    %s13 = sadd.s32 1, %s9
  $region7: #{vae_forward.17} parent=0 // loop_footer_branch
    %8 = sbr.rel target = $region3
  $region8: #{vae_forward.17} parent=0 // loop_exit
    _

</llo_original>
